<compile_context>
chip_gen: v7x
topology: tpu7x:2x2x1
jax: 0.10.0
libtpu: 0.0.40
codegen_flags: <defaults>
</compile_context>

<pallas_src>
import functools

import jax
import jax.numpy as jnp
from jax.experimental import pallas as pl
from jax.experimental.pallas import tpu as pltpu

_LANE = 128          # lane-dense output channel padding
_TILE_M = 512        # safe for v5e/v6e (128 MiB VMEM) and v7x (64 MiB VMEM) at these K/N
_VMEM_LIMIT = 64 * 1024 * 1024


def _round_up(x, m):
    return ((x + m - 1) // m) * m


# ---------------------------------------------------------------------------
# Pallas kernels
# ---------------------------------------------------------------------------
def _mm_kernel(x_ref, w_ref, b_ref, o_ref, *, leaky_slope):
    acc = jnp.dot(x_ref[...], w_ref[...], preferred_element_type=jnp.float32)
    acc = acc + b_ref[...]
    if leaky_slope is not None:
        acc = jnp.where(acc >= 0, acc, leaky_slope * acc)
    o_ref[...] = acc


def _mm_res_kernel(x_ref, w_ref, b_ref, r_ref, o_ref, *, leaky_slope):
    acc = jnp.dot(x_ref[...], w_ref[...], preferred_element_type=jnp.float32)
    acc = acc + b_ref[...]
    if leaky_slope is not None:
        acc = jnp.where(acc >= 0, acc, leaky_slope * acc)
    o_ref[...] = acc + r_ref[...]


def _lerp_kernel(a_ref, b_ref, c_ref, d_ref, wx_ref, wy_ref, o_ref):
    a = a_ref[...]
    b = b_ref[...]
    c = c_ref[...]
    d = d_ref[...]
    wx = wx_ref[...]
    wy = wy_ref[...]
    top = a + wx * (b - a)           # 3 FMAs total instead of 8 mul/add
    bot = c + wx * (d - c)
    o_ref[...] = top + wy * (bot - top)


# ---------------------------------------------------------------------------
# Fused matmul wrapper: tiled over M, bf16 MXU inputs, f32 accumulate,
# lane-dense (128-padded) output stores, "parallel" grid axis (v7x megacore).
# ---------------------------------------------------------------------------
def fused_matmul(x, w, b, *, leaky_slope=None, residual=None, tile_m=_TILE_M):
    """out = [leakyrelu](x @ w + b) [+ residual]  — one tiled Pallas kernel."""
    M, K = x.shape
    K2, Nc = w.shape
    assert K == K2
    Np = _round_up(Nc, _LANE)        # lane-dense output
    M16 = _round_up(M, 16)           # bf16 sublane packing friendly
    tm = min(tile_m, M16)
    Mp = _round_up(M16, tm)
    grid_m = Mp // tm

    xb = jnp.pad(x.astype(jnp.bfloat16), ((0, Mp - M), (0, 0)))
    wb = jnp.pad(w.astype(jnp.bfloat16), ((0, 0), (0, Np - Nc)))
    bb = jnp.pad(b.reshape(1, Nc).astype(jnp.float32), ((0, 0), (0, Np - Nc)))

    ins = [xb, wb, bb]
    in_specs = [
        pl.BlockSpec((tm, K), lambda i: (i, 0)),    # streamed patch rows
        pl.BlockSpec((K, Np), lambda i: (0, 0)),    # weights stay VMEM-resident
        pl.BlockSpec((1, Np), lambda i: (0, 0)),    # bias stays VMEM-resident
    ]
    if residual is None:
        kernel = functools.partial(_mm_kernel, leaky_slope=leaky_slope)
    else:
        kernel = functools.partial(_mm_res_kernel, leaky_slope=leaky_slope)
        rb = jnp.pad(residual.astype(jnp.float32), ((0, Mp - M), (0, Np - Nc)))
        ins.append(rb)
        in_specs.append(pl.BlockSpec((tm, Np), lambda i: (i, 0)))

    out = pl.pallas_call(
        kernel,
        grid=(grid_m,),
        in_specs=in_specs,
        out_specs=pl.BlockSpec((tm, Np), lambda i: (i, 0)),
        out_shape=jax.ShapeDtypeStruct((Mp, Np), jnp.float32),
        compiler_params=pltpu.CompilerParams(
            dimension_semantics=("parallel",),
            vmem_limit_bytes=_VMEM_LIMIT),
    )(*ins)
    return out[:M, :Nc]


# ---------------------------------------------------------------------------
# Conv / deconv / interpolation built on the kernel (im2col glue in plain JAX)
# ---------------------------------------------------------------------------
def _im2col(x, ksize, stride, pad_lo, pad_hi):
    # TODO(synk): the 9-tap patch extraction + edge pad still materialize in XLA;
    # an in-kernel tap-reduction grid axis would cut input HBM traffic further.
    N, H, W, C = x.shape
    xp = jnp.pad(x, ((0, 0), (pad_lo, pad_hi), (pad_lo, pad_hi), (0, 0)))
    Hp, Wp = H + pad_lo + pad_hi, W + pad_lo + pad_hi
    Ho = (Hp - ksize) // stride + 1
    Wo = (Wp - ksize) // stride + 1
    cols = []
    for i in range(ksize):
        for j in range(ksize):
            cols.append(xp[:, i:i + stride * Ho:stride, j:j + stride * Wo:stride, :])
    patches = jnp.concatenate(cols, axis=-1)            # (N, Ho, Wo, k*k*C)
    return patches.reshape(N * Ho * Wo, ksize * ksize * C), Ho, Wo


def conv2d(x, w, b, *, stride, pad, leaky_slope=None, residual=None):
    # x: (N,H,W,Cin)  w: (k,k,Cin,Cout)
    N = x.shape[0]
    k, _, Cin, Cout = w.shape
    patches, Ho, Wo = _im2col(x, k, stride, pad, pad)
    res = residual.reshape(N * Ho * Wo, Cout) if residual is not None else None
    out = fused_matmul(patches, w.reshape(k * k * Cin, Cout), b,
                       leaky_slope=leaky_slope, residual=res)
    return out.reshape(N, Ho, Wo, Cout)


def conv_transpose2d(x, w, b, *, leaky_slope=None):
    # ConvTranspose2d(k=3, stride=2, padding=1, output_padding=1) via 4-phase
    # (sub-pixel) decomposition: no zero-stuffed dilated tensor, ~4x fewer MACs.
    # `w` is kept in the equivalent direct-conv layout (k, k, Cin, Cout).
    N, H, W, Cin = x.shape
    Cout = w.shape[-1]
    xp = jnp.pad(x, ((0, 0), (0, 1), (0, 1), (0, 0)))    # one trailing zero row/col
    x00 = xp[:, :H, :W, :]
    x01 = xp[:, :H, 1:W + 1, :]
    x10 = xp[:, 1:H + 1, :W, :]
    x11 = xp[:, 1:H + 1, 1:W + 1, :]
    M = N * H * W
    f = lambda t: t.reshape(M, Cin)

    def phase(xs, ws):
        xin = jnp.concatenate([f(t) for t in xs], axis=-1)
        win = jnp.concatenate(ws, axis=0)                # (n_taps*Cin, Cout)
        return fused_matmul(xin, win, b,
                            leaky_slope=leaky_slope).reshape(N, H, W, Cout)

    p00 = phase([x00], [w[1, 1]])
    p01 = phase([x00, x01], [w[1, 0], w[1, 2]])
    p10 = phase([x00, x10], [w[0, 1], w[2, 1]])
    p11 = phase([x00, x01, x10, x11], [w[0, 0], w[0, 2], w[2, 0], w[2, 2]])

    row0 = jnp.stack([p00, p01], axis=3)                 # (N,H,W,2,Cout)
    row1 = jnp.stack([p10, p11], axis=3)
    out = jnp.stack([row0, row1], axis=2)                # (N,H,2,W,2,Cout)
    return out.reshape(N, 2 * H, 2 * W, Cout)


def _src_index(out_size, in_size):
    scale = in_size / out_size
    dst = jnp.arange(out_size, dtype=jnp.float32)
    src = jnp.maximum((dst + 0.5) * scale - 0.5, 0.0)
    i0 = jnp.floor(src).astype(jnp.int32)
    i1 = jnp.minimum(i0 + 1, in_size - 1)
    w1 = src - i0.astype(jnp.float32)
    return i0, i1, 1.0 - w1, w1


def bilinear_resize(x, out_h, out_w, *, tile_m=_TILE_M):
    # matches F.interpolate(mode='bilinear', align_corners=False)
    # TODO(synk): 4-corner gathers are still XLA gathers; in-kernel gather via
    # scalar-prefetched index tables would make this a single streaming pass.
    N, H, W, C = x.shape
    y0, y1, _, wy1 = _src_index(out_h, H)
    x0, x1, _, wx1 = _src_index(out_w, W)
    a = x[:, y0][:, :, x0]
    b = x[:, y0][:, :, x1]
    c = x[:, y1][:, :, x0]
    d = x[:, y1][:, :, x1]
    M = N * out_h * out_w
    wx = jnp.broadcast_to(wx1[None, None, :], (N, out_h, out_w)).reshape(M, 1)
    wy = jnp.broadcast_to(wy1[None, :, None], (N, out_h, out_w)).reshape(M, 1)

    M8 = _round_up(M, 8)
    tm = min(tile_m, M8)
    Mp = _round_up(M8, tm)
    grid_m = Mp // tm

    def padM(t):
        return jnp.pad(t.astype(jnp.float32), ((0, Mp - M), (0, 0)))

    ins = [padM(a.reshape(M, C)), padM(b.reshape(M, C)),
           padM(c.reshape(M, C)), padM(d.reshape(M, C)), padM(wx), padM(wy)]
    in_specs = ([pl.BlockSpec((tm, C), lambda i: (i, 0))] * 4
                + [pl.BlockSpec((tm, 1), lambda i: (i, 0))] * 2)
    out = pl.pallas_call(
        _lerp_kernel,
        grid=(grid_m,),
        in_specs=in_specs,
        out_specs=pl.BlockSpec((tm, C), lambda i: (i, 0)),
        out_shape=jax.ShapeDtypeStruct((Mp, C), jnp.float32),
        compiler_params=pltpu.CompilerParams(
            dimension_semantics=("parallel",),
            vmem_limit_bytes=_VMEM_LIMIT),
    )(*ins)
    return out[:M].reshape(N, out_h, out_w, C)


# ---------------------------------------------------------------------------
# Parameters & forward
# ---------------------------------------------------------------------------
def _init(key, shape, fan_in):
    return jax.random.normal(key, shape, jnp.float32) / jnp.sqrt(float(fan_in))


def init_stargan_params(key, in_channel, out_channel, domain_sizes, out_dim_per_domain,
                        down_list, up_list, final_list, d_emb=256):
    dom_c = out_dim_per_domain * len(domain_sizes)
    keys = iter(jax.random.split(key, 256))
    params = {}

    enc, cin = [], in_channel
    for cout in down_list:
        enc.append({"w": _init(next(keys), (3, 3, cin + dom_c, cout), 9 * (cin + dom_c)),
                    "b": jnp.zeros((cout,), jnp.float32)})
        cin = cout
    params["encoder"] = enc

    # channels of residuals[j] = (input of encoder layer j) incl. domain channels
    res_ch = [(in_channel if j == 0 else down_list[j - 1]) + dom_c
              for j in range(len(down_list))]
    dec = []
    for i, cout in enumerate(up_list):
        cin_i = (down_list[-1] + dom_c) if i == 0 else up_list[i - 1] + res_ch[len(down_list) - i]
        dec.append({"w": _init(next(keys), (3, 3, cin_i, cout), 9 * cin_i),
                    "b": jnp.zeros((cout,), jnp.float32)})
    params["decoder"] = dec

    blocks = []
    for _ in range(len(down_list) + 1):
        doms = []
        for ds in domain_sizes:
            doms.append({"emb": _init(next(keys), (ds, d_emb), 1.0),
                         "lin_w": _init(next(keys), (d_emb, out_dim_per_domain), d_emb),
                         "lin_b": jnp.zeros((out_dim_per_domain,), jnp.float32)})
        blocks.append({"domains": doms})
    params["domain_blocks"] = blocks

    fin = []
    for a, b_ in zip(final_list[:-1], final_list[1:]):
        # NOTE: residual use is derived from static weight shapes at trace time
        # (no python bool stored in the pytree -> no TracerBoolConversionError).
        fin.append({"w": _init(next(keys), (3, 3, a, b_), 9 * a),
                    "b": jnp.zeros((b_,), jnp.float32)})
    params["final"] = fin
    return params


def domain_embedding(block, domains, h, w):
    # All per-domain 256->out_dim linears fused into ONE block-diagonal matmul.
    doms = block["domains"]
    n_dom = len(doms)
    d_emb = doms[0]["emb"].shape[1]
    odpd = doms[0]["lin_w"].shape[1]
    embs = [jnp.take(p["emb"], domains[:, d], axis=0) for d, p in enumerate(doms)]
    e_cat = jnp.concatenate(embs, axis=-1)                        # (N, n_dom*d_emb)
    wbd = jnp.zeros((n_dom * d_emb, n_dom * odpd), jnp.float32)
    for d, p in enumerate(doms):
        wbd = wbd.at[d * d_emb:(d + 1) * d_emb, d * odpd:(d + 1) * odpd].set(p["lin_w"])
    bcat = jnp.concatenate([p["lin_b"] for p in doms], axis=0)
    vec = fused_matmul(e_cat, wbd, bcat)                          # (N, dom_c)
    n, c = vec.shape
    return jnp.broadcast_to(vec[:, None, None, :], (n, h, w, c))


def stargan_generator_forward(params, x_nchw, domains, *, slope=0.2):
    x = jnp.transpose(x_nchw, (0, 2, 3, 1)).astype(jnp.float32)   # NCHW -> NHWC
    N, H, W, _ = x.shape
    out = x
    residuals = []
    for j, layer in enumerate(params["encoder"]):
        h, w = out.shape[1], out.shape[2]
        demb = domain_embedding(params["domain_blocks"][j], domains, h, w)
        out = jnp.concatenate([out, demb], axis=-1)
        residuals.append(out)   # skip = layer input (see assumptions at top)
        out = conv2d(out, layer["w"], layer["b"], stride=2, pad=1, leaky_slope=slope)
    for i, layer in enumerate(params["decoder"]):
        h, w = out.shape[1], out.shape[2]
        if i == 0:
            addition = domain_embedding(params["domain_blocks"][-1], domains, h, w)
        else:
            addition = residuals[-i]
        out = jnp.concatenate([out, addition], axis=-1)
        out = conv_transpose2d(out, layer["w"], layer["b"], leaky_slope=slope)
    out = jnp.concatenate([out, residuals[0]], axis=-1)
    out = bilinear_resize(out, H, W)
    for blk in params["final"]:
        use_res = blk["w"].shape[2] == blk["w"].shape[3]          # static shape check
        res = out if use_res else None
        out = conv2d(out, blk["w"], blk["b"], stride=1, pad=1,
                     leaky_slope=slope, residual=res)
    return jnp.transpose(out, (0, 3, 1, 2))                       # NHWC -> NCHW


# ---------------------------------------------------------------------------
if __name__ == "__main__":
    key = jax.random.PRNGKey(0)
    k_par, k_x, k_d = jax.random.split(key, 3)

    in_channel, out_channel = 3, 3
    domain_sizes = [4, 3]
    out_dim_per_domain = 2
    down_hidden = [8, 16]
    up_hidden = [16, 8]
    # final block input channels = up_hidden[-1] + (in_channel + dom_c) = 8 + 7 = 15
    final_hidden = [15, 15, out_channel]

    params = init_stargan_params(k_par, in_channel, out_channel, domain_sizes,
                                 out_dim_per_domain, down_hidden, up_hidden, final_hidden)

    N, H, W = 2, 16, 16
    x = jax.random.normal(k_x, (N, in_channel, H, W), jnp.float32)          # NCHW input
    domains = jnp.stack(
        [jax.random.randint(k_d, (N,), 0, domain_sizes[0]),
         jax.random.randint(jax.random.fold_in(k_d, 1), (N,), 0, domain_sizes[1])],
        axis=-1).astype(jnp.int32)                                          # (N, n_domains)

    out = jax.jit(stargan_generator_forward)(params, x, domains)
    out = jax.block_until_ready(out)
    assert out.shape == (N, out_channel, H, W), out.shape
    assert bool(jnp.all(jnp.isfinite(out)))
    print("KERNEL_OK")
</pallas_src>

<mosaic_0001>
module attributes {stable_mosaic.version = 11 : i64} {
  func.func @_mm_kernel(%arg0: i32, %arg1: memref<16x512xbf16, #tpu.memory_space<vmem>>, %arg2: memref<512x128xbf16, #tpu.memory_space<vmem>>, %arg3: memref<1x128xf32, #tpu.memory_space<vmem>>, %arg4: memref<16x128xf32, #tpu.memory_space<vmem>>) attributes {dimension_semantics = [#tpu.dimension_semantics<parallel>], iteration_bounds = array<i64: 1>, scalar_prefetch = 0 : i64, scratch_operands = 0 : i64, tpu.core_type = #tpu.core_type<tc>, window_params = [{transform_indices = @transform_0, window_bounds = array<i64: 16, 512>}, {pipeline_mode = #tpu.pipeline_mode<synchronous>, transform_indices = @transform_1, window_bounds = array<i64: 512, 128>}, {pipeline_mode = #tpu.pipeline_mode<synchronous>, transform_indices = @transform_2, window_bounds = array<i64: 1, 128>}, {transform_indices = @transform_3, window_bounds = array<i64: 16, 128>}]} {
    %c0 = arith.constant 0 : index
    %c0_0 = arith.constant 0 : index
    %0 = vector.load %arg1[%c0, %c0_0] : memref<16x512xbf16, #tpu.memory_space<vmem>>, vector<16x512xbf16>
    %c0_1 = arith.constant 0 : index
    %c0_2 = arith.constant 0 : index
    %1 = vector.load %arg2[%c0_1, %c0_2] : memref<512x128xbf16, #tpu.memory_space<vmem>>, vector<512x128xbf16>
    %cst = arith.constant dense<0.000000e+00> : vector<16x128xf32>
    %2 = tpu.matmul %0, %1, %cst {dimension_numbers = #tpu.dot_dimension_numbers<[1], [0], [0], [1], [0, 0, 1, 1], [], []>} : vector<16x512xbf16>, vector<512x128xbf16>, vector<16x128xf32> -> vector<16x128xf32>
    %c0_3 = arith.constant 0 : index
    %c0_4 = arith.constant 0 : index
    %3 = vector.load %arg3[%c0_3, %c0_4] : memref<1x128xf32, #tpu.memory_space<vmem>>, vector<1x128xf32>
    %4 = vector.broadcast %3 : vector<1x128xf32> to vector<16x128xf32>
    %5 = arith.addf %2, %4 : vector<16x128xf32>
    %c0_5 = arith.constant 0 : index
    %c0_6 = arith.constant 0 : index
    %6 = vector.load %arg4[%c0_5, %c0_6] : memref<16x128xf32, #tpu.memory_space<vmem>>, vector<16x128xf32>
    tpu.vector_store %arg4[%c0_5, %c0_6], %5 {strides = array<i32>} : memref<16x128xf32, #tpu.memory_space<vmem>>, vector<16x128xf32>,
    return
  }
  func.func @transform_0(%arg0: i32) -> (i32, i32) {
    %c0_i32 = arith.constant 0 : i32
    %c0_i32_0 = arith.constant 0 : i32
    return %arg0, %c0_i32 : i32, i32
  }
  func.func @transform_1(%arg0: i32) -> (i32, i32) {
    %c0_i32 = arith.constant 0 : i32
    %c0_i32_0 = arith.constant 0 : i32
    %c0_i32_1 = arith.constant 0 : i32
    return %c0_i32, %c0_i32_0 : i32, i32
  }
  func.func @transform_2(%arg0: i32) -> (i32, i32) {
    %c0_i32 = arith.constant 0 : i32
    %c0_i32_0 = arith.constant 0 : i32
    %c0_i32_1 = arith.constant 0 : i32
    return %c0_i32, %c0_i32_0 : i32, i32
  }
  func.func @transform_3(%arg0: i32) -> (i32, i32) {
    %c0_i32 = arith.constant 0 : i32
    %c0_i32_0 = arith.constant 0 : i32
    return %arg0, %c0_i32 : i32, i32
  }
}

module attributes {stable_mosaic.version = 11 : i64} {
  func.func @_mm_kernel(%arg0: i32, %arg1: memref<128x63xbf16, #tpu.memory_space<vmem>>, %arg2: memref<63x128xbf16, #tpu.memory_space<vmem>>, %arg3: memref<1x128xf32, #tpu.memory_space<vmem>>, %arg4: memref<128x128xf32, #tpu.memory_space<vmem>>) attributes {dimension_semantics = [#tpu.dimension_semantics<parallel>], iteration_bounds = array<i64: 1>, scalar_prefetch = 0 : i64, scratch_operands = 0 : i64, tpu.core_type = #tpu.core_type<tc>, window_params = [{transform_indices = @transform_0, window_bounds = array<i64: 128, 63>}, {pipeline_mode = #tpu.pipeline_mode<synchronous>, transform_indices = @transform_1, window_bounds = array<i64: 63, 128>}, {pipeline_mode = #tpu.pipeline_mode<synchronous>, transform_indices = @transform_2, window_bounds = array<i64: 1, 128>}, {transform_indices = @transform_3, window_bounds = array<i64: 128, 128>}]} {
    %c0 = arith.constant 0 : index
    %c0_0 = arith.constant 0 : index
    %0 = vector.load %arg1[%c0, %c0_0] : memref<128x63xbf16, #tpu.memory_space<vmem>>, vector<128x63xbf16>
    %c0_1 = arith.constant 0 : index
    %c0_2 = arith.constant 0 : index
    %1 = vector.load %arg2[%c0_1, %c0_2] : memref<63x128xbf16, #tpu.memory_space<vmem>>, vector<63x128xbf16>
    %cst = arith.constant dense<0.000000e+00> : vector<128x128xf32>
    %2 = tpu.matmul %0, %1, %cst {dimension_numbers = #tpu.dot_dimension_numbers<[1], [0], [0], [1], [0, 0, 1, 1], [], []>} : vector<128x63xbf16>, vector<63x128xbf16>, vector<128x128xf32> -> vector<128x128xf32>
    %c0_3 = arith.constant 0 : index
    %c0_4 = arith.constant 0 : index
    %3 = vector.load %arg3[%c0_3, %c0_4] : memref<1x128xf32, #tpu.memory_space<vmem>>, vector<1x128xf32>
    %4 = vector.broadcast %3 : vector<1x128xf32> to vector<128x128xf32>
    %5 = arith.addf %2, %4 : vector<128x128xf32>
    %cst_5 = arith.constant 0.000000e+00 : f32
    %6 = vector.broadcast %cst_5 : f32 to vector<128x128xf32>
    %7 = arith.cmpf oge, %5, %6 : vector<128x128xf32>
    %cst_6 = arith.constant 2.000000e-01 : f32
    %8 = vector.broadcast %cst_6 : f32 to vector<128x128xf32>
    %9 = arith.mulf %8, %5 : vector<128x128xf32>
    %10 = arith.select %7, %5, %9 : vector<128x128xi1>, vector<128x128xf32>
    %c0_7 = arith.constant 0 : index
    %c0_8 = arith.constant 0 : index
    %11 = vector.load %arg4[%c0_7, %c0_8] : memref<128x128xf32, #tpu.memory_space<vmem>>, vector<128x128xf32>
    tpu.vector_store %arg4[%c0_7, %c0_8], %10 {strides = array<i32>} : memref<128x128xf32, #tpu.memory_space<vmem>>, vector<128x128xf32>,
    return
  }
  func.func @transform_0(%arg0: i32) -> (i32, i32) {
    %c0_i32 = arith.constant 0 : i32
    %c0_i32_0 = arith.constant 0 : i32
    return %arg0, %c0_i32 : i32, i32
  }
  func.func @transform_1(%arg0: i32) -> (i32, i32) {
    %c0_i32 = arith.constant 0 : i32
    %c0_i32_0 = arith.constant 0 : i32
    %c0_i32_1 = arith.constant 0 : i32
    return %c0_i32, %c0_i32_0 : i32, i32
  }
  func.func @transform_2(%arg0: i32) -> (i32, i32) {
    %c0_i32 = arith.constant 0 : i32
    %c0_i32_0 = arith.constant 0 : i32
    %c0_i32_1 = arith.constant 0 : i32
    return %c0_i32, %c0_i32_0 : i32, i32
  }
  func.func @transform_3(%arg0: i32) -> (i32, i32) {
    %c0_i32 = arith.constant 0 : i32
    %c0_i32_0 = arith.constant 0 : i32
    return %arg0, %c0_i32 : i32, i32
  }
}

module attributes {stable_mosaic.version = 11 : i64} {
  func.func @_mm_kernel(%arg0: i32, %arg1: memref<32x108xbf16, #tpu.memory_space<vmem>>, %arg2: memref<108x128xbf16, #tpu.memory_space<vmem>>, %arg3: memref<1x128xf32, #tpu.memory_space<vmem>>, %arg4: memref<32x128xf32, #tpu.memory_space<vmem>>) attributes {dimension_semantics = [#tpu.dimension_semantics<parallel>], iteration_bounds = array<i64: 1>, scalar_prefetch = 0 : i64, scratch_operands = 0 : i64, tpu.core_type = #tpu.core_type<tc>, window_params = [{transform_indices = @transform_0, window_bounds = array<i64: 32, 108>}, {pipeline_mode = #tpu.pipeline_mode<synchronous>, transform_indices = @transform_1, window_bounds = array<i64: 108, 128>}, {pipeline_mode = #tpu.pipeline_mode<synchronous>, transform_indices = @transform_2, window_bounds = array<i64: 1, 128>}, {transform_indices = @transform_3, window_bounds = array<i64: 32, 128>}]} {
    %c0 = arith.constant 0 : index
    %c0_0 = arith.constant 0 : index
    %0 = vector.load %arg1[%c0, %c0_0] : memref<32x108xbf16, #tpu.memory_space<vmem>>, vector<32x108xbf16>
    %c0_1 = arith.constant 0 : index
    %c0_2 = arith.constant 0 : index
    %1 = vector.load %arg2[%c0_1, %c0_2] : memref<108x128xbf16, #tpu.memory_space<vmem>>, vector<108x128xbf16>
    %cst = arith.constant dense<0.000000e+00> : vector<32x128xf32>
    %2 = tpu.matmul %0, %1, %cst {dimension_numbers = #tpu.dot_dimension_numbers<[1], [0], [0], [1], [0, 0, 1, 1], [], []>} : vector<32x108xbf16>, vector<108x128xbf16>, vector<32x128xf32> -> vector<32x128xf32>
    %c0_3 = arith.constant 0 : index
    %c0_4 = arith.constant 0 : index
    %3 = vector.load %arg3[%c0_3, %c0_4] : memref<1x128xf32, #tpu.memory_space<vmem>>, vector<1x128xf32>
    %4 = vector.broadcast %3 : vector<1x128xf32> to vector<32x128xf32>
    %5 = arith.addf %2, %4 : vector<32x128xf32>
    %cst_5 = arith.constant 0.000000e+00 : f32
    %6 = vector.broadcast %cst_5 : f32 to vector<32x128xf32>
    %7 = arith.cmpf oge, %5, %6 : vector<32x128xf32>
    %cst_6 = arith.constant 2.000000e-01 : f32
    %8 = vector.broadcast %cst_6 : f32 to vector<32x128xf32>
    %9 = arith.mulf %8, %5 : vector<32x128xf32>
    %10 = arith.select %7, %5, %9 : vector<32x128xi1>, vector<32x128xf32>
    %c0_7 = arith.constant 0 : index
    %c0_8 = arith.constant 0 : index
    %11 = vector.load %arg4[%c0_7, %c0_8] : memref<32x128xf32, #tpu.memory_space<vmem>>, vector<32x128xf32>
    tpu.vector_store %arg4[%c0_7, %c0_8], %10 {strides = array<i32>} : memref<32x128xf32, #tpu.memory_space<vmem>>, vector<32x128xf32>,
    return
  }
  func.func @transform_0(%arg0: i32) -> (i32, i32) {
    %c0_i32 = arith.constant 0 : i32
    %c0_i32_0 = arith.constant 0 : i32
    return %arg0, %c0_i32 : i32, i32
  }
  func.func @transform_1(%arg0: i32) -> (i32, i32) {
    %c0_i32 = arith.constant 0 : i32
    %c0_i32_0 = arith.constant 0 : i32
    %c0_i32_1 = arith.constant 0 : i32
    return %c0_i32, %c0_i32_0 : i32, i32
  }
  func.func @transform_2(%arg0: i32) -> (i32, i32) {
    %c0_i32 = arith.constant 0 : i32
    %c0_i32_0 = arith.constant 0 : i32
    %c0_i32_1 = arith.constant 0 : i32
    return %c0_i32, %c0_i32_0 : i32, i32
  }
  func.func @transform_3(%arg0: i32) -> (i32, i32) {
    %c0_i32 = arith.constant 0 : i32
    %c0_i32_0 = arith.constant 0 : i32
    return %arg0, %c0_i32 : i32, i32
  }
}

module attributes {stable_mosaic.version = 11 : i64} {
  func.func @_mm_kernel(%arg0: i32, %arg1: memref<32x20xbf16, #tpu.memory_space<vmem>>, %arg2: memref<20x128xbf16, #tpu.memory_space<vmem>>, %arg3: memref<1x128xf32, #tpu.memory_space<vmem>>, %arg4: memref<32x128xf32, #tpu.memory_space<vmem>>) attributes {dimension_semantics = [#tpu.dimension_semantics<parallel>], iteration_bounds = array<i64: 1>, scalar_prefetch = 0 : i64, scratch_operands = 0 : i64, tpu.core_type = #tpu.core_type<tc>, window_params = [{transform_indices = @transform_0, window_bounds = array<i64: 32, 20>}, {pipeline_mode = #tpu.pipeline_mode<synchronous>, transform_indices = @transform_1, window_bounds = array<i64: 20, 128>}, {pipeline_mode = #tpu.pipeline_mode<synchronous>, transform_indices = @transform_2, window_bounds = array<i64: 1, 128>}, {transform_indices = @transform_3, window_bounds = array<i64: 32, 128>}]} {
    %c0 = arith.constant 0 : index
    %c0_0 = arith.constant 0 : index
    %0 = vector.load %arg1[%c0, %c0_0] : memref<32x20xbf16, #tpu.memory_space<vmem>>, vector<32x20xbf16>
    %c0_1 = arith.constant 0 : index
    %c0_2 = arith.constant 0 : index
    %1 = vector.load %arg2[%c0_1, %c0_2] : memref<20x128xbf16, #tpu.memory_space<vmem>>, vector<20x128xbf16>
    %cst = arith.constant dense<0.000000e+00> : vector<32x128xf32>
    %2 = tpu.matmul %0, %1, %cst {dimension_numbers = #tpu.dot_dimension_numbers<[1], [0], [0], [1], [0, 0, 1, 1], [], []>} : vector<32x20xbf16>, vector<20x128xbf16>, vector<32x128xf32> -> vector<32x128xf32>
    %c0_3 = arith.constant 0 : index
    %c0_4 = arith.constant 0 : index
    %3 = vector.load %arg3[%c0_3, %c0_4] : memref<1x128xf32, #tpu.memory_space<vmem>>, vector<1x128xf32>
    %4 = vector.broadcast %3 : vector<1x128xf32> to vector<32x128xf32>
    %5 = arith.addf %2, %4 : vector<32x128xf32>
    %cst_5 = arith.constant 0.000000e+00 : f32
    %6 = vector.broadcast %cst_5 : f32 to vector<32x128xf32>
    %7 = arith.cmpf oge, %5, %6 : vector<32x128xf32>
    %cst_6 = arith.constant 2.000000e-01 : f32
    %8 = vector.broadcast %cst_6 : f32 to vector<32x128xf32>
    %9 = arith.mulf %8, %5 : vector<32x128xf32>
    %10 = arith.select %7, %5, %9 : vector<32x128xi1>, vector<32x128xf32>
    %c0_7 = arith.constant 0 : index
    %c0_8 = arith.constant 0 : index
    %11 = vector.load %arg4[%c0_7, %c0_8] : memref<32x128xf32, #tpu.memory_space<vmem>>, vector<32x128xf32>
    tpu.vector_store %arg4[%c0_7, %c0_8], %10 {strides = array<i32>} : memref<32x128xf32, #tpu.memory_space<vmem>>, vector<32x128xf32>,
    return
  }
  func.func @transform_0(%arg0: i32) -> (i32, i32) {
    %c0_i32 = arith.constant 0 : i32
    %c0_i32_0 = arith.constant 0 : i32
    return %arg0, %c0_i32 : i32, i32
  }
  func.func @transform_1(%arg0: i32) -> (i32, i32) {
    %c0_i32 = arith.constant 0 : i32
    %c0_i32_0 = arith.constant 0 : i32
    %c0_i32_1 = arith.constant 0 : i32
    return %c0_i32, %c0_i32_0 : i32, i32
  }
  func.func @transform_2(%arg0: i32) -> (i32, i32) {
    %c0_i32 = arith.constant 0 : i32
    %c0_i32_0 = arith.constant 0 : i32
    %c0_i32_1 = arith.constant 0 : i32
    return %c0_i32, %c0_i32_0 : i32, i32
  }
  func.func @transform_3(%arg0: i32) -> (i32, i32) {
    %c0_i32 = arith.constant 0 : i32
    %c0_i32_0 = arith.constant 0 : i32
    return %arg0, %c0_i32 : i32, i32
  }
}

module attributes {stable_mosaic.version = 11 : i64} {
  func.func @_mm_kernel(%arg0: i32, %arg1: memref<32x40xbf16, #tpu.memory_space<vmem>>, %arg2: memref<40x128xbf16, #tpu.memory_space<vmem>>, %arg3: memref<1x128xf32, #tpu.memory_space<vmem>>, %arg4: memref<32x128xf32, #tpu.memory_space<vmem>>) attributes {dimension_semantics = [#tpu.dimension_semantics<parallel>], iteration_bounds = array<i64: 1>, scalar_prefetch = 0 : i64, scratch_operands = 0 : i64, tpu.core_type = #tpu.core_type<tc>, window_params = [{transform_indices = @transform_0, window_bounds = array<i64: 32, 40>}, {pipeline_mode = #tpu.pipeline_mode<synchronous>, transform_indices = @transform_1, window_bounds = array<i64: 40, 128>}, {pipeline_mode = #tpu.pipeline_mode<synchronous>, transform_indices = @transform_2, window_bounds = array<i64: 1, 128>}, {transform_indices = @transform_3, window_bounds = array<i64: 32, 128>}]} {
    %c0 = arith.constant 0 : index
    %c0_0 = arith.constant 0 : index
    %0 = vector.load %arg1[%c0, %c0_0] : memref<32x40xbf16, #tpu.memory_space<vmem>>, vector<32x40xbf16>
    %c0_1 = arith.constant 0 : index
    %c0_2 = arith.constant 0 : index
    %1 = vector.load %arg2[%c0_1, %c0_2] : memref<40x128xbf16, #tpu.memory_space<vmem>>, vector<40x128xbf16>
    %cst = arith.constant dense<0.000000e+00> : vector<32x128xf32>
    %2 = tpu.matmul %0, %1, %cst {dimension_numbers = #tpu.dot_dimension_numbers<[1], [0], [0], [1], [0, 0, 1, 1], [], []>} : vector<32x40xbf16>, vector<40x128xbf16>, vector<32x128xf32> -> vector<32x128xf32>
    %c0_3 = arith.constant 0 : index
    %c0_4 = arith.constant 0 : index
    %3 = vector.load %arg3[%c0_3, %c0_4] : memref<1x128xf32, #tpu.memory_space<vmem>>, vector<1x128xf32>
    %4 = vector.broadcast %3 : vector<1x128xf32> to vector<32x128xf32>
    %5 = arith.addf %2, %4 : vector<32x128xf32>
    %cst_5 = arith.constant 0.000000e+00 : f32
    %6 = vector.broadcast %cst_5 : f32 to vector<32x128xf32>
    %7 = arith.cmpf oge, %5, %6 : vector<32x128xf32>
    %cst_6 = arith.constant 2.000000e-01 : f32
    %8 = vector.broadcast %cst_6 : f32 to vector<32x128xf32>
    %9 = arith.mulf %8, %5 : vector<32x128xf32>
    %10 = arith.select %7, %5, %9 : vector<32x128xi1>, vector<32x128xf32>
    %c0_7 = arith.constant 0 : index
    %c0_8 = arith.constant 0 : index
    %11 = vector.load %arg4[%c0_7, %c0_8] : memref<32x128xf32, #tpu.memory_space<vmem>>, vector<32x128xf32>
    tpu.vector_store %arg4[%c0_7, %c0_8], %10 {strides = array<i32>} : memref<32x128xf32, #tpu.memory_space<vmem>>, vector<32x128xf32>,
    return
  }
  func.func @transform_0(%arg0: i32) -> (i32, i32) {
    %c0_i32 = arith.constant 0 : i32
    %c0_i32_0 = arith.constant 0 : i32
    return %arg0, %c0_i32 : i32, i32
  }
  func.func @transform_1(%arg0: i32) -> (i32, i32) {
    %c0_i32 = arith.constant 0 : i32
    %c0_i32_0 = arith.constant 0 : i32
    %c0_i32_1 = arith.constant 0 : i32
    return %c0_i32, %c0_i32_0 : i32, i32
  }
  func.func @transform_2(%arg0: i32) -> (i32, i32) {
    %c0_i32 = arith.constant 0 : i32
    %c0_i32_0 = arith.constant 0 : i32
    %c0_i32_1 = arith.constant 0 : i32
    return %c0_i32, %c0_i32_0 : i32, i32
  }
  func.func @transform_3(%arg0: i32) -> (i32, i32) {
    %c0_i32 = arith.constant 0 : i32
    %c0_i32_0 = arith.constant 0 : i32
    return %arg0, %c0_i32 : i32, i32
  }
}

module attributes {stable_mosaic.version = 11 : i64} {
  func.func @_mm_kernel(%arg0: i32, %arg1: memref<32x80xbf16, #tpu.memory_space<vmem>>, %arg2: memref<80x128xbf16, #tpu.memory_space<vmem>>, %arg3: memref<1x128xf32, #tpu.memory_space<vmem>>, %arg4: memref<32x128xf32, #tpu.memory_space<vmem>>) attributes {dimension_semantics = [#tpu.dimension_semantics<parallel>], iteration_bounds = array<i64: 1>, scalar_prefetch = 0 : i64, scratch_operands = 0 : i64, tpu.core_type = #tpu.core_type<tc>, window_params = [{transform_indices = @transform_0, window_bounds = array<i64: 32, 80>}, {pipeline_mode = #tpu.pipeline_mode<synchronous>, transform_indices = @transform_1, window_bounds = array<i64: 80, 128>}, {pipeline_mode = #tpu.pipeline_mode<synchronous>, transform_indices = @transform_2, window_bounds = array<i64: 1, 128>}, {transform_indices = @transform_3, window_bounds = array<i64: 32, 128>}]} {
    %c0 = arith.constant 0 : index
    %c0_0 = arith.constant 0 : index
    %0 = vector.load %arg1[%c0, %c0_0] : memref<32x80xbf16, #tpu.memory_space<vmem>>, vector<32x80xbf16>
    %c0_1 = arith.constant 0 : index
    %c0_2 = arith.constant 0 : index
    %1 = vector.load %arg2[%c0_1, %c0_2] : memref<80x128xbf16, #tpu.memory_space<vmem>>, vector<80x128xbf16>
    %cst = arith.constant dense<0.000000e+00> : vector<32x128xf32>
    %2 = tpu.matmul %0, %1, %cst {dimension_numbers = #tpu.dot_dimension_numbers<[1], [0], [0], [1], [0, 0, 1, 1], [], []>} : vector<32x80xbf16>, vector<80x128xbf16>, vector<32x128xf32> -> vector<32x128xf32>
    %c0_3 = arith.constant 0 : index
    %c0_4 = arith.constant 0 : index
    %3 = vector.load %arg3[%c0_3, %c0_4] : memref<1x128xf32, #tpu.memory_space<vmem>>, vector<1x128xf32>
    %4 = vector.broadcast %3 : vector<1x128xf32> to vector<32x128xf32>
    %5 = arith.addf %2, %4 : vector<32x128xf32>
    %cst_5 = arith.constant 0.000000e+00 : f32
    %6 = vector.broadcast %cst_5 : f32 to vector<32x128xf32>
    %7 = arith.cmpf oge, %5, %6 : vector<32x128xf32>
    %cst_6 = arith.constant 2.000000e-01 : f32
    %8 = vector.broadcast %cst_6 : f32 to vector<32x128xf32>
    %9 = arith.mulf %8, %5 : vector<32x128xf32>
    %10 = arith.select %7, %5, %9 : vector<32x128xi1>, vector<32x128xf32>
    %c0_7 = arith.constant 0 : index
    %c0_8 = arith.constant 0 : index
    %11 = vector.load %arg4[%c0_7, %c0_8] : memref<32x128xf32, #tpu.memory_space<vmem>>, vector<32x128xf32>
    tpu.vector_store %arg4[%c0_7, %c0_8], %10 {strides = array<i32>} : memref<32x128xf32, #tpu.memory_space<vmem>>, vector<32x128xf32>,
    return
  }
  func.func @transform_0(%arg0: i32) -> (i32, i32) {
    %c0_i32 = arith.constant 0 : i32
    %c0_i32_0 = arith.constant 0 : i32
    return %arg0, %c0_i32 : i32, i32
  }
  func.func @transform_1(%arg0: i32) -> (i32, i32) {
    %c0_i32 = arith.constant 0 : i32
    %c0_i32_0 = arith.constant 0 : i32
    %c0_i32_1 = arith.constant 0 : i32
    return %c0_i32, %c0_i32_0 : i32, i32
  }
  func.func @transform_2(%arg0: i32) -> (i32, i32) {
    %c0_i32 = arith.constant 0 : i32
    %c0_i32_0 = arith.constant 0 : i32
    %c0_i32_1 = arith.constant 0 : i32
    return %c0_i32, %c0_i32_0 : i32, i32
  }
  func.func @transform_3(%arg0: i32) -> (i32, i32) {
    %c0_i32 = arith.constant 0 : i32
    %c0_i32_0 = arith.constant 0 : i32
    return %arg0, %c0_i32 : i32, i32
  }
}

module attributes {stable_mosaic.version = 11 : i64} {
  func.func @_mm_kernel(%arg0: i32, %arg1: memref<128x28xbf16, #tpu.memory_space<vmem>>, %arg2: memref<28x128xbf16, #tpu.memory_space<vmem>>, %arg3: memref<1x128xf32, #tpu.memory_space<vmem>>, %arg4: memref<128x128xf32, #tpu.memory_space<vmem>>) attributes {dimension_semantics = [#tpu.dimension_semantics<parallel>], iteration_bounds = array<i64: 1>, scalar_prefetch = 0 : i64, scratch_operands = 0 : i64, tpu.core_type = #tpu.core_type<tc>, window_params = [{transform_indices = @transform_0, window_bounds = array<i64: 128, 28>}, {pipeline_mode = #tpu.pipeline_mode<synchronous>, transform_indices = @transform_1, window_bounds = array<i64: 28, 128>}, {pipeline_mode = #tpu.pipeline_mode<synchronous>, transform_indices = @transform_2, window_bounds = array<i64: 1, 128>}, {transform_indices = @transform_3, window_bounds = array<i64: 128, 128>}]} {
    %c0 = arith.constant 0 : index
    %c0_0 = arith.constant 0 : index
    %0 = vector.load %arg1[%c0, %c0_0] : memref<128x28xbf16, #tpu.memory_space<vmem>>, vector<128x28xbf16>
    %c0_1 = arith.constant 0 : index
    %c0_2 = arith.constant 0 : index
    %1 = vector.load %arg2[%c0_1, %c0_2] : memref<28x128xbf16, #tpu.memory_space<vmem>>, vector<28x128xbf16>
    %cst = arith.constant dense<0.000000e+00> : vector<128x128xf32>
    %2 = tpu.matmul %0, %1, %cst {dimension_numbers = #tpu.dot_dimension_numbers<[1], [0], [0], [1], [0, 0, 1, 1], [], []>} : vector<128x28xbf16>, vector<28x128xbf16>, vector<128x128xf32> -> vector<128x128xf32>
    %c0_3 = arith.constant 0 : index
    %c0_4 = arith.constant 0 : index
    %3 = vector.load %arg3[%c0_3, %c0_4] : memref<1x128xf32, #tpu.memory_space<vmem>>, vector<1x128xf32>
    %4 = vector.broadcast %3 : vector<1x128xf32> to vector<128x128xf32>
    %5 = arith.addf %2, %4 : vector<128x128xf32>
    %cst_5 = arith.constant 0.000000e+00 : f32
    %6 = vector.broadcast %cst_5 : f32 to vector<128x128xf32>
    %7 = arith.cmpf oge, %5, %6 : vector<128x128xf32>
    %cst_6 = arith.constant 2.000000e-01 : f32
    %8 = vector.broadcast %cst_6 : f32 to vector<128x128xf32>
    %9 = arith.mulf %8, %5 : vector<128x128xf32>
    %10 = arith.select %7, %5, %9 : vector<128x128xi1>, vector<128x128xf32>
    %c0_7 = arith.constant 0 : index
    %c0_8 = arith.constant 0 : index
    %11 = vector.load %arg4[%c0_7, %c0_8] : memref<128x128xf32, #tpu.memory_space<vmem>>, vector<128x128xf32>
    tpu.vector_store %arg4[%c0_7, %c0_8], %10 {strides = array<i32>} : memref<128x128xf32, #tpu.memory_space<vmem>>, vector<128x128xf32>,
    return
  }
  func.func @transform_0(%arg0: i32) -> (i32, i32) {
    %c0_i32 = arith.constant 0 : i32
    %c0_i32_0 = arith.constant 0 : i32
    return %arg0, %c0_i32 : i32, i32
  }
  func.func @transform_1(%arg0: i32) -> (i32, i32) {
    %c0_i32 = arith.constant 0 : i32
    %c0_i32_0 = arith.constant 0 : i32
    %c0_i32_1 = arith.constant 0 : i32
    return %c0_i32, %c0_i32_0 : i32, i32
  }
  func.func @transform_2(%arg0: i32) -> (i32, i32) {
    %c0_i32 = arith.constant 0 : i32
    %c0_i32_0 = arith.constant 0 : i32
    %c0_i32_1 = arith.constant 0 : i32
    return %c0_i32, %c0_i32_0 : i32, i32
  }
  func.func @transform_3(%arg0: i32) -> (i32, i32) {
    %c0_i32 = arith.constant 0 : i32
    %c0_i32_0 = arith.constant 0 : i32
    return %arg0, %c0_i32 : i32, i32
  }
}

module attributes {stable_mosaic.version = 11 : i64} {
  func.func @_mm_kernel(%arg0: i32, %arg1: memref<128x56xbf16, #tpu.memory_space<vmem>>, %arg2: memref<56x128xbf16, #tpu.memory_space<vmem>>, %arg3: memref<1x128xf32, #tpu.memory_space<vmem>>, %arg4: memref<128x128xf32, #tpu.memory_space<vmem>>) attributes {dimension_semantics = [#tpu.dimension_semantics<parallel>], iteration_bounds = array<i64: 1>, scalar_prefetch = 0 : i64, scratch_operands = 0 : i64, tpu.core_type = #tpu.core_type<tc>, window_params = [{transform_indices = @transform_0, window_bounds = array<i64: 128, 56>}, {pipeline_mode = #tpu.pipeline_mode<synchronous>, transform_indices = @transform_1, window_bounds = array<i64: 56, 128>}, {pipeline_mode = #tpu.pipeline_mode<synchronous>, transform_indices = @transform_2, window_bounds = array<i64: 1, 128>}, {transform_indices = @transform_3, window_bounds = array<i64: 128, 128>}]} {
    %c0 = arith.constant 0 : index
    %c0_0 = arith.constant 0 : index
    %0 = vector.load %arg1[%c0, %c0_0] : memref<128x56xbf16, #tpu.memory_space<vmem>>, vector<128x56xbf16>
    %c0_1 = arith.constant 0 : index
    %c0_2 = arith.constant 0 : index
    %1 = vector.load %arg2[%c0_1, %c0_2] : memref<56x128xbf16, #tpu.memory_space<vmem>>, vector<56x128xbf16>
    %cst = arith.constant dense<0.000000e+00> : vector<128x128xf32>
    %2 = tpu.matmul %0, %1, %cst {dimension_numbers = #tpu.dot_dimension_numbers<[1], [0], [0], [1], [0, 0, 1, 1], [], []>} : vector<128x56xbf16>, vector<56x128xbf16>, vector<128x128xf32> -> vector<128x128xf32>
    %c0_3 = arith.constant 0 : index
    %c0_4 = arith.constant 0 : index
    %3 = vector.load %arg3[%c0_3, %c0_4] : memref<1x128xf32, #tpu.memory_space<vmem>>, vector<1x128xf32>
    %4 = vector.broadcast %3 : vector<1x128xf32> to vector<128x128xf32>
    %5 = arith.addf %2, %4 : vector<128x128xf32>
    %cst_5 = arith.constant 0.000000e+00 : f32
    %6 = vector.broadcast %cst_5 : f32 to vector<128x128xf32>
    %7 = arith.cmpf oge, %5, %6 : vector<128x128xf32>
    %cst_6 = arith.constant 2.000000e-01 : f32
    %8 = vector.broadcast %cst_6 : f32 to vector<128x128xf32>
    %9 = arith.mulf %8, %5 : vector<128x128xf32>
    %10 = arith.select %7, %5, %9 : vector<128x128xi1>, vector<128x128xf32>
    %c0_7 = arith.constant 0 : index
    %c0_8 = arith.constant 0 : index
    %11 = vector.load %arg4[%c0_7, %c0_8] : memref<128x128xf32, #tpu.memory_space<vmem>>, vector<128x128xf32>
    tpu.vector_store %arg4[%c0_7, %c0_8], %10 {strides = array<i32>} : memref<128x128xf32, #tpu.memory_space<vmem>>, vector<128x128xf32>,
    return
  }
  func.func @transform_0(%arg0: i32) -> (i32, i32) {
    %c0_i32 = arith.constant 0 : i32
    %c0_i32_0 = arith.constant 0 : i32
    return %arg0, %c0_i32 : i32, i32
  }
  func.func @transform_1(%arg0: i32) -> (i32, i32) {
    %c0_i32 = arith.constant 0 : i32
    %c0_i32_0 = arith.constant 0 : i32
    %c0_i32_1 = arith.constant 0 : i32
    return %c0_i32, %c0_i32_0 : i32, i32
  }
  func.func @transform_2(%arg0: i32) -> (i32, i32) {
    %c0_i32 = arith.constant 0 : i32
    %c0_i32_0 = arith.constant 0 : i32
    %c0_i32_1 = arith.constant 0 : i32
    return %c0_i32, %c0_i32_0 : i32, i32
  }
  func.func @transform_3(%arg0: i32) -> (i32, i32) {
    %c0_i32 = arith.constant 0 : i32
    %c0_i32_0 = arith.constant 0 : i32
    return %arg0, %c0_i32 : i32, i32
  }
}

module attributes {stable_mosaic.version = 11 : i64} {
  func.func @_mm_kernel(%arg0: i32, %arg1: memref<128x112xbf16, #tpu.memory_space<vmem>>, %arg2: memref<112x128xbf16, #tpu.memory_space<vmem>>, %arg3: memref<1x128xf32, #tpu.memory_space<vmem>>, %arg4: memref<128x128xf32, #tpu.memory_space<vmem>>) attributes {dimension_semantics = [#tpu.dimension_semantics<parallel>], iteration_bounds = array<i64: 1>, scalar_prefetch = 0 : i64, scratch_operands = 0 : i64, tpu.core_type = #tpu.core_type<tc>, window_params = [{transform_indices = @transform_0, window_bounds = array<i64: 128, 112>}, {pipeline_mode = #tpu.pipeline_mode<synchronous>, transform_indices = @transform_1, window_bounds = array<i64: 112, 128>}, {pipeline_mode = #tpu.pipeline_mode<synchronous>, transform_indices = @transform_2, window_bounds = array<i64: 1, 128>}, {transform_indices = @transform_3, window_bounds = array<i64: 128, 128>}]} {
    %c0 = arith.constant 0 : index
    %c0_0 = arith.constant 0 : index
    %0 = vector.load %arg1[%c0, %c0_0] : memref<128x112xbf16, #tpu.memory_space<vmem>>, vector<128x112xbf16>
    %c0_1 = arith.constant 0 : index
    %c0_2 = arith.constant 0 : index
    %1 = vector.load %arg2[%c0_1, %c0_2] : memref<112x128xbf16, #tpu.memory_space<vmem>>, vector<112x128xbf16>
    %cst = arith.constant dense<0.000000e+00> : vector<128x128xf32>
    %2 = tpu.matmul %0, %1, %cst {dimension_numbers = #tpu.dot_dimension_numbers<[1], [0], [0], [1], [0, 0, 1, 1], [], []>} : vector<128x112xbf16>, vector<112x128xbf16>, vector<128x128xf32> -> vector<128x128xf32>
    %c0_3 = arith.constant 0 : index
    %c0_4 = arith.constant 0 : index
    %3 = vector.load %arg3[%c0_3, %c0_4] : memref<1x128xf32, #tpu.memory_space<vmem>>, vector<1x128xf32>
    %4 = vector.broadcast %3 : vector<1x128xf32> to vector<128x128xf32>
    %5 = arith.addf %2, %4 : vector<128x128xf32>
    %cst_5 = arith.constant 0.000000e+00 : f32
    %6 = vector.broadcast %cst_5 : f32 to vector<128x128xf32>
    %7 = arith.cmpf oge, %5, %6 : vector<128x128xf32>
    %cst_6 = arith.constant 2.000000e-01 : f32
    %8 = vector.broadcast %cst_6 : f32 to vector<128x128xf32>
    %9 = arith.mulf %8, %5 : vector<128x128xf32>
    %10 = arith.select %7, %5, %9 : vector<128x128xi1>, vector<128x128xf32>
    %c0_7 = arith.constant 0 : index
    %c0_8 = arith.constant 0 : index
    %11 = vector.load %arg4[%c0_7, %c0_8] : memref<128x128xf32, #tpu.memory_space<vmem>>, vector<128x128xf32>
    tpu.vector_store %arg4[%c0_7, %c0_8], %10 {strides = array<i32>} : memref<128x128xf32, #tpu.memory_space<vmem>>, vector<128x128xf32>,
    return
  }
  func.func @transform_0(%arg0: i32) -> (i32, i32) {
    %c0_i32 = arith.constant 0 : i32
    %c0_i32_0 = arith.constant 0 : i32
    return %arg0, %c0_i32 : i32, i32
  }
  func.func @transform_1(%arg0: i32) -> (i32, i32) {
    %c0_i32 = arith.constant 0 : i32
    %c0_i32_0 = arith.constant 0 : i32
    %c0_i32_1 = arith.constant 0 : i32
    return %c0_i32, %c0_i32_0 : i32, i32
  }
  func.func @transform_2(%arg0: i32) -> (i32, i32) {
    %c0_i32 = arith.constant 0 : i32
    %c0_i32_0 = arith.constant 0 : i32
    %c0_i32_1 = arith.constant 0 : i32
    return %c0_i32, %c0_i32_0 : i32, i32
  }
  func.func @transform_3(%arg0: i32) -> (i32, i32) {
    %c0_i32 = arith.constant 0 : i32
    %c0_i32_0 = arith.constant 0 : i32
    return %arg0, %c0_i32 : i32, i32
  }
}

module attributes {stable_mosaic.version = 11 : i64} {
  func.func @_lerp_kernel(%arg0: i32, %arg1: memref<512x15xf32, #tpu.memory_space<vmem>>, %arg2: memref<512x15xf32, #tpu.memory_space<vmem>>, %arg3: memref<512x15xf32, #tpu.memory_space<vmem>>, %arg4: memref<512x15xf32, #tpu.memory_space<vmem>>, %arg5: memref<512x1xf32, #tpu.memory_space<vmem>>, %arg6: memref<512x1xf32, #tpu.memory_space<vmem>>, %arg7: memref<512x15xf32, #tpu.memory_space<vmem>>) attributes {dimension_semantics = [#tpu.dimension_semantics<parallel>], iteration_bounds = array<i64: 1>, scalar_prefetch = 0 : i64, scratch_operands = 0 : i64, tpu.core_type = #tpu.core_type<tc>, window_params = [{transform_indices = @transform_0, window_bounds = array<i64: 512, 15>}, {transform_indices = @transform_1, window_bounds = array<i64: 512, 15>}, {transform_indices = @transform_2, window_bounds = array<i64: 512, 15>}, {transform_indices = @transform_3, window_bounds = array<i64: 512, 15>}, {transform_indices = @transform_4, window_bounds = array<i64: 512, 1>}, {transform_indices = @transform_5, window_bounds = array<i64: 512, 1>}, {transform_indices = @transform_6, window_bounds = array<i64: 512, 15>}]} {
    %c0 = arith.constant 0 : index
    %c0_0 = arith.constant 0 : index
    %0 = vector.load %arg1[%c0, %c0_0] : memref<512x15xf32, #tpu.memory_space<vmem>>, vector<512x15xf32>
    %c0_1 = arith.constant 0 : index
    %c0_2 = arith.constant 0 : index
    %1 = vector.load %arg2[%c0_1, %c0_2] : memref<512x15xf32, #tpu.memory_space<vmem>>, vector<512x15xf32>
    %c0_3 = arith.constant 0 : index
    %c0_4 = arith.constant 0 : index
    %2 = vector.load %arg3[%c0_3, %c0_4] : memref<512x15xf32, #tpu.memory_space<vmem>>, vector<512x15xf32>
    %c0_5 = arith.constant 0 : index
    %c0_6 = arith.constant 0 : index
    %3 = vector.load %arg4[%c0_5, %c0_6] : memref<512x15xf32, #tpu.memory_space<vmem>>, vector<512x15xf32>
    %c0_7 = arith.constant 0 : index
    %c0_8 = arith.constant 0 : index
    %4 = vector.load %arg5[%c0_7, %c0_8] : memref<512x1xf32, #tpu.memory_space<vmem>>, vector<512x1xf32>
    %c0_9 = arith.constant 0 : index
    %c0_10 = arith.constant 0 : index
    %5 = vector.load %arg6[%c0_9, %c0_10] : memref<512x1xf32, #tpu.memory_space<vmem>>, vector<512x1xf32>
    %6 = arith.subf %1, %0 : vector<512x15xf32>
    %7 = vector.broadcast %4 : vector<512x1xf32> to vector<512x15xf32>
    %8 = arith.mulf %7, %6 : vector<512x15xf32>
    %9 = arith.addf %0, %8 : vector<512x15xf32>
    %10 = arith.subf %3, %2 : vector<512x15xf32>
    %11 = vector.broadcast %4 : vector<512x1xf32> to vector<512x15xf32>
    %12 = arith.mulf %11, %10 : vector<512x15xf32>
    %13 = arith.addf %2, %12 : vector<512x15xf32>
    %14 = arith.subf %13, %9 : vector<512x15xf32>
    %15 = vector.broadcast %5 : vector<512x1xf32> to vector<512x15xf32>
    %16 = arith.mulf %15, %14 : vector<512x15xf32>
    %17 = arith.addf %9, %16 : vector<512x15xf32>
    %c0_11 = arith.constant 0 : index
    %c0_12 = arith.constant 0 : index
    %18 = vector.load %arg7[%c0_11, %c0_12] : memref<512x15xf32, #tpu.memory_space<vmem>>, vector<512x15xf32>
    tpu.vector_store %arg7[%c0_11, %c0_12], %17 {strides = array<i32>} : memref<512x15xf32, #tpu.memory_space<vmem>>, vector<512x15xf32>,
    return
  }
  func.func @transform_0(%arg0: i32) -> (i32, i32) {
    %c0_i32 = arith.constant 0 : i32
    %c0_i32_0 = arith.constant 0 : i32
    return %arg0, %c0_i32 : i32, i32
  }
  func.func @transform_1(%arg0: i32) -> (i32, i32) {
    %c0_i32 = arith.constant 0 : i32
    %c0_i32_0 = arith.constant 0 : i32
    return %arg0, %c0_i32 : i32, i32
  }
  func.func @transform_2(%arg0: i32) -> (i32, i32) {
    %c0_i32 = arith.constant 0 : i32
    %c0_i32_0 = arith.constant 0 : i32
    return %arg0, %c0_i32 : i32, i32
  }
  func.func @transform_3(%arg0: i32) -> (i32, i32) {
    %c0_i32 = arith.constant 0 : i32
    %c0_i32_0 = arith.constant 0 : i32
    return %arg0, %c0_i32 : i32, i32
  }
  func.func @transform_4(%arg0: i32) -> (i32, i32) {
    %c0_i32 = arith.constant 0 : i32
    %c0_i32_0 = arith.constant 0 : i32
    return %arg0, %c0_i32 : i32, i32
  }
  func.func @transform_5(%arg0: i32) -> (i32, i32) {
    %c0_i32 = arith.constant 0 : i32
    %c0_i32_0 = arith.constant 0 : i32
    return %arg0, %c0_i32 : i32, i32
  }
  func.func @transform_6(%arg0: i32) -> (i32, i32) {
    %c0_i32 = arith.constant 0 : i32
    %c0_i32_0 = arith.constant 0 : i32
    return %arg0, %c0_i32 : i32, i32
  }
}

module attributes {stable_mosaic.version = 11 : i64} {
  func.func @_mm_res_kernel(%arg0: i32, %arg1: memref<512x135xbf16, #tpu.memory_space<vmem>>, %arg2: memref<135x128xbf16, #tpu.memory_space<vmem>>, %arg3: memref<1x128xf32, #tpu.memory_space<vmem>>, %arg4: memref<512x128xf32, #tpu.memory_space<vmem>>, %arg5: memref<512x128xf32, #tpu.memory_space<vmem>>) attributes {dimension_semantics = [#tpu.dimension_semantics<parallel>], iteration_bounds = array<i64: 1>, scalar_prefetch = 0 : i64, scratch_operands = 0 : i64, tpu.core_type = #tpu.core_type<tc>, window_params = [{transform_indices = @transform_0, window_bounds = array<i64: 512, 135>}, {pipeline_mode = #tpu.pipeline_mode<synchronous>, transform_indices = @transform_1, window_bounds = array<i64: 135, 128>}, {pipeline_mode = #tpu.pipeline_mode<synchronous>, transform_indices = @transform_2, window_bounds = array<i64: 1, 128>}, {transform_indices = @transform_3, window_bounds = array<i64: 512, 128>}, {transform_indices = @transform_4, window_bounds = array<i64: 512, 128>}]} {
    %c0 = arith.constant 0 : index
    %c0_0 = arith.constant 0 : index
    %0 = vector.load %arg1[%c0, %c0_0] : memref<512x135xbf16, #tpu.memory_space<vmem>>, vector<512x135xbf16>
    %c0_1 = arith.constant 0 : index
    %c0_2 = arith.constant 0 : index
    %1 = vector.load %arg2[%c0_1, %c0_2] : memref<135x128xbf16, #tpu.memory_space<vmem>>, vector<135x128xbf16>
    %cst = arith.constant dense<0.000000e+00> : vector<512x128xf32>
    %2 = tpu.matmul %0, %1, %cst {dimension_numbers = #tpu.dot_dimension_numbers<[1], [0], [0], [1], [0, 0, 1, 1], [], []>} : vector<512x135xbf16>, vector<135x128xbf16>, vector<512x128xf32> -> vector<512x128xf32>
    %c0_3 = arith.constant 0 : index
    %c0_4 = arith.constant 0 : index
    %3 = vector.load %arg3[%c0_3, %c0_4] : memref<1x128xf32, #tpu.memory_space<vmem>>, vector<1x128xf32>
    %4 = vector.broadcast %3 : vector<1x128xf32> to vector<512x128xf32>
    %5 = arith.addf %2, %4 : vector<512x128xf32>
    %cst_5 = arith.constant 0.000000e+00 : f32
    %6 = vector.broadcast %cst_5 : f32 to vector<512x128xf32>
    %7 = arith.cmpf oge, %5, %6 : vector<512x128xf32>
    %cst_6 = arith.constant 2.000000e-01 : f32
    %8 = vector.broadcast %cst_6 : f32 to vector<512x128xf32>
    %9 = arith.mulf %8, %5 : vector<512x128xf32>
    %10 = arith.select %7, %5, %9 : vector<512x128xi1>, vector<512x128xf32>
    %c0_7 = arith.constant 0 : index
    %c0_8 = arith.constant 0 : index
    %11 = vector.load %arg4[%c0_7, %c0_8] : memref<512x128xf32, #tpu.memory_space<vmem>>, vector<512x128xf32>
    %12 = arith.addf %10, %11 : vector<512x128xf32>
    %c0_9 = arith.constant 0 : index
    %c0_10 = arith.constant 0 : index
    %13 = vector.load %arg5[%c0_9, %c0_10] : memref<512x128xf32, #tpu.memory_space<vmem>>, vector<512x128xf32>
    tpu.vector_store %arg5[%c0_9, %c0_10], %12 {strides = array<i32>} : memref<512x128xf32, #tpu.memory_space<vmem>>, vector<512x128xf32>,
    return
  }
  func.func @transform_0(%arg0: i32) -> (i32, i32) {
    %c0_i32 = arith.constant 0 : i32
    %c0_i32_0 = arith.constant 0 : i32
    return %arg0, %c0_i32 : i32, i32
  }
  func.func @transform_1(%arg0: i32) -> (i32, i32) {
    %c0_i32 = arith.constant 0 : i32
    %c0_i32_0 = arith.constant 0 : i32
    %c0_i32_1 = arith.constant 0 : i32
    return %c0_i32, %c0_i32_0 : i32, i32
  }
  func.func @transform_2(%arg0: i32) -> (i32, i32) {
    %c0_i32 = arith.constant 0 : i32
    %c0_i32_0 = arith.constant 0 : i32
    %c0_i32_1 = arith.constant 0 : i32
    return %c0_i32, %c0_i32_0 : i32, i32
  }
  func.func @transform_3(%arg0: i32) -> (i32, i32) {
    %c0_i32 = arith.constant 0 : i32
    %c0_i32_0 = arith.constant 0 : i32
    return %arg0, %c0_i32 : i32, i32
  }
  func.func @transform_4(%arg0: i32) -> (i32, i32) {
    %c0_i32 = arith.constant 0 : i32
    %c0_i32_0 = arith.constant 0 : i32
    return %arg0, %c0_i32 : i32, i32
  }
}

module attributes {stable_mosaic.version = 11 : i64} {
  func.func @_mm_kernel(%arg0: i32, %arg1: memref<512x135xbf16, #tpu.memory_space<vmem>>, %arg2: memref<135x128xbf16, #tpu.memory_space<vmem>>, %arg3: memref<1x128xf32, #tpu.memory_space<vmem>>, %arg4: memref<512x128xf32, #tpu.memory_space<vmem>>) attributes {dimension_semantics = [#tpu.dimension_semantics<parallel>], iteration_bounds = array<i64: 1>, scalar_prefetch = 0 : i64, scratch_operands = 0 : i64, tpu.core_type = #tpu.core_type<tc>, window_params = [{transform_indices = @transform_0, window_bounds = array<i64: 512, 135>}, {pipeline_mode = #tpu.pipeline_mode<synchronous>, transform_indices = @transform_1, window_bounds = array<i64: 135, 128>}, {pipeline_mode = #tpu.pipeline_mode<synchronous>, transform_indices = @transform_2, window_bounds = array<i64: 1, 128>}, {transform_indices = @transform_3, window_bounds = array<i64: 512, 128>}]} {
    %c0 = arith.constant 0 : index
    %c0_0 = arith.constant 0 : index
    %0 = vector.load %arg1[%c0, %c0_0] : memref<512x135xbf16, #tpu.memory_space<vmem>>, vector<512x135xbf16>
    %c0_1 = arith.constant 0 : index
    %c0_2 = arith.constant 0 : index
    %1 = vector.load %arg2[%c0_1, %c0_2] : memref<135x128xbf16, #tpu.memory_space<vmem>>, vector<135x128xbf16>
    %cst = arith.constant dense<0.000000e+00> : vector<512x128xf32>
    %2 = tpu.matmul %0, %1, %cst {dimension_numbers = #tpu.dot_dimension_numbers<[1], [0], [0], [1], [0, 0, 1, 1], [], []>} : vector<512x135xbf16>, vector<135x128xbf16>, vector<512x128xf32> -> vector<512x128xf32>
    %c0_3 = arith.constant 0 : index
    %c0_4 = arith.constant 0 : index
    %3 = vector.load %arg3[%c0_3, %c0_4] : memref<1x128xf32, #tpu.memory_space<vmem>>, vector<1x128xf32>
    %4 = vector.broadcast %3 : vector<1x128xf32> to vector<512x128xf32>
    %5 = arith.addf %2, %4 : vector<512x128xf32>
    %cst_5 = arith.constant 0.000000e+00 : f32
    %6 = vector.broadcast %cst_5 : f32 to vector<512x128xf32>
    %7 = arith.cmpf oge, %5, %6 : vector<512x128xf32>
    %cst_6 = arith.constant 2.000000e-01 : f32
    %8 = vector.broadcast %cst_6 : f32 to vector<512x128xf32>
    %9 = arith.mulf %8, %5 : vector<512x128xf32>
    %10 = arith.select %7, %5, %9 : vector<512x128xi1>, vector<512x128xf32>
    %c0_7 = arith.constant 0 : index
    %c0_8 = arith.constant 0 : index
    %11 = vector.load %arg4[%c0_7, %c0_8] : memref<512x128xf32, #tpu.memory_space<vmem>>, vector<512x128xf32>
    tpu.vector_store %arg4[%c0_7, %c0_8], %10 {strides = array<i32>} : memref<512x128xf32, #tpu.memory_space<vmem>>, vector<512x128xf32>,
    return
  }
  func.func @transform_0(%arg0: i32) -> (i32, i32) {
    %c0_i32 = arith.constant 0 : i32
    %c0_i32_0 = arith.constant 0 : i32
    return %arg0, %c0_i32 : i32, i32
  }
  func.func @transform_1(%arg0: i32) -> (i32, i32) {
    %c0_i32 = arith.constant 0 : i32
    %c0_i32_0 = arith.constant 0 : i32
    %c0_i32_1 = arith.constant 0 : i32
    return %c0_i32, %c0_i32_0 : i32, i32
  }
  func.func @transform_2(%arg0: i32) -> (i32, i32) {
    %c0_i32 = arith.constant 0 : i32
    %c0_i32_0 = arith.constant 0 : i32
    %c0_i32_1 = arith.constant 0 : i32
    return %c0_i32, %c0_i32_0 : i32, i32
  }
  func.func @transform_3(%arg0: i32) -> (i32, i32) {
    %c0_i32 = arith.constant 0 : i32
    %c0_i32_0 = arith.constant 0 : i32
    return %arg0, %c0_i32 : i32, i32
  }
}

</mosaic_0001>

<llo_original>
// kernel: stargan_generator_forward.16
$region0: #{stargan_generator_forward.16}
  #allocation0 [shape = 'u32[]', space=smem, size = 0x4, offset = 0x4, fixed_abs, tag = 'smem constant byte address 0x4 - core index']
  #allocation1 [shape = 'u32[144,128]{1,0:T(1,128)}', space=vmem, size = 0x12000, scoped, tag = 'internal scratch']
  %s0 = inlined_call_operand.hbm [shape: bf16[16,512], index: 0, kind: input, shape index: {}]
  %s1 = inlined_call_operand.hbm [shape: bf16[512,128], index: 1, kind: input, shape index: {}]
  %s2 = inlined_call_operand.hbm [shape: f32[1,128], index: 2, kind: input, shape index: {}]
  %s3 = inlined_call_operand.hbm [shape: f32[16,128], index: 3, kind: output, shape index: {}]
  %s4 = sld [smem:[#allocation0]]
  $region34: #{stargan_generator_forward.16} parent=0
    _
  %s6 = ssub.s32 1, %s4
  %s7 = scalar_select 0, %s6, %s4
  $region1: #{stargan_generator_forward.16} parent=0
    #allocation2 [shape = 'u8[16384]{0}', space=vmem, size = 0x4000, scoped, tag = 'input window, operand 0, single buffered']
    #allocation3 [shape = 's32[1]{0}', space=sflag, size = 0x4, scoped, tag = 'scoped memory for stargan_generator_forward.16']
    #allocation4 [shape = 's32[1]{0}', space=sflag, size = 0x4, scoped, tag = 'scoped memory for stargan_generator_forward.16']
    #allocation5 [shape = 'u8[131072]{0}', space=vmem, size = 0x20000, scoped, tag = 'input window, operand 1, single buffered']
    #allocation6 [shape = 's32[1]{0}', space=sflag, size = 0x4, scoped, tag = 'scoped memory for stargan_generator_forward.16']
    #allocation7 [shape = 'u8[512]{0}', space=vmem, size = 0x400, scoped, tag = 'input window, operand 2, single buffered']
    #allocation8 [shape = 'u8[8192]{0}', space=vmem, size = 0x2000, scoped, tag = 'output window, operand 0, single buffered']
    %8 = vsyncpa [#allocation3], 0
    %9 = vsyncpa [#allocation6], 0
    %10 = vsyncpa [#allocation4], 0
    // Predicated region
    $region2: #{stargan_generator_forward.16} parent=1 // pred_check
      _
    $region3: #{stargan_generator_forward.16} parent=1 // pred_check_branch
      %12 = sbr.rel (0) target = $region5
    $region4: #{stargan_generator_forward.16} parent=1 // pred_region
      %s14 = ssub.s32 512, 512
      %15 = vsyncadd [#allocation3], %s14
      %s16 = sshll.u32 [#allocation2], 4
      %s17 = int_to_ptr.vmem [resolvable:$true] %s16
      %22 = dma.hbm_to_vmem [thread:$0]  %s0, 512, %s17, [#allocation3], 256, 256, 16
    $region5: #{stargan_generator_forward.16} parent=1 // pred_fallthru
      _
    // Predicated region
    $region6: #{stargan_generator_forward.16} parent=1 // pred_check
      _
    $region7: #{stargan_generator_forward.16} parent=1 // pred_check_branch
      %24 = sbr.rel (0) target = $region9
    $region8: #{stargan_generator_forward.16} parent=1 // pred_region
      %s26 = ssub.s32 4096, 4096
      %27 = vsyncadd [#allocation6], %s26
      %s28 = sshll.u32 [#allocation5], 4
      %s29 = int_to_ptr.vmem [resolvable:$true] %s28
      %34 = dma.hbm_to_vmem [thread:$0]  %s1, 4096, %s29, [#allocation6], 64, 64, 4
    $region9: #{stargan_generator_forward.16} parent=1 // pred_fallthru
      _
    // Predicated region
    $region10: #{stargan_generator_forward.16} parent=1 // pred_check
      _
    $region11: #{stargan_generator_forward.16} parent=1 // pred_check_branch
      %36 = sbr.rel (0) target = $region13
    $region12: #{stargan_generator_forward.16} parent=1 // pred_region
      %s38 = ssub.s32 16, 16
      %39 = vsyncadd [#allocation6], %s38
      %s41 = sshll.u32 [#allocation7], 4
      %s42 = int_to_ptr.vmem [resolvable:$true] %s41
      %44 = dma.hbm_to_vmem [thread:$0]  %s2, 16, %s42, [#allocation6]
    $region13: #{stargan_generator_forward.16} parent=1 // pred_fallthru
      _
    // Predicated region
    $region14: #{stargan_generator_forward.16} parent=1 // pred_check
      _
    $region15: #{stargan_generator_forward.16} parent=1 // pred_check_branch
      %46 = sbr.rel (0) target = $region17
    $region16: #{stargan_generator_forward.16} parent=1 // pred_region
      %47 = dma.done [#allocation3], 512
    $region17: #{stargan_generator_forward.16} parent=1 // pred_fallthru
      _
    // Predicated region
    $region18: #{stargan_generator_forward.16} parent=1 // pred_check
      _
    $region19: #{stargan_generator_forward.16} parent=1 // pred_check_branch
      %49 = sbr.rel (0) target = $region21
    $region20: #{stargan_generator_forward.16} parent=1 // pred_region
      %50 = dma.done [#allocation6], 4096
    $region21: #{stargan_generator_forward.16} parent=1 // pred_fallthru
      _
    // Predicated region
    $region22: #{stargan_generator_forward.16} parent=1 // pred_check
      _
    $region23: #{stargan_generator_forward.16} parent=1 // pred_check_branch
      %52 = sbr.rel (0) target = $region25
    $region24: #{stargan_generator_forward.16} parent=1 // pred_region
      %53 = dma.done [#allocation6], 16
    $region25: #{stargan_generator_forward.16} parent=1 // pred_fallthru
      _
    %v55 = vld [vmem:[#allocation2] sm:$0xff]
    %v56 = vld [vmem:[#allocation2 + $0x8] sm:$0xff]
    %v57 = vld [vmem:[#allocation2 + $0x10] sm:$0xff]
    %v58 = vld [vmem:[#allocation2 + $0x18] sm:$0xff]
    %v59 = vld [vmem:[#allocation5] sm:$0xf]
    %v60 = vld [vmem:[#allocation5 + $0x4] sm:$0xf]
    %v61 = vld [vmem:[#allocation5 + $0x8] sm:$0xf]
    %v62 = vld [vmem:[#allocation5 + $0xc] sm:$0xf]
    %v63 = vld [vmem:[#allocation5 + $0x10] sm:$0xf]
    %v64 = vld [vmem:[#allocation5 + $0x14] sm:$0xf]
    %v65 = vld [vmem:[#allocation5 + $0x18] sm:$0xf]
    %v66 = vld [vmem:[#allocation5 + $0x1c] sm:$0xf]
    %v67 = vld [vmem:[#allocation5 + $0x20] sm:$0xf]
    %v68 = vld [vmem:[#allocation5 + $0x24] sm:$0xf]
    %v69 = vld [vmem:[#allocation5 + $0x28] sm:$0xf]
    %v70 = vld [vmem:[#allocation5 + $0x2c] sm:$0xf]
    %v71 = vld [vmem:[#allocation5 + $0x30] sm:$0xf]
    %v72 = vld [vmem:[#allocation5 + $0x34] sm:$0xf]
    %v73 = vld [vmem:[#allocation5 + $0x38] sm:$0xf]
    %v74 = vld [vmem:[#allocation5 + $0x3c] sm:$0xf]
    %v75 = vld [vmem:[#allocation5 + $0x40] sm:$0xf]
    %v76 = vld [vmem:[#allocation5 + $0x44] sm:$0xf]
    %v77 = vld [vmem:[#allocation5 + $0x48] sm:$0xf]
    %v78 = vld [vmem:[#allocation5 + $0x4c] sm:$0xf]
    %v79 = vld [vmem:[#allocation5 + $0x50] sm:$0xf]
    %v80 = vld [vmem:[#allocation5 + $0x54] sm:$0xf]
    %v81 = vld [vmem:[#allocation5 + $0x58] sm:$0xf]
    %v82 = vld [vmem:[#allocation5 + $0x5c] sm:$0xf]
    %v83 = vld [vmem:[#allocation5 + $0x60] sm:$0xf]
    %v84 = vld [vmem:[#allocation5 + $0x64] sm:$0xf]
    %v85 = vld [vmem:[#allocation5 + $0x68] sm:$0xf]
    %v86 = vld [vmem:[#allocation5 + $0x6c] sm:$0xf]
    %v87 = vld [vmem:[#allocation5 + $0x70] sm:$0xf]
    %v88 = vld [vmem:[#allocation5 + $0x74] sm:$0xf]
    %v89 = vld [vmem:[#allocation5 + $0x78] sm:$0xf]
    %v90 = vld [vmem:[#allocation5 + $0x7c] sm:$0xf]
    %v91 = vld [vmem:[#allocation5 + $0x80] sm:$0xf]
    %v92 = vld [vmem:[#allocation5 + $0x84] sm:$0xf]
    %v93 = vld [vmem:[#allocation5 + $0x88] sm:$0xf]
    %v94 = vld [vmem:[#allocation5 + $0x8c] sm:$0xf]
    %v95 = vld [vmem:[#allocation5 + $0x90] sm:$0xf]
    %v96 = vld [vmem:[#allocation5 + $0x94] sm:$0xf]
    %v97 = vld [vmem:[#allocation5 + $0x98] sm:$0xf]
    %v98 = vld [vmem:[#allocation5 + $0x9c] sm:$0xf]
    %v99 = vld [vmem:[#allocation5 + $0xa0] sm:$0xf]
    %v100 = vld [vmem:[#allocation5 + $0xa4] sm:$0xf]
    %v101 = vld [vmem:[#allocation5 + $0xa8] sm:$0xf]
    %v102 = vld [vmem:[#allocation5 + $0xac] sm:$0xf]
    %v103 = vld [vmem:[#allocation5 + $0xb0] sm:$0xf]
    %v104 = vld [vmem:[#allocation5 + $0xb4] sm:$0xf]
    %v105 = vld [vmem:[#allocation5 + $0xb8] sm:$0xf]
    %v106 = vld [vmem:[#allocation5 + $0xbc] sm:$0xf]
    %v107 = vld [vmem:[#allocation5 + $0xc0] sm:$0xf]
    %v108 = vld [vmem:[#allocation5 + $0xc4] sm:$0xf]
    %v109 = vld [vmem:[#allocation5 + $0xc8] sm:$0xf]
    %v110 = vld [vmem:[#allocation5 + $0xcc] sm:$0xf]
    %v111 = vld [vmem:[#allocation5 + $0xd0] sm:$0xf]
    %v112 = vld [vmem:[#allocation5 + $0xd4] sm:$0xf]
    %v113 = vld [vmem:[#allocation5 + $0xd8] sm:$0xf]
    %v114 = vld [vmem:[#allocation5 + $0xdc] sm:$0xf]
    %v115 = vld [vmem:[#allocation5 + $0xe0] sm:$0xf]
    %v116 = vld [vmem:[#allocation5 + $0xe4] sm:$0xf]
    %v117 = vld [vmem:[#allocation5 + $0xe8] sm:$0xf]
    %v118 = vld [vmem:[#allocation5 + $0xec] sm:$0xf]
    %v119 = vld [vmem:[#allocation5 + $0xf0] sm:$0xf]
    %v120 = vld [vmem:[#allocation5 + $0xf4] sm:$0xf]
    %v121 = vld [vmem:[#allocation5 + $0xf8] sm:$0xf]
    %v122 = vld [vmem:[#allocation5 + $0xfc] sm:$0xf]
    %v123 = vld [vmem:[#allocation7] sm:$0x1]
    %v125 = vlaneseq
    %v126 = vshrl.u32 %v125, 7
    %v127 = vsub.s32 0, %v126
    %v128 = vrot.slane %v123, %v127
    %v134 = vunpack.c.l.b16 %v55
    %v135 = vunpack.c.h.b16 %v55
    %v136 = vunpack.c.l.b16 %v56
    %v137 = vunpack.c.h.b16 %v56
    %v138 = vunpack.c.l.b16 %v57
    %v139 = vunpack.c.h.b16 %v57
    %v140 = vunpack.c.l.b16 %v58
    %v141 = vunpack.c.h.b16 %v58
    %v142 = vpack.c.b16 %v138, %v134
    %v143 = vpack.c.b16 %v139, %v135
    %v144 = vpack.c.b16 %v140, %v136
    %v145 = vpack.c.b16 %v141, %v137
    %v214 = vunpack.c.l.b16 %v59
    %v215 = vunpack.c.l.b16 %v60
    %v216 = vunpack.c.l.b16 %v61
    %v217 = vunpack.c.l.b16 %v62
    %v218 = vunpack.c.l.b16 %v63
    %v219 = vunpack.c.l.b16 %v64
    %v220 = vunpack.c.l.b16 %v65
    %v221 = vunpack.c.l.b16 %v66
    %v222 = vunpack.c.l.b16 %v67
    %v223 = vunpack.c.l.b16 %v68
    %v224 = vunpack.c.l.b16 %v69
    %v225 = vunpack.c.l.b16 %v70
    %v226 = vunpack.c.l.b16 %v71
    %v227 = vunpack.c.l.b16 %v72
    %v228 = vunpack.c.l.b16 %v73
    %v229 = vunpack.c.l.b16 %v74
    %v230 = vunpack.c.l.b16 %v75
    %v231 = vunpack.c.l.b16 %v76
    %v232 = vunpack.c.l.b16 %v77
    %v233 = vunpack.c.l.b16 %v78
    %v234 = vunpack.c.l.b16 %v79
    %v235 = vunpack.c.l.b16 %v80
    %v236 = vunpack.c.l.b16 %v81
    %v237 = vunpack.c.l.b16 %v82
    %v238 = vunpack.c.l.b16 %v83
    %v239 = vunpack.c.l.b16 %v84
    %v240 = vunpack.c.l.b16 %v85
    %v241 = vunpack.c.l.b16 %v86
    %v242 = vunpack.c.l.b16 %v87
    %v243 = vunpack.c.l.b16 %v88
    %v244 = vunpack.c.l.b16 %v89
    %v245 = vunpack.c.l.b16 %v90
    %v246 = vunpack.c.l.b16 %v91
    %v247 = vunpack.c.l.b16 %v92
    %v248 = vunpack.c.l.b16 %v93
    %v249 = vunpack.c.l.b16 %v94
    %v250 = vunpack.c.l.b16 %v95
    %v251 = vunpack.c.l.b16 %v96
    %v252 = vunpack.c.l.b16 %v97
    %v253 = vunpack.c.l.b16 %v98
    %v254 = vunpack.c.l.b16 %v99
    %v255 = vunpack.c.l.b16 %v100
    %v256 = vunpack.c.l.b16 %v101
    %v257 = vunpack.c.l.b16 %v102
    %v258 = vunpack.c.l.b16 %v103
    %v259 = vunpack.c.l.b16 %v104
    %v260 = vunpack.c.l.b16 %v105
    %v261 = vunpack.c.l.b16 %v106
    %v262 = vunpack.c.l.b16 %v107
    %v263 = vunpack.c.l.b16 %v108
    %v264 = vunpack.c.l.b16 %v109
    %v265 = vunpack.c.l.b16 %v110
    %v266 = vunpack.c.l.b16 %v111
    %v267 = vunpack.c.l.b16 %v112
    %v268 = vunpack.c.l.b16 %v113
    %v269 = vunpack.c.l.b16 %v114
    %v270 = vunpack.c.l.b16 %v115
    %v271 = vunpack.c.l.b16 %v116
    %v272 = vunpack.c.l.b16 %v117
    %v273 = vunpack.c.l.b16 %v118
    %v274 = vunpack.c.l.b16 %v119
    %v275 = vunpack.c.l.b16 %v120
    %v276 = vunpack.c.l.b16 %v121
    %v277 = vunpack.c.l.b16 %v122
    %v278 = vpack.c.b16 %v215, %v214
    %v279 = vpack.c.b16 %v217, %v216
    %v280 = vpack.c.b16 %v219, %v218
    %v281 = vpack.c.b16 %v221, %v220
    %v282 = vpack.c.b16 %v223, %v222
    %v283 = vpack.c.b16 %v225, %v224
    %v284 = vpack.c.b16 %v227, %v226
    %v285 = vpack.c.b16 %v229, %v228
    %v286 = vpack.c.b16 %v231, %v230
    %v287 = vpack.c.b16 %v233, %v232
    %v288 = vpack.c.b16 %v235, %v234
    %v289 = vpack.c.b16 %v237, %v236
    %v290 = vpack.c.b16 %v239, %v238
    %v291 = vpack.c.b16 %v241, %v240
    %v292 = vpack.c.b16 %v243, %v242
    %v293 = vpack.c.b16 %v245, %v244
    %v294 = vpack.c.b16 %v247, %v246
    %v295 = vpack.c.b16 %v249, %v248
    %v296 = vpack.c.b16 %v251, %v250
    %v297 = vpack.c.b16 %v253, %v252
    %v298 = vpack.c.b16 %v255, %v254
    %v299 = vpack.c.b16 %v257, %v256
    %v300 = vpack.c.b16 %v259, %v258
    %v301 = vpack.c.b16 %v261, %v260
    %v302 = vpack.c.b16 %v263, %v262
    %v303 = vpack.c.b16 %v265, %v264
    %v304 = vpack.c.b16 %v267, %v266
    %v305 = vpack.c.b16 %v269, %v268
    %v306 = vpack.c.b16 %v271, %v270
    %v307 = vpack.c.b16 %v273, %v272
    %v308 = vpack.c.b16 %v275, %v274
    %v309 = vpack.c.b16 %v277, %v276
    %342 = vmatprep.subr.bf16.mxu0 0
    %343 = vmatpush1.bf16.msra.mxu0 %v278
    %344 = vmatprep.subr.bf16.mxu0 0
    %345 = vmatpush1.bf16.msra.mxu0 %v279
    %346 = vmatprep.subr.bf16.mxu0 0
    %347 = vmatpush1.bf16.msra.mxu0 %v280
    %348 = vmatprep.subr.bf16.mxu0 0
    %349 = vmatpush1.bf16.msra.mxu0 %v281
    %350 = vmatprep.subr.bf16.mxu0 0
    %351 = vmatpush1.bf16.msra.mxu0 %v282
    %352 = vmatprep.subr.bf16.mxu0 0
    %353 = vmatpush1.bf16.msra.mxu0 %v283
    %354 = vmatprep.subr.bf16.mxu0 0
    %355 = vmatpush1.bf16.msra.mxu0 %v284
    %356 = vmatprep.subr.bf16.mxu0 0
    %357 = vmatpush1.bf16.msra.mxu0 %v285
    %358 = vmatprep.subr.bf16.mxu0 0
    %359 = vmatpush1.bf16.msra.mxu0 %v286
    %360 = vmatprep.subr.bf16.mxu0 0
    %361 = vmatpush1.bf16.msra.mxu0 %v287
    %362 = vmatprep.subr.bf16.mxu0 0
    %363 = vmatpush1.bf16.msra.mxu0 %v288
    %364 = vmatprep.subr.bf16.mxu0 0
    %365 = vmatpush1.bf16.msra.mxu0 %v289
    %366 = vmatprep.subr.bf16.mxu0 0
    %367 = vmatpush1.bf16.msra.mxu0 %v290
    %368 = vmatprep.subr.bf16.mxu0 0
    %369 = vmatpush1.bf16.msra.mxu0 %v291
    %370 = vmatprep.subr.bf16.mxu0 0
    %371 = vmatpush1.bf16.msra.mxu0 %v292
    %372 = vmatprep.subr.bf16.mxu0 0
    %373 = vmatpush1.bf16.msra.mxu0 %v293
    %374 = vmatprep.mubr.bf16.mxu0 %v143
    %375 = vmatmul.mubr.bf16.gmra.mrb[0].mxu0 %v142
    %v376 = vpop.f32.mrb[0].mxu0
    %v377 = vadd.f32 %v128, %v376
    %v378 = vpop.f32.mrb[0].mxu0
    %v379 = vpop.f32.mrb[0].mxu0
    %v380 = vadd.f32 %v128, %v379
    %v381 = vpop.f32.mrb[0].mxu0
    %382 = vdwg.mxu0
    %383 = vmatprep.subr.bf16.mxu0 0
    %384 = vmatpush1.bf16.msra.mxu0 %v294
    %385 = vmatprep.subr.bf16.mxu0 0
    %386 = vmatpush1.bf16.msra.mxu0 %v295
    %387 = vmatprep.subr.bf16.mxu0 0
    %388 = vmatpush1.bf16.msra.mxu0 %v296
    %389 = vmatprep.subr.bf16.mxu0 0
    %390 = vmatpush1.bf16.msra.mxu0 %v297
    %391 = vmatprep.subr.bf16.mxu0 0
    %392 = vmatpush1.bf16.msra.mxu0 %v298
    %393 = vmatprep.subr.bf16.mxu0 0
    %394 = vmatpush1.bf16.msra.mxu0 %v299
    %395 = vmatprep.subr.bf16.mxu0 0
    %396 = vmatpush1.bf16.msra.mxu0 %v300
    %397 = vmatprep.subr.bf16.mxu0 0
    %398 = vmatpush1.bf16.msra.mxu0 %v301
    %399 = vmatprep.subr.bf16.mxu0 0
    %400 = vmatpush1.bf16.msra.mxu0 %v302
    %401 = vmatprep.subr.bf16.mxu0 0
    %402 = vmatpush1.bf16.msra.mxu0 %v303
    %403 = vmatprep.subr.bf16.mxu0 0
    %404 = vmatpush1.bf16.msra.mxu0 %v304
    %405 = vmatprep.subr.bf16.mxu0 0
    %406 = vmatpush1.bf16.msra.mxu0 %v305
    %407 = vmatprep.subr.bf16.mxu0 0
    %408 = vmatpush1.bf16.msra.mxu0 %v306
    %409 = vmatprep.subr.bf16.mxu0 0
    %410 = vmatpush1.bf16.msra.mxu0 %v307
    %411 = vmatprep.subr.bf16.mxu0 0
    %412 = vmatpush1.bf16.msra.mxu0 %v308
    %413 = vmatprep.subr.bf16.mxu0 0
    %414 = vmatpush1.bf16.msra.mxu0 %v309
    %415 = vmatprep.mubr.bf16.mxu0 %v145
    %416 = vmatmul.mubr.bf16.gmra.mrb[0].mxu0 %v144
    %v417 = vpop.f32.mrb[0].mxu0
    %v418 = vadd.f32 %v377, %v417
    %v419 = vpop.f32.mrb[0].mxu0
    %v420 = vpop.f32.mrb[0].mxu0
    %v421 = vadd.f32 %v380, %v420
    %v422 = vpop.f32.mrb[0].mxu0
    %423 = vdwg.mxu0
    %424 = vst [vmem:[#allocation8] sm:$0xff] %v418
    %425 = vst [vmem:[#allocation8 + $0x8] sm:$0xff] %v421
    // Predicated region
    $region26: #{stargan_generator_forward.16} parent=1 // pred_check
      _
    $region27: #{stargan_generator_forward.16} parent=1 // pred_check_branch
      %427 = sbr.rel (0) target = $region29
    $region28: #{stargan_generator_forward.16} parent=1 // pred_region
      %s429 = ssub.s32 256, 256
      %430 = vsyncadd [#allocation4], %s429
      %s431 = sshll.u32 [#allocation8], 4
      %s432 = int_to_ptr.vmem [resolvable:$true] %s431
      %437 = dma.vmem_to_hbm [thread:$0]  %s432, 256, %s3, [#allocation4], 128, 128, 8
    $region29: #{stargan_generator_forward.16} parent=1 // pred_fallthru
      _
    // Predicated region
    $region30: #{stargan_generator_forward.16} parent=1 // pred_check
      _
    $region31: #{stargan_generator_forward.16} parent=1 // pred_check_branch
      %439 = sbr.rel (0) target = $region33
    $region32: #{stargan_generator_forward.16} parent=1 // pred_region
      %440 = dma.done [#allocation4], 256
    $region33: #{stargan_generator_forward.16} parent=1 // pred_fallthru
      _
    %441 = vsyncpa [#allocation3], 1
    %442 = vsyncpa [#allocation6], 1
    %443 = vsyncpa [#allocation4], 1

// kernel: stargan_generator_forward.17
$region0: #{stargan_generator_forward.17}
  #allocation0 [shape = 'u32[]', space=smem, size = 0x4, offset = 0x4, fixed_abs, tag = 'smem constant byte address 0x4 - core index']
  #allocation1 [shape = 'u32[144,128]{1,0:T(1,128)}', space=vmem, size = 0x12000, scoped, tag = 'internal scratch']
  %s0 = inlined_call_operand.hbm [shape: bf16[128,63], index: 0, kind: input, shape index: {}]
  %s1 = inlined_call_operand.hbm [shape: bf16[63,128], index: 1, kind: input, shape index: {}]
  %s2 = inlined_call_operand.hbm [shape: f32[1,128], index: 2, kind: input, shape index: {}]
  %s3 = inlined_call_operand.hbm [shape: f32[128,128], index: 3, kind: output, shape index: {}]
  %s4 = sld [smem:[#allocation0]]
  $region34: #{stargan_generator_forward.17} parent=0
    _
  %s6 = ssub.s32 1, %s4
  %s7 = scalar_select 0, %s6, %s4
  $region1: #{stargan_generator_forward.17} parent=0
    #allocation2 [shape = 'u8[32768]{0}', space=vmem, size = 0x8000, scoped, tag = 'input window, operand 0, single buffered']
    #allocation3 [shape = 's32[1]{0}', space=sflag, size = 0x4, scoped, tag = 'scoped memory for stargan_generator_forward.17']
    #allocation4 [shape = 's32[1]{0}', space=sflag, size = 0x4, scoped, tag = 'scoped memory for stargan_generator_forward.17']
    #allocation5 [shape = 'u8[16384]{0}', space=vmem, size = 0x4000, scoped, tag = 'input window, operand 1, single buffered']
    #allocation6 [shape = 's32[1]{0}', space=sflag, size = 0x4, scoped, tag = 'scoped memory for stargan_generator_forward.17']
    #allocation7 [shape = 'u8[512]{0}', space=vmem, size = 0x400, scoped, tag = 'input window, operand 2, single buffered']
    #allocation8 [shape = 'u8[65536]{0}', space=vmem, size = 0x10000, scoped, tag = 'output window, operand 0, single buffered']
    %8 = vsyncpa [#allocation3], 0
    %9 = vsyncpa [#allocation6], 0
    %10 = vsyncpa [#allocation4], 0
    // Predicated region
    $region2: #{stargan_generator_forward.17} parent=1 // pred_check
      _
    $region3: #{stargan_generator_forward.17} parent=1 // pred_check_branch
      %12 = sbr.rel (0) target = $region5
    $region4: #{stargan_generator_forward.17} parent=1 // pred_region
      %s14 = ssub.s32 1024, 1024
      %15 = vsyncadd [#allocation3], %s14
      %s16 = sshll.u32 [#allocation2], 4
      %s17 = int_to_ptr.vmem [resolvable:$true] %s16
      %22 = dma.hbm_to_vmem [thread:$0]  %s0, 1024, %s17, [#allocation3], 64, 64, 4
    $region5: #{stargan_generator_forward.17} parent=1 // pred_fallthru
      _
    // Predicated region
    $region6: #{stargan_generator_forward.17} parent=1 // pred_check
      _
    $region7: #{stargan_generator_forward.17} parent=1 // pred_check_branch
      %24 = sbr.rel (0) target = $region9
    $region8: #{stargan_generator_forward.17} parent=1 // pred_region
      %s26 = ssub.s32 512, 512
      %27 = vsyncadd [#allocation6], %s26
      %s28 = sshll.u32 [#allocation5], 4
      %s29 = int_to_ptr.vmem [resolvable:$true] %s28
      %34 = dma.hbm_to_vmem [thread:$0]  %s1, 512, %s29, [#allocation6], 64, 64, 4
    $region9: #{stargan_generator_forward.17} parent=1 // pred_fallthru
      _
    // Predicated region
    $region10: #{stargan_generator_forward.17} parent=1 // pred_check
      _
    $region11: #{stargan_generator_forward.17} parent=1 // pred_check_branch
      %36 = sbr.rel (0) target = $region13
    $region12: #{stargan_generator_forward.17} parent=1 // pred_region
      %s38 = ssub.s32 16, 16
      %39 = vsyncadd [#allocation6], %s38
      %s41 = sshll.u32 [#allocation7], 4
      %s42 = int_to_ptr.vmem [resolvable:$true] %s41
      %44 = dma.hbm_to_vmem [thread:$0]  %s2, 16, %s42, [#allocation6]
    $region13: #{stargan_generator_forward.17} parent=1 // pred_fallthru
      _
    // Predicated region
    $region14: #{stargan_generator_forward.17} parent=1 // pred_check
      _
    $region15: #{stargan_generator_forward.17} parent=1 // pred_check_branch
      %46 = sbr.rel (0) target = $region17
    $region16: #{stargan_generator_forward.17} parent=1 // pred_region
      %47 = dma.done [#allocation3], 1024
    $region17: #{stargan_generator_forward.17} parent=1 // pred_fallthru
      _
    // Predicated region
    $region18: #{stargan_generator_forward.17} parent=1 // pred_check
      _
    $region19: #{stargan_generator_forward.17} parent=1 // pred_check_branch
      %49 = sbr.rel (0) target = $region21
    $region20: #{stargan_generator_forward.17} parent=1 // pred_region
      %50 = dma.done [#allocation6], 512
    $region21: #{stargan_generator_forward.17} parent=1 // pred_fallthru
      _
    // Predicated region
    $region22: #{stargan_generator_forward.17} parent=1 // pred_check
      _
    $region23: #{stargan_generator_forward.17} parent=1 // pred_check_branch
      %52 = sbr.rel (0) target = $region25
    $region24: #{stargan_generator_forward.17} parent=1 // pred_region
      %53 = dma.done [#allocation6], 16
    $region25: #{stargan_generator_forward.17} parent=1 // pred_fallthru
      _
    %v55 = vld [vmem:[#allocation2] sm:$0xf]
    %v56 = vld [vmem:[#allocation2 + $0x4] sm:$0xf]
    %v57 = vld [vmem:[#allocation2 + $0x8] sm:$0xf]
    %v58 = vld [vmem:[#allocation2 + $0xc] sm:$0xf]
    %v59 = vld [vmem:[#allocation2 + $0x10] sm:$0xf]
    %v60 = vld [vmem:[#allocation2 + $0x14] sm:$0xf]
    %v61 = vld [vmem:[#allocation2 + $0x18] sm:$0xf]
    %v62 = vld [vmem:[#allocation2 + $0x1c] sm:$0xf]
    %v63 = vld [vmem:[#allocation2 + $0x20] sm:$0xf]
    %v64 = vld [vmem:[#allocation2 + $0x24] sm:$0xf]
    %v65 = vld [vmem:[#allocation2 + $0x28] sm:$0xf]
    %v66 = vld [vmem:[#allocation2 + $0x2c] sm:$0xf]
    %v67 = vld [vmem:[#allocation2 + $0x30] sm:$0xf]
    %v68 = vld [vmem:[#allocation2 + $0x34] sm:$0xf]
    %v69 = vld [vmem:[#allocation2 + $0x38] sm:$0xf]
    %v70 = vld [vmem:[#allocation2 + $0x3c] sm:$0xf]
    %v71 = vld [vmem:[#allocation5] sm:$0xf]
    %v72 = vld [vmem:[#allocation5 + $0x4] sm:$0xf]
    %v73 = vld [vmem:[#allocation5 + $0x8] sm:$0xf]
    %v74 = vld [vmem:[#allocation5 + $0xc] sm:$0xf]
    %v75 = vld [vmem:[#allocation5 + $0x10] sm:$0xf]
    %v76 = vld [vmem:[#allocation5 + $0x14] sm:$0xf]
    %v77 = vld [vmem:[#allocation5 + $0x18] sm:$0xf]
    %v78 = vld [vmem:[#allocation5 + $0x1c] sm:$0xf]
    %v79 = vld [vmem:[#allocation7] sm:$0x1]
    %v81 = vlaneseq
    %v82 = vshrl.u32 %v81, 7
    %v83 = vsub.s32 0, %v82
    %v84 = vrot.slane %v79, %v83
    %v102 = vunpack.c.l.b16 %v55
    %v103 = vunpack.c.l.b16 %v56
    %v104 = vunpack.c.l.b16 %v57
    %v105 = vunpack.c.l.b16 %v58
    %v106 = vunpack.c.l.b16 %v59
    %v107 = vunpack.c.l.b16 %v60
    %v108 = vunpack.c.l.b16 %v61
    %v109 = vunpack.c.l.b16 %v62
    %v110 = vunpack.c.l.b16 %v63
    %v111 = vunpack.c.l.b16 %v64
    %v112 = vunpack.c.l.b16 %v65
    %v113 = vunpack.c.l.b16 %v66
    %v114 = vunpack.c.l.b16 %v67
    %v115 = vunpack.c.l.b16 %v68
    %v116 = vunpack.c.l.b16 %v69
    %v117 = vunpack.c.l.b16 %v70
    %v118 = vpack.c.b16 %v103, %v102
    %v119 = vpack.c.b16 %v105, %v104
    %v120 = vpack.c.b16 %v107, %v106
    %v121 = vpack.c.b16 %v109, %v108
    %v122 = vpack.c.b16 %v111, %v110
    %v123 = vpack.c.b16 %v113, %v112
    %v124 = vpack.c.b16 %v115, %v114
    %v125 = vpack.c.b16 %v117, %v116
    %v134 = vunpack.c.l.b16 %v71
    %v135 = vunpack.c.l.b16 %v72
    %v136 = vunpack.c.l.b16 %v73
    %v137 = vunpack.c.l.b16 %v74
    %v138 = vunpack.c.l.b16 %v75
    %v139 = vunpack.c.l.b16 %v76
    %v140 = vunpack.c.l.b16 %v77
    %v141 = vunpack.c.l.b16 %v78
    %v142 = vpack.c.b16 %v135, %v134
    %v143 = vpack.c.b16 %v137, %v136
    %v144 = vpack.c.b16 %v139, %v138
    %v145 = vpack.c.b16 %v141, %v140
    %vm149 = vcmask 515072
    %v151 = vsel %vm149, %v118, 0
    %v154 = vsel %vm149, %v119, 0
    %v157 = vsel %vm149, %v120, 0
    %v160 = vsel %vm149, %v121, 0
    %v163 = vsel %vm149, %v122, 0
    %v166 = vsel %vm149, %v123, 0
    %v169 = vsel %vm149, %v124, 0
    %v172 = vsel %vm149, %v125, 0
    %vm174 = vcmask 1046528
    %vm175 = vcmask 1047552
    %v176 = vsel %vm174, 4294967295, 65535
    %v177 = vsel %vm175, %v176, 0
    %v179 = vand.u32 %v145, %v177
    %181 = vmatprep.subr.bf16.mxu0 0
    %182 = vmatpush1.bf16.msra.mxu0 %v142
    %183 = vmatprep.subr.bf16.mxu0 0
    %184 = vmatpush1.bf16.msra.mxu0 %v143
    %185 = vmatprep.subr.bf16.mxu0 0
    %186 = vmatpush1.bf16.msra.mxu0 %v144
    %187 = vmatprep.subr.bf16.mxu0 0
    %188 = vmatpush1.bf16.msra.mxu0 %v179
    %189 = vmatprep.subr.bf16.mxu0 0
    %190 = vmatpush1.bf16.msra.mxu0 0
    %191 = vmatprep.subr.bf16.mxu0 0
    %192 = vmatpush1.bf16.msra.mxu0 0
    %193 = vmatprep.subr.bf16.mxu0 0
    %194 = vmatpush1.bf16.msra.mxu0 0
    %195 = vmatprep.subr.bf16.mxu0 0
    %196 = vmatpush1.bf16.msra.mxu0 0
    %197 = vmatprep.subr.bf16.mxu0 0
    %198 = vmatpush1.bf16.msra.mxu0 0
    %199 = vmatprep.subr.bf16.mxu0 0
    %200 = vmatpush1.bf16.msra.mxu0 0
    %201 = vmatprep.subr.bf16.mxu0 0
    %202 = vmatpush1.bf16.msra.mxu0 0
    %203 = vmatprep.subr.bf16.mxu0 0
    %204 = vmatpush1.bf16.msra.mxu0 0
    %205 = vmatprep.subr.bf16.mxu0 0
    %206 = vmatpush1.bf16.msra.mxu0 0
    %207 = vmatprep.subr.bf16.mxu0 0
    %208 = vmatpush1.bf16.msra.mxu0 0
    %209 = vmatprep.subr.bf16.mxu0 0
    %210 = vmatpush1.bf16.msra.mxu0 0
    %211 = vmatprep.subr.bf16.mxu0 0
    %212 = vmatpush1.bf16.msra.mxu0 0
    %213 = vmatprep.mubr.bf16.mxu0 0
    %214 = vmatmul.mubr.bf16.gmra.mrb[0].mxu0 %v151
    %v215 = vpop.f32.mrb[0].mxu0
    %v216 = vadd.f32 %v84, %v215
    %v217 = vpop.f32.mrb[0].mxu0
    %v218 = vpop.f32.mrb[0].mxu0
    %v219 = vadd.f32 %v84, %v218
    %v220 = vpop.f32.mrb[0].mxu0
    %221 = vmatprep.mubr.bf16.mxu0 0
    %222 = vmatmul.mubr.bf16.gmra.mrb[0].mxu0 %v154
    %v223 = vpop.f32.mrb[0].mxu0
    %v224 = vadd.f32 %v84, %v223
    %v225 = vpop.f32.mrb[0].mxu0
    %v226 = vpop.f32.mrb[0].mxu0
    %v227 = vadd.f32 %v84, %v226
    %v228 = vpop.f32.mrb[0].mxu0
    %229 = vmatprep.mubr.bf16.mxu0 0
    %230 = vmatmul.mubr.bf16.gmra.mrb[0].mxu0 %v157
    %v231 = vpop.f32.mrb[0].mxu0
    %v232 = vadd.f32 %v84, %v231
    %v233 = vpop.f32.mrb[0].mxu0
    %v234 = vpop.f32.mrb[0].mxu0
    %v235 = vadd.f32 %v84, %v234
    %v236 = vpop.f32.mrb[0].mxu0
    %237 = vmatprep.mubr.bf16.mxu0 0
    %238 = vmatmul.mubr.bf16.gmra.mrb[0].mxu0 %v160
    %v239 = vpop.f32.mrb[0].mxu0
    %v240 = vadd.f32 %v84, %v239
    %v241 = vpop.f32.mrb[0].mxu0
    %v242 = vpop.f32.mrb[0].mxu0
    %v243 = vadd.f32 %v84, %v242
    %v244 = vpop.f32.mrb[0].mxu0
    %245 = vmatprep.mubr.bf16.mxu0 0
    %246 = vmatmul.mubr.bf16.gmra.mrb[0].mxu0 %v163
    %v247 = vpop.f32.mrb[0].mxu0
    %v248 = vadd.f32 %v84, %v247
    %v249 = vpop.f32.mrb[0].mxu0
    %v250 = vpop.f32.mrb[0].mxu0
    %v251 = vadd.f32 %v84, %v250
    %v252 = vpop.f32.mrb[0].mxu0
    %253 = vmatprep.mubr.bf16.mxu0 0
    %254 = vmatmul.mubr.bf16.gmra.mrb[0].mxu0 %v166
    %v255 = vpop.f32.mrb[0].mxu0
    %v256 = vadd.f32 %v84, %v255
    %v257 = vpop.f32.mrb[0].mxu0
    %v258 = vpop.f32.mrb[0].mxu0
    %v259 = vadd.f32 %v84, %v258
    %v260 = vpop.f32.mrb[0].mxu0
    %261 = vmatprep.mubr.bf16.mxu0 0
    %262 = vmatmul.mubr.bf16.gmra.mrb[0].mxu0 %v169
    %v263 = vpop.f32.mrb[0].mxu0
    %v264 = vadd.f32 %v84, %v263
    %v265 = vpop.f32.mrb[0].mxu0
    %v266 = vpop.f32.mrb[0].mxu0
    %v267 = vadd.f32 %v84, %v266
    %v268 = vpop.f32.mrb[0].mxu0
    %269 = vmatprep.mubr.bf16.mxu0 0
    %270 = vmatmul.mubr.bf16.gmra.mrb[0].mxu0 %v172
    %v271 = vpop.f32.mrb[0].mxu0
    %v272 = vadd.f32 %v84, %v271
    %v273 = vpop.f32.mrb[0].mxu0
    %v274 = vpop.f32.mrb[0].mxu0
    %v275 = vadd.f32 %v84, %v274
    %v276 = vpop.f32.mrb[0].mxu0
    %277 = vdwg.mxu0
    %vm278 = vcmp.ge.f32.partialorder %v216, 0.0
    %vm279 = vcmp.ge.f32.partialorder %v219, 0.0
    %vm280 = vcmp.ge.f32.partialorder %v224, 0.0
    %vm281 = vcmp.ge.f32.partialorder %v227, 0.0
    %vm282 = vcmp.ge.f32.partialorder %v232, 0.0
    %vm283 = vcmp.ge.f32.partialorder %v235, 0.0
    %vm284 = vcmp.ge.f32.partialorder %v240, 0.0
    %vm285 = vcmp.ge.f32.partialorder %v243, 0.0
    %vm286 = vcmp.ge.f32.partialorder %v248, 0.0
    %vm287 = vcmp.ge.f32.partialorder %v251, 0.0
    %vm288 = vcmp.ge.f32.partialorder %v256, 0.0
    %vm289 = vcmp.ge.f32.partialorder %v259, 0.0
    %vm290 = vcmp.ge.f32.partialorder %v264, 0.0
    %vm291 = vcmp.ge.f32.partialorder %v267, 0.0
    %vm292 = vcmp.ge.f32.partialorder %v272, 0.0
    %vm293 = vcmp.ge.f32.partialorder %v275, 0.0
    %v294 = vmul.f32 %v216, 0.2
    %v295 = vmul.f32 %v219, 0.2
    %v296 = vmul.f32 %v224, 0.2
    %v297 = vmul.f32 %v227, 0.2
    %v298 = vmul.f32 %v232, 0.2
    %v299 = vmul.f32 %v235, 0.2
    %v300 = vmul.f32 %v240, 0.2
    %v301 = vmul.f32 %v243, 0.2
    %v302 = vmul.f32 %v248, 0.2
    %v303 = vmul.f32 %v251, 0.2
    %v304 = vmul.f32 %v256, 0.2
    %v305 = vmul.f32 %v259, 0.2
    %v306 = vmul.f32 %v264, 0.2
    %v307 = vmul.f32 %v267, 0.2
    %v308 = vmul.f32 %v272, 0.2
    %v309 = vmul.f32 %v275, 0.2
    %v310 = vsel %vm278, %v216, %v294
    %v311 = vsel %vm279, %v219, %v295
    %v312 = vsel %vm280, %v224, %v296
    %v313 = vsel %vm281, %v227, %v297
    %v314 = vsel %vm282, %v232, %v298
    %v315 = vsel %vm283, %v235, %v299
    %v316 = vsel %vm284, %v240, %v300
    %v317 = vsel %vm285, %v243, %v301
    %v318 = vsel %vm286, %v248, %v302
    %v319 = vsel %vm287, %v251, %v303
    %v320 = vsel %vm288, %v256, %v304
    %v321 = vsel %vm289, %v259, %v305
    %v322 = vsel %vm290, %v264, %v306
    %v323 = vsel %vm291, %v267, %v307
    %v324 = vsel %vm292, %v272, %v308
    %v325 = vsel %vm293, %v275, %v309
    %326 = vst [vmem:[#allocation8] sm:$0xff] %v310
    %327 = vst [vmem:[#allocation8 + $0x8] sm:$0xff] %v311
    %328 = vst [vmem:[#allocation8 + $0x10] sm:$0xff] %v312
    %329 = vst [vmem:[#allocation8 + $0x18] sm:$0xff] %v313
    %330 = vst [vmem:[#allocation8 + $0x20] sm:$0xff] %v314
    %331 = vst [vmem:[#allocation8 + $0x28] sm:$0xff] %v315
    %332 = vst [vmem:[#allocation8 + $0x30] sm:$0xff] %v316
    %333 = vst [vmem:[#allocation8 + $0x38] sm:$0xff] %v317
    %334 = vst [vmem:[#allocation8 + $0x40] sm:$0xff] %v318
    %335 = vst [vmem:[#allocation8 + $0x48] sm:$0xff] %v319
    %336 = vst [vmem:[#allocation8 + $0x50] sm:$0xff] %v320
    %337 = vst [vmem:[#allocation8 + $0x58] sm:$0xff] %v321
    %338 = vst [vmem:[#allocation8 + $0x60] sm:$0xff] %v322
    %339 = vst [vmem:[#allocation8 + $0x68] sm:$0xff] %v323
    %340 = vst [vmem:[#allocation8 + $0x70] sm:$0xff] %v324
    %341 = vst [vmem:[#allocation8 + $0x78] sm:$0xff] %v325
    // Predicated region
    $region26: #{stargan_generator_forward.17} parent=1 // pred_check
      _
    $region27: #{stargan_generator_forward.17} parent=1 // pred_check_branch
      %343 = sbr.rel (0) target = $region29
    $region28: #{stargan_generator_forward.17} parent=1 // pred_region
      %s345 = ssub.s32 2048, 2048
      %346 = vsyncadd [#allocation4], %s345
      %s347 = sshll.u32 [#allocation8], 4
      %s348 = int_to_ptr.vmem [resolvable:$true] %s347
      %353 = dma.vmem_to_hbm [thread:$0]  %s348, 2048, %s3, [#allocation4], 128, 128, 8
    $region29: #{stargan_generator_forward.17} parent=1 // pred_fallthru
      _
    // Predicated region
    $region30: #{stargan_generator_forward.17} parent=1 // pred_check
      _
    $region31: #{stargan_generator_forward.17} parent=1 // pred_check_branch
      %355 = sbr.rel (0) target = $region33
    $region32: #{stargan_generator_forward.17} parent=1 // pred_region
      %356 = dma.done [#allocation4], 2048
    $region33: #{stargan_generator_forward.17} parent=1 // pred_fallthru
      _
    %357 = vsyncpa [#allocation3], 1
    %358 = vsyncpa [#allocation6], 1
    %359 = vsyncpa [#allocation4], 1

// kernel: stargan_generator_forward.19
$region0: #{stargan_generator_forward.19}
  #allocation0 [shape = 'u32[]', space=smem, size = 0x4, offset = 0x4, fixed_abs, tag = 'smem constant byte address 0x4 - core index']
  #allocation1 [shape = 'u32[144,128]{1,0:T(1,128)}', space=vmem, size = 0x12000, scoped, tag = 'internal scratch']
  %s0 = inlined_call_operand.hbm [shape: bf16[32,108], index: 0, kind: input, shape index: {}]
  %s1 = inlined_call_operand.hbm [shape: bf16[108,128], index: 1, kind: input, shape index: {}]
  %s2 = inlined_call_operand.hbm [shape: f32[1,128], index: 2, kind: input, shape index: {}]
  %s3 = inlined_call_operand.hbm [shape: f32[32,128], index: 3, kind: output, shape index: {}]
  %s4 = sld [smem:[#allocation0]]
  $region34: #{stargan_generator_forward.19} parent=0
    _
  %s6 = ssub.s32 1, %s4
  %s7 = scalar_select 0, %s6, %s4
  $region1: #{stargan_generator_forward.19} parent=0
    #allocation2 [shape = 'u8[8192]{0}', space=vmem, size = 0x2000, scoped, tag = 'input window, operand 0, single buffered']
    #allocation3 [shape = 's32[1]{0}', space=sflag, size = 0x4, scoped, tag = 'scoped memory for stargan_generator_forward.19']
    #allocation4 [shape = 's32[1]{0}', space=sflag, size = 0x4, scoped, tag = 'scoped memory for stargan_generator_forward.19']
    #allocation5 [shape = 'u8[28672]{0}', space=vmem, size = 0x7000, scoped, tag = 'input window, operand 1, single buffered']
    #allocation6 [shape = 's32[1]{0}', space=sflag, size = 0x4, scoped, tag = 'scoped memory for stargan_generator_forward.19']
    #allocation7 [shape = 'u8[512]{0}', space=vmem, size = 0x400, scoped, tag = 'input window, operand 2, single buffered']
    #allocation8 [shape = 'u8[16384]{0}', space=vmem, size = 0x4000, scoped, tag = 'output window, operand 0, single buffered']
    %8 = vsyncpa [#allocation3], 0
    %9 = vsyncpa [#allocation6], 0
    %10 = vsyncpa [#allocation4], 0
    // Predicated region
    $region2: #{stargan_generator_forward.19} parent=1 // pred_check
      _
    $region3: #{stargan_generator_forward.19} parent=1 // pred_check_branch
      %12 = sbr.rel (0) target = $region5
    $region4: #{stargan_generator_forward.19} parent=1 // pred_region
      %s14 = ssub.s32 256, 256
      %15 = vsyncadd [#allocation3], %s14
      %s16 = sshll.u32 [#allocation2], 4
      %s17 = int_to_ptr.vmem [resolvable:$true] %s16
      %22 = dma.hbm_to_vmem [thread:$0]  %s0, 256, %s17, [#allocation3], 64, 64, 4
    $region5: #{stargan_generator_forward.19} parent=1 // pred_fallthru
      _
    // Predicated region
    $region6: #{stargan_generator_forward.19} parent=1 // pred_check
      _
    $region7: #{stargan_generator_forward.19} parent=1 // pred_check_branch
      %24 = sbr.rel (0) target = $region9
    $region8: #{stargan_generator_forward.19} parent=1 // pred_region
      %s26 = ssub.s32 896, 896
      %27 = vsyncadd [#allocation6], %s26
      %s28 = sshll.u32 [#allocation5], 4
      %s29 = int_to_ptr.vmem [resolvable:$true] %s28
      %34 = dma.hbm_to_vmem [thread:$0]  %s1, 896, %s29, [#allocation6], 64, 64, 4
    $region9: #{stargan_generator_forward.19} parent=1 // pred_fallthru
      _
    // Predicated region
    $region10: #{stargan_generator_forward.19} parent=1 // pred_check
      _
    $region11: #{stargan_generator_forward.19} parent=1 // pred_check_branch
      %36 = sbr.rel (0) target = $region13
    $region12: #{stargan_generator_forward.19} parent=1 // pred_region
      %s38 = ssub.s32 16, 16
      %39 = vsyncadd [#allocation6], %s38
      %s41 = sshll.u32 [#allocation7], 4
      %s42 = int_to_ptr.vmem [resolvable:$true] %s41
      %44 = dma.hbm_to_vmem [thread:$0]  %s2, 16, %s42, [#allocation6]
    $region13: #{stargan_generator_forward.19} parent=1 // pred_fallthru
      _
    // Predicated region
    $region14: #{stargan_generator_forward.19} parent=1 // pred_check
      _
    $region15: #{stargan_generator_forward.19} parent=1 // pred_check_branch
      %46 = sbr.rel (0) target = $region17
    $region16: #{stargan_generator_forward.19} parent=1 // pred_region
      %47 = dma.done [#allocation3], 256
    $region17: #{stargan_generator_forward.19} parent=1 // pred_fallthru
      _
    // Predicated region
    $region18: #{stargan_generator_forward.19} parent=1 // pred_check
      _
    $region19: #{stargan_generator_forward.19} parent=1 // pred_check_branch
      %49 = sbr.rel (0) target = $region21
    $region20: #{stargan_generator_forward.19} parent=1 // pred_region
      %50 = dma.done [#allocation6], 896
    $region21: #{stargan_generator_forward.19} parent=1 // pred_fallthru
      _
    // Predicated region
    $region22: #{stargan_generator_forward.19} parent=1 // pred_check
      _
    $region23: #{stargan_generator_forward.19} parent=1 // pred_check_branch
      %52 = sbr.rel (0) target = $region25
    $region24: #{stargan_generator_forward.19} parent=1 // pred_region
      %53 = dma.done [#allocation6], 16
    $region25: #{stargan_generator_forward.19} parent=1 // pred_fallthru
      _
    %v55 = vld [vmem:[#allocation2] sm:$0xf]
    %v56 = vld [vmem:[#allocation2 + $0x4] sm:$0xf]
    %v57 = vld [vmem:[#allocation2 + $0x8] sm:$0xf]
    %v58 = vld [vmem:[#allocation2 + $0xc] sm:$0xf]
    %v59 = vld [vmem:[#allocation5] sm:$0xf]
    %v60 = vld [vmem:[#allocation5 + $0x4] sm:$0xf]
    %v61 = vld [vmem:[#allocation5 + $0x8] sm:$0xf]
    %v62 = vld [vmem:[#allocation5 + $0xc] sm:$0xf]
    %v63 = vld [vmem:[#allocation5 + $0x10] sm:$0xf]
    %v64 = vld [vmem:[#allocation5 + $0x14] sm:$0xf]
    %v65 = vld [vmem:[#allocation5 + $0x18] sm:$0xf]
    %v66 = vld [vmem:[#allocation5 + $0x1c] sm:$0xf]
    %v67 = vld [vmem:[#allocation5 + $0x20] sm:$0xf]
    %v68 = vld [vmem:[#allocation5 + $0x24] sm:$0xf]
    %v69 = vld [vmem:[#allocation5 + $0x28] sm:$0xf]
    %v70 = vld [vmem:[#allocation5 + $0x2c] sm:$0xf]
    %v71 = vld [vmem:[#allocation5 + $0x30] sm:$0xf]
    %v72 = vld [vmem:[#allocation5 + $0x34] sm:$0x3]
    %v73 = vld [vmem:[#allocation7] sm:$0x1]
    %v75 = vlaneseq
    %v76 = vshrl.u32 %v75, 7
    %v77 = vsub.s32 0, %v76
    %v78 = vrot.slane %v73, %v77
    %v84 = vunpack.c.l.b16 %v55
    %v85 = vunpack.c.l.b16 %v56
    %v86 = vunpack.c.l.b16 %v57
    %v87 = vunpack.c.l.b16 %v58
    %v88 = vpack.c.b16 %v85, %v84
    %v89 = vpack.c.b16 %v87, %v86
    %v104 = vunpack.c.l.b16 %v59
    %v105 = vunpack.c.l.b16 %v60
    %v106 = vunpack.c.l.b16 %v61
    %v107 = vunpack.c.l.b16 %v62
    %v108 = vunpack.c.l.b16 %v63
    %v109 = vunpack.c.l.b16 %v64
    %v110 = vunpack.c.l.b16 %v65
    %v111 = vunpack.c.l.b16 %v66
    %v112 = vunpack.c.l.b16 %v67
    %v113 = vunpack.c.l.b16 %v68
    %v114 = vunpack.c.l.b16 %v69
    %v115 = vunpack.c.l.b16 %v70
    %v116 = vunpack.c.l.b16 %v71
    %v117 = vunpack.c.l.b16 %v72
    %v118 = vpack.c.b16 %v105, %v104
    %v119 = vpack.c.b16 %v107, %v106
    %v120 = vpack.c.b16 %v109, %v108
    %v121 = vpack.c.b16 %v111, %v110
    %v122 = vpack.c.b16 %v113, %v112
    %v123 = vpack.c.b16 %v115, %v114
    %v124 = vpack.c.b16 %v117, %v116
    %vm131 = vcmask 883712
    %v133 = vsel %vm131, %v88, 0
    %v136 = vsel %vm131, %v89, 0
    %vm138 = vcmask 1045504
    %v140 = vsel %vm138, %v124, 0
    %142 = vmatprep.subr.bf16.mxu0 0
    %143 = vmatpush1.bf16.msra.mxu0 %v118
    %144 = vmatprep.subr.bf16.mxu0 0
    %145 = vmatpush1.bf16.msra.mxu0 %v119
    %146 = vmatprep.subr.bf16.mxu0 0
    %147 = vmatpush1.bf16.msra.mxu0 %v120
    %148 = vmatprep.subr.bf16.mxu0 0
    %149 = vmatpush1.bf16.msra.mxu0 %v121
    %150 = vmatprep.subr.bf16.mxu0 0
    %151 = vmatpush1.bf16.msra.mxu0 %v122
    %152 = vmatprep.subr.bf16.mxu0 0
    %153 = vmatpush1.bf16.msra.mxu0 %v123
    %154 = vmatprep.subr.bf16.mxu0 0
    %155 = vmatpush1.bf16.msra.mxu0 %v140
    %156 = vmatprep.subr.bf16.mxu0 0
    %157 = vmatpush1.bf16.msra.mxu0 0
    %158 = vmatprep.subr.bf16.mxu0 0
    %159 = vmatpush1.bf16.msra.mxu0 0
    %160 = vmatprep.subr.bf16.mxu0 0
    %161 = vmatpush1.bf16.msra.mxu0 0
    %162 = vmatprep.subr.bf16.mxu0 0
    %163 = vmatpush1.bf16.msra.mxu0 0
    %164 = vmatprep.subr.bf16.mxu0 0
    %165 = vmatpush1.bf16.msra.mxu0 0
    %166 = vmatprep.subr.bf16.mxu0 0
    %167 = vmatpush1.bf16.msra.mxu0 0
    %168 = vmatprep.subr.bf16.mxu0 0
    %169 = vmatpush1.bf16.msra.mxu0 0
    %170 = vmatprep.subr.bf16.mxu0 0
    %171 = vmatpush1.bf16.msra.mxu0 0
    %172 = vmatprep.subr.bf16.mxu0 0
    %173 = vmatpush1.bf16.msra.mxu0 0
    %174 = vmatprep.mubr.bf16.mxu0 0
    %175 = vmatmul.mubr.bf16.gmra.mrb[0].mxu0 %v133
    %v176 = vpop.f32.mrb[0].mxu0
    %v177 = vadd.f32 %v78, %v176
    %v178 = vpop.f32.mrb[0].mxu0
    %v179 = vpop.f32.mrb[0].mxu0
    %v180 = vadd.f32 %v78, %v179
    %v181 = vpop.f32.mrb[0].mxu0
    %182 = vmatprep.mubr.bf16.mxu0 0
    %183 = vmatmul.mubr.bf16.gmra.mrb[0].mxu0 %v136
    %v184 = vpop.f32.mrb[0].mxu0
    %v185 = vadd.f32 %v78, %v184
    %v186 = vpop.f32.mrb[0].mxu0
    %v187 = vpop.f32.mrb[0].mxu0
    %v188 = vadd.f32 %v78, %v187
    %v189 = vpop.f32.mrb[0].mxu0
    %190 = vdwg.mxu0
    %vm191 = vcmp.ge.f32.partialorder %v177, 0.0
    %vm192 = vcmp.ge.f32.partialorder %v180, 0.0
    %vm193 = vcmp.ge.f32.partialorder %v185, 0.0
    %vm194 = vcmp.ge.f32.partialorder %v188, 0.0
    %v195 = vmul.f32 %v177, 0.2
    %v196 = vmul.f32 %v180, 0.2
    %v197 = vmul.f32 %v185, 0.2
    %v198 = vmul.f32 %v188, 0.2
    %v199 = vsel %vm191, %v177, %v195
    %v200 = vsel %vm192, %v180, %v196
    %v201 = vsel %vm193, %v185, %v197
    %v202 = vsel %vm194, %v188, %v198
    %203 = vst [vmem:[#allocation8] sm:$0xff] %v199
    %204 = vst [vmem:[#allocation8 + $0x8] sm:$0xff] %v200
    %205 = vst [vmem:[#allocation8 + $0x10] sm:$0xff] %v201
    %206 = vst [vmem:[#allocation8 + $0x18] sm:$0xff] %v202
    // Predicated region
    $region26: #{stargan_generator_forward.19} parent=1 // pred_check
      _
    $region27: #{stargan_generator_forward.19} parent=1 // pred_check_branch
      %208 = sbr.rel (0) target = $region29
    $region28: #{stargan_generator_forward.19} parent=1 // pred_region
      %s210 = ssub.s32 512, 512
      %211 = vsyncadd [#allocation4], %s210
      %s212 = sshll.u32 [#allocation8], 4
      %s213 = int_to_ptr.vmem [resolvable:$true] %s212
      %218 = dma.vmem_to_hbm [thread:$0]  %s213, 512, %s3, [#allocation4], 128, 128, 8
    $region29: #{stargan_generator_forward.19} parent=1 // pred_fallthru
      _
    // Predicated region
    $region30: #{stargan_generator_forward.19} parent=1 // pred_check
      _
    $region31: #{stargan_generator_forward.19} parent=1 // pred_check_branch
      %220 = sbr.rel (0) target = $region33
    $region32: #{stargan_generator_forward.19} parent=1 // pred_region
      %221 = dma.done [#allocation4], 512
    $region33: #{stargan_generator_forward.19} parent=1 // pred_fallthru
      _
    %222 = vsyncpa [#allocation3], 1
    %223 = vsyncpa [#allocation6], 1
    %224 = vsyncpa [#allocation4], 1

// kernel: stargan_generator_forward.21
$region0: #{stargan_generator_forward.21}
  #allocation0 [shape = 'u32[]', space=smem, size = 0x4, offset = 0x4, fixed_abs, tag = 'smem constant byte address 0x4 - core index']
  #allocation1 [shape = 'u32[144,128]{1,0:T(1,128)}', space=vmem, size = 0x12000, scoped, tag = 'internal scratch']
  %s0 = inlined_call_operand.hbm [shape: bf16[32,20], index: 0, kind: input, shape index: {}]
  %s1 = inlined_call_operand.hbm [shape: bf16[20,128], index: 1, kind: input, shape index: {}]
  %s2 = inlined_call_operand.hbm [shape: f32[1,128], index: 2, kind: input, shape index: {}]
  %s3 = inlined_call_operand.hbm [shape: f32[32,128], index: 3, kind: output, shape index: {}]
  %s4 = sld [smem:[#allocation0]]
  $region34: #{stargan_generator_forward.21} parent=0
    _
  %s6 = ssub.s32 1, %s4
  %s7 = scalar_select 0, %s6, %s4
  $region1: #{stargan_generator_forward.21} parent=0
    #allocation2 [shape = 'u8[8192]{0}', space=vmem, size = 0x2000, scoped, tag = 'input window, operand 0, single buffered']
    #allocation3 [shape = 's32[1]{0}', space=sflag, size = 0x4, scoped, tag = 'scoped memory for stargan_generator_forward.21']
    #allocation4 [shape = 's32[1]{0}', space=sflag, size = 0x4, scoped, tag = 'scoped memory for stargan_generator_forward.21']
    #allocation5 [shape = 'u8[6144]{0}', space=vmem, size = 0x1800, scoped, tag = 'input window, operand 1, single buffered']
    #allocation6 [shape = 's32[1]{0}', space=sflag, size = 0x4, scoped, tag = 'scoped memory for stargan_generator_forward.21']
    #allocation7 [shape = 'u8[512]{0}', space=vmem, size = 0x400, scoped, tag = 'input window, operand 2, single buffered']
    #allocation8 [shape = 'u8[16384]{0}', space=vmem, size = 0x4000, scoped, tag = 'output window, operand 0, single buffered']
    %8 = vsyncpa [#allocation3], 0
    %9 = vsyncpa [#allocation6], 0
    %10 = vsyncpa [#allocation4], 0
    // Predicated region
    $region2: #{stargan_generator_forward.21} parent=1 // pred_check
      _
    $region3: #{stargan_generator_forward.21} parent=1 // pred_check_branch
      %12 = sbr.rel (0) target = $region5
    $region4: #{stargan_generator_forward.21} parent=1 // pred_region
      %s14 = ssub.s32 256, 256
      %15 = vsyncadd [#allocation3], %s14
      %s16 = sshll.u32 [#allocation2], 4
      %s17 = int_to_ptr.vmem [resolvable:$true] %s16
      %22 = dma.hbm_to_vmem [thread:$0]  %s0, 256, %s17, [#allocation3], 64, 64, 4
    $region5: #{stargan_generator_forward.21} parent=1 // pred_fallthru
      _
    // Predicated region
    $region6: #{stargan_generator_forward.21} parent=1 // pred_check
      _
    $region7: #{stargan_generator_forward.21} parent=1 // pred_check_branch
      %24 = sbr.rel (0) target = $region9
    $region8: #{stargan_generator_forward.21} parent=1 // pred_region
      %s26 = ssub.s32 192, 192
      %27 = vsyncadd [#allocation6], %s26
      %s28 = sshll.u32 [#allocation5], 4
      %s29 = int_to_ptr.vmem [resolvable:$true] %s28
      %34 = dma.hbm_to_vmem [thread:$0]  %s1, 192, %s29, [#allocation6], 64, 64, 4
    $region9: #{stargan_generator_forward.21} parent=1 // pred_fallthru
      _
    // Predicated region
    $region10: #{stargan_generator_forward.21} parent=1 // pred_check
      _
    $region11: #{stargan_generator_forward.21} parent=1 // pred_check_branch
      %36 = sbr.rel (0) target = $region13
    $region12: #{stargan_generator_forward.21} parent=1 // pred_region
      %s38 = ssub.s32 16, 16
      %39 = vsyncadd [#allocation6], %s38
      %s41 = sshll.u32 [#allocation7], 4
      %s42 = int_to_ptr.vmem [resolvable:$true] %s41
      %44 = dma.hbm_to_vmem [thread:$0]  %s2, 16, %s42, [#allocation6]
    $region13: #{stargan_generator_forward.21} parent=1 // pred_fallthru
      _
    // Predicated region
    $region14: #{stargan_generator_forward.21} parent=1 // pred_check
      _
    $region15: #{stargan_generator_forward.21} parent=1 // pred_check_branch
      %46 = sbr.rel (0) target = $region17
    $region16: #{stargan_generator_forward.21} parent=1 // pred_region
      %47 = dma.done [#allocation3], 256
    $region17: #{stargan_generator_forward.21} parent=1 // pred_fallthru
      _
    // Predicated region
    $region18: #{stargan_generator_forward.21} parent=1 // pred_check
      _
    $region19: #{stargan_generator_forward.21} parent=1 // pred_check_branch
      %49 = sbr.rel (0) target = $region21
    $region20: #{stargan_generator_forward.21} parent=1 // pred_region
      %50 = dma.done [#allocation6], 192
    $region21: #{stargan_generator_forward.21} parent=1 // pred_fallthru
      _
    // Predicated region
    $region22: #{stargan_generator_forward.21} parent=1 // pred_check
      _
    $region23: #{stargan_generator_forward.21} parent=1 // pred_check_branch
      %52 = sbr.rel (0) target = $region25
    $region24: #{stargan_generator_forward.21} parent=1 // pred_region
      %53 = dma.done [#allocation6], 16
    $region25: #{stargan_generator_forward.21} parent=1 // pred_fallthru
      _
    %v55 = vld [vmem:[#allocation2] sm:$0xf]
    %v56 = vld [vmem:[#allocation2 + $0x4] sm:$0xf]
    %v57 = vld [vmem:[#allocation2 + $0x8] sm:$0xf]
    %v58 = vld [vmem:[#allocation2 + $0xc] sm:$0xf]
    %v59 = vld [vmem:[#allocation5] sm:$0xf]
    %v60 = vld [vmem:[#allocation5 + $0x4] sm:$0xf]
    %v61 = vld [vmem:[#allocation5 + $0x8] sm:$0x3]
    %v62 = vld [vmem:[#allocation7] sm:$0x1]
    %v64 = vlaneseq
    %v65 = vshrl.u32 %v64, 7
    %v66 = vsub.s32 0, %v65
    %v67 = vrot.slane %v62, %v66
    %v73 = vunpack.c.l.b16 %v55
    %v74 = vunpack.c.l.b16 %v56
    %v75 = vunpack.c.l.b16 %v57
    %v76 = vunpack.c.l.b16 %v58
    %v77 = vpack.c.b16 %v74, %v73
    %v78 = vpack.c.b16 %v76, %v75
    %v82 = vunpack.c.l.b16 %v59
    %v83 = vunpack.c.l.b16 %v60
    %v84 = vunpack.c.l.b16 %v61
    %v85 = vpack.c.b16 %v83, %v82
    %v86 = vpack.c.b16 %v84, %v84
    %vm88 = vcmask 162816
    %v90 = vsel %vm88, %v77, 0
    %v93 = vsel %vm88, %v78, 0
    %vm95 = vcmask 1041408
    %v97 = vsel %vm95, %v86, 0
    %99 = vmatprep.subr.bf16.mxu0 0
    %100 = vmatpush1.bf16.msra.mxu0 %v85
    %101 = vmatprep.subr.bf16.mxu0 0
    %102 = vmatpush1.bf16.msra.mxu0 %v97
    %103 = vmatprep.subr.bf16.mxu0 0
    %104 = vmatpush1.bf16.msra.mxu0 0
    %105 = vmatprep.subr.bf16.mxu0 0
    %106 = vmatpush1.bf16.msra.mxu0 0
    %107 = vmatprep.subr.bf16.mxu0 0
    %108 = vmatpush1.bf16.msra.mxu0 0
    %109 = vmatprep.subr.bf16.mxu0 0
    %110 = vmatpush1.bf16.msra.mxu0 0
    %111 = vmatprep.subr.bf16.mxu0 0
    %112 = vmatpush1.bf16.msra.mxu0 0
    %113 = vmatprep.subr.bf16.mxu0 0
    %114 = vmatpush1.bf16.msra.mxu0 0
    %115 = vmatprep.subr.bf16.mxu0 0
    %116 = vmatpush1.bf16.msra.mxu0 0
    %117 = vmatprep.subr.bf16.mxu0 0
    %118 = vmatpush1.bf16.msra.mxu0 0
    %119 = vmatprep.subr.bf16.mxu0 0
    %120 = vmatpush1.bf16.msra.mxu0 0
    %121 = vmatprep.subr.bf16.mxu0 0
    %122 = vmatpush1.bf16.msra.mxu0 0
    %123 = vmatprep.subr.bf16.mxu0 0
    %124 = vmatpush1.bf16.msra.mxu0 0
    %125 = vmatprep.subr.bf16.mxu0 0
    %126 = vmatpush1.bf16.msra.mxu0 0
    %127 = vmatprep.subr.bf16.mxu0 0
    %128 = vmatpush1.bf16.msra.mxu0 0
    %129 = vmatprep.subr.bf16.mxu0 0
    %130 = vmatpush1.bf16.msra.mxu0 0
    %131 = vmatprep.mubr.bf16.mxu0 0
    %132 = vmatmul.mubr.bf16.gmra.mrb[0].mxu0 %v90
    %v133 = vpop.f32.mrb[0].mxu0
    %v134 = vadd.f32 %v67, %v133
    %v135 = vpop.f32.mrb[0].mxu0
    %v136 = vpop.f32.mrb[0].mxu0
    %v137 = vadd.f32 %v67, %v136
    %v138 = vpop.f32.mrb[0].mxu0
    %139 = vmatprep.mubr.bf16.mxu0 0
    %140 = vmatmul.mubr.bf16.gmra.mrb[0].mxu0 %v93
    %v141 = vpop.f32.mrb[0].mxu0
    %v142 = vadd.f32 %v67, %v141
    %v143 = vpop.f32.mrb[0].mxu0
    %v144 = vpop.f32.mrb[0].mxu0
    %v145 = vadd.f32 %v67, %v144
    %v146 = vpop.f32.mrb[0].mxu0
    %147 = vdwg.mxu0
    %vm148 = vcmp.ge.f32.partialorder %v134, 0.0
    %vm149 = vcmp.ge.f32.partialorder %v137, 0.0
    %vm150 = vcmp.ge.f32.partialorder %v142, 0.0
    %vm151 = vcmp.ge.f32.partialorder %v145, 0.0
    %v152 = vmul.f32 %v134, 0.2
    %v153 = vmul.f32 %v137, 0.2
    %v154 = vmul.f32 %v142, 0.2
    %v155 = vmul.f32 %v145, 0.2
    %v156 = vsel %vm148, %v134, %v152
    %v157 = vsel %vm149, %v137, %v153
    %v158 = vsel %vm150, %v142, %v154
    %v159 = vsel %vm151, %v145, %v155
    %160 = vst [vmem:[#allocation8] sm:$0xff] %v156
    %161 = vst [vmem:[#allocation8 + $0x8] sm:$0xff] %v157
    %162 = vst [vmem:[#allocation8 + $0x10] sm:$0xff] %v158
    %163 = vst [vmem:[#allocation8 + $0x18] sm:$0xff] %v159
    // Predicated region
    $region26: #{stargan_generator_forward.21} parent=1 // pred_check
      _
    $region27: #{stargan_generator_forward.21} parent=1 // pred_check_branch
      %165 = sbr.rel (0) target = $region29
    $region28: #{stargan_generator_forward.21} parent=1 // pred_region
      %s167 = ssub.s32 512, 512
      %168 = vsyncadd [#allocation4], %s167
      %s169 = sshll.u32 [#allocation8], 4
      %s170 = int_to_ptr.vmem [resolvable:$true] %s169
      %175 = dma.vmem_to_hbm [thread:$0]  %s170, 512, %s3, [#allocation4], 128, 128, 8
    $region29: #{stargan_generator_forward.21} parent=1 // pred_fallthru
      _
    // Predicated region
    $region30: #{stargan_generator_forward.21} parent=1 // pred_check
      _
    $region31: #{stargan_generator_forward.21} parent=1 // pred_check_branch
      %177 = sbr.rel (0) target = $region33
    $region32: #{stargan_generator_forward.21} parent=1 // pred_region
      %178 = dma.done [#allocation4], 512
    $region33: #{stargan_generator_forward.21} parent=1 // pred_fallthru
      _
    %179 = vsyncpa [#allocation3], 1
    %180 = vsyncpa [#allocation6], 1
    %181 = vsyncpa [#allocation4], 1

// kernel: stargan_generator_forward.22
$region0: #{stargan_generator_forward.22}
  #allocation0 [shape = 'u32[]', space=smem, size = 0x4, offset = 0x4, fixed_abs, tag = 'smem constant byte address 0x4 - core index']
  #allocation1 [shape = 'u32[144,128]{1,0:T(1,128)}', space=vmem, size = 0x12000, scoped, tag = 'internal scratch']
  %s0 = inlined_call_operand.hbm [shape: bf16[32,40], index: 0, kind: input, shape index: {}]
  %s1 = inlined_call_operand.hbm [shape: bf16[40,128], index: 1, kind: input, shape index: {}]
  %s2 = inlined_call_operand.hbm [shape: f32[1,128], index: 2, kind: input, shape index: {}]
  %s3 = inlined_call_operand.hbm [shape: f32[32,128], index: 3, kind: output, shape index: {}]
  %s4 = sld [smem:[#allocation0]]
  $region34: #{stargan_generator_forward.22} parent=0
    _
  %s6 = ssub.s32 1, %s4
  %s7 = scalar_select 0, %s6, %s4
  $region1: #{stargan_generator_forward.22} parent=0
    #allocation2 [shape = 'u8[8192]{0}', space=vmem, size = 0x2000, scoped, tag = 'input window, operand 0, single buffered']
    #allocation3 [shape = 's32[1]{0}', space=sflag, size = 0x4, scoped, tag = 'scoped memory for stargan_generator_forward.22']
    #allocation4 [shape = 's32[1]{0}', space=sflag, size = 0x4, scoped, tag = 'scoped memory for stargan_generator_forward.22']
    #allocation5 [shape = 'u8[10240]{0}', space=vmem, size = 0x2800, scoped, tag = 'input window, operand 1, single buffered']
    #allocation6 [shape = 's32[1]{0}', space=sflag, size = 0x4, scoped, tag = 'scoped memory for stargan_generator_forward.22']
    #allocation7 [shape = 'u8[512]{0}', space=vmem, size = 0x400, scoped, tag = 'input window, operand 2, single buffered']
    #allocation8 [shape = 'u8[16384]{0}', space=vmem, size = 0x4000, scoped, tag = 'output window, operand 0, single buffered']
    %8 = vsyncpa [#allocation3], 0
    %9 = vsyncpa [#allocation6], 0
    %10 = vsyncpa [#allocation4], 0
    // Predicated region
    $region2: #{stargan_generator_forward.22} parent=1 // pred_check
      _
    $region3: #{stargan_generator_forward.22} parent=1 // pred_check_branch
      %12 = sbr.rel (0) target = $region5
    $region4: #{stargan_generator_forward.22} parent=1 // pred_region
      %s14 = ssub.s32 256, 256
      %15 = vsyncadd [#allocation3], %s14
      %s16 = sshll.u32 [#allocation2], 4
      %s17 = int_to_ptr.vmem [resolvable:$true] %s16
      %22 = dma.hbm_to_vmem [thread:$0]  %s0, 256, %s17, [#allocation3], 64, 64, 4
    $region5: #{stargan_generator_forward.22} parent=1 // pred_fallthru
      _
    // Predicated region
    $region6: #{stargan_generator_forward.22} parent=1 // pred_check
      _
    $region7: #{stargan_generator_forward.22} parent=1 // pred_check_branch
      %24 = sbr.rel (0) target = $region9
    $region8: #{stargan_generator_forward.22} parent=1 // pred_region
      %s26 = ssub.s32 320, 320
      %27 = vsyncadd [#allocation6], %s26
      %s28 = sshll.u32 [#allocation5], 4
      %s29 = int_to_ptr.vmem [resolvable:$true] %s28
      %34 = dma.hbm_to_vmem [thread:$0]  %s1, 320, %s29, [#allocation6], 64, 64, 4
    $region9: #{stargan_generator_forward.22} parent=1 // pred_fallthru
      _
    // Predicated region
    $region10: #{stargan_generator_forward.22} parent=1 // pred_check
      _
    $region11: #{stargan_generator_forward.22} parent=1 // pred_check_branch
      %36 = sbr.rel (0) target = $region13
    $region12: #{stargan_generator_forward.22} parent=1 // pred_region
      %s38 = ssub.s32 16, 16
      %39 = vsyncadd [#allocation6], %s38
      %s41 = sshll.u32 [#allocation7], 4
      %s42 = int_to_ptr.vmem [resolvable:$true] %s41
      %44 = dma.hbm_to_vmem [thread:$0]  %s2, 16, %s42, [#allocation6]
    $region13: #{stargan_generator_forward.22} parent=1 // pred_fallthru
      _
    // Predicated region
    $region14: #{stargan_generator_forward.22} parent=1 // pred_check
      _
    $region15: #{stargan_generator_forward.22} parent=1 // pred_check_branch
      %46 = sbr.rel (0) target = $region17
    $region16: #{stargan_generator_forward.22} parent=1 // pred_region
      %47 = dma.done [#allocation3], 256
    $region17: #{stargan_generator_forward.22} parent=1 // pred_fallthru
      _
    // Predicated region
    $region18: #{stargan_generator_forward.22} parent=1 // pred_check
      _
    $region19: #{stargan_generator_forward.22} parent=1 // pred_check_branch
      %49 = sbr.rel (0) target = $region21
    $region20: #{stargan_generator_forward.22} parent=1 // pred_region
      %50 = dma.done [#allocation6], 320
    $region21: #{stargan_generator_forward.22} parent=1 // pred_fallthru
      _
    // Predicated region
    $region22: #{stargan_generator_forward.22} parent=1 // pred_check
      _
    $region23: #{stargan_generator_forward.22} parent=1 // pred_check_branch
      %52 = sbr.rel (0) target = $region25
    $region24: #{stargan_generator_forward.22} parent=1 // pred_region
      %53 = dma.done [#allocation6], 16
    $region25: #{stargan_generator_forward.22} parent=1 // pred_fallthru
      _
    %v55 = vld [vmem:[#allocation2] sm:$0xf]
    %v56 = vld [vmem:[#allocation2 + $0x4] sm:$0xf]
    %v57 = vld [vmem:[#allocation2 + $0x8] sm:$0xf]
    %v58 = vld [vmem:[#allocation2 + $0xc] sm:$0xf]
    %v59 = vld [vmem:[#allocation5] sm:$0xf]
    %v60 = vld [vmem:[#allocation5 + $0x4] sm:$0xf]
    %v61 = vld [vmem:[#allocation5 + $0x8] sm:$0xf]
    %v62 = vld [vmem:[#allocation5 + $0xc] sm:$0xf]
    %v63 = vld [vmem:[#allocation5 + $0x10] sm:$0xf]
    %v64 = vld [vmem:[#allocation7] sm:$0x1]
    %v66 = vlaneseq
    %v67 = vshrl.u32 %v66, 7
    %v68 = vsub.s32 0, %v67
    %v69 = vrot.slane %v64, %v68
    %v75 = vunpack.c.l.b16 %v55
    %v76 = vunpack.c.l.b16 %v56
    %v77 = vunpack.c.l.b16 %v57
    %v78 = vunpack.c.l.b16 %v58
    %v79 = vpack.c.b16 %v76, %v75
    %v80 = vpack.c.b16 %v78, %v77
    %v86 = vunpack.c.l.b16 %v59
    %v87 = vunpack.c.l.b16 %v60
    %v88 = vunpack.c.l.b16 %v61
    %v89 = vunpack.c.l.b16 %v62
    %v90 = vunpack.c.l.b16 %v63
    %v91 = vpack.c.b16 %v87, %v86
    %v92 = vpack.c.b16 %v89, %v88
    %v93 = vpack.c.b16 %v90, %v90
    %vm96 = vcmask 326656
    %v98 = vsel %vm96, %v79, 0
    %v101 = vsel %vm96, %v80, 0
    %vm103 = vcmask 1043456
    %v105 = vsel %vm103, %v93, 0
    %107 = vmatprep.subr.bf16.mxu0 0
    %108 = vmatpush1.bf16.msra.mxu0 %v91
    %109 = vmatprep.subr.bf16.mxu0 0
    %110 = vmatpush1.bf16.msra.mxu0 %v92
    %111 = vmatprep.subr.bf16.mxu0 0
    %112 = vmatpush1.bf16.msra.mxu0 %v105
    %113 = vmatprep.subr.bf16.mxu0 0
    %114 = vmatpush1.bf16.msra.mxu0 0
    %115 = vmatprep.subr.bf16.mxu0 0
    %116 = vmatpush1.bf16.msra.mxu0 0
    %117 = vmatprep.subr.bf16.mxu0 0
    %118 = vmatpush1.bf16.msra.mxu0 0
    %119 = vmatprep.subr.bf16.mxu0 0
    %120 = vmatpush1.bf16.msra.mxu0 0
    %121 = vmatprep.subr.bf16.mxu0 0
    %122 = vmatpush1.bf16.msra.mxu0 0
    %123 = vmatprep.subr.bf16.mxu0 0
    %124 = vmatpush1.bf16.msra.mxu0 0
    %125 = vmatprep.subr.bf16.mxu0 0
    %126 = vmatpush1.bf16.msra.mxu0 0
    %127 = vmatprep.subr.bf16.mxu0 0
    %128 = vmatpush1.bf16.msra.mxu0 0
    %129 = vmatprep.subr.bf16.mxu0 0
    %130 = vmatpush1.bf16.msra.mxu0 0
    %131 = vmatprep.subr.bf16.mxu0 0
    %132 = vmatpush1.bf16.msra.mxu0 0
    %133 = vmatprep.subr.bf16.mxu0 0
    %134 = vmatpush1.bf16.msra.mxu0 0
    %135 = vmatprep.subr.bf16.mxu0 0
    %136 = vmatpush1.bf16.msra.mxu0 0
    %137 = vmatprep.subr.bf16.mxu0 0
    %138 = vmatpush1.bf16.msra.mxu0 0
    %139 = vmatprep.mubr.bf16.mxu0 0
    %140 = vmatmul.mubr.bf16.gmra.mrb[0].mxu0 %v98
    %v141 = vpop.f32.mrb[0].mxu0
    %v142 = vadd.f32 %v69, %v141
    %v143 = vpop.f32.mrb[0].mxu0
    %v144 = vpop.f32.mrb[0].mxu0
    %v145 = vadd.f32 %v69, %v144
    %v146 = vpop.f32.mrb[0].mxu0
    %147 = vmatprep.mubr.bf16.mxu0 0
    %148 = vmatmul.mubr.bf16.gmra.mrb[0].mxu0 %v101
    %v149 = vpop.f32.mrb[0].mxu0
    %v150 = vadd.f32 %v69, %v149
    %v151 = vpop.f32.mrb[0].mxu0
    %v152 = vpop.f32.mrb[0].mxu0
    %v153 = vadd.f32 %v69, %v152
    %v154 = vpop.f32.mrb[0].mxu0
    %155 = vdwg.mxu0
    %vm156 = vcmp.ge.f32.partialorder %v142, 0.0
    %vm157 = vcmp.ge.f32.partialorder %v145, 0.0
    %vm158 = vcmp.ge.f32.partialorder %v150, 0.0
    %vm159 = vcmp.ge.f32.partialorder %v153, 0.0
    %v160 = vmul.f32 %v142, 0.2
    %v161 = vmul.f32 %v145, 0.2
    %v162 = vmul.f32 %v150, 0.2
    %v163 = vmul.f32 %v153, 0.2
    %v164 = vsel %vm156, %v142, %v160
    %v165 = vsel %vm157, %v145, %v161
    %v166 = vsel %vm158, %v150, %v162
    %v167 = vsel %vm159, %v153, %v163
    %168 = vst [vmem:[#allocation8] sm:$0xff] %v164
    %169 = vst [vmem:[#allocation8 + $0x8] sm:$0xff] %v165
    %170 = vst [vmem:[#allocation8 + $0x10] sm:$0xff] %v166
    %171 = vst [vmem:[#allocation8 + $0x18] sm:$0xff] %v167
    // Predicated region
    $region26: #{stargan_generator_forward.22} parent=1 // pred_check
      _
    $region27: #{stargan_generator_forward.22} parent=1 // pred_check_branch
      %173 = sbr.rel (0) target = $region29
    $region28: #{stargan_generator_forward.22} parent=1 // pred_region
      %s175 = ssub.s32 512, 512
      %176 = vsyncadd [#allocation4], %s175
      %s177 = sshll.u32 [#allocation8], 4
      %s178 = int_to_ptr.vmem [resolvable:$true] %s177
      %183 = dma.vmem_to_hbm [thread:$0]  %s178, 512, %s3, [#allocation4], 128, 128, 8
    $region29: #{stargan_generator_forward.22} parent=1 // pred_fallthru
      _
    // Predicated region
    $region30: #{stargan_generator_forward.22} parent=1 // pred_check
      _
    $region31: #{stargan_generator_forward.22} parent=1 // pred_check_branch
      %185 = sbr.rel (0) target = $region33
    $region32: #{stargan_generator_forward.22} parent=1 // pred_region
      %186 = dma.done [#allocation4], 512
    $region33: #{stargan_generator_forward.22} parent=1 // pred_fallthru
      _
    %187 = vsyncpa [#allocation3], 1
    %188 = vsyncpa [#allocation6], 1
    %189 = vsyncpa [#allocation4], 1

// kernel: stargan_generator_forward.24
$region0: #{stargan_generator_forward.24}
  #allocation0 [shape = 'u32[]', space=smem, size = 0x4, offset = 0x4, fixed_abs, tag = 'smem constant byte address 0x4 - core index']
  #allocation1 [shape = 'u32[144,128]{1,0:T(1,128)}', space=vmem, size = 0x12000, scoped, tag = 'internal scratch']
  %s0 = inlined_call_operand.hbm [shape: bf16[32,80], index: 0, kind: input, shape index: {}]
  %s1 = inlined_call_operand.hbm [shape: bf16[80,128], index: 1, kind: input, shape index: {}]
  %s2 = inlined_call_operand.hbm [shape: f32[1,128], index: 2, kind: input, shape index: {}]
  %s3 = inlined_call_operand.hbm [shape: f32[32,128], index: 3, kind: output, shape index: {}]
  %s4 = sld [smem:[#allocation0]]
  $region34: #{stargan_generator_forward.24} parent=0
    _
  %s6 = ssub.s32 1, %s4
  %s7 = scalar_select 0, %s6, %s4
  $region1: #{stargan_generator_forward.24} parent=0
    #allocation2 [shape = 'u8[8192]{0}', space=vmem, size = 0x2000, scoped, tag = 'input window, operand 0, single buffered']
    #allocation3 [shape = 's32[1]{0}', space=sflag, size = 0x4, scoped, tag = 'scoped memory for stargan_generator_forward.24']
    #allocation4 [shape = 's32[1]{0}', space=sflag, size = 0x4, scoped, tag = 'scoped memory for stargan_generator_forward.24']
    #allocation5 [shape = 'u8[20480]{0}', space=vmem, size = 0x5000, scoped, tag = 'input window, operand 1, single buffered']
    #allocation6 [shape = 's32[1]{0}', space=sflag, size = 0x4, scoped, tag = 'scoped memory for stargan_generator_forward.24']
    #allocation7 [shape = 'u8[512]{0}', space=vmem, size = 0x400, scoped, tag = 'input window, operand 2, single buffered']
    #allocation8 [shape = 'u8[16384]{0}', space=vmem, size = 0x4000, scoped, tag = 'output window, operand 0, single buffered']
    %8 = vsyncpa [#allocation3], 0
    %9 = vsyncpa [#allocation6], 0
    %10 = vsyncpa [#allocation4], 0
    // Predicated region
    $region2: #{stargan_generator_forward.24} parent=1 // pred_check
      _
    $region3: #{stargan_generator_forward.24} parent=1 // pred_check_branch
      %12 = sbr.rel (0) target = $region5
    $region4: #{stargan_generator_forward.24} parent=1 // pred_region
      %s14 = ssub.s32 256, 256
      %15 = vsyncadd [#allocation3], %s14
      %s16 = sshll.u32 [#allocation2], 4
      %s17 = int_to_ptr.vmem [resolvable:$true] %s16
      %22 = dma.hbm_to_vmem [thread:$0]  %s0, 256, %s17, [#allocation3], 64, 64, 4
    $region5: #{stargan_generator_forward.24} parent=1 // pred_fallthru
      _
    // Predicated region
    $region6: #{stargan_generator_forward.24} parent=1 // pred_check
      _
    $region7: #{stargan_generator_forward.24} parent=1 // pred_check_branch
      %24 = sbr.rel (0) target = $region9
    $region8: #{stargan_generator_forward.24} parent=1 // pred_region
      %s26 = ssub.s32 640, 640
      %27 = vsyncadd [#allocation6], %s26
      %s28 = sshll.u32 [#allocation5], 4
      %s29 = int_to_ptr.vmem [resolvable:$true] %s28
      %34 = dma.hbm_to_vmem [thread:$0]  %s1, 640, %s29, [#allocation6], 64, 64, 4
    $region9: #{stargan_generator_forward.24} parent=1 // pred_fallthru
      _
    // Predicated region
    $region10: #{stargan_generator_forward.24} parent=1 // pred_check
      _
    $region11: #{stargan_generator_forward.24} parent=1 // pred_check_branch
      %36 = sbr.rel (0) target = $region13
    $region12: #{stargan_generator_forward.24} parent=1 // pred_region
      %s38 = ssub.s32 16, 16
      %39 = vsyncadd [#allocation6], %s38
      %s41 = sshll.u32 [#allocation7], 4
      %s42 = int_to_ptr.vmem [resolvable:$true] %s41
      %44 = dma.hbm_to_vmem [thread:$0]  %s2, 16, %s42, [#allocation6]
    $region13: #{stargan_generator_forward.24} parent=1 // pred_fallthru
      _
    // Predicated region
    $region14: #{stargan_generator_forward.24} parent=1 // pred_check
      _
    $region15: #{stargan_generator_forward.24} parent=1 // pred_check_branch
      %46 = sbr.rel (0) target = $region17
    $region16: #{stargan_generator_forward.24} parent=1 // pred_region
      %47 = dma.done [#allocation3], 256
    $region17: #{stargan_generator_forward.24} parent=1 // pred_fallthru
      _
    // Predicated region
    $region18: #{stargan_generator_forward.24} parent=1 // pred_check
      _
    $region19: #{stargan_generator_forward.24} parent=1 // pred_check_branch
      %49 = sbr.rel (0) target = $region21
    $region20: #{stargan_generator_forward.24} parent=1 // pred_region
      %50 = dma.done [#allocation6], 640
    $region21: #{stargan_generator_forward.24} parent=1 // pred_fallthru
      _
    // Predicated region
    $region22: #{stargan_generator_forward.24} parent=1 // pred_check
      _
    $region23: #{stargan_generator_forward.24} parent=1 // pred_check_branch
      %52 = sbr.rel (0) target = $region25
    $region24: #{stargan_generator_forward.24} parent=1 // pred_region
      %53 = dma.done [#allocation6], 16
    $region25: #{stargan_generator_forward.24} parent=1 // pred_fallthru
      _
    %v55 = vld [vmem:[#allocation2] sm:$0xf]
    %v56 = vld [vmem:[#allocation2 + $0x4] sm:$0xf]
    %v57 = vld [vmem:[#allocation2 + $0x8] sm:$0xf]
    %v58 = vld [vmem:[#allocation2 + $0xc] sm:$0xf]
    %v59 = vld [vmem:[#allocation5] sm:$0xf]
    %v60 = vld [vmem:[#allocation5 + $0x4] sm:$0xf]
    %v61 = vld [vmem:[#allocation5 + $0x8] sm:$0xf]
    %v62 = vld [vmem:[#allocation5 + $0xc] sm:$0xf]
    %v63 = vld [vmem:[#allocation5 + $0x10] sm:$0xf]
    %v64 = vld [vmem:[#allocation5 + $0x14] sm:$0xf]
    %v65 = vld [vmem:[#allocation5 + $0x18] sm:$0xf]
    %v66 = vld [vmem:[#allocation5 + $0x1c] sm:$0xf]
    %v67 = vld [vmem:[#allocation5 + $0x20] sm:$0xf]
    %v68 = vld [vmem:[#allocation5 + $0x24] sm:$0xf]
    %v69 = vld [vmem:[#allocation7] sm:$0x1]
    %v71 = vlaneseq
    %v72 = vshrl.u32 %v71, 7
    %v73 = vsub.s32 0, %v72
    %v74 = vrot.slane %v69, %v73
    %v80 = vunpack.c.l.b16 %v55
    %v81 = vunpack.c.l.b16 %v56
    %v82 = vunpack.c.l.b16 %v57
    %v83 = vunpack.c.l.b16 %v58
    %v84 = vpack.c.b16 %v81, %v80
    %v85 = vpack.c.b16 %v83, %v82
    %v96 = vunpack.c.l.b16 %v59
    %v97 = vunpack.c.l.b16 %v60
    %v98 = vunpack.c.l.b16 %v61
    %v99 = vunpack.c.l.b16 %v62
    %v100 = vunpack.c.l.b16 %v63
    %v101 = vunpack.c.l.b16 %v64
    %v102 = vunpack.c.l.b16 %v65
    %v103 = vunpack.c.l.b16 %v66
    %v104 = vunpack.c.l.b16 %v67
    %v105 = vunpack.c.l.b16 %v68
    %v106 = vpack.c.b16 %v97, %v96
    %v107 = vpack.c.b16 %v99, %v98
    %v108 = vpack.c.b16 %v101, %v100
    %v109 = vpack.c.b16 %v103, %v102
    %v110 = vpack.c.b16 %v105, %v104
    %vm116 = vcmask 654336
    %v118 = vsel %vm116, %v84, 0
    %v121 = vsel %vm116, %v85, 0
    %123 = vmatprep.subr.bf16.mxu0 0
    %124 = vmatpush1.bf16.msra.mxu0 %v106
    %125 = vmatprep.subr.bf16.mxu0 0
    %126 = vmatpush1.bf16.msra.mxu0 %v107
    %127 = vmatprep.subr.bf16.mxu0 0
    %128 = vmatpush1.bf16.msra.mxu0 %v108
    %129 = vmatprep.subr.bf16.mxu0 0
    %130 = vmatpush1.bf16.msra.mxu0 %v109
    %131 = vmatprep.subr.bf16.mxu0 0
    %132 = vmatpush1.bf16.msra.mxu0 %v110
    %133 = vmatprep.subr.bf16.mxu0 0
    %134 = vmatpush1.bf16.msra.mxu0 0
    %135 = vmatprep.subr.bf16.mxu0 0
    %136 = vmatpush1.bf16.msra.mxu0 0
    %137 = vmatprep.subr.bf16.mxu0 0
    %138 = vmatpush1.bf16.msra.mxu0 0
    %139 = vmatprep.subr.bf16.mxu0 0
    %140 = vmatpush1.bf16.msra.mxu0 0
    %141 = vmatprep.subr.bf16.mxu0 0
    %142 = vmatpush1.bf16.msra.mxu0 0
    %143 = vmatprep.subr.bf16.mxu0 0
    %144 = vmatpush1.bf16.msra.mxu0 0
    %145 = vmatprep.subr.bf16.mxu0 0
    %146 = vmatpush1.bf16.msra.mxu0 0
    %147 = vmatprep.subr.bf16.mxu0 0
    %148 = vmatpush1.bf16.msra.mxu0 0
    %149 = vmatprep.subr.bf16.mxu0 0
    %150 = vmatpush1.bf16.msra.mxu0 0
    %151 = vmatprep.subr.bf16.mxu0 0
    %152 = vmatpush1.bf16.msra.mxu0 0
    %153 = vmatprep.subr.bf16.mxu0 0
    %154 = vmatpush1.bf16.msra.mxu0 0
    %155 = vmatprep.mubr.bf16.mxu0 0
    %156 = vmatmul.mubr.bf16.gmra.mrb[0].mxu0 %v118
    %v157 = vpop.f32.mrb[0].mxu0
    %v158 = vadd.f32 %v74, %v157
    %v159 = vpop.f32.mrb[0].mxu0
    %v160 = vpop.f32.mrb[0].mxu0
    %v161 = vadd.f32 %v74, %v160
    %v162 = vpop.f32.mrb[0].mxu0
    %163 = vmatprep.mubr.bf16.mxu0 0
    %164 = vmatmul.mubr.bf16.gmra.mrb[0].mxu0 %v121
    %v165 = vpop.f32.mrb[0].mxu0
    %v166 = vadd.f32 %v74, %v165
    %v167 = vpop.f32.mrb[0].mxu0
    %v168 = vpop.f32.mrb[0].mxu0
    %v169 = vadd.f32 %v74, %v168
    %v170 = vpop.f32.mrb[0].mxu0
    %171 = vdwg.mxu0
    %vm172 = vcmp.ge.f32.partialorder %v158, 0.0
    %vm173 = vcmp.ge.f32.partialorder %v161, 0.0
    %vm174 = vcmp.ge.f32.partialorder %v166, 0.0
    %vm175 = vcmp.ge.f32.partialorder %v169, 0.0
    %v176 = vmul.f32 %v158, 0.2
    %v177 = vmul.f32 %v161, 0.2
    %v178 = vmul.f32 %v166, 0.2
    %v179 = vmul.f32 %v169, 0.2
    %v180 = vsel %vm172, %v158, %v176
    %v181 = vsel %vm173, %v161, %v177
    %v182 = vsel %vm174, %v166, %v178
    %v183 = vsel %vm175, %v169, %v179
    %184 = vst [vmem:[#allocation8] sm:$0xff] %v180
    %185 = vst [vmem:[#allocation8 + $0x8] sm:$0xff] %v181
    %186 = vst [vmem:[#allocation8 + $0x10] sm:$0xff] %v182
    %187 = vst [vmem:[#allocation8 + $0x18] sm:$0xff] %v183
    // Predicated region
    $region26: #{stargan_generator_forward.24} parent=1 // pred_check
      _
    $region27: #{stargan_generator_forward.24} parent=1 // pred_check_branch
      %189 = sbr.rel (0) target = $region29
    $region28: #{stargan_generator_forward.24} parent=1 // pred_region
      %s191 = ssub.s32 512, 512
      %192 = vsyncadd [#allocation4], %s191
      %s193 = sshll.u32 [#allocation8], 4
      %s194 = int_to_ptr.vmem [resolvable:$true] %s193
      %199 = dma.vmem_to_hbm [thread:$0]  %s194, 512, %s3, [#allocation4], 128, 128, 8
    $region29: #{stargan_generator_forward.24} parent=1 // pred_fallthru
      _
    // Predicated region
    $region30: #{stargan_generator_forward.24} parent=1 // pred_check
      _
    $region31: #{stargan_generator_forward.24} parent=1 // pred_check_branch
      %201 = sbr.rel (0) target = $region33
    $region32: #{stargan_generator_forward.24} parent=1 // pred_region
      %202 = dma.done [#allocation4], 512
    $region33: #{stargan_generator_forward.24} parent=1 // pred_fallthru
      _
    %203 = vsyncpa [#allocation3], 1
    %204 = vsyncpa [#allocation6], 1
    %205 = vsyncpa [#allocation4], 1

// kernel: stargan_generator_forward.25
$region0: #{stargan_generator_forward.25}
  #allocation0 [shape = 'u32[]', space=smem, size = 0x4, offset = 0x4, fixed_abs, tag = 'smem constant byte address 0x4 - core index']
  #allocation1 [shape = 'u32[144,128]{1,0:T(1,128)}', space=vmem, size = 0x12000, scoped, tag = 'internal scratch']
  %s0 = inlined_call_operand.hbm [shape: bf16[128,28], index: 0, kind: input, shape index: {}]
  %s1 = inlined_call_operand.hbm [shape: bf16[28,128], index: 1, kind: input, shape index: {}]
  %s2 = inlined_call_operand.hbm [shape: f32[1,128], index: 2, kind: input, shape index: {}]
  %s3 = inlined_call_operand.hbm [shape: f32[128,128], index: 3, kind: output, shape index: {}]
  %s4 = sld [smem:[#allocation0]]
  $region34: #{stargan_generator_forward.25} parent=0
    _
  %s6 = ssub.s32 1, %s4
  %s7 = scalar_select 0, %s6, %s4
  $region1: #{stargan_generator_forward.25} parent=0
    #allocation2 [shape = 'u8[32768]{0}', space=vmem, size = 0x8000, scoped, tag = 'input window, operand 0, single buffered']
    #allocation3 [shape = 's32[1]{0}', space=sflag, size = 0x4, scoped, tag = 'scoped memory for stargan_generator_forward.25']
    #allocation4 [shape = 's32[1]{0}', space=sflag, size = 0x4, scoped, tag = 'scoped memory for stargan_generator_forward.25']
    #allocation5 [shape = 'u8[8192]{0}', space=vmem, size = 0x2000, scoped, tag = 'input window, operand 1, single buffered']
    #allocation6 [shape = 's32[1]{0}', space=sflag, size = 0x4, scoped, tag = 'scoped memory for stargan_generator_forward.25']
    #allocation7 [shape = 'u8[512]{0}', space=vmem, size = 0x400, scoped, tag = 'input window, operand 2, single buffered']
    #allocation8 [shape = 'u8[65536]{0}', space=vmem, size = 0x10000, scoped, tag = 'output window, operand 0, single buffered']
    %8 = vsyncpa [#allocation3], 0
    %9 = vsyncpa [#allocation6], 0
    %10 = vsyncpa [#allocation4], 0
    // Predicated region
    $region2: #{stargan_generator_forward.25} parent=1 // pred_check
      _
    $region3: #{stargan_generator_forward.25} parent=1 // pred_check_branch
      %12 = sbr.rel (0) target = $region5
    $region4: #{stargan_generator_forward.25} parent=1 // pred_region
      %s14 = ssub.s32 1024, 1024
      %15 = vsyncadd [#allocation3], %s14
      %s16 = sshll.u32 [#allocation2], 4
      %s17 = int_to_ptr.vmem [resolvable:$true] %s16
      %22 = dma.hbm_to_vmem [thread:$0]  %s0, 1024, %s17, [#allocation3], 64, 64, 4
    $region5: #{stargan_generator_forward.25} parent=1 // pred_fallthru
      _
    // Predicated region
    $region6: #{stargan_generator_forward.25} parent=1 // pred_check
      _
    $region7: #{stargan_generator_forward.25} parent=1 // pred_check_branch
      %24 = sbr.rel (0) target = $region9
    $region8: #{stargan_generator_forward.25} parent=1 // pred_region
      %s26 = ssub.s32 256, 256
      %27 = vsyncadd [#allocation6], %s26
      %s28 = sshll.u32 [#allocation5], 4
      %s29 = int_to_ptr.vmem [resolvable:$true] %s28
      %34 = dma.hbm_to_vmem [thread:$0]  %s1, 256, %s29, [#allocation6], 64, 64, 4
    $region9: #{stargan_generator_forward.25} parent=1 // pred_fallthru
      _
    // Predicated region
    $region10: #{stargan_generator_forward.25} parent=1 // pred_check
      _
    $region11: #{stargan_generator_forward.25} parent=1 // pred_check_branch
      %36 = sbr.rel (0) target = $region13
    $region12: #{stargan_generator_forward.25} parent=1 // pred_region
      %s38 = ssub.s32 16, 16
      %39 = vsyncadd [#allocation6], %s38
      %s41 = sshll.u32 [#allocation7], 4
      %s42 = int_to_ptr.vmem [resolvable:$true] %s41
      %44 = dma.hbm_to_vmem [thread:$0]  %s2, 16, %s42, [#allocation6]
    $region13: #{stargan_generator_forward.25} parent=1 // pred_fallthru
      _
    // Predicated region
    $region14: #{stargan_generator_forward.25} parent=1 // pred_check
      _
    $region15: #{stargan_generator_forward.25} parent=1 // pred_check_branch
      %46 = sbr.rel (0) target = $region17
    $region16: #{stargan_generator_forward.25} parent=1 // pred_region
      %47 = dma.done [#allocation3], 1024
    $region17: #{stargan_generator_forward.25} parent=1 // pred_fallthru
      _
    // Predicated region
    $region18: #{stargan_generator_forward.25} parent=1 // pred_check
      _
    $region19: #{stargan_generator_forward.25} parent=1 // pred_check_branch
      %49 = sbr.rel (0) target = $region21
    $region20: #{stargan_generator_forward.25} parent=1 // pred_region
      %50 = dma.done [#allocation6], 256
    $region21: #{stargan_generator_forward.25} parent=1 // pred_fallthru
      _
    // Predicated region
    $region22: #{stargan_generator_forward.25} parent=1 // pred_check
      _
    $region23: #{stargan_generator_forward.25} parent=1 // pred_check_branch
      %52 = sbr.rel (0) target = $region25
    $region24: #{stargan_generator_forward.25} parent=1 // pred_region
      %53 = dma.done [#allocation6], 16
    $region25: #{stargan_generator_forward.25} parent=1 // pred_fallthru
      _
    %v55 = vld [vmem:[#allocation2] sm:$0xf]
    %v56 = vld [vmem:[#allocation2 + $0x4] sm:$0xf]
    %v57 = vld [vmem:[#allocation2 + $0x8] sm:$0xf]
    %v58 = vld [vmem:[#allocation2 + $0xc] sm:$0xf]
    %v59 = vld [vmem:[#allocation2 + $0x10] sm:$0xf]
    %v60 = vld [vmem:[#allocation2 + $0x14] sm:$0xf]
    %v61 = vld [vmem:[#allocation2 + $0x18] sm:$0xf]
    %v62 = vld [vmem:[#allocation2 + $0x1c] sm:$0xf]
    %v63 = vld [vmem:[#allocation2 + $0x20] sm:$0xf]
    %v64 = vld [vmem:[#allocation2 + $0x24] sm:$0xf]
    %v65 = vld [vmem:[#allocation2 + $0x28] sm:$0xf]
    %v66 = vld [vmem:[#allocation2 + $0x2c] sm:$0xf]
    %v67 = vld [vmem:[#allocation2 + $0x30] sm:$0xf]
    %v68 = vld [vmem:[#allocation2 + $0x34] sm:$0xf]
    %v69 = vld [vmem:[#allocation2 + $0x38] sm:$0xf]
    %v70 = vld [vmem:[#allocation2 + $0x3c] sm:$0xf]
    %v71 = vld [vmem:[#allocation5] sm:$0xf]
    %v72 = vld [vmem:[#allocation5 + $0x4] sm:$0xf]
    %v73 = vld [vmem:[#allocation5 + $0x8] sm:$0xf]
    %v74 = vld [vmem:[#allocation5 + $0xc] sm:$0x3]
    %v75 = vld [vmem:[#allocation7] sm:$0x1]
    %v77 = vlaneseq
    %v78 = vshrl.u32 %v77, 7
    %v79 = vsub.s32 0, %v78
    %v80 = vrot.slane %v75, %v79
    %v98 = vunpack.c.l.b16 %v55
    %v99 = vunpack.c.l.b16 %v56
    %v100 = vunpack.c.l.b16 %v57
    %v101 = vunpack.c.l.b16 %v58
    %v102 = vunpack.c.l.b16 %v59
    %v103 = vunpack.c.l.b16 %v60
    %v104 = vunpack.c.l.b16 %v61
    %v105 = vunpack.c.l.b16 %v62
    %v106 = vunpack.c.l.b16 %v63
    %v107 = vunpack.c.l.b16 %v64
    %v108 = vunpack.c.l.b16 %v65
    %v109 = vunpack.c.l.b16 %v66
    %v110 = vunpack.c.l.b16 %v67
    %v111 = vunpack.c.l.b16 %v68
    %v112 = vunpack.c.l.b16 %v69
    %v113 = vunpack.c.l.b16 %v70
    %v114 = vpack.c.b16 %v99, %v98
    %v115 = vpack.c.b16 %v101, %v100
    %v116 = vpack.c.b16 %v103, %v102
    %v117 = vpack.c.b16 %v105, %v104
    %v118 = vpack.c.b16 %v107, %v106
    %v119 = vpack.c.b16 %v109, %v108
    %v120 = vpack.c.b16 %v111, %v110
    %v121 = vpack.c.b16 %v113, %v112
    %v126 = vunpack.c.l.b16 %v71
    %v127 = vunpack.c.l.b16 %v72
    %v128 = vunpack.c.l.b16 %v73
    %v129 = vunpack.c.l.b16 %v74
    %v130 = vpack.c.b16 %v127, %v126
    %v131 = vpack.c.b16 %v129, %v128
    %vm133 = vcmask 228352
    %v135 = vsel %vm133, %v114, 0
    %v138 = vsel %vm133, %v115, 0
    %v141 = vsel %vm133, %v116, 0
    %v144 = vsel %vm133, %v117, 0
    %v147 = vsel %vm133, %v118, 0
    %v150 = vsel %vm133, %v119, 0
    %v153 = vsel %vm133, %v120, 0
    %v156 = vsel %vm133, %v121, 0
    %vm158 = vcmask 1045504
    %v160 = vsel %vm158, %v131, 0
    %162 = vmatprep.subr.bf16.mxu0 0
    %163 = vmatpush1.bf16.msra.mxu0 %v130
    %164 = vmatprep.subr.bf16.mxu0 0
    %165 = vmatpush1.bf16.msra.mxu0 %v160
    %166 = vmatprep.subr.bf16.mxu0 0
    %167 = vmatpush1.bf16.msra.mxu0 0
    %168 = vmatprep.subr.bf16.mxu0 0
    %169 = vmatpush1.bf16.msra.mxu0 0
    %170 = vmatprep.subr.bf16.mxu0 0
    %171 = vmatpush1.bf16.msra.mxu0 0
    %172 = vmatprep.subr.bf16.mxu0 0
    %173 = vmatpush1.bf16.msra.mxu0 0
    %174 = vmatprep.subr.bf16.mxu0 0
    %175 = vmatpush1.bf16.msra.mxu0 0
    %176 = vmatprep.subr.bf16.mxu0 0
    %177 = vmatpush1.bf16.msra.mxu0 0
    %178 = vmatprep.subr.bf16.mxu0 0
    %179 = vmatpush1.bf16.msra.mxu0 0
    %180 = vmatprep.subr.bf16.mxu0 0
    %181 = vmatpush1.bf16.msra.mxu0 0
    %182 = vmatprep.subr.bf16.mxu0 0
    %183 = vmatpush1.bf16.msra.mxu0 0
    %184 = vmatprep.subr.bf16.mxu0 0
    %185 = vmatpush1.bf16.msra.mxu0 0
    %186 = vmatprep.subr.bf16.mxu0 0
    %187 = vmatpush1.bf16.msra.mxu0 0
    %188 = vmatprep.subr.bf16.mxu0 0
    %189 = vmatpush1.bf16.msra.mxu0 0
    %190 = vmatprep.subr.bf16.mxu0 0
    %191 = vmatpush1.bf16.msra.mxu0 0
    %192 = vmatprep.subr.bf16.mxu0 0
    %193 = vmatpush1.bf16.msra.mxu0 0
    %194 = vmatprep.mubr.bf16.mxu0 0
    %195 = vmatmul.mubr.bf16.gmra.mrb[0].mxu0 %v135
    %v196 = vpop.f32.mrb[0].mxu0
    %v197 = vadd.f32 %v80, %v196
    %v198 = vpop.f32.mrb[0].mxu0
    %v199 = vpop.f32.mrb[0].mxu0
    %v200 = vadd.f32 %v80, %v199
    %v201 = vpop.f32.mrb[0].mxu0
    %202 = vmatprep.mubr.bf16.mxu0 0
    %203 = vmatmul.mubr.bf16.gmra.mrb[0].mxu0 %v138
    %v204 = vpop.f32.mrb[0].mxu0
    %v205 = vadd.f32 %v80, %v204
    %v206 = vpop.f32.mrb[0].mxu0
    %v207 = vpop.f32.mrb[0].mxu0
    %v208 = vadd.f32 %v80, %v207
    %v209 = vpop.f32.mrb[0].mxu0
    %210 = vmatprep.mubr.bf16.mxu0 0
    %211 = vmatmul.mubr.bf16.gmra.mrb[0].mxu0 %v141
    %v212 = vpop.f32.mrb[0].mxu0
    %v213 = vadd.f32 %v80, %v212
    %v214 = vpop.f32.mrb[0].mxu0
    %v215 = vpop.f32.mrb[0].mxu0
    %v216 = vadd.f32 %v80, %v215
    %v217 = vpop.f32.mrb[0].mxu0
    %218 = vmatprep.mubr.bf16.mxu0 0
    %219 = vmatmul.mubr.bf16.gmra.mrb[0].mxu0 %v144
    %v220 = vpop.f32.mrb[0].mxu0
    %v221 = vadd.f32 %v80, %v220
    %v222 = vpop.f32.mrb[0].mxu0
    %v223 = vpop.f32.mrb[0].mxu0
    %v224 = vadd.f32 %v80, %v223
    %v225 = vpop.f32.mrb[0].mxu0
    %226 = vmatprep.mubr.bf16.mxu0 0
    %227 = vmatmul.mubr.bf16.gmra.mrb[0].mxu0 %v147
    %v228 = vpop.f32.mrb[0].mxu0
    %v229 = vadd.f32 %v80, %v228
    %v230 = vpop.f32.mrb[0].mxu0
    %v231 = vpop.f32.mrb[0].mxu0
    %v232 = vadd.f32 %v80, %v231
    %v233 = vpop.f32.mrb[0].mxu0
    %234 = vmatprep.mubr.bf16.mxu0 0
    %235 = vmatmul.mubr.bf16.gmra.mrb[0].mxu0 %v150
    %v236 = vpop.f32.mrb[0].mxu0
    %v237 = vadd.f32 %v80, %v236
    %v238 = vpop.f32.mrb[0].mxu0
    %v239 = vpop.f32.mrb[0].mxu0
    %v240 = vadd.f32 %v80, %v239
    %v241 = vpop.f32.mrb[0].mxu0
    %242 = vmatprep.mubr.bf16.mxu0 0
    %243 = vmatmul.mubr.bf16.gmra.mrb[0].mxu0 %v153
    %v244 = vpop.f32.mrb[0].mxu0
    %v245 = vadd.f32 %v80, %v244
    %v246 = vpop.f32.mrb[0].mxu0
    %v247 = vpop.f32.mrb[0].mxu0
    %v248 = vadd.f32 %v80, %v247
    %v249 = vpop.f32.mrb[0].mxu0
    %250 = vmatprep.mubr.bf16.mxu0 0
    %251 = vmatmul.mubr.bf16.gmra.mrb[0].mxu0 %v156
    %v252 = vpop.f32.mrb[0].mxu0
    %v253 = vadd.f32 %v80, %v252
    %v254 = vpop.f32.mrb[0].mxu0
    %v255 = vpop.f32.mrb[0].mxu0
    %v256 = vadd.f32 %v80, %v255
    %v257 = vpop.f32.mrb[0].mxu0
    %258 = vdwg.mxu0
    %vm259 = vcmp.ge.f32.partialorder %v197, 0.0
    %vm260 = vcmp.ge.f32.partialorder %v200, 0.0
    %vm261 = vcmp.ge.f32.partialorder %v205, 0.0
    %vm262 = vcmp.ge.f32.partialorder %v208, 0.0
    %vm263 = vcmp.ge.f32.partialorder %v213, 0.0
    %vm264 = vcmp.ge.f32.partialorder %v216, 0.0
    %vm265 = vcmp.ge.f32.partialorder %v221, 0.0
    %vm266 = vcmp.ge.f32.partialorder %v224, 0.0
    %vm267 = vcmp.ge.f32.partialorder %v229, 0.0
    %vm268 = vcmp.ge.f32.partialorder %v232, 0.0
    %vm269 = vcmp.ge.f32.partialorder %v237, 0.0
    %vm270 = vcmp.ge.f32.partialorder %v240, 0.0
    %vm271 = vcmp.ge.f32.partialorder %v245, 0.0
    %vm272 = vcmp.ge.f32.partialorder %v248, 0.0
    %vm273 = vcmp.ge.f32.partialorder %v253, 0.0
    %vm274 = vcmp.ge.f32.partialorder %v256, 0.0
    %v275 = vmul.f32 %v197, 0.2
    %v276 = vmul.f32 %v200, 0.2
    %v277 = vmul.f32 %v205, 0.2
    %v278 = vmul.f32 %v208, 0.2
    %v279 = vmul.f32 %v213, 0.2
    %v280 = vmul.f32 %v216, 0.2
    %v281 = vmul.f32 %v221, 0.2
    %v282 = vmul.f32 %v224, 0.2
    %v283 = vmul.f32 %v229, 0.2
    %v284 = vmul.f32 %v232, 0.2
    %v285 = vmul.f32 %v237, 0.2
    %v286 = vmul.f32 %v240, 0.2
    %v287 = vmul.f32 %v245, 0.2
    %v288 = vmul.f32 %v248, 0.2
    %v289 = vmul.f32 %v253, 0.2
    %v290 = vmul.f32 %v256, 0.2
    %v291 = vsel %vm259, %v197, %v275
    %v292 = vsel %vm260, %v200, %v276
    %v293 = vsel %vm261, %v205, %v277
    %v294 = vsel %vm262, %v208, %v278
    %v295 = vsel %vm263, %v213, %v279
    %v296 = vsel %vm264, %v216, %v280
    %v297 = vsel %vm265, %v221, %v281
    %v298 = vsel %vm266, %v224, %v282
    %v299 = vsel %vm267, %v229, %v283
    %v300 = vsel %vm268, %v232, %v284
    %v301 = vsel %vm269, %v237, %v285
    %v302 = vsel %vm270, %v240, %v286
    %v303 = vsel %vm271, %v245, %v287
    %v304 = vsel %vm272, %v248, %v288
    %v305 = vsel %vm273, %v253, %v289
    %v306 = vsel %vm274, %v256, %v290
    %307 = vst [vmem:[#allocation8] sm:$0xff] %v291
    %308 = vst [vmem:[#allocation8 + $0x8] sm:$0xff] %v292
    %309 = vst [vmem:[#allocation8 + $0x10] sm:$0xff] %v293
    %310 = vst [vmem:[#allocation8 + $0x18] sm:$0xff] %v294
    %311 = vst [vmem:[#allocation8 + $0x20] sm:$0xff] %v295
    %312 = vst [vmem:[#allocation8 + $0x28] sm:$0xff] %v296
    %313 = vst [vmem:[#allocation8 + $0x30] sm:$0xff] %v297
    %314 = vst [vmem:[#allocation8 + $0x38] sm:$0xff] %v298
    %315 = vst [vmem:[#allocation8 + $0x40] sm:$0xff] %v299
    %316 = vst [vmem:[#allocation8 + $0x48] sm:$0xff] %v300
    %317 = vst [vmem:[#allocation8 + $0x50] sm:$0xff] %v301
    %318 = vst [vmem:[#allocation8 + $0x58] sm:$0xff] %v302
    %319 = vst [vmem:[#allocation8 + $0x60] sm:$0xff] %v303
    %320 = vst [vmem:[#allocation8 + $0x68] sm:$0xff] %v304
    %321 = vst [vmem:[#allocation8 + $0x70] sm:$0xff] %v305
    %322 = vst [vmem:[#allocation8 + $0x78] sm:$0xff] %v306
    // Predicated region
    $region26: #{stargan_generator_forward.25} parent=1 // pred_check
      _
    $region27: #{stargan_generator_forward.25} parent=1 // pred_check_branch
      %324 = sbr.rel (0) target = $region29
    $region28: #{stargan_generator_forward.25} parent=1 // pred_region
      %s326 = ssub.s32 2048, 2048
      %327 = vsyncadd [#allocation4], %s326
      %s328 = sshll.u32 [#allocation8], 4
      %s329 = int_to_ptr.vmem [resolvable:$true] %s328
      %334 = dma.vmem_to_hbm [thread:$0]  %s329, 2048, %s3, [#allocation4], 128, 128, 8
    $region29: #{stargan_generator_forward.25} parent=1 // pred_fallthru
      _
    // Predicated region
    $region30: #{stargan_generator_forward.25} parent=1 // pred_check
      _
    $region31: #{stargan_generator_forward.25} parent=1 // pred_check_branch
      %336 = sbr.rel (0) target = $region33
    $region32: #{stargan_generator_forward.25} parent=1 // pred_region
      %337 = dma.done [#allocation4], 2048
    $region33: #{stargan_generator_forward.25} parent=1 // pred_fallthru
      _
    %338 = vsyncpa [#allocation3], 1
    %339 = vsyncpa [#allocation6], 1
    %340 = vsyncpa [#allocation4], 1

// kernel: stargan_generator_forward.26
$region0: #{stargan_generator_forward.26}
  #allocation0 [shape = 'u32[]', space=smem, size = 0x4, offset = 0x4, fixed_abs, tag = 'smem constant byte address 0x4 - core index']
  #allocation1 [shape = 'u32[144,128]{1,0:T(1,128)}', space=vmem, size = 0x12000, scoped, tag = 'internal scratch']
  %s0 = inlined_call_operand.hbm [shape: bf16[128,56], index: 0, kind: input, shape index: {}]
  %s1 = inlined_call_operand.hbm [shape: bf16[56,128], index: 1, kind: input, shape index: {}]
  %s2 = inlined_call_operand.hbm [shape: f32[1,128], index: 2, kind: input, shape index: {}]
  %s3 = inlined_call_operand.hbm [shape: f32[128,128], index: 3, kind: output, shape index: {}]
  %s4 = sld [smem:[#allocation0]]
  $region34: #{stargan_generator_forward.26} parent=0
    _
  %s6 = ssub.s32 1, %s4
  %s7 = scalar_select 0, %s6, %s4
  $region1: #{stargan_generator_forward.26} parent=0
    #allocation2 [shape = 'u8[32768]{0}', space=vmem, size = 0x8000, scoped, tag = 'input window, operand 0, single buffered']
    #allocation3 [shape = 's32[1]{0}', space=sflag, size = 0x4, scoped, tag = 'scoped memory for stargan_generator_forward.26']
    #allocation4 [shape = 's32[1]{0}', space=sflag, size = 0x4, scoped, tag = 'scoped memory for stargan_generator_forward.26']
    #allocation5 [shape = 'u8[14336]{0}', space=vmem, size = 0x3800, scoped, tag = 'input window, operand 1, single buffered']
    #allocation6 [shape = 's32[1]{0}', space=sflag, size = 0x4, scoped, tag = 'scoped memory for stargan_generator_forward.26']
    #allocation7 [shape = 'u8[512]{0}', space=vmem, size = 0x400, scoped, tag = 'input window, operand 2, single buffered']
    #allocation8 [shape = 'u8[65536]{0}', space=vmem, size = 0x10000, scoped, tag = 'output window, operand 0, single buffered']
    %8 = vsyncpa [#allocation3], 0
    %9 = vsyncpa [#allocation6], 0
    %10 = vsyncpa [#allocation4], 0
    // Predicated region
    $region2: #{stargan_generator_forward.26} parent=1 // pred_check
      _
    $region3: #{stargan_generator_forward.26} parent=1 // pred_check_branch
      %12 = sbr.rel (0) target = $region5
    $region4: #{stargan_generator_forward.26} parent=1 // pred_region
      %s14 = ssub.s32 1024, 1024
      %15 = vsyncadd [#allocation3], %s14
      %s16 = sshll.u32 [#allocation2], 4
      %s17 = int_to_ptr.vmem [resolvable:$true] %s16
      %22 = dma.hbm_to_vmem [thread:$0]  %s0, 1024, %s17, [#allocation3], 64, 64, 4
    $region5: #{stargan_generator_forward.26} parent=1 // pred_fallthru
      _
    // Predicated region
    $region6: #{stargan_generator_forward.26} parent=1 // pred_check
      _
    $region7: #{stargan_generator_forward.26} parent=1 // pred_check_branch
      %24 = sbr.rel (0) target = $region9
    $region8: #{stargan_generator_forward.26} parent=1 // pred_region
      %s26 = ssub.s32 448, 448
      %27 = vsyncadd [#allocation6], %s26
      %s28 = sshll.u32 [#allocation5], 4
      %s29 = int_to_ptr.vmem [resolvable:$true] %s28
      %34 = dma.hbm_to_vmem [thread:$0]  %s1, 448, %s29, [#allocation6], 64, 64, 4
    $region9: #{stargan_generator_forward.26} parent=1 // pred_fallthru
      _
    // Predicated region
    $region10: #{stargan_generator_forward.26} parent=1 // pred_check
      _
    $region11: #{stargan_generator_forward.26} parent=1 // pred_check_branch
      %36 = sbr.rel (0) target = $region13
    $region12: #{stargan_generator_forward.26} parent=1 // pred_region
      %s38 = ssub.s32 16, 16
      %39 = vsyncadd [#allocation6], %s38
      %s41 = sshll.u32 [#allocation7], 4
      %s42 = int_to_ptr.vmem [resolvable:$true] %s41
      %44 = dma.hbm_to_vmem [thread:$0]  %s2, 16, %s42, [#allocation6]
    $region13: #{stargan_generator_forward.26} parent=1 // pred_fallthru
      _
    // Predicated region
    $region14: #{stargan_generator_forward.26} parent=1 // pred_check
      _
    $region15: #{stargan_generator_forward.26} parent=1 // pred_check_branch
      %46 = sbr.rel (0) target = $region17
    $region16: #{stargan_generator_forward.26} parent=1 // pred_region
      %47 = dma.done [#allocation3], 1024
    $region17: #{stargan_generator_forward.26} parent=1 // pred_fallthru
      _
    // Predicated region
    $region18: #{stargan_generator_forward.26} parent=1 // pred_check
      _
    $region19: #{stargan_generator_forward.26} parent=1 // pred_check_branch
      %49 = sbr.rel (0) target = $region21
    $region20: #{stargan_generator_forward.26} parent=1 // pred_region
      %50 = dma.done [#allocation6], 448
    $region21: #{stargan_generator_forward.26} parent=1 // pred_fallthru
      _
    // Predicated region
    $region22: #{stargan_generator_forward.26} parent=1 // pred_check
      _
    $region23: #{stargan_generator_forward.26} parent=1 // pred_check_branch
      %52 = sbr.rel (0) target = $region25
    $region24: #{stargan_generator_forward.26} parent=1 // pred_region
      %53 = dma.done [#allocation6], 16
    $region25: #{stargan_generator_forward.26} parent=1 // pred_fallthru
      _
    %v55 = vld [vmem:[#allocation2] sm:$0xf]
    %v56 = vld [vmem:[#allocation2 + $0x4] sm:$0xf]
    %v57 = vld [vmem:[#allocation2 + $0x8] sm:$0xf]
    %v58 = vld [vmem:[#allocation2 + $0xc] sm:$0xf]
    %v59 = vld [vmem:[#allocation2 + $0x10] sm:$0xf]
    %v60 = vld [vmem:[#allocation2 + $0x14] sm:$0xf]
    %v61 = vld [vmem:[#allocation2 + $0x18] sm:$0xf]
    %v62 = vld [vmem:[#allocation2 + $0x1c] sm:$0xf]
    %v63 = vld [vmem:[#allocation2 + $0x20] sm:$0xf]
    %v64 = vld [vmem:[#allocation2 + $0x24] sm:$0xf]
    %v65 = vld [vmem:[#allocation2 + $0x28] sm:$0xf]
    %v66 = vld [vmem:[#allocation2 + $0x2c] sm:$0xf]
    %v67 = vld [vmem:[#allocation2 + $0x30] sm:$0xf]
    %v68 = vld [vmem:[#allocation2 + $0x34] sm:$0xf]
    %v69 = vld [vmem:[#allocation2 + $0x38] sm:$0xf]
    %v70 = vld [vmem:[#allocation2 + $0x3c] sm:$0xf]
    %v71 = vld [vmem:[#allocation5] sm:$0xf]
    %v72 = vld [vmem:[#allocation5 + $0x4] sm:$0xf]
    %v73 = vld [vmem:[#allocation5 + $0x8] sm:$0xf]
    %v74 = vld [vmem:[#allocation5 + $0xc] sm:$0xf]
    %v75 = vld [vmem:[#allocation5 + $0x10] sm:$0xf]
    %v76 = vld [vmem:[#allocation5 + $0x14] sm:$0xf]
    %v77 = vld [vmem:[#allocation5 + $0x18] sm:$0xf]
    %v78 = vld [vmem:[#allocation7] sm:$0x1]
    %v80 = vlaneseq
    %v81 = vshrl.u32 %v80, 7
    %v82 = vsub.s32 0, %v81
    %v83 = vrot.slane %v78, %v82
    %v101 = vunpack.c.l.b16 %v55
    %v102 = vunpack.c.l.b16 %v56
    %v103 = vunpack.c.l.b16 %v57
    %v104 = vunpack.c.l.b16 %v58
    %v105 = vunpack.c.l.b16 %v59
    %v106 = vunpack.c.l.b16 %v60
    %v107 = vunpack.c.l.b16 %v61
    %v108 = vunpack.c.l.b16 %v62
    %v109 = vunpack.c.l.b16 %v63
    %v110 = vunpack.c.l.b16 %v64
    %v111 = vunpack.c.l.b16 %v65
    %v112 = vunpack.c.l.b16 %v66
    %v113 = vunpack.c.l.b16 %v67
    %v114 = vunpack.c.l.b16 %v68
    %v115 = vunpack.c.l.b16 %v69
    %v116 = vunpack.c.l.b16 %v70
    %v117 = vpack.c.b16 %v102, %v101
    %v118 = vpack.c.b16 %v104, %v103
    %v119 = vpack.c.b16 %v106, %v105
    %v120 = vpack.c.b16 %v108, %v107
    %v121 = vpack.c.b16 %v110, %v109
    %v122 = vpack.c.b16 %v112, %v111
    %v123 = vpack.c.b16 %v114, %v113
    %v124 = vpack.c.b16 %v116, %v115
    %v132 = vunpack.c.l.b16 %v71
    %v133 = vunpack.c.l.b16 %v72
    %v134 = vunpack.c.l.b16 %v73
    %v135 = vunpack.c.l.b16 %v74
    %v136 = vunpack.c.l.b16 %v75
    %v137 = vunpack.c.l.b16 %v76
    %v138 = vunpack.c.l.b16 %v77
    %v139 = vpack.c.b16 %v133, %v132
    %v140 = vpack.c.b16 %v135, %v134
    %v141 = vpack.c.b16 %v137, %v136
    %v142 = vpack.c.b16 %v138, %v138
    %vm146 = vcmask 457728
    %v148 = vsel %vm146, %v117, 0
    %v151 = vsel %vm146, %v118, 0
    %v154 = vsel %vm146, %v119, 0
    %v157 = vsel %vm146, %v120, 0
    %v160 = vsel %vm146, %v121, 0
    %v163 = vsel %vm146, %v122, 0
    %v166 = vsel %vm146, %v123, 0
    %v169 = vsel %vm146, %v124, 0
    %vm171 = vcmask 1043456
    %v173 = vsel %vm171, %v142, 0
    %175 = vmatprep.subr.bf16.mxu0 0
    %176 = vmatpush1.bf16.msra.mxu0 %v139
    %177 = vmatprep.subr.bf16.mxu0 0
    %178 = vmatpush1.bf16.msra.mxu0 %v140
    %179 = vmatprep.subr.bf16.mxu0 0
    %180 = vmatpush1.bf16.msra.mxu0 %v141
    %181 = vmatprep.subr.bf16.mxu0 0
    %182 = vmatpush1.bf16.msra.mxu0 %v173
    %183 = vmatprep.subr.bf16.mxu0 0
    %184 = vmatpush1.bf16.msra.mxu0 0
    %185 = vmatprep.subr.bf16.mxu0 0
    %186 = vmatpush1.bf16.msra.mxu0 0
    %187 = vmatprep.subr.bf16.mxu0 0
    %188 = vmatpush1.bf16.msra.mxu0 0
    %189 = vmatprep.subr.bf16.mxu0 0
    %190 = vmatpush1.bf16.msra.mxu0 0
    %191 = vmatprep.subr.bf16.mxu0 0
    %192 = vmatpush1.bf16.msra.mxu0 0
    %193 = vmatprep.subr.bf16.mxu0 0
    %194 = vmatpush1.bf16.msra.mxu0 0
    %195 = vmatprep.subr.bf16.mxu0 0
    %196 = vmatpush1.bf16.msra.mxu0 0
    %197 = vmatprep.subr.bf16.mxu0 0
    %198 = vmatpush1.bf16.msra.mxu0 0
    %199 = vmatprep.subr.bf16.mxu0 0
    %200 = vmatpush1.bf16.msra.mxu0 0
    %201 = vmatprep.subr.bf16.mxu0 0
    %202 = vmatpush1.bf16.msra.mxu0 0
    %203 = vmatprep.subr.bf16.mxu0 0
    %204 = vmatpush1.bf16.msra.mxu0 0
    %205 = vmatprep.subr.bf16.mxu0 0
    %206 = vmatpush1.bf16.msra.mxu0 0
    %207 = vmatprep.mubr.bf16.mxu0 0
    %208 = vmatmul.mubr.bf16.gmra.mrb[0].mxu0 %v148
    %v209 = vpop.f32.mrb[0].mxu0
    %v210 = vadd.f32 %v83, %v209
    %v211 = vpop.f32.mrb[0].mxu0
    %v212 = vpop.f32.mrb[0].mxu0
    %v213 = vadd.f32 %v83, %v212
    %v214 = vpop.f32.mrb[0].mxu0
    %215 = vmatprep.mubr.bf16.mxu0 0
    %216 = vmatmul.mubr.bf16.gmra.mrb[0].mxu0 %v151
    %v217 = vpop.f32.mrb[0].mxu0
    %v218 = vadd.f32 %v83, %v217
    %v219 = vpop.f32.mrb[0].mxu0
    %v220 = vpop.f32.mrb[0].mxu0
    %v221 = vadd.f32 %v83, %v220
    %v222 = vpop.f32.mrb[0].mxu0
    %223 = vmatprep.mubr.bf16.mxu0 0
    %224 = vmatmul.mubr.bf16.gmra.mrb[0].mxu0 %v154
    %v225 = vpop.f32.mrb[0].mxu0
    %v226 = vadd.f32 %v83, %v225
    %v227 = vpop.f32.mrb[0].mxu0
    %v228 = vpop.f32.mrb[0].mxu0
    %v229 = vadd.f32 %v83, %v228
    %v230 = vpop.f32.mrb[0].mxu0
    %231 = vmatprep.mubr.bf16.mxu0 0
    %232 = vmatmul.mubr.bf16.gmra.mrb[0].mxu0 %v157
    %v233 = vpop.f32.mrb[0].mxu0
    %v234 = vadd.f32 %v83, %v233
    %v235 = vpop.f32.mrb[0].mxu0
    %v236 = vpop.f32.mrb[0].mxu0
    %v237 = vadd.f32 %v83, %v236
    %v238 = vpop.f32.mrb[0].mxu0
    %239 = vmatprep.mubr.bf16.mxu0 0
    %240 = vmatmul.mubr.bf16.gmra.mrb[0].mxu0 %v160
    %v241 = vpop.f32.mrb[0].mxu0
    %v242 = vadd.f32 %v83, %v241
    %v243 = vpop.f32.mrb[0].mxu0
    %v244 = vpop.f32.mrb[0].mxu0
    %v245 = vadd.f32 %v83, %v244
    %v246 = vpop.f32.mrb[0].mxu0
    %247 = vmatprep.mubr.bf16.mxu0 0
    %248 = vmatmul.mubr.bf16.gmra.mrb[0].mxu0 %v163
    %v249 = vpop.f32.mrb[0].mxu0
    %v250 = vadd.f32 %v83, %v249
    %v251 = vpop.f32.mrb[0].mxu0
    %v252 = vpop.f32.mrb[0].mxu0
    %v253 = vadd.f32 %v83, %v252
    %v254 = vpop.f32.mrb[0].mxu0
    %255 = vmatprep.mubr.bf16.mxu0 0
    %256 = vmatmul.mubr.bf16.gmra.mrb[0].mxu0 %v166
    %v257 = vpop.f32.mrb[0].mxu0
    %v258 = vadd.f32 %v83, %v257
    %v259 = vpop.f32.mrb[0].mxu0
    %v260 = vpop.f32.mrb[0].mxu0
    %v261 = vadd.f32 %v83, %v260
    %v262 = vpop.f32.mrb[0].mxu0
    %263 = vmatprep.mubr.bf16.mxu0 0
    %264 = vmatmul.mubr.bf16.gmra.mrb[0].mxu0 %v169
    %v265 = vpop.f32.mrb[0].mxu0
    %v266 = vadd.f32 %v83, %v265
    %v267 = vpop.f32.mrb[0].mxu0
    %v268 = vpop.f32.mrb[0].mxu0
    %v269 = vadd.f32 %v83, %v268
    %v270 = vpop.f32.mrb[0].mxu0
    %271 = vdwg.mxu0
    %vm272 = vcmp.ge.f32.partialorder %v210, 0.0
    %vm273 = vcmp.ge.f32.partialorder %v213, 0.0
    %vm274 = vcmp.ge.f32.partialorder %v218, 0.0
    %vm275 = vcmp.ge.f32.partialorder %v221, 0.0
    %vm276 = vcmp.ge.f32.partialorder %v226, 0.0
    %vm277 = vcmp.ge.f32.partialorder %v229, 0.0
    %vm278 = vcmp.ge.f32.partialorder %v234, 0.0
    %vm279 = vcmp.ge.f32.partialorder %v237, 0.0
    %vm280 = vcmp.ge.f32.partialorder %v242, 0.0
    %vm281 = vcmp.ge.f32.partialorder %v245, 0.0
    %vm282 = vcmp.ge.f32.partialorder %v250, 0.0
    %vm283 = vcmp.ge.f32.partialorder %v253, 0.0
    %vm284 = vcmp.ge.f32.partialorder %v258, 0.0
    %vm285 = vcmp.ge.f32.partialorder %v261, 0.0
    %vm286 = vcmp.ge.f32.partialorder %v266, 0.0
    %vm287 = vcmp.ge.f32.partialorder %v269, 0.0
    %v288 = vmul.f32 %v210, 0.2
    %v289 = vmul.f32 %v213, 0.2
    %v290 = vmul.f32 %v218, 0.2
    %v291 = vmul.f32 %v221, 0.2
    %v292 = vmul.f32 %v226, 0.2
    %v293 = vmul.f32 %v229, 0.2
    %v294 = vmul.f32 %v234, 0.2
    %v295 = vmul.f32 %v237, 0.2
    %v296 = vmul.f32 %v242, 0.2
    %v297 = vmul.f32 %v245, 0.2
    %v298 = vmul.f32 %v250, 0.2
    %v299 = vmul.f32 %v253, 0.2
    %v300 = vmul.f32 %v258, 0.2
    %v301 = vmul.f32 %v261, 0.2
    %v302 = vmul.f32 %v266, 0.2
    %v303 = vmul.f32 %v269, 0.2
    %v304 = vsel %vm272, %v210, %v288
    %v305 = vsel %vm273, %v213, %v289
    %v306 = vsel %vm274, %v218, %v290
    %v307 = vsel %vm275, %v221, %v291
    %v308 = vsel %vm276, %v226, %v292
    %v309 = vsel %vm277, %v229, %v293
    %v310 = vsel %vm278, %v234, %v294
    %v311 = vsel %vm279, %v237, %v295
    %v312 = vsel %vm280, %v242, %v296
    %v313 = vsel %vm281, %v245, %v297
    %v314 = vsel %vm282, %v250, %v298
    %v315 = vsel %vm283, %v253, %v299
    %v316 = vsel %vm284, %v258, %v300
    %v317 = vsel %vm285, %v261, %v301
    %v318 = vsel %vm286, %v266, %v302
    %v319 = vsel %vm287, %v269, %v303
    %320 = vst [vmem:[#allocation8] sm:$0xff] %v304
    %321 = vst [vmem:[#allocation8 + $0x8] sm:$0xff] %v305
    %322 = vst [vmem:[#allocation8 + $0x10] sm:$0xff] %v306
    %323 = vst [vmem:[#allocation8 + $0x18] sm:$0xff] %v307
    %324 = vst [vmem:[#allocation8 + $0x20] sm:$0xff] %v308
    %325 = vst [vmem:[#allocation8 + $0x28] sm:$0xff] %v309
    %326 = vst [vmem:[#allocation8 + $0x30] sm:$0xff] %v310
    %327 = vst [vmem:[#allocation8 + $0x38] sm:$0xff] %v311
    %328 = vst [vmem:[#allocation8 + $0x40] sm:$0xff] %v312
    %329 = vst [vmem:[#allocation8 + $0x48] sm:$0xff] %v313
    %330 = vst [vmem:[#allocation8 + $0x50] sm:$0xff] %v314
    %331 = vst [vmem:[#allocation8 + $0x58] sm:$0xff] %v315
    %332 = vst [vmem:[#allocation8 + $0x60] sm:$0xff] %v316
    %333 = vst [vmem:[#allocation8 + $0x68] sm:$0xff] %v317
    %334 = vst [vmem:[#allocation8 + $0x70] sm:$0xff] %v318
    %335 = vst [vmem:[#allocation8 + $0x78] sm:$0xff] %v319
    // Predicated region
    $region26: #{stargan_generator_forward.26} parent=1 // pred_check
      _
    $region27: #{stargan_generator_forward.26} parent=1 // pred_check_branch
      %337 = sbr.rel (0) target = $region29
    $region28: #{stargan_generator_forward.26} parent=1 // pred_region
      %s339 = ssub.s32 2048, 2048
      %340 = vsyncadd [#allocation4], %s339
      %s341 = sshll.u32 [#allocation8], 4
      %s342 = int_to_ptr.vmem [resolvable:$true] %s341
      %347 = dma.vmem_to_hbm [thread:$0]  %s342, 2048, %s3, [#allocation4], 128, 128, 8
    $region29: #{stargan_generator_forward.26} parent=1 // pred_fallthru
      _
    // Predicated region
    $region30: #{stargan_generator_forward.26} parent=1 // pred_check
      _
    $region31: #{stargan_generator_forward.26} parent=1 // pred_check_branch
      %349 = sbr.rel (0) target = $region33
    $region32: #{stargan_generator_forward.26} parent=1 // pred_region
      %350 = dma.done [#allocation4], 2048
    $region33: #{stargan_generator_forward.26} parent=1 // pred_fallthru
      _
    %351 = vsyncpa [#allocation3], 1
    %352 = vsyncpa [#allocation6], 1
    %353 = vsyncpa [#allocation4], 1

// kernel: stargan_generator_forward.28
$region0: #{stargan_generator_forward.28}
  #allocation0 [shape = 'u32[]', space=smem, size = 0x4, offset = 0x4, fixed_abs, tag = 'smem constant byte address 0x4 - core index']
  #allocation1 [shape = 'u32[144,128]{1,0:T(1,128)}', space=vmem, size = 0x12000, scoped, tag = 'internal scratch']
  %s0 = inlined_call_operand.hbm [shape: bf16[128,112], index: 0, kind: input, shape index: {}]
  %s1 = inlined_call_operand.hbm [shape: bf16[112,128], index: 1, kind: input, shape index: {}]
  %s2 = inlined_call_operand.hbm [shape: f32[1,128], index: 2, kind: input, shape index: {}]
  %s3 = inlined_call_operand.hbm [shape: f32[128,128], index: 3, kind: output, shape index: {}]
  %s4 = sld [smem:[#allocation0]]
  $region34: #{stargan_generator_forward.28} parent=0
    _
  %s6 = ssub.s32 1, %s4
  %s7 = scalar_select 0, %s6, %s4
  $region1: #{stargan_generator_forward.28} parent=0
    #allocation2 [shape = 'u8[32768]{0}', space=vmem, size = 0x8000, scoped, tag = 'input window, operand 0, single buffered']
    #allocation3 [shape = 's32[1]{0}', space=sflag, size = 0x4, scoped, tag = 'scoped memory for stargan_generator_forward.28']
    #allocation4 [shape = 's32[1]{0}', space=sflag, size = 0x4, scoped, tag = 'scoped memory for stargan_generator_forward.28']
    #allocation5 [shape = 'u8[28672]{0}', space=vmem, size = 0x7000, scoped, tag = 'input window, operand 1, single buffered']
    #allocation6 [shape = 's32[1]{0}', space=sflag, size = 0x4, scoped, tag = 'scoped memory for stargan_generator_forward.28']
    #allocation7 [shape = 'u8[512]{0}', space=vmem, size = 0x400, scoped, tag = 'input window, operand 2, single buffered']
    #allocation8 [shape = 'u8[65536]{0}', space=vmem, size = 0x10000, scoped, tag = 'output window, operand 0, single buffered']
    %8 = vsyncpa [#allocation3], 0
    %9 = vsyncpa [#allocation6], 0
    %10 = vsyncpa [#allocation4], 0
    // Predicated region
    $region2: #{stargan_generator_forward.28} parent=1 // pred_check
      _
    $region3: #{stargan_generator_forward.28} parent=1 // pred_check_branch
      %12 = sbr.rel (0) target = $region5
    $region4: #{stargan_generator_forward.28} parent=1 // pred_region
      %s14 = ssub.s32 1024, 1024
      %15 = vsyncadd [#allocation3], %s14
      %s16 = sshll.u32 [#allocation2], 4
      %s17 = int_to_ptr.vmem [resolvable:$true] %s16
      %22 = dma.hbm_to_vmem [thread:$0]  %s0, 1024, %s17, [#allocation3], 64, 64, 4
    $region5: #{stargan_generator_forward.28} parent=1 // pred_fallthru
      _
    // Predicated region
    $region6: #{stargan_generator_forward.28} parent=1 // pred_check
      _
    $region7: #{stargan_generator_forward.28} parent=1 // pred_check_branch
      %24 = sbr.rel (0) target = $region9
    $region8: #{stargan_generator_forward.28} parent=1 // pred_region
      %s26 = ssub.s32 896, 896
      %27 = vsyncadd [#allocation6], %s26
      %s28 = sshll.u32 [#allocation5], 4
      %s29 = int_to_ptr.vmem [resolvable:$true] %s28
      %34 = dma.hbm_to_vmem [thread:$0]  %s1, 896, %s29, [#allocation6], 64, 64, 4
    $region9: #{stargan_generator_forward.28} parent=1 // pred_fallthru
      _
    // Predicated region
    $region10: #{stargan_generator_forward.28} parent=1 // pred_check
      _
    $region11: #{stargan_generator_forward.28} parent=1 // pred_check_branch
      %36 = sbr.rel (0) target = $region13
    $region12: #{stargan_generator_forward.28} parent=1 // pred_region
      %s38 = ssub.s32 16, 16
      %39 = vsyncadd [#allocation6], %s38
      %s41 = sshll.u32 [#allocation7], 4
      %s42 = int_to_ptr.vmem [resolvable:$true] %s41
      %44 = dma.hbm_to_vmem [thread:$0]  %s2, 16, %s42, [#allocation6]
    $region13: #{stargan_generator_forward.28} parent=1 // pred_fallthru
      _
    // Predicated region
    $region14: #{stargan_generator_forward.28} parent=1 // pred_check
      _
    $region15: #{stargan_generator_forward.28} parent=1 // pred_check_branch
      %46 = sbr.rel (0) target = $region17
    $region16: #{stargan_generator_forward.28} parent=1 // pred_region
      %47 = dma.done [#allocation3], 1024
    $region17: #{stargan_generator_forward.28} parent=1 // pred_fallthru
      _
    // Predicated region
    $region18: #{stargan_generator_forward.28} parent=1 // pred_check
      _
    $region19: #{stargan_generator_forward.28} parent=1 // pred_check_branch
      %49 = sbr.rel (0) target = $region21
    $region20: #{stargan_generator_forward.28} parent=1 // pred_region
      %50 = dma.done [#allocation6], 896
    $region21: #{stargan_generator_forward.28} parent=1 // pred_fallthru
      _
    // Predicated region
    $region22: #{stargan_generator_forward.28} parent=1 // pred_check
      _
    $region23: #{stargan_generator_forward.28} parent=1 // pred_check_branch
      %52 = sbr.rel (0) target = $region25
    $region24: #{stargan_generator_forward.28} parent=1 // pred_region
      %53 = dma.done [#allocation6], 16
    $region25: #{stargan_generator_forward.28} parent=1 // pred_fallthru
      _
    %v55 = vld [vmem:[#allocation2] sm:$0xf]
    %v56 = vld [vmem:[#allocation2 + $0x4] sm:$0xf]
    %v57 = vld [vmem:[#allocation2 + $0x8] sm:$0xf]
    %v58 = vld [vmem:[#allocation2 + $0xc] sm:$0xf]
    %v59 = vld [vmem:[#allocation2 + $0x10] sm:$0xf]
    %v60 = vld [vmem:[#allocation2 + $0x14] sm:$0xf]
    %v61 = vld [vmem:[#allocation2 + $0x18] sm:$0xf]
    %v62 = vld [vmem:[#allocation2 + $0x1c] sm:$0xf]
    %v63 = vld [vmem:[#allocation2 + $0x20] sm:$0xf]
    %v64 = vld [vmem:[#allocation2 + $0x24] sm:$0xf]
    %v65 = vld [vmem:[#allocation2 + $0x28] sm:$0xf]
    %v66 = vld [vmem:[#allocation2 + $0x2c] sm:$0xf]
    %v67 = vld [vmem:[#allocation2 + $0x30] sm:$0xf]
    %v68 = vld [vmem:[#allocation2 + $0x34] sm:$0xf]
    %v69 = vld [vmem:[#allocation2 + $0x38] sm:$0xf]
    %v70 = vld [vmem:[#allocation2 + $0x3c] sm:$0xf]
    %v71 = vld [vmem:[#allocation5] sm:$0xf]
    %v72 = vld [vmem:[#allocation5 + $0x4] sm:$0xf]
    %v73 = vld [vmem:[#allocation5 + $0x8] sm:$0xf]
    %v74 = vld [vmem:[#allocation5 + $0xc] sm:$0xf]
    %v75 = vld [vmem:[#allocation5 + $0x10] sm:$0xf]
    %v76 = vld [vmem:[#allocation5 + $0x14] sm:$0xf]
    %v77 = vld [vmem:[#allocation5 + $0x18] sm:$0xf]
    %v78 = vld [vmem:[#allocation5 + $0x1c] sm:$0xf]
    %v79 = vld [vmem:[#allocation5 + $0x20] sm:$0xf]
    %v80 = vld [vmem:[#allocation5 + $0x24] sm:$0xf]
    %v81 = vld [vmem:[#allocation5 + $0x28] sm:$0xf]
    %v82 = vld [vmem:[#allocation5 + $0x2c] sm:$0xf]
    %v83 = vld [vmem:[#allocation5 + $0x30] sm:$0xf]
    %v84 = vld [vmem:[#allocation5 + $0x34] sm:$0xf]
    %v85 = vld [vmem:[#allocation7] sm:$0x1]
    %v87 = vlaneseq
    %v88 = vshrl.u32 %v87, 7
    %v89 = vsub.s32 0, %v88
    %v90 = vrot.slane %v85, %v89
    %v108 = vunpack.c.l.b16 %v55
    %v109 = vunpack.c.l.b16 %v56
    %v110 = vunpack.c.l.b16 %v57
    %v111 = vunpack.c.l.b16 %v58
    %v112 = vunpack.c.l.b16 %v59
    %v113 = vunpack.c.l.b16 %v60
    %v114 = vunpack.c.l.b16 %v61
    %v115 = vunpack.c.l.b16 %v62
    %v116 = vunpack.c.l.b16 %v63
    %v117 = vunpack.c.l.b16 %v64
    %v118 = vunpack.c.l.b16 %v65
    %v119 = vunpack.c.l.b16 %v66
    %v120 = vunpack.c.l.b16 %v67
    %v121 = vunpack.c.l.b16 %v68
    %v122 = vunpack.c.l.b16 %v69
    %v123 = vunpack.c.l.b16 %v70
    %v124 = vpack.c.b16 %v109, %v108
    %v125 = vpack.c.b16 %v111, %v110
    %v126 = vpack.c.b16 %v113, %v112
    %v127 = vpack.c.b16 %v115, %v114
    %v128 = vpack.c.b16 %v117, %v116
    %v129 = vpack.c.b16 %v119, %v118
    %v130 = vpack.c.b16 %v121, %v120
    %v131 = vpack.c.b16 %v123, %v122
    %v146 = vunpack.c.l.b16 %v71
    %v147 = vunpack.c.l.b16 %v72
    %v148 = vunpack.c.l.b16 %v73
    %v149 = vunpack.c.l.b16 %v74
    %v150 = vunpack.c.l.b16 %v75
    %v151 = vunpack.c.l.b16 %v76
    %v152 = vunpack.c.l.b16 %v77
    %v153 = vunpack.c.l.b16 %v78
    %v154 = vunpack.c.l.b16 %v79
    %v155 = vunpack.c.l.b16 %v80
    %v156 = vunpack.c.l.b16 %v81
    %v157 = vunpack.c.l.b16 %v82
    %v158 = vunpack.c.l.b16 %v83
    %v159 = vunpack.c.l.b16 %v84
    %v160 = vpack.c.b16 %v147, %v146
    %v161 = vpack.c.b16 %v149, %v148
    %v162 = vpack.c.b16 %v151, %v150
    %v163 = vpack.c.b16 %v153, %v152
    %v164 = vpack.c.b16 %v155, %v154
    %v165 = vpack.c.b16 %v157, %v156
    %v166 = vpack.c.b16 %v159, %v158
    %vm174 = vcmask 916480
    %v176 = vsel %vm174, %v124, 0
    %v179 = vsel %vm174, %v125, 0
    %v182 = vsel %vm174, %v126, 0
    %v185 = vsel %vm174, %v127, 0
    %v188 = vsel %vm174, %v128, 0
    %v191 = vsel %vm174, %v129, 0
    %v194 = vsel %vm174, %v130, 0
    %v197 = vsel %vm174, %v131, 0
    %199 = vmatprep.subr.bf16.mxu0 0
    %200 = vmatpush1.bf16.msra.mxu0 %v160
    %201 = vmatprep.subr.bf16.mxu0 0
    %202 = vmatpush1.bf16.msra.mxu0 %v161
    %203 = vmatprep.subr.bf16.mxu0 0
    %204 = vmatpush1.bf16.msra.mxu0 %v162
    %205 = vmatprep.subr.bf16.mxu0 0
    %206 = vmatpush1.bf16.msra.mxu0 %v163
    %207 = vmatprep.subr.bf16.mxu0 0
    %208 = vmatpush1.bf16.msra.mxu0 %v164
    %209 = vmatprep.subr.bf16.mxu0 0
    %210 = vmatpush1.bf16.msra.mxu0 %v165
    %211 = vmatprep.subr.bf16.mxu0 0
    %212 = vmatpush1.bf16.msra.mxu0 %v166
    %213 = vmatprep.subr.bf16.mxu0 0
    %214 = vmatpush1.bf16.msra.mxu0 0
    %215 = vmatprep.subr.bf16.mxu0 0
    %216 = vmatpush1.bf16.msra.mxu0 0
    %217 = vmatprep.subr.bf16.mxu0 0
    %218 = vmatpush1.bf16.msra.mxu0 0
    %219 = vmatprep.subr.bf16.mxu0 0
    %220 = vmatpush1.bf16.msra.mxu0 0
    %221 = vmatprep.subr.bf16.mxu0 0
    %222 = vmatpush1.bf16.msra.mxu0 0
    %223 = vmatprep.subr.bf16.mxu0 0
    %224 = vmatpush1.bf16.msra.mxu0 0
    %225 = vmatprep.subr.bf16.mxu0 0
    %226 = vmatpush1.bf16.msra.mxu0 0
    %227 = vmatprep.subr.bf16.mxu0 0
    %228 = vmatpush1.bf16.msra.mxu0 0
    %229 = vmatprep.subr.bf16.mxu0 0
    %230 = vmatpush1.bf16.msra.mxu0 0
    %231 = vmatprep.mubr.bf16.mxu0 0
    %232 = vmatmul.mubr.bf16.gmra.mrb[0].mxu0 %v176
    %v233 = vpop.f32.mrb[0].mxu0
    %v234 = vadd.f32 %v90, %v233
    %v235 = vpop.f32.mrb[0].mxu0
    %v236 = vpop.f32.mrb[0].mxu0
    %v237 = vadd.f32 %v90, %v236
    %v238 = vpop.f32.mrb[0].mxu0
    %239 = vmatprep.mubr.bf16.mxu0 0
    %240 = vmatmul.mubr.bf16.gmra.mrb[0].mxu0 %v179
    %v241 = vpop.f32.mrb[0].mxu0
    %v242 = vadd.f32 %v90, %v241
    %v243 = vpop.f32.mrb[0].mxu0
    %v244 = vpop.f32.mrb[0].mxu0
    %v245 = vadd.f32 %v90, %v244
    %v246 = vpop.f32.mrb[0].mxu0
    %247 = vmatprep.mubr.bf16.mxu0 0
    %248 = vmatmul.mubr.bf16.gmra.mrb[0].mxu0 %v182
    %v249 = vpop.f32.mrb[0].mxu0
    %v250 = vadd.f32 %v90, %v249
    %v251 = vpop.f32.mrb[0].mxu0
    %v252 = vpop.f32.mrb[0].mxu0
    %v253 = vadd.f32 %v90, %v252
    %v254 = vpop.f32.mrb[0].mxu0
    %255 = vmatprep.mubr.bf16.mxu0 0
    %256 = vmatmul.mubr.bf16.gmra.mrb[0].mxu0 %v185
    %v257 = vpop.f32.mrb[0].mxu0
    %v258 = vadd.f32 %v90, %v257
    %v259 = vpop.f32.mrb[0].mxu0
    %v260 = vpop.f32.mrb[0].mxu0
    %v261 = vadd.f32 %v90, %v260
    %v262 = vpop.f32.mrb[0].mxu0
    %263 = vmatprep.mubr.bf16.mxu0 0
    %264 = vmatmul.mubr.bf16.gmra.mrb[0].mxu0 %v188
    %v265 = vpop.f32.mrb[0].mxu0
    %v266 = vadd.f32 %v90, %v265
    %v267 = vpop.f32.mrb[0].mxu0
    %v268 = vpop.f32.mrb[0].mxu0
    %v269 = vadd.f32 %v90, %v268
    %v270 = vpop.f32.mrb[0].mxu0
    %271 = vmatprep.mubr.bf16.mxu0 0
    %272 = vmatmul.mubr.bf16.gmra.mrb[0].mxu0 %v191
    %v273 = vpop.f32.mrb[0].mxu0
    %v274 = vadd.f32 %v90, %v273
    %v275 = vpop.f32.mrb[0].mxu0
    %v276 = vpop.f32.mrb[0].mxu0
    %v277 = vadd.f32 %v90, %v276
    %v278 = vpop.f32.mrb[0].mxu0
    %279 = vmatprep.mubr.bf16.mxu0 0
    %280 = vmatmul.mubr.bf16.gmra.mrb[0].mxu0 %v194
    %v281 = vpop.f32.mrb[0].mxu0
    %v282 = vadd.f32 %v90, %v281
    %v283 = vpop.f32.mrb[0].mxu0
    %v284 = vpop.f32.mrb[0].mxu0
    %v285 = vadd.f32 %v90, %v284
    %v286 = vpop.f32.mrb[0].mxu0
    %287 = vmatprep.mubr.bf16.mxu0 0
    %288 = vmatmul.mubr.bf16.gmra.mrb[0].mxu0 %v197
    %v289 = vpop.f32.mrb[0].mxu0
    %v290 = vadd.f32 %v90, %v289
    %v291 = vpop.f32.mrb[0].mxu0
    %v292 = vpop.f32.mrb[0].mxu0
    %v293 = vadd.f32 %v90, %v292
    %v294 = vpop.f32.mrb[0].mxu0
    %295 = vdwg.mxu0
    %vm296 = vcmp.ge.f32.partialorder %v234, 0.0
    %vm297 = vcmp.ge.f32.partialorder %v237, 0.0
    %vm298 = vcmp.ge.f32.partialorder %v242, 0.0
    %vm299 = vcmp.ge.f32.partialorder %v245, 0.0
    %vm300 = vcmp.ge.f32.partialorder %v250, 0.0
    %vm301 = vcmp.ge.f32.partialorder %v253, 0.0
    %vm302 = vcmp.ge.f32.partialorder %v258, 0.0
    %vm303 = vcmp.ge.f32.partialorder %v261, 0.0
    %vm304 = vcmp.ge.f32.partialorder %v266, 0.0
    %vm305 = vcmp.ge.f32.partialorder %v269, 0.0
    %vm306 = vcmp.ge.f32.partialorder %v274, 0.0
    %vm307 = vcmp.ge.f32.partialorder %v277, 0.0
    %vm308 = vcmp.ge.f32.partialorder %v282, 0.0
    %vm309 = vcmp.ge.f32.partialorder %v285, 0.0
    %vm310 = vcmp.ge.f32.partialorder %v290, 0.0
    %vm311 = vcmp.ge.f32.partialorder %v293, 0.0
    %v312 = vmul.f32 %v234, 0.2
    %v313 = vmul.f32 %v237, 0.2
    %v314 = vmul.f32 %v242, 0.2
    %v315 = vmul.f32 %v245, 0.2
    %v316 = vmul.f32 %v250, 0.2
    %v317 = vmul.f32 %v253, 0.2
    %v318 = vmul.f32 %v258, 0.2
    %v319 = vmul.f32 %v261, 0.2
    %v320 = vmul.f32 %v266, 0.2
    %v321 = vmul.f32 %v269, 0.2
    %v322 = vmul.f32 %v274, 0.2
    %v323 = vmul.f32 %v277, 0.2
    %v324 = vmul.f32 %v282, 0.2
    %v325 = vmul.f32 %v285, 0.2
    %v326 = vmul.f32 %v290, 0.2
    %v327 = vmul.f32 %v293, 0.2
    %v328 = vsel %vm296, %v234, %v312
    %v329 = vsel %vm297, %v237, %v313
    %v330 = vsel %vm298, %v242, %v314
    %v331 = vsel %vm299, %v245, %v315
    %v332 = vsel %vm300, %v250, %v316
    %v333 = vsel %vm301, %v253, %v317
    %v334 = vsel %vm302, %v258, %v318
    %v335 = vsel %vm303, %v261, %v319
    %v336 = vsel %vm304, %v266, %v320
    %v337 = vsel %vm305, %v269, %v321
    %v338 = vsel %vm306, %v274, %v322
    %v339 = vsel %vm307, %v277, %v323
    %v340 = vsel %vm308, %v282, %v324
    %v341 = vsel %vm309, %v285, %v325
    %v342 = vsel %vm310, %v290, %v326
    %v343 = vsel %vm311, %v293, %v327
    %344 = vst [vmem:[#allocation8] sm:$0xff] %v328
    %345 = vst [vmem:[#allocation8 + $0x8] sm:$0xff] %v329
    %346 = vst [vmem:[#allocation8 + $0x10] sm:$0xff] %v330
    %347 = vst [vmem:[#allocation8 + $0x18] sm:$0xff] %v331
    %348 = vst [vmem:[#allocation8 + $0x20] sm:$0xff] %v332
    %349 = vst [vmem:[#allocation8 + $0x28] sm:$0xff] %v333
    %350 = vst [vmem:[#allocation8 + $0x30] sm:$0xff] %v334
    %351 = vst [vmem:[#allocation8 + $0x38] sm:$0xff] %v335
    %352 = vst [vmem:[#allocation8 + $0x40] sm:$0xff] %v336
    %353 = vst [vmem:[#allocation8 + $0x48] sm:$0xff] %v337
    %354 = vst [vmem:[#allocation8 + $0x50] sm:$0xff] %v338
    %355 = vst [vmem:[#allocation8 + $0x58] sm:$0xff] %v339
    %356 = vst [vmem:[#allocation8 + $0x60] sm:$0xff] %v340
    %357 = vst [vmem:[#allocation8 + $0x68] sm:$0xff] %v341
    %358 = vst [vmem:[#allocation8 + $0x70] sm:$0xff] %v342
    %359 = vst [vmem:[#allocation8 + $0x78] sm:$0xff] %v343
    // Predicated region
    $region26: #{stargan_generator_forward.28} parent=1 // pred_check
      _
    $region27: #{stargan_generator_forward.28} parent=1 // pred_check_branch
      %361 = sbr.rel (0) target = $region29
    $region28: #{stargan_generator_forward.28} parent=1 // pred_region
      %s363 = ssub.s32 2048, 2048
      %364 = vsyncadd [#allocation4], %s363
      %s365 = sshll.u32 [#allocation8], 4
      %s366 = int_to_ptr.vmem [resolvable:$true] %s365
      %371 = dma.vmem_to_hbm [thread:$0]  %s366, 2048, %s3, [#allocation4], 128, 128, 8
    $region29: #{stargan_generator_forward.28} parent=1 // pred_fallthru
      _
    // Predicated region
    $region30: #{stargan_generator_forward.28} parent=1 // pred_check
      _
    $region31: #{stargan_generator_forward.28} parent=1 // pred_check_branch
      %373 = sbr.rel (0) target = $region33
    $region32: #{stargan_generator_forward.28} parent=1 // pred_region
      %374 = dma.done [#allocation4], 2048
    $region33: #{stargan_generator_forward.28} parent=1 // pred_fallthru
      _
    %375 = vsyncpa [#allocation3], 1
    %376 = vsyncpa [#allocation6], 1
    %377 = vsyncpa [#allocation4], 1

// kernel: stargan_generator_forward.29
$region0: #{stargan_generator_forward.29}
  #allocation0 [shape = 'u32[]', space=smem, size = 0x4, offset = 0x4, fixed_abs, tag = 'smem constant byte address 0x4 - core index']
  #allocation1 [shape = 'u32[144,128]{1,0:T(1,128)}', space=vmem, size = 0x12000, scoped, tag = 'internal scratch']
  %s0 = inlined_call_operand.hbm [shape: f32[512,15], index: 0, kind: input, shape index: {}]
  %s1 = inlined_call_operand.hbm [shape: f32[512,15], index: 1, kind: input, shape index: {}]
  %s2 = inlined_call_operand.hbm [shape: f32[512,15], index: 2, kind: input, shape index: {}]
  %s3 = inlined_call_operand.hbm [shape: f32[512,15], index: 3, kind: input, shape index: {}]
  %s4 = inlined_call_operand.hbm [shape: f32[512,1], index: 4, kind: input, shape index: {}]
  %s5 = inlined_call_operand.hbm [shape: f32[512,1], index: 5, kind: input, shape index: {}]
  %s6 = inlined_call_operand.hbm [shape: f32[512,15], index: 6, kind: output, shape index: {}]
  %s7 = sld [smem:[#allocation0]]
  $region58: #{stargan_generator_forward.29} parent=0
    _
  %s9 = ssub.s32 1, %s7
  %s10 = scalar_select 0, %s9, %s7
  $region1: #{stargan_generator_forward.29} parent=0
    #allocation2 [shape = 'u8[262144]{0}', space=vmem, size = 0x40000, scoped, tag = 'input window, operand 0, single buffered']
    #allocation3 [shape = 's32[1]{0}', space=sflag, size = 0x4, scoped, tag = 'scoped memory for stargan_generator_forward.29']
    #allocation4 [shape = 's32[1]{0}', space=sflag, size = 0x4, scoped, tag = 'scoped memory for stargan_generator_forward.29']
    #allocation5 [shape = 'u8[262144]{0}', space=vmem, size = 0x40000, scoped, tag = 'input window, operand 1, single buffered']
    #allocation6 [shape = 's32[1]{0}', space=sflag, size = 0x4, scoped, tag = 'scoped memory for stargan_generator_forward.29']
    #allocation7 [shape = 'u8[262144]{0}', space=vmem, size = 0x40000, scoped, tag = 'input window, operand 2, single buffered']
    #allocation8 [shape = 'u8[262144]{0}', space=vmem, size = 0x40000, scoped, tag = 'input window, operand 3, single buffered']
    #allocation9 [shape = 's32[1]{0}', space=sflag, size = 0x4, scoped, tag = 'scoped memory for stargan_generator_forward.29']
    #allocation10 [shape = 'u8[262144]{0}', space=vmem, size = 0x40000, scoped, tag = 'input window, operand 4, single buffered']
    #allocation11 [shape = 'u8[262144]{0}', space=vmem, size = 0x40000, scoped, tag = 'input window, operand 5, single buffered']
    #allocation12 [shape = 's32[1]{0}', space=sflag, size = 0x4, scoped, tag = 'scoped memory for stargan_generator_forward.29']
    #allocation13 [shape = 'u8[262144]{0}', space=vmem, size = 0x40000, scoped, tag = 'output window, operand 0, single buffered']
    %11 = vsyncpa [#allocation3], 0
    %12 = vsyncpa [#allocation6], 0
    %13 = vsyncpa [#allocation9], 0
    %14 = vsyncpa [#allocation12], 0
    %15 = vsyncpa [#allocation4], 0
    // Predicated region
    $region2: #{stargan_generator_forward.29} parent=1 // pred_check
      _
    $region3: #{stargan_generator_forward.29} parent=1 // pred_check_branch
      %17 = sbr.rel (0) target = $region5
    $region4: #{stargan_generator_forward.29} parent=1 // pred_region
      %s19 = ssub.s32 8192, 8192
      %20 = vsyncadd [#allocation3], %s19
      %s21 = sshll.u32 [#allocation2], 4
      %s22 = int_to_ptr.vmem [resolvable:$true] %s21
      %27 = dma.hbm_to_vmem [thread:$0]  %s0, 8192, %s22, [#allocation3], 128, 128, 8
    $region5: #{stargan_generator_forward.29} parent=1 // pred_fallthru
      _
    // Predicated region
    $region6: #{stargan_generator_forward.29} parent=1 // pred_check
      _
    $region7: #{stargan_generator_forward.29} parent=1 // pred_check_branch
      %29 = sbr.rel (0) target = $region9
    $region8: #{stargan_generator_forward.29} parent=1 // pred_region
      %s31 = ssub.s32 8192, 8192
      %32 = vsyncadd [#allocation6], %s31
      %s33 = sshll.u32 [#allocation5], 4
      %s34 = int_to_ptr.vmem [resolvable:$true] %s33
      %39 = dma.hbm_to_vmem [thread:$0]  %s1, 8192, %s34, [#allocation6], 128, 128, 8
    $region9: #{stargan_generator_forward.29} parent=1 // pred_fallthru
      _
    // Predicated region
    $region10: #{stargan_generator_forward.29} parent=1 // pred_check
      _
    $region11: #{stargan_generator_forward.29} parent=1 // pred_check_branch
      %41 = sbr.rel (0) target = $region13
    $region12: #{stargan_generator_forward.29} parent=1 // pred_region
      %s43 = ssub.s32 8192, 8192
      %44 = vsyncadd [#allocation6], %s43
      %s45 = sshll.u32 [#allocation7], 4
      %s46 = int_to_ptr.vmem [resolvable:$true] %s45
      %51 = dma.hbm_to_vmem [thread:$0]  %s2, 8192, %s46, [#allocation6], 128, 128, 8
    $region13: #{stargan_generator_forward.29} parent=1 // pred_fallthru
      _
    // Predicated region
    $region14: #{stargan_generator_forward.29} parent=1 // pred_check
      _
    $region15: #{stargan_generator_forward.29} parent=1 // pred_check_branch
      %53 = sbr.rel (0) target = $region17
    $region16: #{stargan_generator_forward.29} parent=1 // pred_region
      %s55 = ssub.s32 8192, 8192
      %56 = vsyncadd [#allocation9], %s55
      %s57 = sshll.u32 [#allocation8], 4
      %s58 = int_to_ptr.vmem [resolvable:$true] %s57
      %63 = dma.hbm_to_vmem [thread:$0]  %s3, 8192, %s58, [#allocation9], 128, 128, 8
    $region17: #{stargan_generator_forward.29} parent=1 // pred_fallthru
      _
    // Predicated region
    $region18: #{stargan_generator_forward.29} parent=1 // pred_check
      _
    $region19: #{stargan_generator_forward.29} parent=1 // pred_check_branch
      %65 = sbr.rel (0) target = $region21
    $region20: #{stargan_generator_forward.29} parent=1 // pred_region
      %s67 = ssub.s32 8192, 8192
      %68 = vsyncadd [#allocation9], %s67
      %s69 = sshll.u32 [#allocation10], 4
      %s70 = int_to_ptr.vmem [resolvable:$true] %s69
      %75 = dma.hbm_to_vmem [thread:$0]  %s4, 8192, %s70, [#allocation9], 128, 128, 8
    $region21: #{stargan_generator_forward.29} parent=1 // pred_fallthru
      _
    // Predicated region
    $region22: #{stargan_generator_forward.29} parent=1 // pred_check
      _
    $region23: #{stargan_generator_forward.29} parent=1 // pred_check_branch
      %77 = sbr.rel (0) target = $region25
    $region24: #{stargan_generator_forward.29} parent=1 // pred_region
      %s79 = ssub.s32 8192, 8192
      %80 = vsyncadd [#allocation12], %s79
      %s81 = sshll.u32 [#allocation11], 4
      %s82 = int_to_ptr.vmem [resolvable:$true] %s81
      %87 = dma.hbm_to_vmem [thread:$0]  %s5, 8192, %s82, [#allocation12], 128, 128, 8
    $region25: #{stargan_generator_forward.29} parent=1 // pred_fallthru
      _
    // Predicated region
    $region26: #{stargan_generator_forward.29} parent=1 // pred_check
      _
    $region27: #{stargan_generator_forward.29} parent=1 // pred_check_branch
      %89 = sbr.rel (0) target = $region29
    $region28: #{stargan_generator_forward.29} parent=1 // pred_region
      %90 = dma.done [#allocation3], 8192
    $region29: #{stargan_generator_forward.29} parent=1 // pred_fallthru
      _
    // Predicated region
    $region30: #{stargan_generator_forward.29} parent=1 // pred_check
      _
    $region31: #{stargan_generator_forward.29} parent=1 // pred_check_branch
      %92 = sbr.rel (0) target = $region33
    $region32: #{stargan_generator_forward.29} parent=1 // pred_region
      %93 = dma.done [#allocation6], 8192
    $region33: #{stargan_generator_forward.29} parent=1 // pred_fallthru
      _
    // Predicated region
    $region34: #{stargan_generator_forward.29} parent=1 // pred_check
      _
    $region35: #{stargan_generator_forward.29} parent=1 // pred_check_branch
      %95 = sbr.rel (0) target = $region37
    $region36: #{stargan_generator_forward.29} parent=1 // pred_region
      %96 = dma.done [#allocation6], 8192
    $region37: #{stargan_generator_forward.29} parent=1 // pred_fallthru
      _
    // Predicated region
    $region38: #{stargan_generator_forward.29} parent=1 // pred_check
      _
    $region39: #{stargan_generator_forward.29} parent=1 // pred_check_branch
      %98 = sbr.rel (0) target = $region41
    $region40: #{stargan_generator_forward.29} parent=1 // pred_region
      %99 = dma.done [#allocation9], 8192
    $region41: #{stargan_generator_forward.29} parent=1 // pred_fallthru
      _
    // Predicated region
    $region42: #{stargan_generator_forward.29} parent=1 // pred_check
      _
    $region43: #{stargan_generator_forward.29} parent=1 // pred_check_branch
      %101 = sbr.rel (0) target = $region45
    $region44: #{stargan_generator_forward.29} parent=1 // pred_region
      %102 = dma.done [#allocation9], 8192
    $region45: #{stargan_generator_forward.29} parent=1 // pred_fallthru
      _
    // Predicated region
    $region46: #{stargan_generator_forward.29} parent=1 // pred_check
      _
    $region47: #{stargan_generator_forward.29} parent=1 // pred_check_branch
      %104 = sbr.rel (0) target = $region49
    $region48: #{stargan_generator_forward.29} parent=1 // pred_region
      %105 = dma.done [#allocation12], 8192
    $region49: #{stargan_generator_forward.29} parent=1 // pred_fallthru
      _
    %v106 = vld [vmem:[#allocation2] sm:$0xff]
    %v107 = vld [vmem:[#allocation2 + $0x8] sm:$0xff]
    %v108 = vld [vmem:[#allocation2 + $0x10] sm:$0xff]
    %v109 = vld [vmem:[#allocation2 + $0x18] sm:$0xff]
    %v110 = vld [vmem:[#allocation2 + $0x20] sm:$0xff]
    %v111 = vld [vmem:[#allocation2 + $0x28] sm:$0xff]
    %v112 = vld [vmem:[#allocation2 + $0x30] sm:$0xff]
    %v113 = vld [vmem:[#allocation2 + $0x38] sm:$0xff]
    %v114 = vld [vmem:[#allocation2 + $0x40] sm:$0xff]
    %v115 = vld [vmem:[#allocation2 + $0x48] sm:$0xff]
    %v116 = vld [vmem:[#allocation2 + $0x50] sm:$0xff]
    %v117 = vld [vmem:[#allocation2 + $0x58] sm:$0xff]
    %v118 = vld [vmem:[#allocation2 + $0x60] sm:$0xff]
    %v119 = vld [vmem:[#allocation2 + $0x68] sm:$0xff]
    %v120 = vld [vmem:[#allocation2 + $0x70] sm:$0xff]
    %v121 = vld [vmem:[#allocation2 + $0x78] sm:$0xff]
    %v122 = vld [vmem:[#allocation2 + $0x80] sm:$0xff]
    %v123 = vld [vmem:[#allocation2 + $0x88] sm:$0xff]
    %v124 = vld [vmem:[#allocation2 + $0x90] sm:$0xff]
    %v125 = vld [vmem:[#allocation2 + $0x98] sm:$0xff]
    %v126 = vld [vmem:[#allocation2 + $0xa0] sm:$0xff]
    %v127 = vld [vmem:[#allocation2 + $0xa8] sm:$0xff]
    %v128 = vld [vmem:[#allocation2 + $0xb0] sm:$0xff]
    %v129 = vld [vmem:[#allocation2 + $0xb8] sm:$0xff]
    %v130 = vld [vmem:[#allocation2 + $0xc0] sm:$0xff]
    %v131 = vld [vmem:[#allocation2 + $0xc8] sm:$0xff]
    %v132 = vld [vmem:[#allocation2 + $0xd0] sm:$0xff]
    %v133 = vld [vmem:[#allocation2 + $0xd8] sm:$0xff]
    %v134 = vld [vmem:[#allocation2 + $0xe0] sm:$0xff]
    %v135 = vld [vmem:[#allocation2 + $0xe8] sm:$0xff]
    %v136 = vld [vmem:[#allocation2 + $0xf0] sm:$0xff]
    %v137 = vld [vmem:[#allocation2 + $0xf8] sm:$0xff]
    %v138 = vld [vmem:[#allocation2 + $0x100] sm:$0xff]
    %v139 = vld [vmem:[#allocation2 + $0x108] sm:$0xff]
    %v140 = vld [vmem:[#allocation2 + $0x110] sm:$0xff]
    %v141 = vld [vmem:[#allocation2 + $0x118] sm:$0xff]
    %v142 = vld [vmem:[#allocation2 + $0x120] sm:$0xff]
    %v143 = vld [vmem:[#allocation2 + $0x128] sm:$0xff]
    %v144 = vld [vmem:[#allocation2 + $0x130] sm:$0xff]
    %v145 = vld [vmem:[#allocation2 + $0x138] sm:$0xff]
    %v146 = vld [vmem:[#allocation2 + $0x140] sm:$0xff]
    %v147 = vld [vmem:[#allocation2 + $0x148] sm:$0xff]
    %v148 = vld [vmem:[#allocation2 + $0x150] sm:$0xff]
    %v149 = vld [vmem:[#allocation2 + $0x158] sm:$0xff]
    %v150 = vld [vmem:[#allocation2 + $0x160] sm:$0xff]
    %v151 = vld [vmem:[#allocation2 + $0x168] sm:$0xff]
    %v152 = vld [vmem:[#allocation2 + $0x170] sm:$0xff]
    %v153 = vld [vmem:[#allocation2 + $0x178] sm:$0xff]
    %v154 = vld [vmem:[#allocation2 + $0x180] sm:$0xff]
    %v155 = vld [vmem:[#allocation2 + $0x188] sm:$0xff]
    %v156 = vld [vmem:[#allocation2 + $0x190] sm:$0xff]
    %v157 = vld [vmem:[#allocation2 + $0x198] sm:$0xff]
    %v158 = vld [vmem:[#allocation2 + $0x1a0] sm:$0xff]
    %v159 = vld [vmem:[#allocation2 + $0x1a8] sm:$0xff]
    %v160 = vld [vmem:[#allocation2 + $0x1b0] sm:$0xff]
    %v161 = vld [vmem:[#allocation2 + $0x1b8] sm:$0xff]
    %v162 = vld [vmem:[#allocation2 + $0x1c0] sm:$0xff]
    %v163 = vld [vmem:[#allocation2 + $0x1c8] sm:$0xff]
    %v164 = vld [vmem:[#allocation2 + $0x1d0] sm:$0xff]
    %v165 = vld [vmem:[#allocation2 + $0x1d8] sm:$0xff]
    %v166 = vld [vmem:[#allocation2 + $0x1e0] sm:$0xff]
    %v167 = vld [vmem:[#allocation2 + $0x1e8] sm:$0xff]
    %v168 = vld [vmem:[#allocation2 + $0x1f0] sm:$0xff]
    %v169 = vld [vmem:[#allocation2 + $0x1f8] sm:$0xff]
    %v170 = vld [vmem:[#allocation5] sm:$0xff]
    %v171 = vld [vmem:[#allocation5 + $0x8] sm:$0xff]
    %v172 = vld [vmem:[#allocation5 + $0x10] sm:$0xff]
    %v173 = vld [vmem:[#allocation5 + $0x18] sm:$0xff]
    %v174 = vld [vmem:[#allocation5 + $0x20] sm:$0xff]
    %v175 = vld [vmem:[#allocation5 + $0x28] sm:$0xff]
    %v176 = vld [vmem:[#allocation5 + $0x30] sm:$0xff]
    %v177 = vld [vmem:[#allocation5 + $0x38] sm:$0xff]
    %v178 = vld [vmem:[#allocation5 + $0x40] sm:$0xff]
    %v179 = vld [vmem:[#allocation5 + $0x48] sm:$0xff]
    %v180 = vld [vmem:[#allocation5 + $0x50] sm:$0xff]
    %v181 = vld [vmem:[#allocation5 + $0x58] sm:$0xff]
    %v182 = vld [vmem:[#allocation5 + $0x60] sm:$0xff]
    %v183 = vld [vmem:[#allocation5 + $0x68] sm:$0xff]
    %v184 = vld [vmem:[#allocation5 + $0x70] sm:$0xff]
    %v185 = vld [vmem:[#allocation5 + $0x78] sm:$0xff]
    %v186 = vld [vmem:[#allocation5 + $0x80] sm:$0xff]
    %v187 = vld [vmem:[#allocation5 + $0x88] sm:$0xff]
    %v188 = vld [vmem:[#allocation5 + $0x90] sm:$0xff]
    %v189 = vld [vmem:[#allocation5 + $0x98] sm:$0xff]
    %v190 = vld [vmem:[#allocation5 + $0xa0] sm:$0xff]
    %v191 = vld [vmem:[#allocation5 + $0xa8] sm:$0xff]
    %v192 = vld [vmem:[#allocation5 + $0xb0] sm:$0xff]
    %v193 = vld [vmem:[#allocation5 + $0xb8] sm:$0xff]
    %v194 = vld [vmem:[#allocation5 + $0xc0] sm:$0xff]
    %v195 = vld [vmem:[#allocation5 + $0xc8] sm:$0xff]
    %v196 = vld [vmem:[#allocation5 + $0xd0] sm:$0xff]
    %v197 = vld [vmem:[#allocation5 + $0xd8] sm:$0xff]
    %v198 = vld [vmem:[#allocation5 + $0xe0] sm:$0xff]
    %v199 = vld [vmem:[#allocation5 + $0xe8] sm:$0xff]
    %v200 = vld [vmem:[#allocation5 + $0xf0] sm:$0xff]
    %v201 = vld [vmem:[#allocation5 + $0xf8] sm:$0xff]
    %v202 = vld [vmem:[#allocation5 + $0x100] sm:$0xff]
    %v203 = vld [vmem:[#allocation5 + $0x108] sm:$0xff]
    %v204 = vld [vmem:[#allocation5 + $0x110] sm:$0xff]
    %v205 = vld [vmem:[#allocation5 + $0x118] sm:$0xff]
    %v206 = vld [vmem:[#allocation5 + $0x120] sm:$0xff]
    %v207 = vld [vmem:[#allocation5 + $0x128] sm:$0xff]
    %v208 = vld [vmem:[#allocation5 + $0x130] sm:$0xff]
    %v209 = vld [vmem:[#allocation5 + $0x138] sm:$0xff]
    %v210 = vld [vmem:[#allocation5 + $0x140] sm:$0xff]
    %v211 = vld [vmem:[#allocation5 + $0x148] sm:$0xff]
    %v212 = vld [vmem:[#allocation5 + $0x150] sm:$0xff]
    %v213 = vld [vmem:[#allocation5 + $0x158] sm:$0xff]
    %v214 = vld [vmem:[#allocation5 + $0x160] sm:$0xff]
    %v215 = vld [vmem:[#allocation5 + $0x168] sm:$0xff]
    %v216 = vld [vmem:[#allocation5 + $0x170] sm:$0xff]
    %v217 = vld [vmem:[#allocation5 + $0x178] sm:$0xff]
    %v218 = vld [vmem:[#allocation5 + $0x180] sm:$0xff]
    %v219 = vld [vmem:[#allocation5 + $0x188] sm:$0xff]
    %v220 = vld [vmem:[#allocation5 + $0x190] sm:$0xff]
    %v221 = vld [vmem:[#allocation5 + $0x198] sm:$0xff]
    %v222 = vld [vmem:[#allocation5 + $0x1a0] sm:$0xff]
    %v223 = vld [vmem:[#allocation5 + $0x1a8] sm:$0xff]
    %v224 = vld [vmem:[#allocation5 + $0x1b0] sm:$0xff]
    %v225 = vld [vmem:[#allocation5 + $0x1b8] sm:$0xff]
    %v226 = vld [vmem:[#allocation5 + $0x1c0] sm:$0xff]
    %v227 = vld [vmem:[#allocation5 + $0x1c8] sm:$0xff]
    %v228 = vld [vmem:[#allocation5 + $0x1d0] sm:$0xff]
    %v229 = vld [vmem:[#allocation5 + $0x1d8] sm:$0xff]
    %v230 = vld [vmem:[#allocation5 + $0x1e0] sm:$0xff]
    %v231 = vld [vmem:[#allocation5 + $0x1e8] sm:$0xff]
    %v232 = vld [vmem:[#allocation5 + $0x1f0] sm:$0xff]
    %v233 = vld [vmem:[#allocation5 + $0x1f8] sm:$0xff]
    %v234 = vld [vmem:[#allocation7] sm:$0xff]
    %v235 = vld [vmem:[#allocation7 + $0x8] sm:$0xff]
    %v236 = vld [vmem:[#allocation7 + $0x10] sm:$0xff]
    %v237 = vld [vmem:[#allocation7 + $0x18] sm:$0xff]
    %v238 = vld [vmem:[#allocation7 + $0x20] sm:$0xff]
    %v239 = vld [vmem:[#allocation7 + $0x28] sm:$0xff]
    %v240 = vld [vmem:[#allocation7 + $0x30] sm:$0xff]
    %v241 = vld [vmem:[#allocation7 + $0x38] sm:$0xff]
    %v242 = vld [vmem:[#allocation7 + $0x40] sm:$0xff]
    %v243 = vld [vmem:[#allocation7 + $0x48] sm:$0xff]
    %v244 = vld [vmem:[#allocation7 + $0x50] sm:$0xff]
    %v245 = vld [vmem:[#allocation7 + $0x58] sm:$0xff]
    %v246 = vld [vmem:[#allocation7 + $0x60] sm:$0xff]
    %v247 = vld [vmem:[#allocation7 + $0x68] sm:$0xff]
    %v248 = vld [vmem:[#allocation7 + $0x70] sm:$0xff]
    %v249 = vld [vmem:[#allocation7 + $0x78] sm:$0xff]
    %v250 = vld [vmem:[#allocation7 + $0x80] sm:$0xff]
    %v251 = vld [vmem:[#allocation7 + $0x88] sm:$0xff]
    %v252 = vld [vmem:[#allocation7 + $0x90] sm:$0xff]
    %v253 = vld [vmem:[#allocation7 + $0x98] sm:$0xff]
    %v254 = vld [vmem:[#allocation7 + $0xa0] sm:$0xff]
    %v255 = vld [vmem:[#allocation7 + $0xa8] sm:$0xff]
    %v256 = vld [vmem:[#allocation7 + $0xb0] sm:$0xff]
    %v257 = vld [vmem:[#allocation7 + $0xb8] sm:$0xff]
    %v258 = vld [vmem:[#allocation7 + $0xc0] sm:$0xff]
    %v259 = vld [vmem:[#allocation7 + $0xc8] sm:$0xff]
    %v260 = vld [vmem:[#allocation7 + $0xd0] sm:$0xff]
    %v261 = vld [vmem:[#allocation7 + $0xd8] sm:$0xff]
    %v262 = vld [vmem:[#allocation7 + $0xe0] sm:$0xff]
    %v263 = vld [vmem:[#allocation7 + $0xe8] sm:$0xff]
    %v264 = vld [vmem:[#allocation7 + $0xf0] sm:$0xff]
    %v265 = vld [vmem:[#allocation7 + $0xf8] sm:$0xff]
    %v266 = vld [vmem:[#allocation7 + $0x100] sm:$0xff]
    %v267 = vld [vmem:[#allocation7 + $0x108] sm:$0xff]
    %v268 = vld [vmem:[#allocation7 + $0x110] sm:$0xff]
    %v269 = vld [vmem:[#allocation7 + $0x118] sm:$0xff]
    %v270 = vld [vmem:[#allocation7 + $0x120] sm:$0xff]
    %v271 = vld [vmem:[#allocation7 + $0x128] sm:$0xff]
    %v272 = vld [vmem:[#allocation7 + $0x130] sm:$0xff]
    %v273 = vld [vmem:[#allocation7 + $0x138] sm:$0xff]
    %v274 = vld [vmem:[#allocation7 + $0x140] sm:$0xff]
    %v275 = vld [vmem:[#allocation7 + $0x148] sm:$0xff]
    %v276 = vld [vmem:[#allocation7 + $0x150] sm:$0xff]
    %v277 = vld [vmem:[#allocation7 + $0x158] sm:$0xff]
    %v278 = vld [vmem:[#allocation7 + $0x160] sm:$0xff]
    %v279 = vld [vmem:[#allocation7 + $0x168] sm:$0xff]
    %v280 = vld [vmem:[#allocation7 + $0x170] sm:$0xff]
    %v281 = vld [vmem:[#allocation7 + $0x178] sm:$0xff]
    %v282 = vld [vmem:[#allocation7 + $0x180] sm:$0xff]
    %v283 = vld [vmem:[#allocation7 + $0x188] sm:$0xff]
    %v284 = vld [vmem:[#allocation7 + $0x190] sm:$0xff]
    %v285 = vld [vmem:[#allocation7 + $0x198] sm:$0xff]
    %v286 = vld [vmem:[#allocation7 + $0x1a0] sm:$0xff]
    %v287 = vld [vmem:[#allocation7 + $0x1a8] sm:$0xff]
    %v288 = vld [vmem:[#allocation7 + $0x1b0] sm:$0xff]
    %v289 = vld [vmem:[#allocation7 + $0x1b8] sm:$0xff]
    %v290 = vld [vmem:[#allocation7 + $0x1c0] sm:$0xff]
    %v291 = vld [vmem:[#allocation7 + $0x1c8] sm:$0xff]
    %v292 = vld [vmem:[#allocation7 + $0x1d0] sm:$0xff]
    %v293 = vld [vmem:[#allocation7 + $0x1d8] sm:$0xff]
    %v294 = vld [vmem:[#allocation7 + $0x1e0] sm:$0xff]
    %v295 = vld [vmem:[#allocation7 + $0x1e8] sm:$0xff]
    %v296 = vld [vmem:[#allocation7 + $0x1f0] sm:$0xff]
    %v297 = vld [vmem:[#allocation7 + $0x1f8] sm:$0xff]
    %v298 = vld [vmem:[#allocation8] sm:$0xff]
    %v299 = vld [vmem:[#allocation8 + $0x8] sm:$0xff]
    %v300 = vld [vmem:[#allocation8 + $0x10] sm:$0xff]
    %v301 = vld [vmem:[#allocation8 + $0x18] sm:$0xff]
    %v302 = vld [vmem:[#allocation8 + $0x20] sm:$0xff]
    %v303 = vld [vmem:[#allocation8 + $0x28] sm:$0xff]
    %v304 = vld [vmem:[#allocation8 + $0x30] sm:$0xff]
    %v305 = vld [vmem:[#allocation8 + $0x38] sm:$0xff]
    %v306 = vld [vmem:[#allocation8 + $0x40] sm:$0xff]
    %v307 = vld [vmem:[#allocation8 + $0x48] sm:$0xff]
    %v308 = vld [vmem:[#allocation8 + $0x50] sm:$0xff]
    %v309 = vld [vmem:[#allocation8 + $0x58] sm:$0xff]
    %v310 = vld [vmem:[#allocation8 + $0x60] sm:$0xff]
    %v311 = vld [vmem:[#allocation8 + $0x68] sm:$0xff]
    %v312 = vld [vmem:[#allocation8 + $0x70] sm:$0xff]
    %v313 = vld [vmem:[#allocation8 + $0x78] sm:$0xff]
    %v314 = vld [vmem:[#allocation8 + $0x80] sm:$0xff]
    %v315 = vld [vmem:[#allocation8 + $0x88] sm:$0xff]
    %v316 = vld [vmem:[#allocation8 + $0x90] sm:$0xff]
    %v317 = vld [vmem:[#allocation8 + $0x98] sm:$0xff]
    %v318 = vld [vmem:[#allocation8 + $0xa0] sm:$0xff]
    %v319 = vld [vmem:[#allocation8 + $0xa8] sm:$0xff]
    %v320 = vld [vmem:[#allocation8 + $0xb0] sm:$0xff]
    %v321 = vld [vmem:[#allocation8 + $0xb8] sm:$0xff]
    %v322 = vld [vmem:[#allocation8 + $0xc0] sm:$0xff]
    %v323 = vld [vmem:[#allocation8 + $0xc8] sm:$0xff]
    %v324 = vld [vmem:[#allocation8 + $0xd0] sm:$0xff]
    %v325 = vld [vmem:[#allocation8 + $0xd8] sm:$0xff]
    %v326 = vld [vmem:[#allocation8 + $0xe0] sm:$0xff]
    %v327 = vld [vmem:[#allocation8 + $0xe8] sm:$0xff]
    %v328 = vld [vmem:[#allocation8 + $0xf0] sm:$0xff]
    %v329 = vld [vmem:[#allocation8 + $0xf8] sm:$0xff]
    %v330 = vld [vmem:[#allocation8 + $0x100] sm:$0xff]
    %v331 = vld [vmem:[#allocation8 + $0x108] sm:$0xff]
    %v332 = vld [vmem:[#allocation8 + $0x110] sm:$0xff]
    %v333 = vld [vmem:[#allocation8 + $0x118] sm:$0xff]
    %v334 = vld [vmem:[#allocation8 + $0x120] sm:$0xff]
    %v335 = vld [vmem:[#allocation8 + $0x128] sm:$0xff]
    %v336 = vld [vmem:[#allocation8 + $0x130] sm:$0xff]
    %v337 = vld [vmem:[#allocation8 + $0x138] sm:$0xff]
    %v338 = vld [vmem:[#allocation8 + $0x140] sm:$0xff]
    %v339 = vld [vmem:[#allocation8 + $0x148] sm:$0xff]
    %v340 = vld [vmem:[#allocation8 + $0x150] sm:$0xff]
    %v341 = vld [vmem:[#allocation8 + $0x158] sm:$0xff]
    %v342 = vld [vmem:[#allocation8 + $0x160] sm:$0xff]
    %v343 = vld [vmem:[#allocation8 + $0x168] sm:$0xff]
    %v344 = vld [vmem:[#allocation8 + $0x170] sm:$0xff]
    %v345 = vld [vmem:[#allocation8 + $0x178] sm:$0xff]
    %v346 = vld [vmem:[#allocation8 + $0x180] sm:$0xff]
    %v347 = vld [vmem:[#allocation8 + $0x188] sm:$0xff]
    %v348 = vld [vmem:[#allocation8 + $0x190] sm:$0xff]
    %v349 = vld [vmem:[#allocation8 + $0x198] sm:$0xff]
    %v350 = vld [vmem:[#allocation8 + $0x1a0] sm:$0xff]
    %v351 = vld [vmem:[#allocation8 + $0x1a8] sm:$0xff]
    %v352 = vld [vmem:[#allocation8 + $0x1b0] sm:$0xff]
    %v353 = vld [vmem:[#allocation8 + $0x1b8] sm:$0xff]
    %v354 = vld [vmem:[#allocation8 + $0x1c0] sm:$0xff]
    %v355 = vld [vmem:[#allocation8 + $0x1c8] sm:$0xff]
    %v356 = vld [vmem:[#allocation8 + $0x1d0] sm:$0xff]
    %v357 = vld [vmem:[#allocation8 + $0x1d8] sm:$0xff]
    %v358 = vld [vmem:[#allocation8 + $0x1e0] sm:$0xff]
    %v359 = vld [vmem:[#allocation8 + $0x1e8] sm:$0xff]
    %v360 = vld [vmem:[#allocation8 + $0x1f0] sm:$0xff]
    %v361 = vld [vmem:[#allocation8 + $0x1f8] sm:$0xff]
    %v362 = vld [vmem:[#allocation10] sm:$0xff]
    %v363 = vld [vmem:[#allocation10 + $0x8] sm:$0xff]
    %v364 = vld [vmem:[#allocation10 + $0x10] sm:$0xff]
    %v365 = vld [vmem:[#allocation10 + $0x18] sm:$0xff]
    %v366 = vld [vmem:[#allocation10 + $0x20] sm:$0xff]
    %v367 = vld [vmem:[#allocation10 + $0x28] sm:$0xff]
    %v368 = vld [vmem:[#allocation10 + $0x30] sm:$0xff]
    %v369 = vld [vmem:[#allocation10 + $0x38] sm:$0xff]
    %v370 = vld [vmem:[#allocation10 + $0x40] sm:$0xff]
    %v371 = vld [vmem:[#allocation10 + $0x48] sm:$0xff]
    %v372 = vld [vmem:[#allocation10 + $0x50] sm:$0xff]
    %v373 = vld [vmem:[#allocation10 + $0x58] sm:$0xff]
    %v374 = vld [vmem:[#allocation10 + $0x60] sm:$0xff]
    %v375 = vld [vmem:[#allocation10 + $0x68] sm:$0xff]
    %v376 = vld [vmem:[#allocation10 + $0x70] sm:$0xff]
    %v377 = vld [vmem:[#allocation10 + $0x78] sm:$0xff]
    %v378 = vld [vmem:[#allocation10 + $0x80] sm:$0xff]
    %v379 = vld [vmem:[#allocation10 + $0x88] sm:$0xff]
    %v380 = vld [vmem:[#allocation10 + $0x90] sm:$0xff]
    %v381 = vld [vmem:[#allocation10 + $0x98] sm:$0xff]
    %v382 = vld [vmem:[#allocation10 + $0xa0] sm:$0xff]
    %v383 = vld [vmem:[#allocation10 + $0xa8] sm:$0xff]
    %v384 = vld [vmem:[#allocation10 + $0xb0] sm:$0xff]
    %v385 = vld [vmem:[#allocation10 + $0xb8] sm:$0xff]
    %v386 = vld [vmem:[#allocation10 + $0xc0] sm:$0xff]
    %v387 = vld [vmem:[#allocation10 + $0xc8] sm:$0xff]
    %v388 = vld [vmem:[#allocation10 + $0xd0] sm:$0xff]
    %v389 = vld [vmem:[#allocation10 + $0xd8] sm:$0xff]
    %v390 = vld [vmem:[#allocation10 + $0xe0] sm:$0xff]
    %v391 = vld [vmem:[#allocation10 + $0xe8] sm:$0xff]
    %v392 = vld [vmem:[#allocation10 + $0xf0] sm:$0xff]
    %v393 = vld [vmem:[#allocation10 + $0xf8] sm:$0xff]
    %v394 = vld [vmem:[#allocation10 + $0x100] sm:$0xff]
    %v395 = vld [vmem:[#allocation10 + $0x108] sm:$0xff]
    %v396 = vld [vmem:[#allocation10 + $0x110] sm:$0xff]
    %v397 = vld [vmem:[#allocation10 + $0x118] sm:$0xff]
    %v398 = vld [vmem:[#allocation10 + $0x120] sm:$0xff]
    %v399 = vld [vmem:[#allocation10 + $0x128] sm:$0xff]
    %v400 = vld [vmem:[#allocation10 + $0x130] sm:$0xff]
    %v401 = vld [vmem:[#allocation10 + $0x138] sm:$0xff]
    %v402 = vld [vmem:[#allocation10 + $0x140] sm:$0xff]
    %v403 = vld [vmem:[#allocation10 + $0x148] sm:$0xff]
    %v404 = vld [vmem:[#allocation10 + $0x150] sm:$0xff]
    %v405 = vld [vmem:[#allocation10 + $0x158] sm:$0xff]
    %v406 = vld [vmem:[#allocation10 + $0x160] sm:$0xff]
    %v407 = vld [vmem:[#allocation10 + $0x168] sm:$0xff]
    %v408 = vld [vmem:[#allocation10 + $0x170] sm:$0xff]
    %v409 = vld [vmem:[#allocation10 + $0x178] sm:$0xff]
    %v410 = vld [vmem:[#allocation10 + $0x180] sm:$0xff]
    %v411 = vld [vmem:[#allocation10 + $0x188] sm:$0xff]
    %v412 = vld [vmem:[#allocation10 + $0x190] sm:$0xff]
    %v413 = vld [vmem:[#allocation10 + $0x198] sm:$0xff]
    %v414 = vld [vmem:[#allocation10 + $0x1a0] sm:$0xff]
    %v415 = vld [vmem:[#allocation10 + $0x1a8] sm:$0xff]
    %v416 = vld [vmem:[#allocation10 + $0x1b0] sm:$0xff]
    %v417 = vld [vmem:[#allocation10 + $0x1b8] sm:$0xff]
    %v418 = vld [vmem:[#allocation10 + $0x1c0] sm:$0xff]
    %v419 = vld [vmem:[#allocation10 + $0x1c8] sm:$0xff]
    %v420 = vld [vmem:[#allocation10 + $0x1d0] sm:$0xff]
    %v421 = vld [vmem:[#allocation10 + $0x1d8] sm:$0xff]
    %v422 = vld [vmem:[#allocation10 + $0x1e0] sm:$0xff]
    %v423 = vld [vmem:[#allocation10 + $0x1e8] sm:$0xff]
    %v424 = vld [vmem:[#allocation10 + $0x1f0] sm:$0xff]
    %v425 = vld [vmem:[#allocation10 + $0x1f8] sm:$0xff]
    %v426 = vld [vmem:[#allocation11] sm:$0xff]
    %v427 = vld [vmem:[#allocation11 + $0x8] sm:$0xff]
    %v428 = vld [vmem:[#allocation11 + $0x10] sm:$0xff]
    %v429 = vld [vmem:[#allocation11 + $0x18] sm:$0xff]
    %v430 = vld [vmem:[#allocation11 + $0x20] sm:$0xff]
    %v431 = vld [vmem:[#allocation11 + $0x28] sm:$0xff]
    %v432 = vld [vmem:[#allocation11 + $0x30] sm:$0xff]
    %v433 = vld [vmem:[#allocation11 + $0x38] sm:$0xff]
    %v434 = vld [vmem:[#allocation11 + $0x40] sm:$0xff]
    %v435 = vld [vmem:[#allocation11 + $0x48] sm:$0xff]
    %v436 = vld [vmem:[#allocation11 + $0x50] sm:$0xff]
    %v437 = vld [vmem:[#allocation11 + $0x58] sm:$0xff]
    %v438 = vld [vmem:[#allocation11 + $0x60] sm:$0xff]
    %v439 = vld [vmem:[#allocation11 + $0x68] sm:$0xff]
    %v440 = vld [vmem:[#allocation11 + $0x70] sm:$0xff]
    %v441 = vld [vmem:[#allocation11 + $0x78] sm:$0xff]
    %v442 = vld [vmem:[#allocation11 + $0x80] sm:$0xff]
    %v443 = vld [vmem:[#allocation11 + $0x88] sm:$0xff]
    %v444 = vld [vmem:[#allocation11 + $0x90] sm:$0xff]
    %v445 = vld [vmem:[#allocation11 + $0x98] sm:$0xff]
    %v446 = vld [vmem:[#allocation11 + $0xa0] sm:$0xff]
    %v447 = vld [vmem:[#allocation11 + $0xa8] sm:$0xff]
    %v448 = vld [vmem:[#allocation11 + $0xb0] sm:$0xff]
    %v449 = vld [vmem:[#allocation11 + $0xb8] sm:$0xff]
    %v450 = vld [vmem:[#allocation11 + $0xc0] sm:$0xff]
    %v451 = vld [vmem:[#allocation11 + $0xc8] sm:$0xff]
    %v452 = vld [vmem:[#allocation11 + $0xd0] sm:$0xff]
    %v453 = vld [vmem:[#allocation11 + $0xd8] sm:$0xff]
    %v454 = vld [vmem:[#allocation11 + $0xe0] sm:$0xff]
    %v455 = vld [vmem:[#allocation11 + $0xe8] sm:$0xff]
    %v456 = vld [vmem:[#allocation11 + $0xf0] sm:$0xff]
    %v457 = vld [vmem:[#allocation11 + $0xf8] sm:$0xff]
    %v458 = vld [vmem:[#allocation11 + $0x100] sm:$0xff]
    %v459 = vld [vmem:[#allocation11 + $0x108] sm:$0xff]
    %v460 = vld [vmem:[#allocation11 + $0x110] sm:$0xff]
    %v461 = vld [vmem:[#allocation11 + $0x118] sm:$0xff]
    %v462 = vld [vmem:[#allocation11 + $0x120] sm:$0xff]
    %v463 = vld [vmem:[#allocation11 + $0x128] sm:$0xff]
    %v464 = vld [vmem:[#allocation11 + $0x130] sm:$0xff]
    %v465 = vld [vmem:[#allocation11 + $0x138] sm:$0xff]
    %v466 = vld [vmem:[#allocation11 + $0x140] sm:$0xff]
    %v467 = vld [vmem:[#allocation11 + $0x148] sm:$0xff]
    %v468 = vld [vmem:[#allocation11 + $0x150] sm:$0xff]
    %v469 = vld [vmem:[#allocation11 + $0x158] sm:$0xff]
    %v470 = vld [vmem:[#allocation11 + $0x160] sm:$0xff]
    %v471 = vld [vmem:[#allocation11 + $0x168] sm:$0xff]
    %v472 = vld [vmem:[#allocation11 + $0x170] sm:$0xff]
    %v473 = vld [vmem:[#allocation11 + $0x178] sm:$0xff]
    %v474 = vld [vmem:[#allocation11 + $0x180] sm:$0xff]
    %v475 = vld [vmem:[#allocation11 + $0x188] sm:$0xff]
    %v476 = vld [vmem:[#allocation11 + $0x190] sm:$0xff]
    %v477 = vld [vmem:[#allocation11 + $0x198] sm:$0xff]
    %v478 = vld [vmem:[#allocation11 + $0x1a0] sm:$0xff]
    %v479 = vld [vmem:[#allocation11 + $0x1a8] sm:$0xff]
    %v480 = vld [vmem:[#allocation11 + $0x1b0] sm:$0xff]
    %v481 = vld [vmem:[#allocation11 + $0x1b8] sm:$0xff]
    %v482 = vld [vmem:[#allocation11 + $0x1c0] sm:$0xff]
    %v483 = vld [vmem:[#allocation11 + $0x1c8] sm:$0xff]
    %v484 = vld [vmem:[#allocation11 + $0x1d0] sm:$0xff]
    %v485 = vld [vmem:[#allocation11 + $0x1d8] sm:$0xff]
    %v486 = vld [vmem:[#allocation11 + $0x1e0] sm:$0xff]
    %v487 = vld [vmem:[#allocation11 + $0x1e8] sm:$0xff]
    %v488 = vld [vmem:[#allocation11 + $0x1f0] sm:$0xff]
    %v489 = vld [vmem:[#allocation11 + $0x1f8] sm:$0xff]
    %v490 = vsub.f32 %v170, %v106
    %v491 = vsub.f32 %v171, %v107
    %v492 = vsub.f32 %v172, %v108
    %v493 = vsub.f32 %v173, %v109
    %v494 = vsub.f32 %v174, %v110
    %v495 = vsub.f32 %v175, %v111
    %v496 = vsub.f32 %v176, %v112
    %v497 = vsub.f32 %v177, %v113
    %v498 = vsub.f32 %v178, %v114
    %v499 = vsub.f32 %v179, %v115
    %v500 = vsub.f32 %v180, %v116
    %v501 = vsub.f32 %v181, %v117
    %v502 = vsub.f32 %v182, %v118
    %v503 = vsub.f32 %v183, %v119
    %v504 = vsub.f32 %v184, %v120
    %v505 = vsub.f32 %v185, %v121
    %v506 = vsub.f32 %v186, %v122
    %v507 = vsub.f32 %v187, %v123
    %v508 = vsub.f32 %v188, %v124
    %v509 = vsub.f32 %v189, %v125
    %v510 = vsub.f32 %v190, %v126
    %v511 = vsub.f32 %v191, %v127
    %v512 = vsub.f32 %v192, %v128
    %v513 = vsub.f32 %v193, %v129
    %v514 = vsub.f32 %v194, %v130
    %v515 = vsub.f32 %v195, %v131
    %v516 = vsub.f32 %v196, %v132
    %v517 = vsub.f32 %v197, %v133
    %v518 = vsub.f32 %v198, %v134
    %v519 = vsub.f32 %v199, %v135
    %v520 = vsub.f32 %v200, %v136
    %v521 = vsub.f32 %v201, %v137
    %v522 = vsub.f32 %v202, %v138
    %v523 = vsub.f32 %v203, %v139
    %v524 = vsub.f32 %v204, %v140
    %v525 = vsub.f32 %v205, %v141
    %v526 = vsub.f32 %v206, %v142
    %v527 = vsub.f32 %v207, %v143
    %v528 = vsub.f32 %v208, %v144
    %v529 = vsub.f32 %v209, %v145
    %v530 = vsub.f32 %v210, %v146
    %v531 = vsub.f32 %v211, %v147
    %v532 = vsub.f32 %v212, %v148
    %v533 = vsub.f32 %v213, %v149
    %v534 = vsub.f32 %v214, %v150
    %v535 = vsub.f32 %v215, %v151
    %v536 = vsub.f32 %v216, %v152
    %v537 = vsub.f32 %v217, %v153
    %v538 = vsub.f32 %v218, %v154
    %v539 = vsub.f32 %v219, %v155
    %v540 = vsub.f32 %v220, %v156
    %v541 = vsub.f32 %v221, %v157
    %v542 = vsub.f32 %v222, %v158
    %v543 = vsub.f32 %v223, %v159
    %v544 = vsub.f32 %v224, %v160
    %v545 = vsub.f32 %v225, %v161
    %v546 = vsub.f32 %v226, %v162
    %v547 = vsub.f32 %v227, %v163
    %v548 = vsub.f32 %v228, %v164
    %v549 = vsub.f32 %v229, %v165
    %v550 = vsub.f32 %v230, %v166
    %v551 = vsub.f32 %v231, %v167
    %v552 = vsub.f32 %v232, %v168
    %v553 = vsub.f32 %v233, %v169
    %555 = vset.pattern.permute.xlu0 0
    %556 = vperm.xlu0 %555, %v362
    %v557 = vpop.permute.xlu0 %556
    %560 = vset.pattern.permute.xlu0 0
    %561 = vperm.xlu0 %560, %v363
    %v562 = vpop.permute.xlu0 %561
    %565 = vset.pattern.permute.xlu0 0
    %566 = vperm.xlu0 %565, %v364
    %v567 = vpop.permute.xlu0 %566
    %570 = vset.pattern.permute.xlu0 0
    %571 = vperm.xlu0 %570, %v365
    %v572 = vpop.permute.xlu0 %571
    %575 = vset.pattern.permute.xlu0 0
    %576 = vperm.xlu0 %575, %v366
    %v577 = vpop.permute.xlu0 %576
    %580 = vset.pattern.permute.xlu0 0
    %581 = vperm.xlu0 %580, %v367
    %v582 = vpop.permute.xlu0 %581
    %585 = vset.pattern.permute.xlu0 0
    %586 = vperm.xlu0 %585, %v368
    %v587 = vpop.permute.xlu0 %586
    %590 = vset.pattern.permute.xlu0 0
    %591 = vperm.xlu0 %590, %v369
    %v592 = vpop.permute.xlu0 %591
    %595 = vset.pattern.permute.xlu0 0
    %596 = vperm.xlu0 %595, %v370
    %v597 = vpop.permute.xlu0 %596
    %600 = vset.pattern.permute.xlu0 0
    %601 = vperm.xlu0 %600, %v371
    %v602 = vpop.permute.xlu0 %601
    %605 = vset.pattern.permute.xlu0 0
    %606 = vperm.xlu0 %605, %v372
    %v607 = vpop.permute.xlu0 %606
    %610 = vset.pattern.permute.xlu0 0
    %611 = vperm.xlu0 %610, %v373
    %v612 = vpop.permute.xlu0 %611
    %615 = vset.pattern.permute.xlu0 0
    %616 = vperm.xlu0 %615, %v374
    %v617 = vpop.permute.xlu0 %616
    %620 = vset.pattern.permute.xlu0 0
    %621 = vperm.xlu0 %620, %v375
    %v622 = vpop.permute.xlu0 %621
    %625 = vset.pattern.permute.xlu0 0
    %626 = vperm.xlu0 %625, %v376
    %v627 = vpop.permute.xlu0 %626
    %630 = vset.pattern.permute.xlu0 0
    %631 = vperm.xlu0 %630, %v377
    %v632 = vpop.permute.xlu0 %631
    %635 = vset.pattern.permute.xlu0 0
    %636 = vperm.xlu0 %635, %v378
    %v637 = vpop.permute.xlu0 %636
    %640 = vset.pattern.permute.xlu0 0
    %641 = vperm.xlu0 %640, %v379
    %v642 = vpop.permute.xlu0 %641
    %645 = vset.pattern.permute.xlu0 0
    %646 = vperm.xlu0 %645, %v380
    %v647 = vpop.permute.xlu0 %646
    %650 = vset.pattern.permute.xlu0 0
    %651 = vperm.xlu0 %650, %v381
    %v652 = vpop.permute.xlu0 %651
    %655 = vset.pattern.permute.xlu0 0
    %656 = vperm.xlu0 %655, %v382
    %v657 = vpop.permute.xlu0 %656
    %660 = vset.pattern.permute.xlu0 0
    %661 = vperm.xlu0 %660, %v383
    %v662 = vpop.permute.xlu0 %661
    %665 = vset.pattern.permute.xlu0 0
    %666 = vperm.xlu0 %665, %v384
    %v667 = vpop.permute.xlu0 %666
    %670 = vset.pattern.permute.xlu0 0
    %671 = vperm.xlu0 %670, %v385
    %v672 = vpop.permute.xlu0 %671
    %675 = vset.pattern.permute.xlu0 0
    %676 = vperm.xlu0 %675, %v386
    %v677 = vpop.permute.xlu0 %676
    %680 = vset.pattern.permute.xlu0 0
    %681 = vperm.xlu0 %680, %v387
    %v682 = vpop.permute.xlu0 %681
    %685 = vset.pattern.permute.xlu0 0
    %686 = vperm.xlu0 %685, %v388
    %v687 = vpop.permute.xlu0 %686
    %690 = vset.pattern.permute.xlu0 0
    %691 = vperm.xlu0 %690, %v389
    %v692 = vpop.permute.xlu0 %691
    %695 = vset.pattern.permute.xlu0 0
    %696 = vperm.xlu0 %695, %v390
    %v697 = vpop.permute.xlu0 %696
    %700 = vset.pattern.permute.xlu0 0
    %701 = vperm.xlu0 %700, %v391
    %v702 = vpop.permute.xlu0 %701
    %705 = vset.pattern.permute.xlu0 0
    %706 = vperm.xlu0 %705, %v392
    %v707 = vpop.permute.xlu0 %706
    %710 = vset.pattern.permute.xlu0 0
    %711 = vperm.xlu0 %710, %v393
    %v712 = vpop.permute.xlu0 %711
    %715 = vset.pattern.permute.xlu0 0
    %716 = vperm.xlu0 %715, %v394
    %v717 = vpop.permute.xlu0 %716
    %720 = vset.pattern.permute.xlu0 0
    %721 = vperm.xlu0 %720, %v395
    %v722 = vpop.permute.xlu0 %721
    %725 = vset.pattern.permute.xlu0 0
    %726 = vperm.xlu0 %725, %v396
    %v727 = vpop.permute.xlu0 %726
    %730 = vset.pattern.permute.xlu0 0
    %731 = vperm.xlu0 %730, %v397
    %v732 = vpop.permute.xlu0 %731
    %735 = vset.pattern.permute.xlu0 0
    %736 = vperm.xlu0 %735, %v398
    %v737 = vpop.permute.xlu0 %736
    %740 = vset.pattern.permute.xlu0 0
    %741 = vperm.xlu0 %740, %v399
    %v742 = vpop.permute.xlu0 %741
    %745 = vset.pattern.permute.xlu0 0
    %746 = vperm.xlu0 %745, %v400
    %v747 = vpop.permute.xlu0 %746
    %750 = vset.pattern.permute.xlu0 0
    %751 = vperm.xlu0 %750, %v401
    %v752 = vpop.permute.xlu0 %751
    %755 = vset.pattern.permute.xlu0 0
    %756 = vperm.xlu0 %755, %v402
    %v757 = vpop.permute.xlu0 %756
    %760 = vset.pattern.permute.xlu0 0
    %761 = vperm.xlu0 %760, %v403
    %v762 = vpop.permute.xlu0 %761
    %765 = vset.pattern.permute.xlu0 0
    %766 = vperm.xlu0 %765, %v404
    %v767 = vpop.permute.xlu0 %766
    %770 = vset.pattern.permute.xlu0 0
    %771 = vperm.xlu0 %770, %v405
    %v772 = vpop.permute.xlu0 %771
    %775 = vset.pattern.permute.xlu0 0
    %776 = vperm.xlu0 %775, %v406
    %v777 = vpop.permute.xlu0 %776
    %780 = vset.pattern.permute.xlu0 0
    %781 = vperm.xlu0 %780, %v407
    %v782 = vpop.permute.xlu0 %781
    %785 = vset.pattern.permute.xlu0 0
    %786 = vperm.xlu0 %785, %v408
    %v787 = vpop.permute.xlu0 %786
    %790 = vset.pattern.permute.xlu0 0
    %791 = vperm.xlu0 %790, %v409
    %v792 = vpop.permute.xlu0 %791
    %795 = vset.pattern.permute.xlu0 0
    %796 = vperm.xlu0 %795, %v410
    %v797 = vpop.permute.xlu0 %796
    %800 = vset.pattern.permute.xlu0 0
    %801 = vperm.xlu0 %800, %v411
    %v802 = vpop.permute.xlu0 %801
    %805 = vset.pattern.permute.xlu0 0
    %806 = vperm.xlu0 %805, %v412
    %v807 = vpop.permute.xlu0 %806
    %810 = vset.pattern.permute.xlu0 0
    %811 = vperm.xlu0 %810, %v413
    %v812 = vpop.permute.xlu0 %811
    %815 = vset.pattern.permute.xlu0 0
    %816 = vperm.xlu0 %815, %v414
    %v817 = vpop.permute.xlu0 %816
    %820 = vset.pattern.permute.xlu0 0
    %821 = vperm.xlu0 %820, %v415
    %v822 = vpop.permute.xlu0 %821
    %825 = vset.pattern.permute.xlu0 0
    %826 = vperm.xlu0 %825, %v416
    %v827 = vpop.permute.xlu0 %826
    %830 = vset.pattern.permute.xlu0 0
    %831 = vperm.xlu0 %830, %v417
    %v832 = vpop.permute.xlu0 %831
    %835 = vset.pattern.permute.xlu0 0
    %836 = vperm.xlu0 %835, %v418
    %v837 = vpop.permute.xlu0 %836
    %840 = vset.pattern.permute.xlu0 0
    %841 = vperm.xlu0 %840, %v419
    %v842 = vpop.permute.xlu0 %841
    %845 = vset.pattern.permute.xlu0 0
    %846 = vperm.xlu0 %845, %v420
    %v847 = vpop.permute.xlu0 %846
    %850 = vset.pattern.permute.xlu0 0
    %851 = vperm.xlu0 %850, %v421
    %v852 = vpop.permute.xlu0 %851
    %855 = vset.pattern.permute.xlu0 0
    %856 = vperm.xlu0 %855, %v422
    %v857 = vpop.permute.xlu0 %856
    %860 = vset.pattern.permute.xlu0 0
    %861 = vperm.xlu0 %860, %v423
    %v862 = vpop.permute.xlu0 %861
    %865 = vset.pattern.permute.xlu0 0
    %866 = vperm.xlu0 %865, %v424
    %v867 = vpop.permute.xlu0 %866
    %870 = vset.pattern.permute.xlu0 0
    %871 = vperm.xlu0 %870, %v425
    %v872 = vpop.permute.xlu0 %871
    %v874 = vmul.f32 %v557, %v490
    %v875 = vmul.f32 %v562, %v491
    %v876 = vmul.f32 %v567, %v492
    %v877 = vmul.f32 %v572, %v493
    %v878 = vmul.f32 %v577, %v494
    %v879 = vmul.f32 %v582, %v495
    %v880 = vmul.f32 %v587, %v496
    %v881 = vmul.f32 %v592, %v497
    %v882 = vmul.f32 %v597, %v498
    %v883 = vmul.f32 %v602, %v499
    %v884 = vmul.f32 %v607, %v500
    %v885 = vmul.f32 %v612, %v501
    %v886 = vmul.f32 %v617, %v502
    %v887 = vmul.f32 %v622, %v503
    %v888 = vmul.f32 %v627, %v504
    %v889 = vmul.f32 %v632, %v505
    %v890 = vmul.f32 %v637, %v506
    %v891 = vmul.f32 %v642, %v507
    %v892 = vmul.f32 %v647, %v508
    %v893 = vmul.f32 %v652, %v509
    %v894 = vmul.f32 %v657, %v510
    %v895 = vmul.f32 %v662, %v511
    %v896 = vmul.f32 %v667, %v512
    %v897 = vmul.f32 %v672, %v513
    %v898 = vmul.f32 %v677, %v514
    %v899 = vmul.f32 %v682, %v515
    %v900 = vmul.f32 %v687, %v516
    %v901 = vmul.f32 %v692, %v517
    %v902 = vmul.f32 %v697, %v518
    %v903 = vmul.f32 %v702, %v519
    %v904 = vmul.f32 %v707, %v520
    %v905 = vmul.f32 %v712, %v521
    %v906 = vmul.f32 %v717, %v522
    %v907 = vmul.f32 %v722, %v523
    %v908 = vmul.f32 %v727, %v524
    %v909 = vmul.f32 %v732, %v525
    %v910 = vmul.f32 %v737, %v526
    %v911 = vmul.f32 %v742, %v527
    %v912 = vmul.f32 %v747, %v528
    %v913 = vmul.f32 %v752, %v529
    %v914 = vmul.f32 %v757, %v530
    %v915 = vmul.f32 %v762, %v531
    %v916 = vmul.f32 %v767, %v532
    %v917 = vmul.f32 %v772, %v533
    %v918 = vmul.f32 %v777, %v534
    %v919 = vmul.f32 %v782, %v535
    %v920 = vmul.f32 %v787, %v536
    %v921 = vmul.f32 %v792, %v537
    %v922 = vmul.f32 %v797, %v538
    %v923 = vmul.f32 %v802, %v539
    %v924 = vmul.f32 %v807, %v540
    %v925 = vmul.f32 %v812, %v541
    %v926 = vmul.f32 %v817, %v542
    %v927 = vmul.f32 %v822, %v543
    %v928 = vmul.f32 %v827, %v544
    %v929 = vmul.f32 %v832, %v545
    %v930 = vmul.f32 %v837, %v546
    %v931 = vmul.f32 %v842, %v547
    %v932 = vmul.f32 %v847, %v548
    %v933 = vmul.f32 %v852, %v549
    %v934 = vmul.f32 %v857, %v550
    %v935 = vmul.f32 %v862, %v551
    %v936 = vmul.f32 %v867, %v552
    %v937 = vmul.f32 %v872, %v553
    %v938 = vadd.f32 %v106, %v874
    %v939 = vadd.f32 %v107, %v875
    %v940 = vadd.f32 %v108, %v876
    %v941 = vadd.f32 %v109, %v877
    %v942 = vadd.f32 %v110, %v878
    %v943 = vadd.f32 %v111, %v879
    %v944 = vadd.f32 %v112, %v880
    %v945 = vadd.f32 %v113, %v881
    %v946 = vadd.f32 %v114, %v882
    %v947 = vadd.f32 %v115, %v883
    %v948 = vadd.f32 %v116, %v884
    %v949 = vadd.f32 %v117, %v885
    %v950 = vadd.f32 %v118, %v886
    %v951 = vadd.f32 %v119, %v887
    %v952 = vadd.f32 %v120, %v888
    %v953 = vadd.f32 %v121, %v889
    %v954 = vadd.f32 %v122, %v890
    %v955 = vadd.f32 %v123, %v891
    %v956 = vadd.f32 %v124, %v892
    %v957 = vadd.f32 %v125, %v893
    %v958 = vadd.f32 %v126, %v894
    %v959 = vadd.f32 %v127, %v895
    %v960 = vadd.f32 %v128, %v896
    %v961 = vadd.f32 %v129, %v897
    %v962 = vadd.f32 %v130, %v898
    %v963 = vadd.f32 %v131, %v899
    %v964 = vadd.f32 %v132, %v900
    %v965 = vadd.f32 %v133, %v901
    %v966 = vadd.f32 %v134, %v902
    %v967 = vadd.f32 %v135, %v903
    %v968 = vadd.f32 %v136, %v904
    %v969 = vadd.f32 %v137, %v905
    %v970 = vadd.f32 %v138, %v906
    %v971 = vadd.f32 %v139, %v907
    %v972 = vadd.f32 %v140, %v908
    %v973 = vadd.f32 %v141, %v909
    %v974 = vadd.f32 %v142, %v910
    %v975 = vadd.f32 %v143, %v911
    %v976 = vadd.f32 %v144, %v912
    %v977 = vadd.f32 %v145, %v913
    %v978 = vadd.f32 %v146, %v914
    %v979 = vadd.f32 %v147, %v915
    %v980 = vadd.f32 %v148, %v916
    %v981 = vadd.f32 %v149, %v917
    %v982 = vadd.f32 %v150, %v918
    %v983 = vadd.f32 %v151, %v919
    %v984 = vadd.f32 %v152, %v920
    %v985 = vadd.f32 %v153, %v921
    %v986 = vadd.f32 %v154, %v922
    %v987 = vadd.f32 %v155, %v923
    %v988 = vadd.f32 %v156, %v924
    %v989 = vadd.f32 %v157, %v925
    %v990 = vadd.f32 %v158, %v926
    %v991 = vadd.f32 %v159, %v927
    %v992 = vadd.f32 %v160, %v928
    %v993 = vadd.f32 %v161, %v929
    %v994 = vadd.f32 %v162, %v930
    %v995 = vadd.f32 %v163, %v931
    %v996 = vadd.f32 %v164, %v932
    %v997 = vadd.f32 %v165, %v933
    %v998 = vadd.f32 %v166, %v934
    %v999 = vadd.f32 %v167, %v935
    %v1000 = vadd.f32 %v168, %v936
    %v1001 = vadd.f32 %v169, %v937
    %v1002 = vsub.f32 %v298, %v234
    %v1003 = vsub.f32 %v299, %v235
    %v1004 = vsub.f32 %v300, %v236
    %v1005 = vsub.f32 %v301, %v237
    %v1006 = vsub.f32 %v302, %v238
    %v1007 = vsub.f32 %v303, %v239
    %v1008 = vsub.f32 %v304, %v240
    %v1009 = vsub.f32 %v305, %v241
    %v1010 = vsub.f32 %v306, %v242
    %v1011 = vsub.f32 %v307, %v243
    %v1012 = vsub.f32 %v308, %v244
    %v1013 = vsub.f32 %v309, %v245
    %v1014 = vsub.f32 %v310, %v246
    %v1015 = vsub.f32 %v311, %v247
    %v1016 = vsub.f32 %v312, %v248
    %v1017 = vsub.f32 %v313, %v249
    %v1018 = vsub.f32 %v314, %v250
    %v1019 = vsub.f32 %v315, %v251
    %v1020 = vsub.f32 %v316, %v252
    %v1021 = vsub.f32 %v317, %v253
    %v1022 = vsub.f32 %v318, %v254
    %v1023 = vsub.f32 %v319, %v255
    %v1024 = vsub.f32 %v320, %v256
    %v1025 = vsub.f32 %v321, %v257
    %v1026 = vsub.f32 %v322, %v258
    %v1027 = vsub.f32 %v323, %v259
    %v1028 = vsub.f32 %v324, %v260
    %v1029 = vsub.f32 %v325, %v261
    %v1030 = vsub.f32 %v326, %v262
    %v1031 = vsub.f32 %v327, %v263
    %v1032 = vsub.f32 %v328, %v264
    %v1033 = vsub.f32 %v329, %v265
    %v1034 = vsub.f32 %v330, %v266
    %v1035 = vsub.f32 %v331, %v267
    %v1036 = vsub.f32 %v332, %v268
    %v1037 = vsub.f32 %v333, %v269
    %v1038 = vsub.f32 %v334, %v270
    %v1039 = vsub.f32 %v335, %v271
    %v1040 = vsub.f32 %v336, %v272
    %v1041 = vsub.f32 %v337, %v273
    %v1042 = vsub.f32 %v338, %v274
    %v1043 = vsub.f32 %v339, %v275
    %v1044 = vsub.f32 %v340, %v276
    %v1045 = vsub.f32 %v341, %v277
    %v1046 = vsub.f32 %v342, %v278
    %v1047 = vsub.f32 %v343, %v279
    %v1048 = vsub.f32 %v344, %v280
    %v1049 = vsub.f32 %v345, %v281
    %v1050 = vsub.f32 %v346, %v282
    %v1051 = vsub.f32 %v347, %v283
    %v1052 = vsub.f32 %v348, %v284
    %v1053 = vsub.f32 %v349, %v285
    %v1054 = vsub.f32 %v350, %v286
    %v1055 = vsub.f32 %v351, %v287
    %v1056 = vsub.f32 %v352, %v288
    %v1057 = vsub.f32 %v353, %v289
    %v1058 = vsub.f32 %v354, %v290
    %v1059 = vsub.f32 %v355, %v291
    %v1060 = vsub.f32 %v356, %v292
    %v1061 = vsub.f32 %v357, %v293
    %v1062 = vsub.f32 %v358, %v294
    %v1063 = vsub.f32 %v359, %v295
    %v1064 = vsub.f32 %v360, %v296
    %v1065 = vsub.f32 %v361, %v297
    %v1066 = vmul.f32 %v557, %v1002
    %v1067 = vmul.f32 %v562, %v1003
    %v1068 = vmul.f32 %v567, %v1004
    %v1069 = vmul.f32 %v572, %v1005
    %v1070 = vmul.f32 %v577, %v1006
    %v1071 = vmul.f32 %v582, %v1007
    %v1072 = vmul.f32 %v587, %v1008
    %v1073 = vmul.f32 %v592, %v1009
    %v1074 = vmul.f32 %v597, %v1010
    %v1075 = vmul.f32 %v602, %v1011
    %v1076 = vmul.f32 %v607, %v1012
    %v1077 = vmul.f32 %v612, %v1013
    %v1078 = vmul.f32 %v617, %v1014
    %v1079 = vmul.f32 %v622, %v1015
    %v1080 = vmul.f32 %v627, %v1016
    %v1081 = vmul.f32 %v632, %v1017
    %v1082 = vmul.f32 %v637, %v1018
    %v1083 = vmul.f32 %v642, %v1019
    %v1084 = vmul.f32 %v647, %v1020
    %v1085 = vmul.f32 %v652, %v1021
    %v1086 = vmul.f32 %v657, %v1022
    %v1087 = vmul.f32 %v662, %v1023
    %v1088 = vmul.f32 %v667, %v1024
    %v1089 = vmul.f32 %v672, %v1025
    %v1090 = vmul.f32 %v677, %v1026
    %v1091 = vmul.f32 %v682, %v1027
    %v1092 = vmul.f32 %v687, %v1028
    %v1093 = vmul.f32 %v692, %v1029
    %v1094 = vmul.f32 %v697, %v1030
    %v1095 = vmul.f32 %v702, %v1031
    %v1096 = vmul.f32 %v707, %v1032
    %v1097 = vmul.f32 %v712, %v1033
    %v1098 = vmul.f32 %v717, %v1034
    %v1099 = vmul.f32 %v722, %v1035
    %v1100 = vmul.f32 %v727, %v1036
    %v1101 = vmul.f32 %v732, %v1037
    %v1102 = vmul.f32 %v737, %v1038
    %v1103 = vmul.f32 %v742, %v1039
    %v1104 = vmul.f32 %v747, %v1040
    %v1105 = vmul.f32 %v752, %v1041
    %v1106 = vmul.f32 %v757, %v1042
    %v1107 = vmul.f32 %v762, %v1043
    %v1108 = vmul.f32 %v767, %v1044
    %v1109 = vmul.f32 %v772, %v1045
    %v1110 = vmul.f32 %v777, %v1046
    %v1111 = vmul.f32 %v782, %v1047
    %v1112 = vmul.f32 %v787, %v1048
    %v1113 = vmul.f32 %v792, %v1049
    %v1114 = vmul.f32 %v797, %v1050
    %v1115 = vmul.f32 %v802, %v1051
    %v1116 = vmul.f32 %v807, %v1052
    %v1117 = vmul.f32 %v812, %v1053
    %v1118 = vmul.f32 %v817, %v1054
    %v1119 = vmul.f32 %v822, %v1055
    %v1120 = vmul.f32 %v827, %v1056
    %v1121 = vmul.f32 %v832, %v1057
    %v1122 = vmul.f32 %v837, %v1058
    %v1123 = vmul.f32 %v842, %v1059
    %v1124 = vmul.f32 %v847, %v1060
    %v1125 = vmul.f32 %v852, %v1061
    %v1126 = vmul.f32 %v857, %v1062
    %v1127 = vmul.f32 %v862, %v1063
    %v1128 = vmul.f32 %v867, %v1064
    %v1129 = vmul.f32 %v872, %v1065
    %v1130 = vadd.f32 %v234, %v1066
    %v1131 = vadd.f32 %v235, %v1067
    %v1132 = vadd.f32 %v236, %v1068
    %v1133 = vadd.f32 %v237, %v1069
    %v1134 = vadd.f32 %v238, %v1070
    %v1135 = vadd.f32 %v239, %v1071
    %v1136 = vadd.f32 %v240, %v1072
    %v1137 = vadd.f32 %v241, %v1073
    %v1138 = vadd.f32 %v242, %v1074
    %v1139 = vadd.f32 %v243, %v1075
    %v1140 = vadd.f32 %v244, %v1076
    %v1141 = vadd.f32 %v245, %v1077
    %v1142 = vadd.f32 %v246, %v1078
    %v1143 = vadd.f32 %v247, %v1079
    %v1144 = vadd.f32 %v248, %v1080
    %v1145 = vadd.f32 %v249, %v1081
    %v1146 = vadd.f32 %v250, %v1082
    %v1147 = vadd.f32 %v251, %v1083
    %v1148 = vadd.f32 %v252, %v1084
    %v1149 = vadd.f32 %v253, %v1085
    %v1150 = vadd.f32 %v254, %v1086
    %v1151 = vadd.f32 %v255, %v1087
    %v1152 = vadd.f32 %v256, %v1088
    %v1153 = vadd.f32 %v257, %v1089
    %v1154 = vadd.f32 %v258, %v1090
    %v1155 = vadd.f32 %v259, %v1091
    %v1156 = vadd.f32 %v260, %v1092
    %v1157 = vadd.f32 %v261, %v1093
    %v1158 = vadd.f32 %v262, %v1094
    %v1159 = vadd.f32 %v263, %v1095
    %v1160 = vadd.f32 %v264, %v1096
    %v1161 = vadd.f32 %v265, %v1097
    %v1162 = vadd.f32 %v266, %v1098
    %v1163 = vadd.f32 %v267, %v1099
    %v1164 = vadd.f32 %v268, %v1100
    %v1165 = vadd.f32 %v269, %v1101
    %v1166 = vadd.f32 %v270, %v1102
    %v1167 = vadd.f32 %v271, %v1103
    %v1168 = vadd.f32 %v272, %v1104
    %v1169 = vadd.f32 %v273, %v1105
    %v1170 = vadd.f32 %v274, %v1106
    %v1171 = vadd.f32 %v275, %v1107
    %v1172 = vadd.f32 %v276, %v1108
    %v1173 = vadd.f32 %v277, %v1109
    %v1174 = vadd.f32 %v278, %v1110
    %v1175 = vadd.f32 %v279, %v1111
    %v1176 = vadd.f32 %v280, %v1112
    %v1177 = vadd.f32 %v281, %v1113
    %v1178 = vadd.f32 %v282, %v1114
    %v1179 = vadd.f32 %v283, %v1115
    %v1180 = vadd.f32 %v284, %v1116
    %v1181 = vadd.f32 %v285, %v1117
    %v1182 = vadd.f32 %v286, %v1118
    %v1183 = vadd.f32 %v287, %v1119
    %v1184 = vadd.f32 %v288, %v1120
    %v1185 = vadd.f32 %v289, %v1121
    %v1186 = vadd.f32 %v290, %v1122
    %v1187 = vadd.f32 %v291, %v1123
    %v1188 = vadd.f32 %v292, %v1124
    %v1189 = vadd.f32 %v293, %v1125
    %v1190 = vadd.f32 %v294, %v1126
    %v1191 = vadd.f32 %v295, %v1127
    %v1192 = vadd.f32 %v296, %v1128
    %v1193 = vadd.f32 %v297, %v1129
    %v1194 = vsub.f32 %v1130, %v938
    %v1195 = vsub.f32 %v1131, %v939
    %v1196 = vsub.f32 %v1132, %v940
    %v1197 = vsub.f32 %v1133, %v941
    %v1198 = vsub.f32 %v1134, %v942
    %v1199 = vsub.f32 %v1135, %v943
    %v1200 = vsub.f32 %v1136, %v944
    %v1201 = vsub.f32 %v1137, %v945
    %v1202 = vsub.f32 %v1138, %v946
    %v1203 = vsub.f32 %v1139, %v947
    %v1204 = vsub.f32 %v1140, %v948
    %v1205 = vsub.f32 %v1141, %v949
    %v1206 = vsub.f32 %v1142, %v950
    %v1207 = vsub.f32 %v1143, %v951
    %v1208 = vsub.f32 %v1144, %v952
    %v1209 = vsub.f32 %v1145, %v953
    %v1210 = vsub.f32 %v1146, %v954
    %v1211 = vsub.f32 %v1147, %v955
    %v1212 = vsub.f32 %v1148, %v956
    %v1213 = vsub.f32 %v1149, %v957
    %v1214 = vsub.f32 %v1150, %v958
    %v1215 = vsub.f32 %v1151, %v959
    %v1216 = vsub.f32 %v1152, %v960
    %v1217 = vsub.f32 %v1153, %v961
    %v1218 = vsub.f32 %v1154, %v962
    %v1219 = vsub.f32 %v1155, %v963
    %v1220 = vsub.f32 %v1156, %v964
    %v1221 = vsub.f32 %v1157, %v965
    %v1222 = vsub.f32 %v1158, %v966
    %v1223 = vsub.f32 %v1159, %v967
    %v1224 = vsub.f32 %v1160, %v968
    %v1225 = vsub.f32 %v1161, %v969
    %v1226 = vsub.f32 %v1162, %v970
    %v1227 = vsub.f32 %v1163, %v971
    %v1228 = vsub.f32 %v1164, %v972
    %v1229 = vsub.f32 %v1165, %v973
    %v1230 = vsub.f32 %v1166, %v974
    %v1231 = vsub.f32 %v1167, %v975
    %v1232 = vsub.f32 %v1168, %v976
    %v1233 = vsub.f32 %v1169, %v977
    %v1234 = vsub.f32 %v1170, %v978
    %v1235 = vsub.f32 %v1171, %v979
    %v1236 = vsub.f32 %v1172, %v980
    %v1237 = vsub.f32 %v1173, %v981
    %v1238 = vsub.f32 %v1174, %v982
    %v1239 = vsub.f32 %v1175, %v983
    %v1240 = vsub.f32 %v1176, %v984
    %v1241 = vsub.f32 %v1177, %v985
    %v1242 = vsub.f32 %v1178, %v986
    %v1243 = vsub.f32 %v1179, %v987
    %v1244 = vsub.f32 %v1180, %v988
    %v1245 = vsub.f32 %v1181, %v989
    %v1246 = vsub.f32 %v1182, %v990
    %v1247 = vsub.f32 %v1183, %v991
    %v1248 = vsub.f32 %v1184, %v992
    %v1249 = vsub.f32 %v1185, %v993
    %v1250 = vsub.f32 %v1186, %v994
    %v1251 = vsub.f32 %v1187, %v995
    %v1252 = vsub.f32 %v1188, %v996
    %v1253 = vsub.f32 %v1189, %v997
    %v1254 = vsub.f32 %v1190, %v998
    %v1255 = vsub.f32 %v1191, %v999
    %v1256 = vsub.f32 %v1192, %v1000
    %v1257 = vsub.f32 %v1193, %v1001
    %1259 = vset.pattern.permute.xlu0 0
    %1260 = vperm.xlu0 %1259, %v426
    %v1261 = vpop.permute.xlu0 %1260
    %1264 = vset.pattern.permute.xlu0 0
    %1265 = vperm.xlu0 %1264, %v427
    %v1266 = vpop.permute.xlu0 %1265
    %1269 = vset.pattern.permute.xlu0 0
    %1270 = vperm.xlu0 %1269, %v428
    %v1271 = vpop.permute.xlu0 %1270
    %1274 = vset.pattern.permute.xlu0 0
    %1275 = vperm.xlu0 %1274, %v429
    %v1276 = vpop.permute.xlu0 %1275
    %1279 = vset.pattern.permute.xlu0 0
    %1280 = vperm.xlu0 %1279, %v430
    %v1281 = vpop.permute.xlu0 %1280
    %1284 = vset.pattern.permute.xlu0 0
    %1285 = vperm.xlu0 %1284, %v431
    %v1286 = vpop.permute.xlu0 %1285
    %1289 = vset.pattern.permute.xlu0 0
    %1290 = vperm.xlu0 %1289, %v432
    %v1291 = vpop.permute.xlu0 %1290
    %1294 = vset.pattern.permute.xlu0 0
    %1295 = vperm.xlu0 %1294, %v433
    %v1296 = vpop.permute.xlu0 %1295
    %1299 = vset.pattern.permute.xlu0 0
    %1300 = vperm.xlu0 %1299, %v434
    %v1301 = vpop.permute.xlu0 %1300
    %1304 = vset.pattern.permute.xlu0 0
    %1305 = vperm.xlu0 %1304, %v435
    %v1306 = vpop.permute.xlu0 %1305
    %1309 = vset.pattern.permute.xlu0 0
    %1310 = vperm.xlu0 %1309, %v436
    %v1311 = vpop.permute.xlu0 %1310
    %1314 = vset.pattern.permute.xlu0 0
    %1315 = vperm.xlu0 %1314, %v437
    %v1316 = vpop.permute.xlu0 %1315
    %1319 = vset.pattern.permute.xlu0 0
    %1320 = vperm.xlu0 %1319, %v438
    %v1321 = vpop.permute.xlu0 %1320
    %1324 = vset.pattern.permute.xlu0 0
    %1325 = vperm.xlu0 %1324, %v439
    %v1326 = vpop.permute.xlu0 %1325
    %1329 = vset.pattern.permute.xlu0 0
    %1330 = vperm.xlu0 %1329, %v440
    %v1331 = vpop.permute.xlu0 %1330
    %1334 = vset.pattern.permute.xlu0 0
    %1335 = vperm.xlu0 %1334, %v441
    %v1336 = vpop.permute.xlu0 %1335
    %1339 = vset.pattern.permute.xlu0 0
    %1340 = vperm.xlu0 %1339, %v442
    %v1341 = vpop.permute.xlu0 %1340
    %1344 = vset.pattern.permute.xlu0 0
    %1345 = vperm.xlu0 %1344, %v443
    %v1346 = vpop.permute.xlu0 %1345
    %1349 = vset.pattern.permute.xlu0 0
    %1350 = vperm.xlu0 %1349, %v444
    %v1351 = vpop.permute.xlu0 %1350
    %1354 = vset.pattern.permute.xlu0 0
    %1355 = vperm.xlu0 %1354, %v445
    %v1356 = vpop.permute.xlu0 %1355
    %1359 = vset.pattern.permute.xlu0 0
    %1360 = vperm.xlu0 %1359, %v446
    %v1361 = vpop.permute.xlu0 %1360
    %1364 = vset.pattern.permute.xlu0 0
    %1365 = vperm.xlu0 %1364, %v447
    %v1366 = vpop.permute.xlu0 %1365
    %1369 = vset.pattern.permute.xlu0 0
    %1370 = vperm.xlu0 %1369, %v448
    %v1371 = vpop.permute.xlu0 %1370
    %1374 = vset.pattern.permute.xlu0 0
    %1375 = vperm.xlu0 %1374, %v449
    %v1376 = vpop.permute.xlu0 %1375
    %1379 = vset.pattern.permute.xlu0 0
    %1380 = vperm.xlu0 %1379, %v450
    %v1381 = vpop.permute.xlu0 %1380
    %1384 = vset.pattern.permute.xlu0 0
    %1385 = vperm.xlu0 %1384, %v451
    %v1386 = vpop.permute.xlu0 %1385
    %1389 = vset.pattern.permute.xlu0 0
    %1390 = vperm.xlu0 %1389, %v452
    %v1391 = vpop.permute.xlu0 %1390
    %1394 = vset.pattern.permute.xlu0 0
    %1395 = vperm.xlu0 %1394, %v453
    %v1396 = vpop.permute.xlu0 %1395
    %1399 = vset.pattern.permute.xlu0 0
    %1400 = vperm.xlu0 %1399, %v454
    %v1401 = vpop.permute.xlu0 %1400
    %1404 = vset.pattern.permute.xlu0 0
    %1405 = vperm.xlu0 %1404, %v455
    %v1406 = vpop.permute.xlu0 %1405
    %1409 = vset.pattern.permute.xlu0 0
    %1410 = vperm.xlu0 %1409, %v456
    %v1411 = vpop.permute.xlu0 %1410
    %1414 = vset.pattern.permute.xlu0 0
    %1415 = vperm.xlu0 %1414, %v457
    %v1416 = vpop.permute.xlu0 %1415
    %1419 = vset.pattern.permute.xlu0 0
    %1420 = vperm.xlu0 %1419, %v458
    %v1421 = vpop.permute.xlu0 %1420
    %1424 = vset.pattern.permute.xlu0 0
    %1425 = vperm.xlu0 %1424, %v459
    %v1426 = vpop.permute.xlu0 %1425
    %1429 = vset.pattern.permute.xlu0 0
    %1430 = vperm.xlu0 %1429, %v460
    %v1431 = vpop.permute.xlu0 %1430
    %1434 = vset.pattern.permute.xlu0 0
    %1435 = vperm.xlu0 %1434, %v461
    %v1436 = vpop.permute.xlu0 %1435
    %1439 = vset.pattern.permute.xlu0 0
    %1440 = vperm.xlu0 %1439, %v462
    %v1441 = vpop.permute.xlu0 %1440
    %1444 = vset.pattern.permute.xlu0 0
    %1445 = vperm.xlu0 %1444, %v463
    %v1446 = vpop.permute.xlu0 %1445
    %1449 = vset.pattern.permute.xlu0 0
    %1450 = vperm.xlu0 %1449, %v464
    %v1451 = vpop.permute.xlu0 %1450
    %1454 = vset.pattern.permute.xlu0 0
    %1455 = vperm.xlu0 %1454, %v465
    %v1456 = vpop.permute.xlu0 %1455
    %1459 = vset.pattern.permute.xlu0 0
    %1460 = vperm.xlu0 %1459, %v466
    %v1461 = vpop.permute.xlu0 %1460
    %1464 = vset.pattern.permute.xlu0 0
    %1465 = vperm.xlu0 %1464, %v467
    %v1466 = vpop.permute.xlu0 %1465
    %1469 = vset.pattern.permute.xlu0 0
    %1470 = vperm.xlu0 %1469, %v468
    %v1471 = vpop.permute.xlu0 %1470
    %1474 = vset.pattern.permute.xlu0 0
    %1475 = vperm.xlu0 %1474, %v469
    %v1476 = vpop.permute.xlu0 %1475
    %1479 = vset.pattern.permute.xlu0 0
    %1480 = vperm.xlu0 %1479, %v470
    %v1481 = vpop.permute.xlu0 %1480
    %1484 = vset.pattern.permute.xlu0 0
    %1485 = vperm.xlu0 %1484, %v471
    %v1486 = vpop.permute.xlu0 %1485
    %1489 = vset.pattern.permute.xlu0 0
    %1490 = vperm.xlu0 %1489, %v472
    %v1491 = vpop.permute.xlu0 %1490
    %1494 = vset.pattern.permute.xlu0 0
    %1495 = vperm.xlu0 %1494, %v473
    %v1496 = vpop.permute.xlu0 %1495
    %1499 = vset.pattern.permute.xlu0 0
    %1500 = vperm.xlu0 %1499, %v474
    %v1501 = vpop.permute.xlu0 %1500
    %1504 = vset.pattern.permute.xlu0 0
    %1505 = vperm.xlu0 %1504, %v475
    %v1506 = vpop.permute.xlu0 %1505
    %1509 = vset.pattern.permute.xlu0 0
    %1510 = vperm.xlu0 %1509, %v476
    %v1511 = vpop.permute.xlu0 %1510
    %1514 = vset.pattern.permute.xlu0 0
    %1515 = vperm.xlu0 %1514, %v477
    %v1516 = vpop.permute.xlu0 %1515
    %1519 = vset.pattern.permute.xlu0 0
    %1520 = vperm.xlu0 %1519, %v478
    %v1521 = vpop.permute.xlu0 %1520
    %1524 = vset.pattern.permute.xlu0 0
    %1525 = vperm.xlu0 %1524, %v479
    %v1526 = vpop.permute.xlu0 %1525
    %1529 = vset.pattern.permute.xlu0 0
    %1530 = vperm.xlu0 %1529, %v480
    %v1531 = vpop.permute.xlu0 %1530
    %1534 = vset.pattern.permute.xlu0 0
    %1535 = vperm.xlu0 %1534, %v481
    %v1536 = vpop.permute.xlu0 %1535
    %1539 = vset.pattern.permute.xlu0 0
    %1540 = vperm.xlu0 %1539, %v482
    %v1541 = vpop.permute.xlu0 %1540
    %1544 = vset.pattern.permute.xlu0 0
    %1545 = vperm.xlu0 %1544, %v483
    %v1546 = vpop.permute.xlu0 %1545
    %1549 = vset.pattern.permute.xlu0 0
    %1550 = vperm.xlu0 %1549, %v484
    %v1551 = vpop.permute.xlu0 %1550
    %1554 = vset.pattern.permute.xlu0 0
    %1555 = vperm.xlu0 %1554, %v485
    %v1556 = vpop.permute.xlu0 %1555
    %1559 = vset.pattern.permute.xlu0 0
    %1560 = vperm.xlu0 %1559, %v486
    %v1561 = vpop.permute.xlu0 %1560
    %1564 = vset.pattern.permute.xlu0 0
    %1565 = vperm.xlu0 %1564, %v487
    %v1566 = vpop.permute.xlu0 %1565
    %1569 = vset.pattern.permute.xlu0 0
    %1570 = vperm.xlu0 %1569, %v488
    %v1571 = vpop.permute.xlu0 %1570
    %1574 = vset.pattern.permute.xlu0 0
    %1575 = vperm.xlu0 %1574, %v489
    %v1576 = vpop.permute.xlu0 %1575
    %v1578 = vmul.f32 %v1261, %v1194
    %v1579 = vmul.f32 %v1266, %v1195
    %v1580 = vmul.f32 %v1271, %v1196
    %v1581 = vmul.f32 %v1276, %v1197
    %v1582 = vmul.f32 %v1281, %v1198
    %v1583 = vmul.f32 %v1286, %v1199
    %v1584 = vmul.f32 %v1291, %v1200
    %v1585 = vmul.f32 %v1296, %v1201
    %v1586 = vmul.f32 %v1301, %v1202
    %v1587 = vmul.f32 %v1306, %v1203
    %v1588 = vmul.f32 %v1311, %v1204
    %v1589 = vmul.f32 %v1316, %v1205
    %v1590 = vmul.f32 %v1321, %v1206
    %v1591 = vmul.f32 %v1326, %v1207
    %v1592 = vmul.f32 %v1331, %v1208
    %v1593 = vmul.f32 %v1336, %v1209
    %v1594 = vmul.f32 %v1341, %v1210
    %v1595 = vmul.f32 %v1346, %v1211
    %v1596 = vmul.f32 %v1351, %v1212
    %v1597 = vmul.f32 %v1356, %v1213
    %v1598 = vmul.f32 %v1361, %v1214
    %v1599 = vmul.f32 %v1366, %v1215
    %v1600 = vmul.f32 %v1371, %v1216
    %v1601 = vmul.f32 %v1376, %v1217
    %v1602 = vmul.f32 %v1381, %v1218
    %v1603 = vmul.f32 %v1386, %v1219
    %v1604 = vmul.f32 %v1391, %v1220
    %v1605 = vmul.f32 %v1396, %v1221
    %v1606 = vmul.f32 %v1401, %v1222
    %v1607 = vmul.f32 %v1406, %v1223
    %v1608 = vmul.f32 %v1411, %v1224
    %v1609 = vmul.f32 %v1416, %v1225
    %v1610 = vmul.f32 %v1421, %v1226
    %v1611 = vmul.f32 %v1426, %v1227
    %v1612 = vmul.f32 %v1431, %v1228
    %v1613 = vmul.f32 %v1436, %v1229
    %v1614 = vmul.f32 %v1441, %v1230
    %v1615 = vmul.f32 %v1446, %v1231
    %v1616 = vmul.f32 %v1451, %v1232
    %v1617 = vmul.f32 %v1456, %v1233
    %v1618 = vmul.f32 %v1461, %v1234
    %v1619 = vmul.f32 %v1466, %v1235
    %v1620 = vmul.f32 %v1471, %v1236
    %v1621 = vmul.f32 %v1476, %v1237
    %v1622 = vmul.f32 %v1481, %v1238
    %v1623 = vmul.f32 %v1486, %v1239
    %v1624 = vmul.f32 %v1491, %v1240
    %v1625 = vmul.f32 %v1496, %v1241
    %v1626 = vmul.f32 %v1501, %v1242
    %v1627 = vmul.f32 %v1506, %v1243
    %v1628 = vmul.f32 %v1511, %v1244
    %v1629 = vmul.f32 %v1516, %v1245
    %v1630 = vmul.f32 %v1521, %v1246
    %v1631 = vmul.f32 %v1526, %v1247
    %v1632 = vmul.f32 %v1531, %v1248
    %v1633 = vmul.f32 %v1536, %v1249
    %v1634 = vmul.f32 %v1541, %v1250
    %v1635 = vmul.f32 %v1546, %v1251
    %v1636 = vmul.f32 %v1551, %v1252
    %v1637 = vmul.f32 %v1556, %v1253
    %v1638 = vmul.f32 %v1561, %v1254
    %v1639 = vmul.f32 %v1566, %v1255
    %v1640 = vmul.f32 %v1571, %v1256
    %v1641 = vmul.f32 %v1576, %v1257
    %v1642 = vadd.f32 %v938, %v1578
    %v1643 = vadd.f32 %v939, %v1579
    %v1644 = vadd.f32 %v940, %v1580
    %v1645 = vadd.f32 %v941, %v1581
    %v1646 = vadd.f32 %v942, %v1582
    %v1647 = vadd.f32 %v943, %v1583
    %v1648 = vadd.f32 %v944, %v1584
    %v1649 = vadd.f32 %v945, %v1585
    %v1650 = vadd.f32 %v946, %v1586
    %v1651 = vadd.f32 %v947, %v1587
    %v1652 = vadd.f32 %v948, %v1588
    %v1653 = vadd.f32 %v949, %v1589
    %v1654 = vadd.f32 %v950, %v1590
    %v1655 = vadd.f32 %v951, %v1591
    %v1656 = vadd.f32 %v952, %v1592
    %v1657 = vadd.f32 %v953, %v1593
    %v1658 = vadd.f32 %v954, %v1594
    %v1659 = vadd.f32 %v955, %v1595
    %v1660 = vadd.f32 %v956, %v1596
    %v1661 = vadd.f32 %v957, %v1597
    %v1662 = vadd.f32 %v958, %v1598
    %v1663 = vadd.f32 %v959, %v1599
    %v1664 = vadd.f32 %v960, %v1600
    %v1665 = vadd.f32 %v961, %v1601
    %v1666 = vadd.f32 %v962, %v1602
    %v1667 = vadd.f32 %v963, %v1603
    %v1668 = vadd.f32 %v964, %v1604
    %v1669 = vadd.f32 %v965, %v1605
    %v1670 = vadd.f32 %v966, %v1606
    %v1671 = vadd.f32 %v967, %v1607
    %v1672 = vadd.f32 %v968, %v1608
    %v1673 = vadd.f32 %v969, %v1609
    %v1674 = vadd.f32 %v970, %v1610
    %v1675 = vadd.f32 %v971, %v1611
    %v1676 = vadd.f32 %v972, %v1612
    %v1677 = vadd.f32 %v973, %v1613
    %v1678 = vadd.f32 %v974, %v1614
    %v1679 = vadd.f32 %v975, %v1615
    %v1680 = vadd.f32 %v976, %v1616
    %v1681 = vadd.f32 %v977, %v1617
    %v1682 = vadd.f32 %v978, %v1618
    %v1683 = vadd.f32 %v979, %v1619
    %v1684 = vadd.f32 %v980, %v1620
    %v1685 = vadd.f32 %v981, %v1621
    %v1686 = vadd.f32 %v982, %v1622
    %v1687 = vadd.f32 %v983, %v1623
    %v1688 = vadd.f32 %v984, %v1624
    %v1689 = vadd.f32 %v985, %v1625
    %v1690 = vadd.f32 %v986, %v1626
    %v1691 = vadd.f32 %v987, %v1627
    %v1692 = vadd.f32 %v988, %v1628
    %v1693 = vadd.f32 %v989, %v1629
    %v1694 = vadd.f32 %v990, %v1630
    %v1695 = vadd.f32 %v991, %v1631
    %v1696 = vadd.f32 %v992, %v1632
    %v1697 = vadd.f32 %v993, %v1633
    %v1698 = vadd.f32 %v994, %v1634
    %v1699 = vadd.f32 %v995, %v1635
    %v1700 = vadd.f32 %v996, %v1636
    %v1701 = vadd.f32 %v997, %v1637
    %v1702 = vadd.f32 %v998, %v1638
    %v1703 = vadd.f32 %v999, %v1639
    %v1704 = vadd.f32 %v1000, %v1640
    %v1705 = vadd.f32 %v1001, %v1641
    %vm1706 = vcmask 121856
    %1707 = vst.msk [vmem:[#allocation13] sm:$0xff] %vm1706, %v1642
    %1708 = vst.msk [vmem:[#allocation13 + $0x8] sm:$0xff] %vm1706, %v1643
    %1709 = vst.msk [vmem:[#allocation13 + $0x10] sm:$0xff] %vm1706, %v1644
    %1710 = vst.msk [vmem:[#allocation13 + $0x18] sm:$0xff] %vm1706, %v1645
    %1711 = vst.msk [vmem:[#allocation13 + $0x20] sm:$0xff] %vm1706, %v1646
    %1712 = vst.msk [vmem:[#allocation13 + $0x28] sm:$0xff] %vm1706, %v1647
    %1713 = vst.msk [vmem:[#allocation13 + $0x30] sm:$0xff] %vm1706, %v1648
    %1714 = vst.msk [vmem:[#allocation13 + $0x38] sm:$0xff] %vm1706, %v1649
    %1715 = vst.msk [vmem:[#allocation13 + $0x40] sm:$0xff] %vm1706, %v1650
    %1716 = vst.msk [vmem:[#allocation13 + $0x48] sm:$0xff] %vm1706, %v1651
    %1717 = vst.msk [vmem:[#allocation13 + $0x50] sm:$0xff] %vm1706, %v1652
    %1718 = vst.msk [vmem:[#allocation13 + $0x58] sm:$0xff] %vm1706, %v1653
    %1719 = vst.msk [vmem:[#allocation13 + $0x60] sm:$0xff] %vm1706, %v1654
    %1720 = vst.msk [vmem:[#allocation13 + $0x68] sm:$0xff] %vm1706, %v1655
    %1721 = vst.msk [vmem:[#allocation13 + $0x70] sm:$0xff] %vm1706, %v1656
    %1722 = vst.msk [vmem:[#allocation13 + $0x78] sm:$0xff] %vm1706, %v1657
    %1723 = vst.msk [vmem:[#allocation13 + $0x80] sm:$0xff] %vm1706, %v1658
    %1724 = vst.msk [vmem:[#allocation13 + $0x88] sm:$0xff] %vm1706, %v1659
    %1725 = vst.msk [vmem:[#allocation13 + $0x90] sm:$0xff] %vm1706, %v1660
    %1726 = vst.msk [vmem:[#allocation13 + $0x98] sm:$0xff] %vm1706, %v1661
    %1727 = vst.msk [vmem:[#allocation13 + $0xa0] sm:$0xff] %vm1706, %v1662
    %1728 = vst.msk [vmem:[#allocation13 + $0xa8] sm:$0xff] %vm1706, %v1663
    %1729 = vst.msk [vmem:[#allocation13 + $0xb0] sm:$0xff] %vm1706, %v1664
    %1730 = vst.msk [vmem:[#allocation13 + $0xb8] sm:$0xff] %vm1706, %v1665
    %1731 = vst.msk [vmem:[#allocation13 + $0xc0] sm:$0xff] %vm1706, %v1666
    %1732 = vst.msk [vmem:[#allocation13 + $0xc8] sm:$0xff] %vm1706, %v1667
    %1733 = vst.msk [vmem:[#allocation13 + $0xd0] sm:$0xff] %vm1706, %v1668
    %1734 = vst.msk [vmem:[#allocation13 + $0xd8] sm:$0xff] %vm1706, %v1669
    %1735 = vst.msk [vmem:[#allocation13 + $0xe0] sm:$0xff] %vm1706, %v1670
    %1736 = vst.msk [vmem:[#allocation13 + $0xe8] sm:$0xff] %vm1706, %v1671
    %1737 = vst.msk [vmem:[#allocation13 + $0xf0] sm:$0xff] %vm1706, %v1672
    %1738 = vst.msk [vmem:[#allocation13 + $0xf8] sm:$0xff] %vm1706, %v1673
    %1739 = vst.msk [vmem:[#allocation13 + $0x100] sm:$0xff] %vm1706, %v1674
    %1740 = vst.msk [vmem:[#allocation13 + $0x108] sm:$0xff] %vm1706, %v1675
    %1741 = vst.msk [vmem:[#allocation13 + $0x110] sm:$0xff] %vm1706, %v1676
    %1742 = vst.msk [vmem:[#allocation13 + $0x118] sm:$0xff] %vm1706, %v1677
    %1743 = vst.msk [vmem:[#allocation13 + $0x120] sm:$0xff] %vm1706, %v1678
    %1744 = vst.msk [vmem:[#allocation13 + $0x128] sm:$0xff] %vm1706, %v1679
    %1745 = vst.msk [vmem:[#allocation13 + $0x130] sm:$0xff] %vm1706, %v1680
    %1746 = vst.msk [vmem:[#allocation13 + $0x138] sm:$0xff] %vm1706, %v1681
    %1747 = vst.msk [vmem:[#allocation13 + $0x140] sm:$0xff] %vm1706, %v1682
    %1748 = vst.msk [vmem:[#allocation13 + $0x148] sm:$0xff] %vm1706, %v1683
    %1749 = vst.msk [vmem:[#allocation13 + $0x150] sm:$0xff] %vm1706, %v1684
    %1750 = vst.msk [vmem:[#allocation13 + $0x158] sm:$0xff] %vm1706, %v1685
    %1751 = vst.msk [vmem:[#allocation13 + $0x160] sm:$0xff] %vm1706, %v1686
    %1752 = vst.msk [vmem:[#allocation13 + $0x168] sm:$0xff] %vm1706, %v1687
    %1753 = vst.msk [vmem:[#allocation13 + $0x170] sm:$0xff] %vm1706, %v1688
    %1754 = vst.msk [vmem:[#allocation13 + $0x178] sm:$0xff] %vm1706, %v1689
    %1755 = vst.msk [vmem:[#allocation13 + $0x180] sm:$0xff] %vm1706, %v1690
    %1756 = vst.msk [vmem:[#allocation13 + $0x188] sm:$0xff] %vm1706, %v1691
    %1757 = vst.msk [vmem:[#allocation13 + $0x190] sm:$0xff] %vm1706, %v1692
    %1758 = vst.msk [vmem:[#allocation13 + $0x198] sm:$0xff] %vm1706, %v1693
    %1759 = vst.msk [vmem:[#allocation13 + $0x1a0] sm:$0xff] %vm1706, %v1694
    %1760 = vst.msk [vmem:[#allocation13 + $0x1a8] sm:$0xff] %vm1706, %v1695
    %1761 = vst.msk [vmem:[#allocation13 + $0x1b0] sm:$0xff] %vm1706, %v1696
    %1762 = vst.msk [vmem:[#allocation13 + $0x1b8] sm:$0xff] %vm1706, %v1697
    %1763 = vst.msk [vmem:[#allocation13 + $0x1c0] sm:$0xff] %vm1706, %v1698
    %1764 = vst.msk [vmem:[#allocation13 + $0x1c8] sm:$0xff] %vm1706, %v1699
    %1765 = vst.msk [vmem:[#allocation13 + $0x1d0] sm:$0xff] %vm1706, %v1700
    %1766 = vst.msk [vmem:[#allocation13 + $0x1d8] sm:$0xff] %vm1706, %v1701
    %1767 = vst.msk [vmem:[#allocation13 + $0x1e0] sm:$0xff] %vm1706, %v1702
    %1768 = vst.msk [vmem:[#allocation13 + $0x1e8] sm:$0xff] %vm1706, %v1703
    %1769 = vst.msk [vmem:[#allocation13 + $0x1f0] sm:$0xff] %vm1706, %v1704
    %1770 = vst.msk [vmem:[#allocation13 + $0x1f8] sm:$0xff] %vm1706, %v1705
    // Predicated region
    $region50: #{stargan_generator_forward.29} parent=1 // pred_check
      _
    $region51: #{stargan_generator_forward.29} parent=1 // pred_check_branch
      %1772 = sbr.rel (0) target = $region53
    $region52: #{stargan_generator_forward.29} parent=1 // pred_region
      %s1774 = ssub.s32 8192, 8192
      %1775 = vsyncadd [#allocation4], %s1774
      %s1776 = sshll.u32 [#allocation13], 4
      %s1777 = int_to_ptr.vmem [resolvable:$true] %s1776
      %1782 = dma.vmem_to_hbm [thread:$0]  %s1777, 8192, %s6, [#allocation4], 128, 128, 8
    $region53: #{stargan_generator_forward.29} parent=1 // pred_fallthru
      _
    // Predicated region
    $region54: #{stargan_generator_forward.29} parent=1 // pred_check
      _
    $region55: #{stargan_generator_forward.29} parent=1 // pred_check_branch
      %1784 = sbr.rel (0) target = $region57
    $region56: #{stargan_generator_forward.29} parent=1 // pred_region
      %1785 = dma.done [#allocation4], 8192
    $region57: #{stargan_generator_forward.29} parent=1 // pred_fallthru
      _
    %1786 = vsyncpa [#allocation3], 1
    %1787 = vsyncpa [#allocation6], 1
    %1788 = vsyncpa [#allocation9], 1
    %1789 = vsyncpa [#allocation12], 1
    %1790 = vsyncpa [#allocation4], 1

// kernel: stargan_generator_forward.30
$region0: #{stargan_generator_forward.30}
  #allocation0 [shape = 'u32[]', space=smem, size = 0x4, offset = 0x4, fixed_abs, tag = 'smem constant byte address 0x4 - core index']
  #allocation1 [shape = 'u32[144,128]{1,0:T(1,128)}', space=vmem, size = 0x12000, scoped, tag = 'internal scratch']
  %s0 = inlined_call_operand.hbm [shape: bf16[512,135], index: 0, kind: input, shape index: {}]
  %s1 = inlined_call_operand.hbm [shape: bf16[135,128], index: 1, kind: input, shape index: {}]
  %s2 = inlined_call_operand.hbm [shape: f32[1,128], index: 2, kind: input, shape index: {}]
  %s3 = inlined_call_operand.hbm [shape: f32[512,128], index: 3, kind: input, shape index: {}]
  %s4 = inlined_call_operand.hbm [shape: f32[512,128], index: 4, kind: output, shape index: {}]
  %s5 = sld [smem:[#allocation0]]
  $region42: #{stargan_generator_forward.30} parent=0
    _
  %s7 = ssub.s32 1, %s5
  %s8 = scalar_select 0, %s7, %s5
  $region1: #{stargan_generator_forward.30} parent=0
    #allocation2 [shape = 'u8[262144]{0}', space=vmem, size = 0x40000, scoped, tag = 'input window, operand 0, single buffered']
    #allocation3 [shape = 's32[1]{0}', space=sflag, size = 0x4, scoped, tag = 'scoped memory for stargan_generator_forward.30']
    #allocation4 [shape = 's32[1]{0}', space=sflag, size = 0x4, scoped, tag = 'scoped memory for stargan_generator_forward.30']
    #allocation5 [shape = 'u8[34816]{0}', space=vmem, size = 0x8800, scoped, tag = 'input window, operand 1, single buffered']
    #allocation6 [shape = 's32[1]{0}', space=sflag, size = 0x4, scoped, tag = 'scoped memory for stargan_generator_forward.30']
    #allocation7 [shape = 'u8[512]{0}', space=vmem, size = 0x400, scoped, tag = 'input window, operand 2, single buffered']
    #allocation8 [shape = 'u8[262144]{0}', space=vmem, size = 0x40000, scoped, tag = 'input window, operand 3, single buffered']
    #allocation9 [shape = 's32[1]{0}', space=sflag, size = 0x4, scoped, tag = 'scoped memory for stargan_generator_forward.30']
    #allocation10 [shape = 'u8[262144]{0}', space=vmem, size = 0x40000, scoped, tag = 'output window, operand 0, single buffered']
    %9 = vsyncpa [#allocation3], 0
    %10 = vsyncpa [#allocation6], 0
    %11 = vsyncpa [#allocation9], 0
    %12 = vsyncpa [#allocation4], 0
    // Predicated region
    $region2: #{stargan_generator_forward.30} parent=1 // pred_check
      _
    $region3: #{stargan_generator_forward.30} parent=1 // pred_check_branch
      %14 = sbr.rel (0) target = $region5
    $region4: #{stargan_generator_forward.30} parent=1 // pred_region
      %s16 = ssub.s32 8192, 8192
      %17 = vsyncadd [#allocation3], %s16
      %s18 = sshll.u32 [#allocation2], 4
      %s19 = int_to_ptr.vmem [resolvable:$true] %s18
      %24 = dma.hbm_to_vmem [thread:$0]  %s0, 8192, %s19, [#allocation3], 128, 128, 8
    $region5: #{stargan_generator_forward.30} parent=1 // pred_fallthru
      _
    // Predicated region
    $region6: #{stargan_generator_forward.30} parent=1 // pred_check
      _
    $region7: #{stargan_generator_forward.30} parent=1 // pred_check_branch
      %26 = sbr.rel (0) target = $region9
    $region8: #{stargan_generator_forward.30} parent=1 // pred_region
      %s28 = ssub.s32 1088, 1088
      %29 = vsyncadd [#allocation6], %s28
      %s30 = sshll.u32 [#allocation5], 4
      %s31 = int_to_ptr.vmem [resolvable:$true] %s30
      %36 = dma.hbm_to_vmem [thread:$0]  %s1, 1088, %s31, [#allocation6], 64, 64, 4
    $region9: #{stargan_generator_forward.30} parent=1 // pred_fallthru
      _
    // Predicated region
    $region10: #{stargan_generator_forward.30} parent=1 // pred_check
      _
    $region11: #{stargan_generator_forward.30} parent=1 // pred_check_branch
      %38 = sbr.rel (0) target = $region13
    $region12: #{stargan_generator_forward.30} parent=1 // pred_region
      %s40 = ssub.s32 16, 16
      %41 = vsyncadd [#allocation6], %s40
      %s43 = sshll.u32 [#allocation7], 4
      %s44 = int_to_ptr.vmem [resolvable:$true] %s43
      %46 = dma.hbm_to_vmem [thread:$0]  %s2, 16, %s44, [#allocation6]
    $region13: #{stargan_generator_forward.30} parent=1 // pred_fallthru
      _
    // Predicated region
    $region14: #{stargan_generator_forward.30} parent=1 // pred_check
      _
    $region15: #{stargan_generator_forward.30} parent=1 // pred_check_branch
      %48 = sbr.rel (0) target = $region17
    $region16: #{stargan_generator_forward.30} parent=1 // pred_region
      %s50 = ssub.s32 8192, 8192
      %51 = vsyncadd [#allocation9], %s50
      %s52 = sshll.u32 [#allocation8], 4
      %s53 = int_to_ptr.vmem [resolvable:$true] %s52
      %58 = dma.hbm_to_vmem [thread:$0]  %s3, 8192, %s53, [#allocation9], 128, 128, 8
    $region17: #{stargan_generator_forward.30} parent=1 // pred_fallthru
      _
    // Predicated region
    $region18: #{stargan_generator_forward.30} parent=1 // pred_check
      _
    $region19: #{stargan_generator_forward.30} parent=1 // pred_check_branch
      %60 = sbr.rel (0) target = $region21
    $region20: #{stargan_generator_forward.30} parent=1 // pred_region
      %61 = dma.done [#allocation3], 8192
    $region21: #{stargan_generator_forward.30} parent=1 // pred_fallthru
      _
    // Predicated region
    $region22: #{stargan_generator_forward.30} parent=1 // pred_check
      _
    $region23: #{stargan_generator_forward.30} parent=1 // pred_check_branch
      %63 = sbr.rel (0) target = $region25
    $region24: #{stargan_generator_forward.30} parent=1 // pred_region
      %64 = dma.done [#allocation6], 1088
    $region25: #{stargan_generator_forward.30} parent=1 // pred_fallthru
      _
    // Predicated region
    $region26: #{stargan_generator_forward.30} parent=1 // pred_check
      _
    $region27: #{stargan_generator_forward.30} parent=1 // pred_check_branch
      %66 = sbr.rel (0) target = $region29
    $region28: #{stargan_generator_forward.30} parent=1 // pred_region
      %67 = dma.done [#allocation6], 16
    $region29: #{stargan_generator_forward.30} parent=1 // pred_fallthru
      _
    // Predicated region
    $region30: #{stargan_generator_forward.30} parent=1 // pred_check
      _
    $region31: #{stargan_generator_forward.30} parent=1 // pred_check_branch
      %69 = sbr.rel (0) target = $region33
    $region32: #{stargan_generator_forward.30} parent=1 // pred_region
      %70 = dma.done [#allocation9], 8192
    $region33: #{stargan_generator_forward.30} parent=1 // pred_fallthru
      _
    %v72 = vld [vmem:[#allocation2] sm:$0xff]
    %v73 = vld [vmem:[#allocation2 + $0x8] sm:$0xff]
    %v74 = vld [vmem:[#allocation2 + $0x10] sm:$0xff]
    %v75 = vld [vmem:[#allocation2 + $0x18] sm:$0xff]
    %v76 = vld [vmem:[#allocation2 + $0x20] sm:$0xff]
    %v77 = vld [vmem:[#allocation2 + $0x28] sm:$0xff]
    %v78 = vld [vmem:[#allocation2 + $0x30] sm:$0xff]
    %v79 = vld [vmem:[#allocation2 + $0x38] sm:$0xff]
    %v80 = vld [vmem:[#allocation2 + $0x40] sm:$0xff]
    %v81 = vld [vmem:[#allocation2 + $0x48] sm:$0xff]
    %v82 = vld [vmem:[#allocation2 + $0x50] sm:$0xff]
    %v83 = vld [vmem:[#allocation2 + $0x58] sm:$0xff]
    %v84 = vld [vmem:[#allocation2 + $0x60] sm:$0xff]
    %v85 = vld [vmem:[#allocation2 + $0x68] sm:$0xff]
    %v86 = vld [vmem:[#allocation2 + $0x70] sm:$0xff]
    %v87 = vld [vmem:[#allocation2 + $0x78] sm:$0xff]
    %v88 = vld [vmem:[#allocation2 + $0x80] sm:$0xff]
    %v89 = vld [vmem:[#allocation2 + $0x88] sm:$0xff]
    %v90 = vld [vmem:[#allocation2 + $0x90] sm:$0xff]
    %v91 = vld [vmem:[#allocation2 + $0x98] sm:$0xff]
    %v92 = vld [vmem:[#allocation2 + $0xa0] sm:$0xff]
    %v93 = vld [vmem:[#allocation2 + $0xa8] sm:$0xff]
    %v94 = vld [vmem:[#allocation2 + $0xb0] sm:$0xff]
    %v95 = vld [vmem:[#allocation2 + $0xb8] sm:$0xff]
    %v96 = vld [vmem:[#allocation2 + $0xc0] sm:$0xff]
    %v97 = vld [vmem:[#allocation2 + $0xc8] sm:$0xff]
    %v98 = vld [vmem:[#allocation2 + $0xd0] sm:$0xff]
    %v99 = vld [vmem:[#allocation2 + $0xd8] sm:$0xff]
    %v100 = vld [vmem:[#allocation2 + $0xe0] sm:$0xff]
    %v101 = vld [vmem:[#allocation2 + $0xe8] sm:$0xff]
    %v102 = vld [vmem:[#allocation2 + $0xf0] sm:$0xff]
    %v103 = vld [vmem:[#allocation2 + $0xf8] sm:$0xff]
    %v104 = vld [vmem:[#allocation2 + $0x100] sm:$0xff]
    %v105 = vld [vmem:[#allocation2 + $0x108] sm:$0xff]
    %v106 = vld [vmem:[#allocation2 + $0x110] sm:$0xff]
    %v107 = vld [vmem:[#allocation2 + $0x118] sm:$0xff]
    %v108 = vld [vmem:[#allocation2 + $0x120] sm:$0xff]
    %v109 = vld [vmem:[#allocation2 + $0x128] sm:$0xff]
    %v110 = vld [vmem:[#allocation2 + $0x130] sm:$0xff]
    %v111 = vld [vmem:[#allocation2 + $0x138] sm:$0xff]
    %v112 = vld [vmem:[#allocation2 + $0x140] sm:$0xff]
    %v113 = vld [vmem:[#allocation2 + $0x148] sm:$0xff]
    %v114 = vld [vmem:[#allocation2 + $0x150] sm:$0xff]
    %v115 = vld [vmem:[#allocation2 + $0x158] sm:$0xff]
    %v116 = vld [vmem:[#allocation2 + $0x160] sm:$0xff]
    %v117 = vld [vmem:[#allocation2 + $0x168] sm:$0xff]
    %v118 = vld [vmem:[#allocation2 + $0x170] sm:$0xff]
    %v119 = vld [vmem:[#allocation2 + $0x178] sm:$0xff]
    %v120 = vld [vmem:[#allocation2 + $0x180] sm:$0xff]
    %v121 = vld [vmem:[#allocation2 + $0x188] sm:$0xff]
    %v122 = vld [vmem:[#allocation2 + $0x190] sm:$0xff]
    %v123 = vld [vmem:[#allocation2 + $0x198] sm:$0xff]
    %v124 = vld [vmem:[#allocation2 + $0x1a0] sm:$0xff]
    %v125 = vld [vmem:[#allocation2 + $0x1a8] sm:$0xff]
    %v126 = vld [vmem:[#allocation2 + $0x1b0] sm:$0xff]
    %v127 = vld [vmem:[#allocation2 + $0x1b8] sm:$0xff]
    %v128 = vld [vmem:[#allocation2 + $0x1c0] sm:$0xff]
    %v129 = vld [vmem:[#allocation2 + $0x1c8] sm:$0xff]
    %v130 = vld [vmem:[#allocation2 + $0x1d0] sm:$0xff]
    %v131 = vld [vmem:[#allocation2 + $0x1d8] sm:$0xff]
    %v132 = vld [vmem:[#allocation2 + $0x1e0] sm:$0xff]
    %v133 = vld [vmem:[#allocation2 + $0x1e8] sm:$0xff]
    %v134 = vld [vmem:[#allocation2 + $0x1f0] sm:$0xff]
    %v135 = vld [vmem:[#allocation2 + $0x1f8] sm:$0xff]
    %v136 = vld [vmem:[#allocation5] sm:$0xf]
    %v137 = vld [vmem:[#allocation5 + $0x4] sm:$0xf]
    %v138 = vld [vmem:[#allocation5 + $0x8] sm:$0xf]
    %v139 = vld [vmem:[#allocation5 + $0xc] sm:$0xf]
    %v140 = vld [vmem:[#allocation5 + $0x10] sm:$0xf]
    %v141 = vld [vmem:[#allocation5 + $0x14] sm:$0xf]
    %v142 = vld [vmem:[#allocation5 + $0x18] sm:$0xf]
    %v143 = vld [vmem:[#allocation5 + $0x1c] sm:$0xf]
    %v144 = vld [vmem:[#allocation5 + $0x20] sm:$0xf]
    %v145 = vld [vmem:[#allocation5 + $0x24] sm:$0xf]
    %v146 = vld [vmem:[#allocation5 + $0x28] sm:$0xf]
    %v147 = vld [vmem:[#allocation5 + $0x2c] sm:$0xf]
    %v148 = vld [vmem:[#allocation5 + $0x30] sm:$0xf]
    %v149 = vld [vmem:[#allocation5 + $0x34] sm:$0xf]
    %v150 = vld [vmem:[#allocation5 + $0x38] sm:$0xf]
    %v151 = vld [vmem:[#allocation5 + $0x3c] sm:$0xf]
    %v152 = vld [vmem:[#allocation5 + $0x40] sm:$0xf]
    %v153 = vld [vmem:[#allocation7] sm:$0x1]
    %v155 = vlaneseq
    %v156 = vshrl.u32 %v155, 7
    %v157 = vsub.s32 0, %v156
    %v158 = vrot.slane %v153, %v157
    %v224 = vunpack.c.l.b16 %v72
    %v225 = vunpack.c.h.b16 %v72
    %v226 = vunpack.c.l.b16 %v73
    %v227 = vunpack.c.h.b16 %v73
    %v228 = vunpack.c.l.b16 %v74
    %v229 = vunpack.c.h.b16 %v74
    %v230 = vunpack.c.l.b16 %v75
    %v231 = vunpack.c.h.b16 %v75
    %v232 = vunpack.c.l.b16 %v76
    %v233 = vunpack.c.h.b16 %v76
    %v234 = vunpack.c.l.b16 %v77
    %v235 = vunpack.c.h.b16 %v77
    %v236 = vunpack.c.l.b16 %v78
    %v237 = vunpack.c.h.b16 %v78
    %v238 = vunpack.c.l.b16 %v79
    %v239 = vunpack.c.h.b16 %v79
    %v240 = vunpack.c.l.b16 %v80
    %v241 = vunpack.c.h.b16 %v80
    %v242 = vunpack.c.l.b16 %v81
    %v243 = vunpack.c.h.b16 %v81
    %v244 = vunpack.c.l.b16 %v82
    %v245 = vunpack.c.h.b16 %v82
    %v246 = vunpack.c.l.b16 %v83
    %v247 = vunpack.c.h.b16 %v83
    %v248 = vunpack.c.l.b16 %v84
    %v249 = vunpack.c.h.b16 %v84
    %v250 = vunpack.c.l.b16 %v85
    %v251 = vunpack.c.h.b16 %v85
    %v252 = vunpack.c.l.b16 %v86
    %v253 = vunpack.c.h.b16 %v86
    %v254 = vunpack.c.l.b16 %v87
    %v255 = vunpack.c.h.b16 %v87
    %v256 = vunpack.c.l.b16 %v88
    %v257 = vunpack.c.h.b16 %v88
    %v258 = vunpack.c.l.b16 %v89
    %v259 = vunpack.c.h.b16 %v89
    %v260 = vunpack.c.l.b16 %v90
    %v261 = vunpack.c.h.b16 %v90
    %v262 = vunpack.c.l.b16 %v91
    %v263 = vunpack.c.h.b16 %v91
    %v264 = vunpack.c.l.b16 %v92
    %v265 = vunpack.c.h.b16 %v92
    %v266 = vunpack.c.l.b16 %v93
    %v267 = vunpack.c.h.b16 %v93
    %v268 = vunpack.c.l.b16 %v94
    %v269 = vunpack.c.h.b16 %v94
    %v270 = vunpack.c.l.b16 %v95
    %v271 = vunpack.c.h.b16 %v95
    %v272 = vunpack.c.l.b16 %v96
    %v273 = vunpack.c.h.b16 %v96
    %v274 = vunpack.c.l.b16 %v97
    %v275 = vunpack.c.h.b16 %v97
    %v276 = vunpack.c.l.b16 %v98
    %v277 = vunpack.c.h.b16 %v98
    %v278 = vunpack.c.l.b16 %v99
    %v279 = vunpack.c.h.b16 %v99
    %v280 = vunpack.c.l.b16 %v100
    %v281 = vunpack.c.h.b16 %v100
    %v282 = vunpack.c.l.b16 %v101
    %v283 = vunpack.c.h.b16 %v101
    %v284 = vunpack.c.l.b16 %v102
    %v285 = vunpack.c.h.b16 %v102
    %v286 = vunpack.c.l.b16 %v103
    %v287 = vunpack.c.h.b16 %v103
    %v288 = vunpack.c.l.b16 %v104
    %v289 = vunpack.c.h.b16 %v104
    %v290 = vunpack.c.l.b16 %v105
    %v291 = vunpack.c.h.b16 %v105
    %v292 = vunpack.c.l.b16 %v106
    %v293 = vunpack.c.h.b16 %v106
    %v294 = vunpack.c.l.b16 %v107
    %v295 = vunpack.c.h.b16 %v107
    %v296 = vunpack.c.l.b16 %v108
    %v297 = vunpack.c.h.b16 %v108
    %v298 = vunpack.c.l.b16 %v109
    %v299 = vunpack.c.h.b16 %v109
    %v300 = vunpack.c.l.b16 %v110
    %v301 = vunpack.c.h.b16 %v110
    %v302 = vunpack.c.l.b16 %v111
    %v303 = vunpack.c.h.b16 %v111
    %v304 = vunpack.c.l.b16 %v112
    %v305 = vunpack.c.h.b16 %v112
    %v306 = vunpack.c.l.b16 %v113
    %v307 = vunpack.c.h.b16 %v113
    %v308 = vunpack.c.l.b16 %v114
    %v309 = vunpack.c.h.b16 %v114
    %v310 = vunpack.c.l.b16 %v115
    %v311 = vunpack.c.h.b16 %v115
    %v312 = vunpack.c.l.b16 %v116
    %v313 = vunpack.c.h.b16 %v116
    %v314 = vunpack.c.l.b16 %v117
    %v315 = vunpack.c.h.b16 %v117
    %v316 = vunpack.c.l.b16 %v118
    %v317 = vunpack.c.h.b16 %v118
    %v318 = vunpack.c.l.b16 %v119
    %v319 = vunpack.c.h.b16 %v119
    %v320 = vunpack.c.l.b16 %v120
    %v321 = vunpack.c.h.b16 %v120
    %v322 = vunpack.c.l.b16 %v121
    %v323 = vunpack.c.h.b16 %v121
    %v324 = vunpack.c.l.b16 %v122
    %v325 = vunpack.c.h.b16 %v122
    %v326 = vunpack.c.l.b16 %v123
    %v327 = vunpack.c.h.b16 %v123
    %v328 = vunpack.c.l.b16 %v124
    %v329 = vunpack.c.h.b16 %v124
    %v330 = vunpack.c.l.b16 %v125
    %v331 = vunpack.c.h.b16 %v125
    %v332 = vunpack.c.l.b16 %v126
    %v333 = vunpack.c.h.b16 %v126
    %v334 = vunpack.c.l.b16 %v127
    %v335 = vunpack.c.h.b16 %v127
    %v336 = vunpack.c.l.b16 %v128
    %v337 = vunpack.c.h.b16 %v128
    %v338 = vunpack.c.l.b16 %v129
    %v339 = vunpack.c.h.b16 %v129
    %v340 = vunpack.c.l.b16 %v130
    %v341 = vunpack.c.h.b16 %v130
    %v342 = vunpack.c.l.b16 %v131
    %v343 = vunpack.c.h.b16 %v131
    %v344 = vunpack.c.l.b16 %v132
    %v345 = vunpack.c.h.b16 %v132
    %v346 = vunpack.c.l.b16 %v133
    %v347 = vunpack.c.h.b16 %v133
    %v348 = vunpack.c.l.b16 %v134
    %v349 = vunpack.c.h.b16 %v134
    %v350 = vunpack.c.l.b16 %v135
    %v351 = vunpack.c.h.b16 %v135
    %v352 = vpack.c.b16 %v226, %v224
    %v353 = vpack.c.b16 %v227, %v225
    %v354 = vpack.c.b16 %v230, %v228
    %v355 = vpack.c.b16 %v231, %v229
    %v356 = vpack.c.b16 %v234, %v232
    %v357 = vpack.c.b16 %v235, %v233
    %v358 = vpack.c.b16 %v238, %v236
    %v359 = vpack.c.b16 %v239, %v237
    %v360 = vpack.c.b16 %v242, %v240
    %v361 = vpack.c.b16 %v243, %v241
    %v362 = vpack.c.b16 %v246, %v244
    %v363 = vpack.c.b16 %v247, %v245
    %v364 = vpack.c.b16 %v250, %v248
    %v365 = vpack.c.b16 %v251, %v249
    %v366 = vpack.c.b16 %v254, %v252
    %v367 = vpack.c.b16 %v255, %v253
    %v368 = vpack.c.b16 %v258, %v256
    %v369 = vpack.c.b16 %v259, %v257
    %v370 = vpack.c.b16 %v262, %v260
    %v371 = vpack.c.b16 %v263, %v261
    %v372 = vpack.c.b16 %v266, %v264
    %v373 = vpack.c.b16 %v267, %v265
    %v374 = vpack.c.b16 %v270, %v268
    %v375 = vpack.c.b16 %v271, %v269
    %v376 = vpack.c.b16 %v274, %v272
    %v377 = vpack.c.b16 %v275, %v273
    %v378 = vpack.c.b16 %v278, %v276
    %v379 = vpack.c.b16 %v279, %v277
    %v380 = vpack.c.b16 %v282, %v280
    %v381 = vpack.c.b16 %v283, %v281
    %v382 = vpack.c.b16 %v286, %v284
    %v383 = vpack.c.b16 %v287, %v285
    %v384 = vpack.c.b16 %v290, %v288
    %v385 = vpack.c.b16 %v291, %v289
    %v386 = vpack.c.b16 %v294, %v292
    %v387 = vpack.c.b16 %v295, %v293
    %v388 = vpack.c.b16 %v298, %v296
    %v389 = vpack.c.b16 %v299, %v297
    %v390 = vpack.c.b16 %v302, %v300
    %v391 = vpack.c.b16 %v303, %v301
    %v392 = vpack.c.b16 %v306, %v304
    %v393 = vpack.c.b16 %v307, %v305
    %v394 = vpack.c.b16 %v310, %v308
    %v395 = vpack.c.b16 %v311, %v309
    %v396 = vpack.c.b16 %v314, %v312
    %v397 = vpack.c.b16 %v315, %v313
    %v398 = vpack.c.b16 %v318, %v316
    %v399 = vpack.c.b16 %v319, %v317
    %v400 = vpack.c.b16 %v322, %v320
    %v401 = vpack.c.b16 %v323, %v321
    %v402 = vpack.c.b16 %v326, %v324
    %v403 = vpack.c.b16 %v327, %v325
    %v404 = vpack.c.b16 %v330, %v328
    %v405 = vpack.c.b16 %v331, %v329
    %v406 = vpack.c.b16 %v334, %v332
    %v407 = vpack.c.b16 %v335, %v333
    %v408 = vpack.c.b16 %v338, %v336
    %v409 = vpack.c.b16 %v339, %v337
    %v410 = vpack.c.b16 %v342, %v340
    %v411 = vpack.c.b16 %v343, %v341
    %v412 = vpack.c.b16 %v346, %v344
    %v413 = vpack.c.b16 %v347, %v345
    %v414 = vpack.c.b16 %v350, %v348
    %v415 = vpack.c.b16 %v351, %v349
    %v465 = vunpack.c.l.b16 %v136
    %v466 = vunpack.c.l.b16 %v137
    %v467 = vunpack.c.l.b16 %v138
    %v468 = vunpack.c.l.b16 %v139
    %v469 = vunpack.c.l.b16 %v140
    %v470 = vunpack.c.l.b16 %v141
    %v471 = vunpack.c.l.b16 %v142
    %v472 = vunpack.c.l.b16 %v143
    %v473 = vunpack.c.l.b16 %v144
    %v474 = vunpack.c.l.b16 %v145
    %v475 = vunpack.c.l.b16 %v146
    %v476 = vunpack.c.l.b16 %v147
    %v477 = vunpack.c.l.b16 %v148
    %v478 = vunpack.c.l.b16 %v149
    %v479 = vunpack.c.l.b16 %v150
    %v480 = vunpack.c.l.b16 %v151
    %v481 = vunpack.c.l.b16 %v152
    %v482 = vpack.c.b16 %v466, %v465
    %v483 = vpack.c.b16 %v468, %v467
    %v484 = vpack.c.b16 %v470, %v469
    %v485 = vpack.c.b16 %v472, %v471
    %v486 = vpack.c.b16 %v474, %v473
    %v487 = vpack.c.b16 %v476, %v475
    %v488 = vpack.c.b16 %v478, %v477
    %v489 = vpack.c.b16 %v480, %v479
    %v490 = vpack.c.b16 %v481, %v481
    %vm499 = vcmask 56320
    %v501 = vsel %vm499, %v353, 0
    %v504 = vsel %vm499, %v355, 0
    %v507 = vsel %vm499, %v357, 0
    %v510 = vsel %vm499, %v359, 0
    %v513 = vsel %vm499, %v361, 0
    %v516 = vsel %vm499, %v363, 0
    %v519 = vsel %vm499, %v365, 0
    %v522 = vsel %vm499, %v367, 0
    %v525 = vsel %vm499, %v369, 0
    %v528 = vsel %vm499, %v371, 0
    %v531 = vsel %vm499, %v373, 0
    %v534 = vsel %vm499, %v375, 0
    %v537 = vsel %vm499, %v377, 0
    %v540 = vsel %vm499, %v379, 0
    %v543 = vsel %vm499, %v381, 0
    %v546 = vsel %vm499, %v383, 0
    %v549 = vsel %vm499, %v385, 0
    %v552 = vsel %vm499, %v387, 0
    %v555 = vsel %vm499, %v389, 0
    %v558 = vsel %vm499, %v391, 0
    %v561 = vsel %vm499, %v393, 0
    %v564 = vsel %vm499, %v395, 0
    %v567 = vsel %vm499, %v397, 0
    %v570 = vsel %vm499, %v399, 0
    %v573 = vsel %vm499, %v401, 0
    %v576 = vsel %vm499, %v403, 0
    %v579 = vsel %vm499, %v405, 0
    %v582 = vsel %vm499, %v407, 0
    %v585 = vsel %vm499, %v409, 0
    %v588 = vsel %vm499, %v411, 0
    %v591 = vsel %vm499, %v413, 0
    %v594 = vsel %vm499, %v415, 0
    %vm596 = vcmask 1042432
    %vm597 = vcmask 1043456
    %v598 = vsel %vm596, 4294967295, 65535
    %v599 = vsel %vm597, %v598, 0
    %v601 = vand.u32 %v490, %v599
    %603 = vmatprep.subr.bf16.mxu0 0
    %604 = vmatpush1.bf16.msra.mxu0 %v482
    %605 = vmatprep.subr.bf16.mxu0 0
    %606 = vmatpush1.bf16.msra.mxu0 %v483
    %607 = vmatprep.subr.bf16.mxu0 0
    %608 = vmatpush1.bf16.msra.mxu0 %v484
    %609 = vmatprep.subr.bf16.mxu0 0
    %610 = vmatpush1.bf16.msra.mxu0 %v485
    %611 = vmatprep.subr.bf16.mxu0 0
    %612 = vmatpush1.bf16.msra.mxu0 %v486
    %613 = vmatprep.subr.bf16.mxu0 0
    %614 = vmatpush1.bf16.msra.mxu0 %v487
    %615 = vmatprep.subr.bf16.mxu0 0
    %616 = vmatpush1.bf16.msra.mxu0 %v488
    %617 = vmatprep.subr.bf16.mxu0 0
    %618 = vmatpush1.bf16.msra.mxu0 %v489
    %619 = vmatprep.subr.bf16.mxu0 0
    %620 = vmatpush1.bf16.msra.mxu0 %v601
    %621 = vmatprep.subr.bf16.mxu0 0
    %622 = vmatpush1.bf16.msra.mxu0 0
    %623 = vmatprep.subr.bf16.mxu0 0
    %624 = vmatpush1.bf16.msra.mxu0 0
    %625 = vmatprep.subr.bf16.mxu0 0
    %626 = vmatpush1.bf16.msra.mxu0 0
    %627 = vmatprep.subr.bf16.mxu0 0
    %628 = vmatpush1.bf16.msra.mxu0 0
    %629 = vmatprep.subr.bf16.mxu0 0
    %630 = vmatpush1.bf16.msra.mxu0 0
    %631 = vmatprep.subr.bf16.mxu0 0
    %632 = vmatpush1.bf16.msra.mxu0 0
    %633 = vmatprep.subr.bf16.mxu0 0
    %634 = vmatpush1.bf16.msra.mxu0 0
    %635 = vmatprep.mubr.bf16.mxu0 %v501
    %636 = vmatmul.mubr.bf16.gmra.mrb[0].mxu0 %v352
    %v637 = vpop.f32.mrb[0].mxu0
    %v638 = vadd.f32 %v158, %v637
    %v639 = vpop.f32.mrb[0].mxu0
    %v640 = vpop.f32.mrb[0].mxu0
    %v641 = vadd.f32 %v158, %v640
    %v642 = vpop.f32.mrb[0].mxu0
    %643 = vmatprep.mubr.bf16.mxu0 %v504
    %644 = vmatmul.mubr.bf16.gmra.mrb[0].mxu0 %v354
    %v645 = vpop.f32.mrb[0].mxu0
    %v646 = vadd.f32 %v158, %v645
    %v647 = vpop.f32.mrb[0].mxu0
    %v648 = vpop.f32.mrb[0].mxu0
    %v649 = vadd.f32 %v158, %v648
    %v650 = vpop.f32.mrb[0].mxu0
    %651 = vmatprep.mubr.bf16.mxu0 %v507
    %652 = vmatmul.mubr.bf16.gmra.mrb[0].mxu0 %v356
    %v653 = vpop.f32.mrb[0].mxu0
    %v654 = vadd.f32 %v158, %v653
    %v655 = vpop.f32.mrb[0].mxu0
    %v656 = vpop.f32.mrb[0].mxu0
    %v657 = vadd.f32 %v158, %v656
    %v658 = vpop.f32.mrb[0].mxu0
    %659 = vmatprep.mubr.bf16.mxu0 %v510
    %660 = vmatmul.mubr.bf16.gmra.mrb[0].mxu0 %v358
    %v661 = vpop.f32.mrb[0].mxu0
    %v662 = vadd.f32 %v158, %v661
    %v663 = vpop.f32.mrb[0].mxu0
    %v664 = vpop.f32.mrb[0].mxu0
    %v665 = vadd.f32 %v158, %v664
    %v666 = vpop.f32.mrb[0].mxu0
    %667 = vmatprep.mubr.bf16.mxu0 %v513
    %668 = vmatmul.mubr.bf16.gmra.mrb[0].mxu0 %v360
    %v669 = vpop.f32.mrb[0].mxu0
    %v670 = vadd.f32 %v158, %v669
    %v671 = vpop.f32.mrb[0].mxu0
    %v672 = vpop.f32.mrb[0].mxu0
    %v673 = vadd.f32 %v158, %v672
    %v674 = vpop.f32.mrb[0].mxu0
    %675 = vmatprep.mubr.bf16.mxu0 %v516
    %676 = vmatmul.mubr.bf16.gmra.mrb[0].mxu0 %v362
    %v677 = vpop.f32.mrb[0].mxu0
    %v678 = vadd.f32 %v158, %v677
    %v679 = vpop.f32.mrb[0].mxu0
    %v680 = vpop.f32.mrb[0].mxu0
    %v681 = vadd.f32 %v158, %v680
    %v682 = vpop.f32.mrb[0].mxu0
    %683 = vmatprep.mubr.bf16.mxu0 %v519
    %684 = vmatmul.mubr.bf16.gmra.mrb[0].mxu0 %v364
    %v685 = vpop.f32.mrb[0].mxu0
    %v686 = vadd.f32 %v158, %v685
    %v687 = vpop.f32.mrb[0].mxu0
    %v688 = vpop.f32.mrb[0].mxu0
    %v689 = vadd.f32 %v158, %v688
    %v690 = vpop.f32.mrb[0].mxu0
    %691 = vmatprep.mubr.bf16.mxu0 %v522
    %692 = vmatmul.mubr.bf16.gmra.mrb[0].mxu0 %v366
    %v693 = vpop.f32.mrb[0].mxu0
    %v694 = vadd.f32 %v158, %v693
    %v695 = vpop.f32.mrb[0].mxu0
    %v696 = vpop.f32.mrb[0].mxu0
    %v697 = vadd.f32 %v158, %v696
    %v698 = vpop.f32.mrb[0].mxu0
    %699 = vmatprep.mubr.bf16.mxu0 %v525
    %700 = vmatmul.mubr.bf16.gmra.mrb[0].mxu0 %v368
    %v701 = vpop.f32.mrb[0].mxu0
    %v702 = vadd.f32 %v158, %v701
    %v703 = vpop.f32.mrb[0].mxu0
    %v704 = vpop.f32.mrb[0].mxu0
    %v705 = vadd.f32 %v158, %v704
    %v706 = vpop.f32.mrb[0].mxu0
    %707 = vmatprep.mubr.bf16.mxu0 %v528
    %708 = vmatmul.mubr.bf16.gmra.mrb[0].mxu0 %v370
    %v709 = vpop.f32.mrb[0].mxu0
    %v710 = vadd.f32 %v158, %v709
    %v711 = vpop.f32.mrb[0].mxu0
    %v712 = vpop.f32.mrb[0].mxu0
    %v713 = vadd.f32 %v158, %v712
    %v714 = vpop.f32.mrb[0].mxu0
    %715 = vmatprep.mubr.bf16.mxu0 %v531
    %716 = vmatmul.mubr.bf16.gmra.mrb[0].mxu0 %v372
    %v717 = vpop.f32.mrb[0].mxu0
    %v718 = vadd.f32 %v158, %v717
    %v719 = vpop.f32.mrb[0].mxu0
    %v720 = vpop.f32.mrb[0].mxu0
    %v721 = vadd.f32 %v158, %v720
    %v722 = vpop.f32.mrb[0].mxu0
    %723 = vmatprep.mubr.bf16.mxu0 %v534
    %724 = vmatmul.mubr.bf16.gmra.mrb[0].mxu0 %v374
    %v725 = vpop.f32.mrb[0].mxu0
    %v726 = vadd.f32 %v158, %v725
    %v727 = vpop.f32.mrb[0].mxu0
    %v728 = vpop.f32.mrb[0].mxu0
    %v729 = vadd.f32 %v158, %v728
    %v730 = vpop.f32.mrb[0].mxu0
    %731 = vmatprep.mubr.bf16.mxu0 %v537
    %732 = vmatmul.mubr.bf16.gmra.mrb[0].mxu0 %v376
    %v733 = vpop.f32.mrb[0].mxu0
    %v734 = vadd.f32 %v158, %v733
    %v735 = vpop.f32.mrb[0].mxu0
    %v736 = vpop.f32.mrb[0].mxu0
    %v737 = vadd.f32 %v158, %v736
    %v738 = vpop.f32.mrb[0].mxu0
    %739 = vmatprep.mubr.bf16.mxu0 %v540
    %740 = vmatmul.mubr.bf16.gmra.mrb[0].mxu0 %v378
    %v741 = vpop.f32.mrb[0].mxu0
    %v742 = vadd.f32 %v158, %v741
    %v743 = vpop.f32.mrb[0].mxu0
    %v744 = vpop.f32.mrb[0].mxu0
    %v745 = vadd.f32 %v158, %v744
    %v746 = vpop.f32.mrb[0].mxu0
    %747 = vmatprep.mubr.bf16.mxu0 %v543
    %748 = vmatmul.mubr.bf16.gmra.mrb[0].mxu0 %v380
    %v749 = vpop.f32.mrb[0].mxu0
    %v750 = vadd.f32 %v158, %v749
    %v751 = vpop.f32.mrb[0].mxu0
    %v752 = vpop.f32.mrb[0].mxu0
    %v753 = vadd.f32 %v158, %v752
    %v754 = vpop.f32.mrb[0].mxu0
    %755 = vmatprep.mubr.bf16.mxu0 %v546
    %756 = vmatmul.mubr.bf16.gmra.mrb[0].mxu0 %v382
    %v757 = vpop.f32.mrb[0].mxu0
    %v758 = vadd.f32 %v158, %v757
    %v759 = vpop.f32.mrb[0].mxu0
    %v760 = vpop.f32.mrb[0].mxu0
    %v761 = vadd.f32 %v158, %v760
    %v762 = vpop.f32.mrb[0].mxu0
    %763 = vmatprep.mubr.bf16.mxu0 %v549
    %764 = vmatmul.mubr.bf16.gmra.mrb[0].mxu0 %v384
    %v765 = vpop.f32.mrb[0].mxu0
    %v766 = vadd.f32 %v158, %v765
    %v767 = vpop.f32.mrb[0].mxu0
    %v768 = vpop.f32.mrb[0].mxu0
    %v769 = vadd.f32 %v158, %v768
    %v770 = vpop.f32.mrb[0].mxu0
    %771 = vmatprep.mubr.bf16.mxu0 %v552
    %772 = vmatmul.mubr.bf16.gmra.mrb[0].mxu0 %v386
    %v773 = vpop.f32.mrb[0].mxu0
    %v774 = vadd.f32 %v158, %v773
    %v775 = vpop.f32.mrb[0].mxu0
    %v776 = vpop.f32.mrb[0].mxu0
    %v777 = vadd.f32 %v158, %v776
    %v778 = vpop.f32.mrb[0].mxu0
    %779 = vmatprep.mubr.bf16.mxu0 %v555
    %780 = vmatmul.mubr.bf16.gmra.mrb[0].mxu0 %v388
    %v781 = vpop.f32.mrb[0].mxu0
    %v782 = vadd.f32 %v158, %v781
    %v783 = vpop.f32.mrb[0].mxu0
    %v784 = vpop.f32.mrb[0].mxu0
    %v785 = vadd.f32 %v158, %v784
    %v786 = vpop.f32.mrb[0].mxu0
    %787 = vmatprep.mubr.bf16.mxu0 %v558
    %788 = vmatmul.mubr.bf16.gmra.mrb[0].mxu0 %v390
    %v789 = vpop.f32.mrb[0].mxu0
    %v790 = vadd.f32 %v158, %v789
    %v791 = vpop.f32.mrb[0].mxu0
    %v792 = vpop.f32.mrb[0].mxu0
    %v793 = vadd.f32 %v158, %v792
    %v794 = vpop.f32.mrb[0].mxu0
    %795 = vmatprep.mubr.bf16.mxu0 %v561
    %796 = vmatmul.mubr.bf16.gmra.mrb[0].mxu0 %v392
    %v797 = vpop.f32.mrb[0].mxu0
    %v798 = vadd.f32 %v158, %v797
    %v799 = vpop.f32.mrb[0].mxu0
    %v800 = vpop.f32.mrb[0].mxu0
    %v801 = vadd.f32 %v158, %v800
    %v802 = vpop.f32.mrb[0].mxu0
    %803 = vmatprep.mubr.bf16.mxu0 %v564
    %804 = vmatmul.mubr.bf16.gmra.mrb[0].mxu0 %v394
    %v805 = vpop.f32.mrb[0].mxu0
    %v806 = vadd.f32 %v158, %v805
    %v807 = vpop.f32.mrb[0].mxu0
    %v808 = vpop.f32.mrb[0].mxu0
    %v809 = vadd.f32 %v158, %v808
    %v810 = vpop.f32.mrb[0].mxu0
    %811 = vmatprep.mubr.bf16.mxu0 %v567
    %812 = vmatmul.mubr.bf16.gmra.mrb[0].mxu0 %v396
    %v813 = vpop.f32.mrb[0].mxu0
    %v814 = vadd.f32 %v158, %v813
    %v815 = vpop.f32.mrb[0].mxu0
    %v816 = vpop.f32.mrb[0].mxu0
    %v817 = vadd.f32 %v158, %v816
    %v818 = vpop.f32.mrb[0].mxu0
    %819 = vmatprep.mubr.bf16.mxu0 %v570
    %820 = vmatmul.mubr.bf16.gmra.mrb[0].mxu0 %v398
    %v821 = vpop.f32.mrb[0].mxu0
    %v822 = vadd.f32 %v158, %v821
    %v823 = vpop.f32.mrb[0].mxu0
    %v824 = vpop.f32.mrb[0].mxu0
    %v825 = vadd.f32 %v158, %v824
    %v826 = vpop.f32.mrb[0].mxu0
    %827 = vmatprep.mubr.bf16.mxu0 %v573
    %828 = vmatmul.mubr.bf16.gmra.mrb[0].mxu0 %v400
    %v829 = vpop.f32.mrb[0].mxu0
    %v830 = vadd.f32 %v158, %v829
    %v831 = vpop.f32.mrb[0].mxu0
    %v832 = vpop.f32.mrb[0].mxu0
    %v833 = vadd.f32 %v158, %v832
    %v834 = vpop.f32.mrb[0].mxu0
    %835 = vmatprep.mubr.bf16.mxu0 %v576
    %836 = vmatmul.mubr.bf16.gmra.mrb[0].mxu0 %v402
    %v837 = vpop.f32.mrb[0].mxu0
    %v838 = vadd.f32 %v158, %v837
    %v839 = vpop.f32.mrb[0].mxu0
    %v840 = vpop.f32.mrb[0].mxu0
    %v841 = vadd.f32 %v158, %v840
    %v842 = vpop.f32.mrb[0].mxu0
    %843 = vmatprep.mubr.bf16.mxu0 %v579
    %844 = vmatmul.mubr.bf16.gmra.mrb[0].mxu0 %v404
    %v845 = vpop.f32.mrb[0].mxu0
    %v846 = vadd.f32 %v158, %v845
    %v847 = vpop.f32.mrb[0].mxu0
    %v848 = vpop.f32.mrb[0].mxu0
    %v849 = vadd.f32 %v158, %v848
    %v850 = vpop.f32.mrb[0].mxu0
    %851 = vmatprep.mubr.bf16.mxu0 %v582
    %852 = vmatmul.mubr.bf16.gmra.mrb[0].mxu0 %v406
    %v853 = vpop.f32.mrb[0].mxu0
    %v854 = vadd.f32 %v158, %v853
    %v855 = vpop.f32.mrb[0].mxu0
    %v856 = vpop.f32.mrb[0].mxu0
    %v857 = vadd.f32 %v158, %v856
    %v858 = vpop.f32.mrb[0].mxu0
    %859 = vmatprep.mubr.bf16.mxu0 %v585
    %860 = vmatmul.mubr.bf16.gmra.mrb[0].mxu0 %v408
    %v861 = vpop.f32.mrb[0].mxu0
    %v862 = vadd.f32 %v158, %v861
    %v863 = vpop.f32.mrb[0].mxu0
    %v864 = vpop.f32.mrb[0].mxu0
    %v865 = vadd.f32 %v158, %v864
    %v866 = vpop.f32.mrb[0].mxu0
    %867 = vmatprep.mubr.bf16.mxu0 %v588
    %868 = vmatmul.mubr.bf16.gmra.mrb[0].mxu0 %v410
    %v869 = vpop.f32.mrb[0].mxu0
    %v870 = vadd.f32 %v158, %v869
    %v871 = vpop.f32.mrb[0].mxu0
    %v872 = vpop.f32.mrb[0].mxu0
    %v873 = vadd.f32 %v158, %v872
    %v874 = vpop.f32.mrb[0].mxu0
    %875 = vmatprep.mubr.bf16.mxu0 %v591
    %876 = vmatmul.mubr.bf16.gmra.mrb[0].mxu0 %v412
    %v877 = vpop.f32.mrb[0].mxu0
    %v878 = vadd.f32 %v158, %v877
    %v879 = vpop.f32.mrb[0].mxu0
    %v880 = vpop.f32.mrb[0].mxu0
    %v881 = vadd.f32 %v158, %v880
    %v882 = vpop.f32.mrb[0].mxu0
    %883 = vmatprep.mubr.bf16.mxu0 %v594
    %884 = vmatmul.mubr.bf16.gmra.mrb[0].mxu0 %v414
    %v885 = vpop.f32.mrb[0].mxu0
    %v886 = vadd.f32 %v158, %v885
    %v887 = vpop.f32.mrb[0].mxu0
    %v888 = vpop.f32.mrb[0].mxu0
    %v889 = vadd.f32 %v158, %v888
    %v890 = vpop.f32.mrb[0].mxu0
    %891 = vdwg.mxu0
    %vm892 = vcmp.ge.f32.partialorder %v638, 0.0
    %vm893 = vcmp.ge.f32.partialorder %v641, 0.0
    %vm894 = vcmp.ge.f32.partialorder %v646, 0.0
    %vm895 = vcmp.ge.f32.partialorder %v649, 0.0
    %vm896 = vcmp.ge.f32.partialorder %v654, 0.0
    %vm897 = vcmp.ge.f32.partialorder %v657, 0.0
    %vm898 = vcmp.ge.f32.partialorder %v662, 0.0
    %vm899 = vcmp.ge.f32.partialorder %v665, 0.0
    %vm900 = vcmp.ge.f32.partialorder %v670, 0.0
    %vm901 = vcmp.ge.f32.partialorder %v673, 0.0
    %vm902 = vcmp.ge.f32.partialorder %v678, 0.0
    %vm903 = vcmp.ge.f32.partialorder %v681, 0.0
    %vm904 = vcmp.ge.f32.partialorder %v686, 0.0
    %vm905 = vcmp.ge.f32.partialorder %v689, 0.0
    %vm906 = vcmp.ge.f32.partialorder %v694, 0.0
    %vm907 = vcmp.ge.f32.partialorder %v697, 0.0
    %vm908 = vcmp.ge.f32.partialorder %v702, 0.0
    %vm909 = vcmp.ge.f32.partialorder %v705, 0.0
    %vm910 = vcmp.ge.f32.partialorder %v710, 0.0
    %vm911 = vcmp.ge.f32.partialorder %v713, 0.0
    %vm912 = vcmp.ge.f32.partialorder %v718, 0.0
    %vm913 = vcmp.ge.f32.partialorder %v721, 0.0
    %vm914 = vcmp.ge.f32.partialorder %v726, 0.0
    %vm915 = vcmp.ge.f32.partialorder %v729, 0.0
    %vm916 = vcmp.ge.f32.partialorder %v734, 0.0
    %vm917 = vcmp.ge.f32.partialorder %v737, 0.0
    %vm918 = vcmp.ge.f32.partialorder %v742, 0.0
    %vm919 = vcmp.ge.f32.partialorder %v745, 0.0
    %vm920 = vcmp.ge.f32.partialorder %v750, 0.0
    %vm921 = vcmp.ge.f32.partialorder %v753, 0.0
    %vm922 = vcmp.ge.f32.partialorder %v758, 0.0
    %vm923 = vcmp.ge.f32.partialorder %v761, 0.0
    %vm924 = vcmp.ge.f32.partialorder %v766, 0.0
    %vm925 = vcmp.ge.f32.partialorder %v769, 0.0
    %vm926 = vcmp.ge.f32.partialorder %v774, 0.0
    %vm927 = vcmp.ge.f32.partialorder %v777, 0.0
    %vm928 = vcmp.ge.f32.partialorder %v782, 0.0
    %vm929 = vcmp.ge.f32.partialorder %v785, 0.0
    %vm930 = vcmp.ge.f32.partialorder %v790, 0.0
    %vm931 = vcmp.ge.f32.partialorder %v793, 0.0
    %vm932 = vcmp.ge.f32.partialorder %v798, 0.0
    %vm933 = vcmp.ge.f32.partialorder %v801, 0.0
    %vm934 = vcmp.ge.f32.partialorder %v806, 0.0
    %vm935 = vcmp.ge.f32.partialorder %v809, 0.0
    %vm936 = vcmp.ge.f32.partialorder %v814, 0.0
    %vm937 = vcmp.ge.f32.partialorder %v817, 0.0
    %vm938 = vcmp.ge.f32.partialorder %v822, 0.0
    %vm939 = vcmp.ge.f32.partialorder %v825, 0.0
    %vm940 = vcmp.ge.f32.partialorder %v830, 0.0
    %vm941 = vcmp.ge.f32.partialorder %v833, 0.0
    %vm942 = vcmp.ge.f32.partialorder %v838, 0.0
    %vm943 = vcmp.ge.f32.partialorder %v841, 0.0
    %vm944 = vcmp.ge.f32.partialorder %v846, 0.0
    %vm945 = vcmp.ge.f32.partialorder %v849, 0.0
    %vm946 = vcmp.ge.f32.partialorder %v854, 0.0
    %vm947 = vcmp.ge.f32.partialorder %v857, 0.0
    %vm948 = vcmp.ge.f32.partialorder %v862, 0.0
    %vm949 = vcmp.ge.f32.partialorder %v865, 0.0
    %vm950 = vcmp.ge.f32.partialorder %v870, 0.0
    %vm951 = vcmp.ge.f32.partialorder %v873, 0.0
    %vm952 = vcmp.ge.f32.partialorder %v878, 0.0
    %vm953 = vcmp.ge.f32.partialorder %v881, 0.0
    %vm954 = vcmp.ge.f32.partialorder %v886, 0.0
    %vm955 = vcmp.ge.f32.partialorder %v889, 0.0
    %v956 = vmul.f32 %v638, 0.2
    %v957 = vmul.f32 %v641, 0.2
    %v958 = vmul.f32 %v646, 0.2
    %v959 = vmul.f32 %v649, 0.2
    %v960 = vmul.f32 %v654, 0.2
    %v961 = vmul.f32 %v657, 0.2
    %v962 = vmul.f32 %v662, 0.2
    %v963 = vmul.f32 %v665, 0.2
    %v964 = vmul.f32 %v670, 0.2
    %v965 = vmul.f32 %v673, 0.2
    %v966 = vmul.f32 %v678, 0.2
    %v967 = vmul.f32 %v681, 0.2
    %v968 = vmul.f32 %v686, 0.2
    %v969 = vmul.f32 %v689, 0.2
    %v970 = vmul.f32 %v694, 0.2
    %v971 = vmul.f32 %v697, 0.2
    %v972 = vmul.f32 %v702, 0.2
    %v973 = vmul.f32 %v705, 0.2
    %v974 = vmul.f32 %v710, 0.2
    %v975 = vmul.f32 %v713, 0.2
    %v976 = vmul.f32 %v718, 0.2
    %v977 = vmul.f32 %v721, 0.2
    %v978 = vmul.f32 %v726, 0.2
    %v979 = vmul.f32 %v729, 0.2
    %v980 = vmul.f32 %v734, 0.2
    %v981 = vmul.f32 %v737, 0.2
    %v982 = vmul.f32 %v742, 0.2
    %v983 = vmul.f32 %v745, 0.2
    %v984 = vmul.f32 %v750, 0.2
    %v985 = vmul.f32 %v753, 0.2
    %v986 = vmul.f32 %v758, 0.2
    %v987 = vmul.f32 %v761, 0.2
    %v988 = vmul.f32 %v766, 0.2
    %v989 = vmul.f32 %v769, 0.2
    %v990 = vmul.f32 %v774, 0.2
    %v991 = vmul.f32 %v777, 0.2
    %v992 = vmul.f32 %v782, 0.2
    %v993 = vmul.f32 %v785, 0.2
    %v994 = vmul.f32 %v790, 0.2
    %v995 = vmul.f32 %v793, 0.2
    %v996 = vmul.f32 %v798, 0.2
    %v997 = vmul.f32 %v801, 0.2
    %v998 = vmul.f32 %v806, 0.2
    %v999 = vmul.f32 %v809, 0.2
    %v1000 = vmul.f32 %v814, 0.2
    %v1001 = vmul.f32 %v817, 0.2
    %v1002 = vmul.f32 %v822, 0.2
    %v1003 = vmul.f32 %v825, 0.2
    %v1004 = vmul.f32 %v830, 0.2
    %v1005 = vmul.f32 %v833, 0.2
    %v1006 = vmul.f32 %v838, 0.2
    %v1007 = vmul.f32 %v841, 0.2
    %v1008 = vmul.f32 %v846, 0.2
    %v1009 = vmul.f32 %v849, 0.2
    %v1010 = vmul.f32 %v854, 0.2
    %v1011 = vmul.f32 %v857, 0.2
    %v1012 = vmul.f32 %v862, 0.2
    %v1013 = vmul.f32 %v865, 0.2
    %v1014 = vmul.f32 %v870, 0.2
    %v1015 = vmul.f32 %v873, 0.2
    %v1016 = vmul.f32 %v878, 0.2
    %v1017 = vmul.f32 %v881, 0.2
    %v1018 = vmul.f32 %v886, 0.2
    %v1019 = vmul.f32 %v889, 0.2
    %v1020 = vsel %vm892, %v638, %v956
    %v1021 = vsel %vm893, %v641, %v957
    %v1022 = vsel %vm894, %v646, %v958
    %v1023 = vsel %vm895, %v649, %v959
    %v1024 = vsel %vm896, %v654, %v960
    %v1025 = vsel %vm897, %v657, %v961
    %v1026 = vsel %vm898, %v662, %v962
    %v1027 = vsel %vm899, %v665, %v963
    %v1028 = vsel %vm900, %v670, %v964
    %v1029 = vsel %vm901, %v673, %v965
    %v1030 = vsel %vm902, %v678, %v966
    %v1031 = vsel %vm903, %v681, %v967
    %v1032 = vsel %vm904, %v686, %v968
    %v1033 = vsel %vm905, %v689, %v969
    %v1034 = vsel %vm906, %v694, %v970
    %v1035 = vsel %vm907, %v697, %v971
    %v1036 = vsel %vm908, %v702, %v972
    %v1037 = vsel %vm909, %v705, %v973
    %v1038 = vsel %vm910, %v710, %v974
    %v1039 = vsel %vm911, %v713, %v975
    %v1040 = vsel %vm912, %v718, %v976
    %v1041 = vsel %vm913, %v721, %v977
    %v1042 = vsel %vm914, %v726, %v978
    %v1043 = vsel %vm915, %v729, %v979
    %v1044 = vsel %vm916, %v734, %v980
    %v1045 = vsel %vm917, %v737, %v981
    %v1046 = vsel %vm918, %v742, %v982
    %v1047 = vsel %vm919, %v745, %v983
    %v1048 = vsel %vm920, %v750, %v984
    %v1049 = vsel %vm921, %v753, %v985
    %v1050 = vsel %vm922, %v758, %v986
    %v1051 = vsel %vm923, %v761, %v987
    %v1052 = vsel %vm924, %v766, %v988
    %v1053 = vsel %vm925, %v769, %v989
    %v1054 = vsel %vm926, %v774, %v990
    %v1055 = vsel %vm927, %v777, %v991
    %v1056 = vsel %vm928, %v782, %v992
    %v1057 = vsel %vm929, %v785, %v993
    %v1058 = vsel %vm930, %v790, %v994
    %v1059 = vsel %vm931, %v793, %v995
    %v1060 = vsel %vm932, %v798, %v996
    %v1061 = vsel %vm933, %v801, %v997
    %v1062 = vsel %vm934, %v806, %v998
    %v1063 = vsel %vm935, %v809, %v999
    %v1064 = vsel %vm936, %v814, %v1000
    %v1065 = vsel %vm937, %v817, %v1001
    %v1066 = vsel %vm938, %v822, %v1002
    %v1067 = vsel %vm939, %v825, %v1003
    %v1068 = vsel %vm940, %v830, %v1004
    %v1069 = vsel %vm941, %v833, %v1005
    %v1070 = vsel %vm942, %v838, %v1006
    %v1071 = vsel %vm943, %v841, %v1007
    %v1072 = vsel %vm944, %v846, %v1008
    %v1073 = vsel %vm945, %v849, %v1009
    %v1074 = vsel %vm946, %v854, %v1010
    %v1075 = vsel %vm947, %v857, %v1011
    %v1076 = vsel %vm948, %v862, %v1012
    %v1077 = vsel %vm949, %v865, %v1013
    %v1078 = vsel %vm950, %v870, %v1014
    %v1079 = vsel %vm951, %v873, %v1015
    %v1080 = vsel %vm952, %v878, %v1016
    %v1081 = vsel %vm953, %v881, %v1017
    %v1082 = vsel %vm954, %v886, %v1018
    %v1083 = vsel %vm955, %v889, %v1019
    %v1084 = vld [vmem:[#allocation8] sm:$0xff]
    %v1085 = vld [vmem:[#allocation8 + $0x8] sm:$0xff]
    %v1086 = vld [vmem:[#allocation8 + $0x10] sm:$0xff]
    %v1087 = vld [vmem:[#allocation8 + $0x18] sm:$0xff]
    %v1088 = vld [vmem:[#allocation8 + $0x20] sm:$0xff]
    %v1089 = vld [vmem:[#allocation8 + $0x28] sm:$0xff]
    %v1090 = vld [vmem:[#allocation8 + $0x30] sm:$0xff]
    %v1091 = vld [vmem:[#allocation8 + $0x38] sm:$0xff]
    %v1092 = vld [vmem:[#allocation8 + $0x40] sm:$0xff]
    %v1093 = vld [vmem:[#allocation8 + $0x48] sm:$0xff]
    %v1094 = vld [vmem:[#allocation8 + $0x50] sm:$0xff]
    %v1095 = vld [vmem:[#allocation8 + $0x58] sm:$0xff]
    %v1096 = vld [vmem:[#allocation8 + $0x60] sm:$0xff]
    %v1097 = vld [vmem:[#allocation8 + $0x68] sm:$0xff]
    %v1098 = vld [vmem:[#allocation8 + $0x70] sm:$0xff]
    %v1099 = vld [vmem:[#allocation8 + $0x78] sm:$0xff]
    %v1100 = vld [vmem:[#allocation8 + $0x80] sm:$0xff]
    %v1101 = vld [vmem:[#allocation8 + $0x88] sm:$0xff]
    %v1102 = vld [vmem:[#allocation8 + $0x90] sm:$0xff]
    %v1103 = vld [vmem:[#allocation8 + $0x98] sm:$0xff]
    %v1104 = vld [vmem:[#allocation8 + $0xa0] sm:$0xff]
    %v1105 = vld [vmem:[#allocation8 + $0xa8] sm:$0xff]
    %v1106 = vld [vmem:[#allocation8 + $0xb0] sm:$0xff]
    %v1107 = vld [vmem:[#allocation8 + $0xb8] sm:$0xff]
    %v1108 = vld [vmem:[#allocation8 + $0xc0] sm:$0xff]
    %v1109 = vld [vmem:[#allocation8 + $0xc8] sm:$0xff]
    %v1110 = vld [vmem:[#allocation8 + $0xd0] sm:$0xff]
    %v1111 = vld [vmem:[#allocation8 + $0xd8] sm:$0xff]
    %v1112 = vld [vmem:[#allocation8 + $0xe0] sm:$0xff]
    %v1113 = vld [vmem:[#allocation8 + $0xe8] sm:$0xff]
    %v1114 = vld [vmem:[#allocation8 + $0xf0] sm:$0xff]
    %v1115 = vld [vmem:[#allocation8 + $0xf8] sm:$0xff]
    %v1116 = vld [vmem:[#allocation8 + $0x100] sm:$0xff]
    %v1117 = vld [vmem:[#allocation8 + $0x108] sm:$0xff]
    %v1118 = vld [vmem:[#allocation8 + $0x110] sm:$0xff]
    %v1119 = vld [vmem:[#allocation8 + $0x118] sm:$0xff]
    %v1120 = vld [vmem:[#allocation8 + $0x120] sm:$0xff]
    %v1121 = vld [vmem:[#allocation8 + $0x128] sm:$0xff]
    %v1122 = vld [vmem:[#allocation8 + $0x130] sm:$0xff]
    %v1123 = vld [vmem:[#allocation8 + $0x138] sm:$0xff]
    %v1124 = vld [vmem:[#allocation8 + $0x140] sm:$0xff]
    %v1125 = vld [vmem:[#allocation8 + $0x148] sm:$0xff]
    %v1126 = vld [vmem:[#allocation8 + $0x150] sm:$0xff]
    %v1127 = vld [vmem:[#allocation8 + $0x158] sm:$0xff]
    %v1128 = vld [vmem:[#allocation8 + $0x160] sm:$0xff]
    %v1129 = vld [vmem:[#allocation8 + $0x168] sm:$0xff]
    %v1130 = vld [vmem:[#allocation8 + $0x170] sm:$0xff]
    %v1131 = vld [vmem:[#allocation8 + $0x178] sm:$0xff]
    %v1132 = vld [vmem:[#allocation8 + $0x180] sm:$0xff]
    %v1133 = vld [vmem:[#allocation8 + $0x188] sm:$0xff]
    %v1134 = vld [vmem:[#allocation8 + $0x190] sm:$0xff]
    %v1135 = vld [vmem:[#allocation8 + $0x198] sm:$0xff]
    %v1136 = vld [vmem:[#allocation8 + $0x1a0] sm:$0xff]
    %v1137 = vld [vmem:[#allocation8 + $0x1a8] sm:$0xff]
    %v1138 = vld [vmem:[#allocation8 + $0x1b0] sm:$0xff]
    %v1139 = vld [vmem:[#allocation8 + $0x1b8] sm:$0xff]
    %v1140 = vld [vmem:[#allocation8 + $0x1c0] sm:$0xff]
    %v1141 = vld [vmem:[#allocation8 + $0x1c8] sm:$0xff]
    %v1142 = vld [vmem:[#allocation8 + $0x1d0] sm:$0xff]
    %v1143 = vld [vmem:[#allocation8 + $0x1d8] sm:$0xff]
    %v1144 = vld [vmem:[#allocation8 + $0x1e0] sm:$0xff]
    %v1145 = vld [vmem:[#allocation8 + $0x1e8] sm:$0xff]
    %v1146 = vld [vmem:[#allocation8 + $0x1f0] sm:$0xff]
    %v1147 = vld [vmem:[#allocation8 + $0x1f8] sm:$0xff]
    %v1148 = vadd.f32 %v1020, %v1084
    %v1149 = vadd.f32 %v1021, %v1085
    %v1150 = vadd.f32 %v1022, %v1086
    %v1151 = vadd.f32 %v1023, %v1087
    %v1152 = vadd.f32 %v1024, %v1088
    %v1153 = vadd.f32 %v1025, %v1089
    %v1154 = vadd.f32 %v1026, %v1090
    %v1155 = vadd.f32 %v1027, %v1091
    %v1156 = vadd.f32 %v1028, %v1092
    %v1157 = vadd.f32 %v1029, %v1093
    %v1158 = vadd.f32 %v1030, %v1094
    %v1159 = vadd.f32 %v1031, %v1095
    %v1160 = vadd.f32 %v1032, %v1096
    %v1161 = vadd.f32 %v1033, %v1097
    %v1162 = vadd.f32 %v1034, %v1098
    %v1163 = vadd.f32 %v1035, %v1099
    %v1164 = vadd.f32 %v1036, %v1100
    %v1165 = vadd.f32 %v1037, %v1101
    %v1166 = vadd.f32 %v1038, %v1102
    %v1167 = vadd.f32 %v1039, %v1103
    %v1168 = vadd.f32 %v1040, %v1104
    %v1169 = vadd.f32 %v1041, %v1105
    %v1170 = vadd.f32 %v1042, %v1106
    %v1171 = vadd.f32 %v1043, %v1107
    %v1172 = vadd.f32 %v1044, %v1108
    %v1173 = vadd.f32 %v1045, %v1109
    %v1174 = vadd.f32 %v1046, %v1110
    %v1175 = vadd.f32 %v1047, %v1111
    %v1176 = vadd.f32 %v1048, %v1112
    %v1177 = vadd.f32 %v1049, %v1113
    %v1178 = vadd.f32 %v1050, %v1114
    %v1179 = vadd.f32 %v1051, %v1115
    %v1180 = vadd.f32 %v1052, %v1116
    %v1181 = vadd.f32 %v1053, %v1117
    %v1182 = vadd.f32 %v1054, %v1118
    %v1183 = vadd.f32 %v1055, %v1119
    %v1184 = vadd.f32 %v1056, %v1120
    %v1185 = vadd.f32 %v1057, %v1121
    %v1186 = vadd.f32 %v1058, %v1122
    %v1187 = vadd.f32 %v1059, %v1123
    %v1188 = vadd.f32 %v1060, %v1124
    %v1189 = vadd.f32 %v1061, %v1125
    %v1190 = vadd.f32 %v1062, %v1126
    %v1191 = vadd.f32 %v1063, %v1127
    %v1192 = vadd.f32 %v1064, %v1128
    %v1193 = vadd.f32 %v1065, %v1129
    %v1194 = vadd.f32 %v1066, %v1130
    %v1195 = vadd.f32 %v1067, %v1131
    %v1196 = vadd.f32 %v1068, %v1132
    %v1197 = vadd.f32 %v1069, %v1133
    %v1198 = vadd.f32 %v1070, %v1134
    %v1199 = vadd.f32 %v1071, %v1135
    %v1200 = vadd.f32 %v1072, %v1136
    %v1201 = vadd.f32 %v1073, %v1137
    %v1202 = vadd.f32 %v1074, %v1138
    %v1203 = vadd.f32 %v1075, %v1139
    %v1204 = vadd.f32 %v1076, %v1140
    %v1205 = vadd.f32 %v1077, %v1141
    %v1206 = vadd.f32 %v1078, %v1142
    %v1207 = vadd.f32 %v1079, %v1143
    %v1208 = vadd.f32 %v1080, %v1144
    %v1209 = vadd.f32 %v1081, %v1145
    %v1210 = vadd.f32 %v1082, %v1146
    %v1211 = vadd.f32 %v1083, %v1147
    %1212 = vst [vmem:[#allocation10] sm:$0xff] %v1148
    %1213 = vst [vmem:[#allocation10 + $0x8] sm:$0xff] %v1149
    %1214 = vst [vmem:[#allocation10 + $0x10] sm:$0xff] %v1150
    %1215 = vst [vmem:[#allocation10 + $0x18] sm:$0xff] %v1151
    %1216 = vst [vmem:[#allocation10 + $0x20] sm:$0xff] %v1152
    %1217 = vst [vmem:[#allocation10 + $0x28] sm:$0xff] %v1153
    %1218 = vst [vmem:[#allocation10 + $0x30] sm:$0xff] %v1154
    %1219 = vst [vmem:[#allocation10 + $0x38] sm:$0xff] %v1155
    %1220 = vst [vmem:[#allocation10 + $0x40] sm:$0xff] %v1156
    %1221 = vst [vmem:[#allocation10 + $0x48] sm:$0xff] %v1157
    %1222 = vst [vmem:[#allocation10 + $0x50] sm:$0xff] %v1158
    %1223 = vst [vmem:[#allocation10 + $0x58] sm:$0xff] %v1159
    %1224 = vst [vmem:[#allocation10 + $0x60] sm:$0xff] %v1160
    %1225 = vst [vmem:[#allocation10 + $0x68] sm:$0xff] %v1161
    %1226 = vst [vmem:[#allocation10 + $0x70] sm:$0xff] %v1162
    %1227 = vst [vmem:[#allocation10 + $0x78] sm:$0xff] %v1163
    %1228 = vst [vmem:[#allocation10 + $0x80] sm:$0xff] %v1164
    %1229 = vst [vmem:[#allocation10 + $0x88] sm:$0xff] %v1165
    %1230 = vst [vmem:[#allocation10 + $0x90] sm:$0xff] %v1166
    %1231 = vst [vmem:[#allocation10 + $0x98] sm:$0xff] %v1167
    %1232 = vst [vmem:[#allocation10 + $0xa0] sm:$0xff] %v1168
    %1233 = vst [vmem:[#allocation10 + $0xa8] sm:$0xff] %v1169
    %1234 = vst [vmem:[#allocation10 + $0xb0] sm:$0xff] %v1170
    %1235 = vst [vmem:[#allocation10 + $0xb8] sm:$0xff] %v1171
    %1236 = vst [vmem:[#allocation10 + $0xc0] sm:$0xff] %v1172
    %1237 = vst [vmem:[#allocation10 + $0xc8] sm:$0xff] %v1173
    %1238 = vst [vmem:[#allocation10 + $0xd0] sm:$0xff] %v1174
    %1239 = vst [vmem:[#allocation10 + $0xd8] sm:$0xff] %v1175
    %1240 = vst [vmem:[#allocation10 + $0xe0] sm:$0xff] %v1176
    %1241 = vst [vmem:[#allocation10 + $0xe8] sm:$0xff] %v1177
    %1242 = vst [vmem:[#allocation10 + $0xf0] sm:$0xff] %v1178
    %1243 = vst [vmem:[#allocation10 + $0xf8] sm:$0xff] %v1179
    %1244 = vst [vmem:[#allocation10 + $0x100] sm:$0xff] %v1180
    %1245 = vst [vmem:[#allocation10 + $0x108] sm:$0xff] %v1181
    %1246 = vst [vmem:[#allocation10 + $0x110] sm:$0xff] %v1182
    %1247 = vst [vmem:[#allocation10 + $0x118] sm:$0xff] %v1183
    %1248 = vst [vmem:[#allocation10 + $0x120] sm:$0xff] %v1184
    %1249 = vst [vmem:[#allocation10 + $0x128] sm:$0xff] %v1185
    %1250 = vst [vmem:[#allocation10 + $0x130] sm:$0xff] %v1186
    %1251 = vst [vmem:[#allocation10 + $0x138] sm:$0xff] %v1187
    %1252 = vst [vmem:[#allocation10 + $0x140] sm:$0xff] %v1188
    %1253 = vst [vmem:[#allocation10 + $0x148] sm:$0xff] %v1189
    %1254 = vst [vmem:[#allocation10 + $0x150] sm:$0xff] %v1190
    %1255 = vst [vmem:[#allocation10 + $0x158] sm:$0xff] %v1191
    %1256 = vst [vmem:[#allocation10 + $0x160] sm:$0xff] %v1192
    %1257 = vst [vmem:[#allocation10 + $0x168] sm:$0xff] %v1193
    %1258 = vst [vmem:[#allocation10 + $0x170] sm:$0xff] %v1194
    %1259 = vst [vmem:[#allocation10 + $0x178] sm:$0xff] %v1195
    %1260 = vst [vmem:[#allocation10 + $0x180] sm:$0xff] %v1196
    %1261 = vst [vmem:[#allocation10 + $0x188] sm:$0xff] %v1197
    %1262 = vst [vmem:[#allocation10 + $0x190] sm:$0xff] %v1198
    %1263 = vst [vmem:[#allocation10 + $0x198] sm:$0xff] %v1199
    %1264 = vst [vmem:[#allocation10 + $0x1a0] sm:$0xff] %v1200
    %1265 = vst [vmem:[#allocation10 + $0x1a8] sm:$0xff] %v1201
    %1266 = vst [vmem:[#allocation10 + $0x1b0] sm:$0xff] %v1202
    %1267 = vst [vmem:[#allocation10 + $0x1b8] sm:$0xff] %v1203
    %1268 = vst [vmem:[#allocation10 + $0x1c0] sm:$0xff] %v1204
    %1269 = vst [vmem:[#allocation10 + $0x1c8] sm:$0xff] %v1205
    %1270 = vst [vmem:[#allocation10 + $0x1d0] sm:$0xff] %v1206
    %1271 = vst [vmem:[#allocation10 + $0x1d8] sm:$0xff] %v1207
    %1272 = vst [vmem:[#allocation10 + $0x1e0] sm:$0xff] %v1208
    %1273 = vst [vmem:[#allocation10 + $0x1e8] sm:$0xff] %v1209
    %1274 = vst [vmem:[#allocation10 + $0x1f0] sm:$0xff] %v1210
    %1275 = vst [vmem:[#allocation10 + $0x1f8] sm:$0xff] %v1211
    // Predicated region
    $region34: #{stargan_generator_forward.30} parent=1 // pred_check
      _
    $region35: #{stargan_generator_forward.30} parent=1 // pred_check_branch
      %1277 = sbr.rel (0) target = $region37
    $region36: #{stargan_generator_forward.30} parent=1 // pred_region
      %s1279 = ssub.s32 8192, 8192
      %1280 = vsyncadd [#allocation4], %s1279
      %s1281 = sshll.u32 [#allocation10], 4
      %s1282 = int_to_ptr.vmem [resolvable:$true] %s1281
      %1287 = dma.vmem_to_hbm [thread:$0]  %s1282, 8192, %s4, [#allocation4], 128, 128, 8
    $region37: #{stargan_generator_forward.30} parent=1 // pred_fallthru
      _
    // Predicated region
    $region38: #{stargan_generator_forward.30} parent=1 // pred_check
      _
    $region39: #{stargan_generator_forward.30} parent=1 // pred_check_branch
      %1289 = sbr.rel (0) target = $region41
    $region40: #{stargan_generator_forward.30} parent=1 // pred_region
      %1290 = dma.done [#allocation4], 8192
    $region41: #{stargan_generator_forward.30} parent=1 // pred_fallthru
      _
    %1291 = vsyncpa [#allocation3], 1
    %1292 = vsyncpa [#allocation6], 1
    %1293 = vsyncpa [#allocation9], 1
    %1294 = vsyncpa [#allocation4], 1

// kernel: stargan_generator_forward.31
$region0: #{stargan_generator_forward.31}
  #allocation0 [shape = 'u32[]', space=smem, size = 0x4, offset = 0x4, fixed_abs, tag = 'smem constant byte address 0x4 - core index']
  #allocation1 [shape = 'u32[144,128]{1,0:T(1,128)}', space=vmem, size = 0x12000, scoped, tag = 'internal scratch']
  %s0 = inlined_call_operand.hbm [shape: bf16[512,135], index: 0, kind: input, shape index: {}]
  %s1 = inlined_call_operand.hbm [shape: bf16[135,128], index: 1, kind: input, shape index: {}]
  %s2 = inlined_call_operand.hbm [shape: f32[1,128], index: 2, kind: input, shape index: {}]
  %s3 = inlined_call_operand.hbm [shape: f32[512,128], index: 3, kind: output, shape index: {}]
  %s4 = sld [smem:[#allocation0]]
  $region34: #{stargan_generator_forward.31} parent=0
    _
  %s6 = ssub.s32 1, %s4
  %s7 = scalar_select 0, %s6, %s4
  $region1: #{stargan_generator_forward.31} parent=0
    #allocation2 [shape = 'u8[262144]{0}', space=vmem, size = 0x40000, scoped, tag = 'input window, operand 0, single buffered']
    #allocation3 [shape = 's32[1]{0}', space=sflag, size = 0x4, scoped, tag = 'scoped memory for stargan_generator_forward.31']
    #allocation4 [shape = 's32[1]{0}', space=sflag, size = 0x4, scoped, tag = 'scoped memory for stargan_generator_forward.31']
    #allocation5 [shape = 'u8[34816]{0}', space=vmem, size = 0x8800, scoped, tag = 'input window, operand 1, single buffered']
    #allocation6 [shape = 's32[1]{0}', space=sflag, size = 0x4, scoped, tag = 'scoped memory for stargan_generator_forward.31']
    #allocation7 [shape = 'u8[512]{0}', space=vmem, size = 0x400, scoped, tag = 'input window, operand 2, single buffered']
    #allocation8 [shape = 'u8[262144]{0}', space=vmem, size = 0x40000, scoped, tag = 'output window, operand 0, single buffered']
    %8 = vsyncpa [#allocation3], 0
    %9 = vsyncpa [#allocation6], 0
    %10 = vsyncpa [#allocation4], 0
    // Predicated region
    $region2: #{stargan_generator_forward.31} parent=1 // pred_check
      _
    $region3: #{stargan_generator_forward.31} parent=1 // pred_check_branch
      %12 = sbr.rel (0) target = $region5
    $region4: #{stargan_generator_forward.31} parent=1 // pred_region
      %s14 = ssub.s32 8192, 8192
      %15 = vsyncadd [#allocation3], %s14
      %s16 = sshll.u32 [#allocation2], 4
      %s17 = int_to_ptr.vmem [resolvable:$true] %s16
      %22 = dma.hbm_to_vmem [thread:$0]  %s0, 8192, %s17, [#allocation3], 128, 128, 8
    $region5: #{stargan_generator_forward.31} parent=1 // pred_fallthru
      _
    // Predicated region
    $region6: #{stargan_generator_forward.31} parent=1 // pred_check
      _
    $region7: #{stargan_generator_forward.31} parent=1 // pred_check_branch
      %24 = sbr.rel (0) target = $region9
    $region8: #{stargan_generator_forward.31} parent=1 // pred_region
      %s26 = ssub.s32 1088, 1088
      %27 = vsyncadd [#allocation6], %s26
      %s28 = sshll.u32 [#allocation5], 4
      %s29 = int_to_ptr.vmem [resolvable:$true] %s28
      %34 = dma.hbm_to_vmem [thread:$0]  %s1, 1088, %s29, [#allocation6], 64, 64, 4
    $region9: #{stargan_generator_forward.31} parent=1 // pred_fallthru
      _
    // Predicated region
    $region10: #{stargan_generator_forward.31} parent=1 // pred_check
      _
    $region11: #{stargan_generator_forward.31} parent=1 // pred_check_branch
      %36 = sbr.rel (0) target = $region13
    $region12: #{stargan_generator_forward.31} parent=1 // pred_region
      %s38 = ssub.s32 16, 16
      %39 = vsyncadd [#allocation6], %s38
      %s41 = sshll.u32 [#allocation7], 4
      %s42 = int_to_ptr.vmem [resolvable:$true] %s41
      %44 = dma.hbm_to_vmem [thread:$0]  %s2, 16, %s42, [#allocation6]
    $region13: #{stargan_generator_forward.31} parent=1 // pred_fallthru
      _
    // Predicated region
    $region14: #{stargan_generator_forward.31} parent=1 // pred_check
      _
    $region15: #{stargan_generator_forward.31} parent=1 // pred_check_branch
      %46 = sbr.rel (0) target = $region17
    $region16: #{stargan_generator_forward.31} parent=1 // pred_region
      %47 = dma.done [#allocation3], 8192
    $region17: #{stargan_generator_forward.31} parent=1 // pred_fallthru
      _
    // Predicated region
    $region18: #{stargan_generator_forward.31} parent=1 // pred_check
      _
    $region19: #{stargan_generator_forward.31} parent=1 // pred_check_branch
      %49 = sbr.rel (0) target = $region21
    $region20: #{stargan_generator_forward.31} parent=1 // pred_region
      %50 = dma.done [#allocation6], 1088
    $region21: #{stargan_generator_forward.31} parent=1 // pred_fallthru
      _
    // Predicated region
    $region22: #{stargan_generator_forward.31} parent=1 // pred_check
      _
    $region23: #{stargan_generator_forward.31} parent=1 // pred_check_branch
      %52 = sbr.rel (0) target = $region25
    $region24: #{stargan_generator_forward.31} parent=1 // pred_region
      %53 = dma.done [#allocation6], 16
    $region25: #{stargan_generator_forward.31} parent=1 // pred_fallthru
      _
    %v55 = vld [vmem:[#allocation2] sm:$0xff]
    %v56 = vld [vmem:[#allocation2 + $0x8] sm:$0xff]
    %v57 = vld [vmem:[#allocation2 + $0x10] sm:$0xff]
    %v58 = vld [vmem:[#allocation2 + $0x18] sm:$0xff]
    %v59 = vld [vmem:[#allocation2 + $0x20] sm:$0xff]
    %v60 = vld [vmem:[#allocation2 + $0x28] sm:$0xff]
    %v61 = vld [vmem:[#allocation2 + $0x30] sm:$0xff]
    %v62 = vld [vmem:[#allocation2 + $0x38] sm:$0xff]
    %v63 = vld [vmem:[#allocation2 + $0x40] sm:$0xff]
    %v64 = vld [vmem:[#allocation2 + $0x48] sm:$0xff]
    %v65 = vld [vmem:[#allocation2 + $0x50] sm:$0xff]
    %v66 = vld [vmem:[#allocation2 + $0x58] sm:$0xff]
    %v67 = vld [vmem:[#allocation2 + $0x60] sm:$0xff]
    %v68 = vld [vmem:[#allocation2 + $0x68] sm:$0xff]
    %v69 = vld [vmem:[#allocation2 + $0x70] sm:$0xff]
    %v70 = vld [vmem:[#allocation2 + $0x78] sm:$0xff]
    %v71 = vld [vmem:[#allocation2 + $0x80] sm:$0xff]
    %v72 = vld [vmem:[#allocation2 + $0x88] sm:$0xff]
    %v73 = vld [vmem:[#allocation2 + $0x90] sm:$0xff]
    %v74 = vld [vmem:[#allocation2 + $0x98] sm:$0xff]
    %v75 = vld [vmem:[#allocation2 + $0xa0] sm:$0xff]
    %v76 = vld [vmem:[#allocation2 + $0xa8] sm:$0xff]
    %v77 = vld [vmem:[#allocation2 + $0xb0] sm:$0xff]
    %v78 = vld [vmem:[#allocation2 + $0xb8] sm:$0xff]
    %v79 = vld [vmem:[#allocation2 + $0xc0] sm:$0xff]
    %v80 = vld [vmem:[#allocation2 + $0xc8] sm:$0xff]
    %v81 = vld [vmem:[#allocation2 + $0xd0] sm:$0xff]
    %v82 = vld [vmem:[#allocation2 + $0xd8] sm:$0xff]
    %v83 = vld [vmem:[#allocation2 + $0xe0] sm:$0xff]
    %v84 = vld [vmem:[#allocation2 + $0xe8] sm:$0xff]
    %v85 = vld [vmem:[#allocation2 + $0xf0] sm:$0xff]
    %v86 = vld [vmem:[#allocation2 + $0xf8] sm:$0xff]
    %v87 = vld [vmem:[#allocation2 + $0x100] sm:$0xff]
    %v88 = vld [vmem:[#allocation2 + $0x108] sm:$0xff]
    %v89 = vld [vmem:[#allocation2 + $0x110] sm:$0xff]
    %v90 = vld [vmem:[#allocation2 + $0x118] sm:$0xff]
    %v91 = vld [vmem:[#allocation2 + $0x120] sm:$0xff]
    %v92 = vld [vmem:[#allocation2 + $0x128] sm:$0xff]
    %v93 = vld [vmem:[#allocation2 + $0x130] sm:$0xff]
    %v94 = vld [vmem:[#allocation2 + $0x138] sm:$0xff]
    %v95 = vld [vmem:[#allocation2 + $0x140] sm:$0xff]
    %v96 = vld [vmem:[#allocation2 + $0x148] sm:$0xff]
    %v97 = vld [vmem:[#allocation2 + $0x150] sm:$0xff]
    %v98 = vld [vmem:[#allocation2 + $0x158] sm:$0xff]
    %v99 = vld [vmem:[#allocation2 + $0x160] sm:$0xff]
    %v100 = vld [vmem:[#allocation2 + $0x168] sm:$0xff]
    %v101 = vld [vmem:[#allocation2 + $0x170] sm:$0xff]
    %v102 = vld [vmem:[#allocation2 + $0x178] sm:$0xff]
    %v103 = vld [vmem:[#allocation2 + $0x180] sm:$0xff]
    %v104 = vld [vmem:[#allocation2 + $0x188] sm:$0xff]
    %v105 = vld [vmem:[#allocation2 + $0x190] sm:$0xff]
    %v106 = vld [vmem:[#allocation2 + $0x198] sm:$0xff]
    %v107 = vld [vmem:[#allocation2 + $0x1a0] sm:$0xff]
    %v108 = vld [vmem:[#allocation2 + $0x1a8] sm:$0xff]
    %v109 = vld [vmem:[#allocation2 + $0x1b0] sm:$0xff]
    %v110 = vld [vmem:[#allocation2 + $0x1b8] sm:$0xff]
    %v111 = vld [vmem:[#allocation2 + $0x1c0] sm:$0xff]
    %v112 = vld [vmem:[#allocation2 + $0x1c8] sm:$0xff]
    %v113 = vld [vmem:[#allocation2 + $0x1d0] sm:$0xff]
    %v114 = vld [vmem:[#allocation2 + $0x1d8] sm:$0xff]
    %v115 = vld [vmem:[#allocation2 + $0x1e0] sm:$0xff]
    %v116 = vld [vmem:[#allocation2 + $0x1e8] sm:$0xff]
    %v117 = vld [vmem:[#allocation2 + $0x1f0] sm:$0xff]
    %v118 = vld [vmem:[#allocation2 + $0x1f8] sm:$0xff]
    %v119 = vld [vmem:[#allocation5] sm:$0xf]
    %v120 = vld [vmem:[#allocation5 + $0x4] sm:$0xf]
    %v121 = vld [vmem:[#allocation5 + $0x8] sm:$0xf]
    %v122 = vld [vmem:[#allocation5 + $0xc] sm:$0xf]
    %v123 = vld [vmem:[#allocation5 + $0x10] sm:$0xf]
    %v124 = vld [vmem:[#allocation5 + $0x14] sm:$0xf]
    %v125 = vld [vmem:[#allocation5 + $0x18] sm:$0xf]
    %v126 = vld [vmem:[#allocation5 + $0x1c] sm:$0xf]
    %v127 = vld [vmem:[#allocation5 + $0x20] sm:$0xf]
    %v128 = vld [vmem:[#allocation5 + $0x24] sm:$0xf]
    %v129 = vld [vmem:[#allocation5 + $0x28] sm:$0xf]
    %v130 = vld [vmem:[#allocation5 + $0x2c] sm:$0xf]
    %v131 = vld [vmem:[#allocation5 + $0x30] sm:$0xf]
    %v132 = vld [vmem:[#allocation5 + $0x34] sm:$0xf]
    %v133 = vld [vmem:[#allocation5 + $0x38] sm:$0xf]
    %v134 = vld [vmem:[#allocation5 + $0x3c] sm:$0xf]
    %v135 = vld [vmem:[#allocation5 + $0x40] sm:$0xf]
    %v136 = vld [vmem:[#allocation7] sm:$0x1]
    %v138 = vlaneseq
    %v139 = vshrl.u32 %v138, 7
    %v140 = vsub.s32 0, %v139
    %v141 = vrot.slane %v136, %v140
    %v207 = vunpack.c.l.b16 %v55
    %v208 = vunpack.c.h.b16 %v55
    %v209 = vunpack.c.l.b16 %v56
    %v210 = vunpack.c.h.b16 %v56
    %v211 = vunpack.c.l.b16 %v57
    %v212 = vunpack.c.h.b16 %v57
    %v213 = vunpack.c.l.b16 %v58
    %v214 = vunpack.c.h.b16 %v58
    %v215 = vunpack.c.l.b16 %v59
    %v216 = vunpack.c.h.b16 %v59
    %v217 = vunpack.c.l.b16 %v60
    %v218 = vunpack.c.h.b16 %v60
    %v219 = vunpack.c.l.b16 %v61
    %v220 = vunpack.c.h.b16 %v61
    %v221 = vunpack.c.l.b16 %v62
    %v222 = vunpack.c.h.b16 %v62
    %v223 = vunpack.c.l.b16 %v63
    %v224 = vunpack.c.h.b16 %v63
    %v225 = vunpack.c.l.b16 %v64
    %v226 = vunpack.c.h.b16 %v64
    %v227 = vunpack.c.l.b16 %v65
    %v228 = vunpack.c.h.b16 %v65
    %v229 = vunpack.c.l.b16 %v66
    %v230 = vunpack.c.h.b16 %v66
    %v231 = vunpack.c.l.b16 %v67
    %v232 = vunpack.c.h.b16 %v67
    %v233 = vunpack.c.l.b16 %v68
    %v234 = vunpack.c.h.b16 %v68
    %v235 = vunpack.c.l.b16 %v69
    %v236 = vunpack.c.h.b16 %v69
    %v237 = vunpack.c.l.b16 %v70
    %v238 = vunpack.c.h.b16 %v70
    %v239 = vunpack.c.l.b16 %v71
    %v240 = vunpack.c.h.b16 %v71
    %v241 = vunpack.c.l.b16 %v72
    %v242 = vunpack.c.h.b16 %v72
    %v243 = vunpack.c.l.b16 %v73
    %v244 = vunpack.c.h.b16 %v73
    %v245 = vunpack.c.l.b16 %v74
    %v246 = vunpack.c.h.b16 %v74
    %v247 = vunpack.c.l.b16 %v75
    %v248 = vunpack.c.h.b16 %v75
    %v249 = vunpack.c.l.b16 %v76
    %v250 = vunpack.c.h.b16 %v76
    %v251 = vunpack.c.l.b16 %v77
    %v252 = vunpack.c.h.b16 %v77
    %v253 = vunpack.c.l.b16 %v78
    %v254 = vunpack.c.h.b16 %v78
    %v255 = vunpack.c.l.b16 %v79
    %v256 = vunpack.c.h.b16 %v79
    %v257 = vunpack.c.l.b16 %v80
    %v258 = vunpack.c.h.b16 %v80
    %v259 = vunpack.c.l.b16 %v81
    %v260 = vunpack.c.h.b16 %v81
    %v261 = vunpack.c.l.b16 %v82
    %v262 = vunpack.c.h.b16 %v82
    %v263 = vunpack.c.l.b16 %v83
    %v264 = vunpack.c.h.b16 %v83
    %v265 = vunpack.c.l.b16 %v84
    %v266 = vunpack.c.h.b16 %v84
    %v267 = vunpack.c.l.b16 %v85
    %v268 = vunpack.c.h.b16 %v85
    %v269 = vunpack.c.l.b16 %v86
    %v270 = vunpack.c.h.b16 %v86
    %v271 = vunpack.c.l.b16 %v87
    %v272 = vunpack.c.h.b16 %v87
    %v273 = vunpack.c.l.b16 %v88
    %v274 = vunpack.c.h.b16 %v88
    %v275 = vunpack.c.l.b16 %v89
    %v276 = vunpack.c.h.b16 %v89
    %v277 = vunpack.c.l.b16 %v90
    %v278 = vunpack.c.h.b16 %v90
    %v279 = vunpack.c.l.b16 %v91
    %v280 = vunpack.c.h.b16 %v91
    %v281 = vunpack.c.l.b16 %v92
    %v282 = vunpack.c.h.b16 %v92
    %v283 = vunpack.c.l.b16 %v93
    %v284 = vunpack.c.h.b16 %v93
    %v285 = vunpack.c.l.b16 %v94
    %v286 = vunpack.c.h.b16 %v94
    %v287 = vunpack.c.l.b16 %v95
    %v288 = vunpack.c.h.b16 %v95
    %v289 = vunpack.c.l.b16 %v96
    %v290 = vunpack.c.h.b16 %v96
    %v291 = vunpack.c.l.b16 %v97
    %v292 = vunpack.c.h.b16 %v97
    %v293 = vunpack.c.l.b16 %v98
    %v294 = vunpack.c.h.b16 %v98
    %v295 = vunpack.c.l.b16 %v99
    %v296 = vunpack.c.h.b16 %v99
    %v297 = vunpack.c.l.b16 %v100
    %v298 = vunpack.c.h.b16 %v100
    %v299 = vunpack.c.l.b16 %v101
    %v300 = vunpack.c.h.b16 %v101
    %v301 = vunpack.c.l.b16 %v102
    %v302 = vunpack.c.h.b16 %v102
    %v303 = vunpack.c.l.b16 %v103
    %v304 = vunpack.c.h.b16 %v103
    %v305 = vunpack.c.l.b16 %v104
    %v306 = vunpack.c.h.b16 %v104
    %v307 = vunpack.c.l.b16 %v105
    %v308 = vunpack.c.h.b16 %v105
    %v309 = vunpack.c.l.b16 %v106
    %v310 = vunpack.c.h.b16 %v106
    %v311 = vunpack.c.l.b16 %v107
    %v312 = vunpack.c.h.b16 %v107
    %v313 = vunpack.c.l.b16 %v108
    %v314 = vunpack.c.h.b16 %v108
    %v315 = vunpack.c.l.b16 %v109
    %v316 = vunpack.c.h.b16 %v109
    %v317 = vunpack.c.l.b16 %v110
    %v318 = vunpack.c.h.b16 %v110
    %v319 = vunpack.c.l.b16 %v111
    %v320 = vunpack.c.h.b16 %v111
    %v321 = vunpack.c.l.b16 %v112
    %v322 = vunpack.c.h.b16 %v112
    %v323 = vunpack.c.l.b16 %v113
    %v324 = vunpack.c.h.b16 %v113
    %v325 = vunpack.c.l.b16 %v114
    %v326 = vunpack.c.h.b16 %v114
    %v327 = vunpack.c.l.b16 %v115
    %v328 = vunpack.c.h.b16 %v115
    %v329 = vunpack.c.l.b16 %v116
    %v330 = vunpack.c.h.b16 %v116
    %v331 = vunpack.c.l.b16 %v117
    %v332 = vunpack.c.h.b16 %v117
    %v333 = vunpack.c.l.b16 %v118
    %v334 = vunpack.c.h.b16 %v118
    %v335 = vpack.c.b16 %v209, %v207
    %v336 = vpack.c.b16 %v210, %v208
    %v337 = vpack.c.b16 %v213, %v211
    %v338 = vpack.c.b16 %v214, %v212
    %v339 = vpack.c.b16 %v217, %v215
    %v340 = vpack.c.b16 %v218, %v216
    %v341 = vpack.c.b16 %v221, %v219
    %v342 = vpack.c.b16 %v222, %v220
    %v343 = vpack.c.b16 %v225, %v223
    %v344 = vpack.c.b16 %v226, %v224
    %v345 = vpack.c.b16 %v229, %v227
    %v346 = vpack.c.b16 %v230, %v228
    %v347 = vpack.c.b16 %v233, %v231
    %v348 = vpack.c.b16 %v234, %v232
    %v349 = vpack.c.b16 %v237, %v235
    %v350 = vpack.c.b16 %v238, %v236
    %v351 = vpack.c.b16 %v241, %v239
    %v352 = vpack.c.b16 %v242, %v240
    %v353 = vpack.c.b16 %v245, %v243
    %v354 = vpack.c.b16 %v246, %v244
    %v355 = vpack.c.b16 %v249, %v247
    %v356 = vpack.c.b16 %v250, %v248
    %v357 = vpack.c.b16 %v253, %v251
    %v358 = vpack.c.b16 %v254, %v252
    %v359 = vpack.c.b16 %v257, %v255
    %v360 = vpack.c.b16 %v258, %v256
    %v361 = vpack.c.b16 %v261, %v259
    %v362 = vpack.c.b16 %v262, %v260
    %v363 = vpack.c.b16 %v265, %v263
    %v364 = vpack.c.b16 %v266, %v264
    %v365 = vpack.c.b16 %v269, %v267
    %v366 = vpack.c.b16 %v270, %v268
    %v367 = vpack.c.b16 %v273, %v271
    %v368 = vpack.c.b16 %v274, %v272
    %v369 = vpack.c.b16 %v277, %v275
    %v370 = vpack.c.b16 %v278, %v276
    %v371 = vpack.c.b16 %v281, %v279
    %v372 = vpack.c.b16 %v282, %v280
    %v373 = vpack.c.b16 %v285, %v283
    %v374 = vpack.c.b16 %v286, %v284
    %v375 = vpack.c.b16 %v289, %v287
    %v376 = vpack.c.b16 %v290, %v288
    %v377 = vpack.c.b16 %v293, %v291
    %v378 = vpack.c.b16 %v294, %v292
    %v379 = vpack.c.b16 %v297, %v295
    %v380 = vpack.c.b16 %v298, %v296
    %v381 = vpack.c.b16 %v301, %v299
    %v382 = vpack.c.b16 %v302, %v300
    %v383 = vpack.c.b16 %v305, %v303
    %v384 = vpack.c.b16 %v306, %v304
    %v385 = vpack.c.b16 %v309, %v307
    %v386 = vpack.c.b16 %v310, %v308
    %v387 = vpack.c.b16 %v313, %v311
    %v388 = vpack.c.b16 %v314, %v312
    %v389 = vpack.c.b16 %v317, %v315
    %v390 = vpack.c.b16 %v318, %v316
    %v391 = vpack.c.b16 %v321, %v319
    %v392 = vpack.c.b16 %v322, %v320
    %v393 = vpack.c.b16 %v325, %v323
    %v394 = vpack.c.b16 %v326, %v324
    %v395 = vpack.c.b16 %v329, %v327
    %v396 = vpack.c.b16 %v330, %v328
    %v397 = vpack.c.b16 %v333, %v331
    %v398 = vpack.c.b16 %v334, %v332
    %v448 = vunpack.c.l.b16 %v119
    %v449 = vunpack.c.l.b16 %v120
    %v450 = vunpack.c.l.b16 %v121
    %v451 = vunpack.c.l.b16 %v122
    %v452 = vunpack.c.l.b16 %v123
    %v453 = vunpack.c.l.b16 %v124
    %v454 = vunpack.c.l.b16 %v125
    %v455 = vunpack.c.l.b16 %v126
    %v456 = vunpack.c.l.b16 %v127
    %v457 = vunpack.c.l.b16 %v128
    %v458 = vunpack.c.l.b16 %v129
    %v459 = vunpack.c.l.b16 %v130
    %v460 = vunpack.c.l.b16 %v131
    %v461 = vunpack.c.l.b16 %v132
    %v462 = vunpack.c.l.b16 %v133
    %v463 = vunpack.c.l.b16 %v134
    %v464 = vunpack.c.l.b16 %v135
    %v465 = vpack.c.b16 %v449, %v448
    %v466 = vpack.c.b16 %v451, %v450
    %v467 = vpack.c.b16 %v453, %v452
    %v468 = vpack.c.b16 %v455, %v454
    %v469 = vpack.c.b16 %v457, %v456
    %v470 = vpack.c.b16 %v459, %v458
    %v471 = vpack.c.b16 %v461, %v460
    %v472 = vpack.c.b16 %v463, %v462
    %v473 = vpack.c.b16 %v464, %v464
    %vm482 = vcmask 56320
    %v484 = vsel %vm482, %v336, 0
    %v487 = vsel %vm482, %v338, 0
    %v490 = vsel %vm482, %v340, 0
    %v493 = vsel %vm482, %v342, 0
    %v496 = vsel %vm482, %v344, 0
    %v499 = vsel %vm482, %v346, 0
    %v502 = vsel %vm482, %v348, 0
    %v505 = vsel %vm482, %v350, 0
    %v508 = vsel %vm482, %v352, 0
    %v511 = vsel %vm482, %v354, 0
    %v514 = vsel %vm482, %v356, 0
    %v517 = vsel %vm482, %v358, 0
    %v520 = vsel %vm482, %v360, 0
    %v523 = vsel %vm482, %v362, 0
    %v526 = vsel %vm482, %v364, 0
    %v529 = vsel %vm482, %v366, 0
    %v532 = vsel %vm482, %v368, 0
    %v535 = vsel %vm482, %v370, 0
    %v538 = vsel %vm482, %v372, 0
    %v541 = vsel %vm482, %v374, 0
    %v544 = vsel %vm482, %v376, 0
    %v547 = vsel %vm482, %v378, 0
    %v550 = vsel %vm482, %v380, 0
    %v553 = vsel %vm482, %v382, 0
    %v556 = vsel %vm482, %v384, 0
    %v559 = vsel %vm482, %v386, 0
    %v562 = vsel %vm482, %v388, 0
    %v565 = vsel %vm482, %v390, 0
    %v568 = vsel %vm482, %v392, 0
    %v571 = vsel %vm482, %v394, 0
    %v574 = vsel %vm482, %v396, 0
    %v577 = vsel %vm482, %v398, 0
    %vm579 = vcmask 1042432
    %vm580 = vcmask 1043456
    %v581 = vsel %vm579, 4294967295, 65535
    %v582 = vsel %vm580, %v581, 0
    %v584 = vand.u32 %v473, %v582
    %586 = vmatprep.subr.bf16.mxu0 0
    %587 = vmatpush1.bf16.msra.mxu0 %v465
    %588 = vmatprep.subr.bf16.mxu0 0
    %589 = vmatpush1.bf16.msra.mxu0 %v466
    %590 = vmatprep.subr.bf16.mxu0 0
    %591 = vmatpush1.bf16.msra.mxu0 %v467
    %592 = vmatprep.subr.bf16.mxu0 0
    %593 = vmatpush1.bf16.msra.mxu0 %v468
    %594 = vmatprep.subr.bf16.mxu0 0
    %595 = vmatpush1.bf16.msra.mxu0 %v469
    %596 = vmatprep.subr.bf16.mxu0 0
    %597 = vmatpush1.bf16.msra.mxu0 %v470
    %598 = vmatprep.subr.bf16.mxu0 0
    %599 = vmatpush1.bf16.msra.mxu0 %v471
    %600 = vmatprep.subr.bf16.mxu0 0
    %601 = vmatpush1.bf16.msra.mxu0 %v472
    %602 = vmatprep.subr.bf16.mxu0 0
    %603 = vmatpush1.bf16.msra.mxu0 %v584
    %604 = vmatprep.subr.bf16.mxu0 0
    %605 = vmatpush1.bf16.msra.mxu0 0
    %606 = vmatprep.subr.bf16.mxu0 0
    %607 = vmatpush1.bf16.msra.mxu0 0
    %608 = vmatprep.subr.bf16.mxu0 0
    %609 = vmatpush1.bf16.msra.mxu0 0
    %610 = vmatprep.subr.bf16.mxu0 0
    %611 = vmatpush1.bf16.msra.mxu0 0
    %612 = vmatprep.subr.bf16.mxu0 0
    %613 = vmatpush1.bf16.msra.mxu0 0
    %614 = vmatprep.subr.bf16.mxu0 0
    %615 = vmatpush1.bf16.msra.mxu0 0
    %616 = vmatprep.subr.bf16.mxu0 0
    %617 = vmatpush1.bf16.msra.mxu0 0
    %618 = vmatprep.mubr.bf16.mxu0 %v484
    %619 = vmatmul.mubr.bf16.gmra.mrb[0].mxu0 %v335
    %v620 = vpop.f32.mrb[0].mxu0
    %v621 = vadd.f32 %v141, %v620
    %v622 = vpop.f32.mrb[0].mxu0
    %v623 = vpop.f32.mrb[0].mxu0
    %v624 = vadd.f32 %v141, %v623
    %v625 = vpop.f32.mrb[0].mxu0
    %626 = vmatprep.mubr.bf16.mxu0 %v487
    %627 = vmatmul.mubr.bf16.gmra.mrb[0].mxu0 %v337
    %v628 = vpop.f32.mrb[0].mxu0
    %v629 = vadd.f32 %v141, %v628
    %v630 = vpop.f32.mrb[0].mxu0
    %v631 = vpop.f32.mrb[0].mxu0
    %v632 = vadd.f32 %v141, %v631
    %v633 = vpop.f32.mrb[0].mxu0
    %634 = vmatprep.mubr.bf16.mxu0 %v490
    %635 = vmatmul.mubr.bf16.gmra.mrb[0].mxu0 %v339
    %v636 = vpop.f32.mrb[0].mxu0
    %v637 = vadd.f32 %v141, %v636
    %v638 = vpop.f32.mrb[0].mxu0
    %v639 = vpop.f32.mrb[0].mxu0
    %v640 = vadd.f32 %v141, %v639
    %v641 = vpop.f32.mrb[0].mxu0
    %642 = vmatprep.mubr.bf16.mxu0 %v493
    %643 = vmatmul.mubr.bf16.gmra.mrb[0].mxu0 %v341
    %v644 = vpop.f32.mrb[0].mxu0
    %v645 = vadd.f32 %v141, %v644
    %v646 = vpop.f32.mrb[0].mxu0
    %v647 = vpop.f32.mrb[0].mxu0
    %v648 = vadd.f32 %v141, %v647
    %v649 = vpop.f32.mrb[0].mxu0
    %650 = vmatprep.mubr.bf16.mxu0 %v496
    %651 = vmatmul.mubr.bf16.gmra.mrb[0].mxu0 %v343
    %v652 = vpop.f32.mrb[0].mxu0
    %v653 = vadd.f32 %v141, %v652
    %v654 = vpop.f32.mrb[0].mxu0
    %v655 = vpop.f32.mrb[0].mxu0
    %v656 = vadd.f32 %v141, %v655
    %v657 = vpop.f32.mrb[0].mxu0
    %658 = vmatprep.mubr.bf16.mxu0 %v499
    %659 = vmatmul.mubr.bf16.gmra.mrb[0].mxu0 %v345
    %v660 = vpop.f32.mrb[0].mxu0
    %v661 = vadd.f32 %v141, %v660
    %v662 = vpop.f32.mrb[0].mxu0
    %v663 = vpop.f32.mrb[0].mxu0
    %v664 = vadd.f32 %v141, %v663
    %v665 = vpop.f32.mrb[0].mxu0
    %666 = vmatprep.mubr.bf16.mxu0 %v502
    %667 = vmatmul.mubr.bf16.gmra.mrb[0].mxu0 %v347
    %v668 = vpop.f32.mrb[0].mxu0
    %v669 = vadd.f32 %v141, %v668
    %v670 = vpop.f32.mrb[0].mxu0
    %v671 = vpop.f32.mrb[0].mxu0
    %v672 = vadd.f32 %v141, %v671
    %v673 = vpop.f32.mrb[0].mxu0
    %674 = vmatprep.mubr.bf16.mxu0 %v505
    %675 = vmatmul.mubr.bf16.gmra.mrb[0].mxu0 %v349
    %v676 = vpop.f32.mrb[0].mxu0
    %v677 = vadd.f32 %v141, %v676
    %v678 = vpop.f32.mrb[0].mxu0
    %v679 = vpop.f32.mrb[0].mxu0
    %v680 = vadd.f32 %v141, %v679
    %v681 = vpop.f32.mrb[0].mxu0
    %682 = vmatprep.mubr.bf16.mxu0 %v508
    %683 = vmatmul.mubr.bf16.gmra.mrb[0].mxu0 %v351
    %v684 = vpop.f32.mrb[0].mxu0
    %v685 = vadd.f32 %v141, %v684
    %v686 = vpop.f32.mrb[0].mxu0
    %v687 = vpop.f32.mrb[0].mxu0
    %v688 = vadd.f32 %v141, %v687
    %v689 = vpop.f32.mrb[0].mxu0
    %690 = vmatprep.mubr.bf16.mxu0 %v511
    %691 = vmatmul.mubr.bf16.gmra.mrb[0].mxu0 %v353
    %v692 = vpop.f32.mrb[0].mxu0
    %v693 = vadd.f32 %v141, %v692
    %v694 = vpop.f32.mrb[0].mxu0
    %v695 = vpop.f32.mrb[0].mxu0
    %v696 = vadd.f32 %v141, %v695
    %v697 = vpop.f32.mrb[0].mxu0
    %698 = vmatprep.mubr.bf16.mxu0 %v514
    %699 = vmatmul.mubr.bf16.gmra.mrb[0].mxu0 %v355
    %v700 = vpop.f32.mrb[0].mxu0
    %v701 = vadd.f32 %v141, %v700
    %v702 = vpop.f32.mrb[0].mxu0
    %v703 = vpop.f32.mrb[0].mxu0
    %v704 = vadd.f32 %v141, %v703
    %v705 = vpop.f32.mrb[0].mxu0
    %706 = vmatprep.mubr.bf16.mxu0 %v517
    %707 = vmatmul.mubr.bf16.gmra.mrb[0].mxu0 %v357
    %v708 = vpop.f32.mrb[0].mxu0
    %v709 = vadd.f32 %v141, %v708
    %v710 = vpop.f32.mrb[0].mxu0
    %v711 = vpop.f32.mrb[0].mxu0
    %v712 = vadd.f32 %v141, %v711
    %v713 = vpop.f32.mrb[0].mxu0
    %714 = vmatprep.mubr.bf16.mxu0 %v520
    %715 = vmatmul.mubr.bf16.gmra.mrb[0].mxu0 %v359
    %v716 = vpop.f32.mrb[0].mxu0
    %v717 = vadd.f32 %v141, %v716
    %v718 = vpop.f32.mrb[0].mxu0
    %v719 = vpop.f32.mrb[0].mxu0
    %v720 = vadd.f32 %v141, %v719
    %v721 = vpop.f32.mrb[0].mxu0
    %722 = vmatprep.mubr.bf16.mxu0 %v523
    %723 = vmatmul.mubr.bf16.gmra.mrb[0].mxu0 %v361
    %v724 = vpop.f32.mrb[0].mxu0
    %v725 = vadd.f32 %v141, %v724
    %v726 = vpop.f32.mrb[0].mxu0
    %v727 = vpop.f32.mrb[0].mxu0
    %v728 = vadd.f32 %v141, %v727
    %v729 = vpop.f32.mrb[0].mxu0
    %730 = vmatprep.mubr.bf16.mxu0 %v526
    %731 = vmatmul.mubr.bf16.gmra.mrb[0].mxu0 %v363
    %v732 = vpop.f32.mrb[0].mxu0
    %v733 = vadd.f32 %v141, %v732
    %v734 = vpop.f32.mrb[0].mxu0
    %v735 = vpop.f32.mrb[0].mxu0
    %v736 = vadd.f32 %v141, %v735
    %v737 = vpop.f32.mrb[0].mxu0
    %738 = vmatprep.mubr.bf16.mxu0 %v529
    %739 = vmatmul.mubr.bf16.gmra.mrb[0].mxu0 %v365
    %v740 = vpop.f32.mrb[0].mxu0
    %v741 = vadd.f32 %v141, %v740
    %v742 = vpop.f32.mrb[0].mxu0
    %v743 = vpop.f32.mrb[0].mxu0
    %v744 = vadd.f32 %v141, %v743
    %v745 = vpop.f32.mrb[0].mxu0
    %746 = vmatprep.mubr.bf16.mxu0 %v532
    %747 = vmatmul.mubr.bf16.gmra.mrb[0].mxu0 %v367
    %v748 = vpop.f32.mrb[0].mxu0
    %v749 = vadd.f32 %v141, %v748
    %v750 = vpop.f32.mrb[0].mxu0
    %v751 = vpop.f32.mrb[0].mxu0
    %v752 = vadd.f32 %v141, %v751
    %v753 = vpop.f32.mrb[0].mxu0
    %754 = vmatprep.mubr.bf16.mxu0 %v535
    %755 = vmatmul.mubr.bf16.gmra.mrb[0].mxu0 %v369
    %v756 = vpop.f32.mrb[0].mxu0
    %v757 = vadd.f32 %v141, %v756
    %v758 = vpop.f32.mrb[0].mxu0
    %v759 = vpop.f32.mrb[0].mxu0
    %v760 = vadd.f32 %v141, %v759
    %v761 = vpop.f32.mrb[0].mxu0
    %762 = vmatprep.mubr.bf16.mxu0 %v538
    %763 = vmatmul.mubr.bf16.gmra.mrb[0].mxu0 %v371
    %v764 = vpop.f32.mrb[0].mxu0
    %v765 = vadd.f32 %v141, %v764
    %v766 = vpop.f32.mrb[0].mxu0
    %v767 = vpop.f32.mrb[0].mxu0
    %v768 = vadd.f32 %v141, %v767
    %v769 = vpop.f32.mrb[0].mxu0
    %770 = vmatprep.mubr.bf16.mxu0 %v541
    %771 = vmatmul.mubr.bf16.gmra.mrb[0].mxu0 %v373
    %v772 = vpop.f32.mrb[0].mxu0
    %v773 = vadd.f32 %v141, %v772
    %v774 = vpop.f32.mrb[0].mxu0
    %v775 = vpop.f32.mrb[0].mxu0
    %v776 = vadd.f32 %v141, %v775
    %v777 = vpop.f32.mrb[0].mxu0
    %778 = vmatprep.mubr.bf16.mxu0 %v544
    %779 = vmatmul.mubr.bf16.gmra.mrb[0].mxu0 %v375
    %v780 = vpop.f32.mrb[0].mxu0
    %v781 = vadd.f32 %v141, %v780
    %v782 = vpop.f32.mrb[0].mxu0
    %v783 = vpop.f32.mrb[0].mxu0
    %v784 = vadd.f32 %v141, %v783
    %v785 = vpop.f32.mrb[0].mxu0
    %786 = vmatprep.mubr.bf16.mxu0 %v547
    %787 = vmatmul.mubr.bf16.gmra.mrb[0].mxu0 %v377
    %v788 = vpop.f32.mrb[0].mxu0
    %v789 = vadd.f32 %v141, %v788
    %v790 = vpop.f32.mrb[0].mxu0
    %v791 = vpop.f32.mrb[0].mxu0
    %v792 = vadd.f32 %v141, %v791
    %v793 = vpop.f32.mrb[0].mxu0
    %794 = vmatprep.mubr.bf16.mxu0 %v550
    %795 = vmatmul.mubr.bf16.gmra.mrb[0].mxu0 %v379
    %v796 = vpop.f32.mrb[0].mxu0
    %v797 = vadd.f32 %v141, %v796
    %v798 = vpop.f32.mrb[0].mxu0
    %v799 = vpop.f32.mrb[0].mxu0
    %v800 = vadd.f32 %v141, %v799
    %v801 = vpop.f32.mrb[0].mxu0
    %802 = vmatprep.mubr.bf16.mxu0 %v553
    %803 = vmatmul.mubr.bf16.gmra.mrb[0].mxu0 %v381
    %v804 = vpop.f32.mrb[0].mxu0
    %v805 = vadd.f32 %v141, %v804
    %v806 = vpop.f32.mrb[0].mxu0
    %v807 = vpop.f32.mrb[0].mxu0
    %v808 = vadd.f32 %v141, %v807
    %v809 = vpop.f32.mrb[0].mxu0
    %810 = vmatprep.mubr.bf16.mxu0 %v556
    %811 = vmatmul.mubr.bf16.gmra.mrb[0].mxu0 %v383
    %v812 = vpop.f32.mrb[0].mxu0
    %v813 = vadd.f32 %v141, %v812
    %v814 = vpop.f32.mrb[0].mxu0
    %v815 = vpop.f32.mrb[0].mxu0
    %v816 = vadd.f32 %v141, %v815
    %v817 = vpop.f32.mrb[0].mxu0
    %818 = vmatprep.mubr.bf16.mxu0 %v559
    %819 = vmatmul.mubr.bf16.gmra.mrb[0].mxu0 %v385
    %v820 = vpop.f32.mrb[0].mxu0
    %v821 = vadd.f32 %v141, %v820
    %v822 = vpop.f32.mrb[0].mxu0
    %v823 = vpop.f32.mrb[0].mxu0
    %v824 = vadd.f32 %v141, %v823
    %v825 = vpop.f32.mrb[0].mxu0
    %826 = vmatprep.mubr.bf16.mxu0 %v562
    %827 = vmatmul.mubr.bf16.gmra.mrb[0].mxu0 %v387
    %v828 = vpop.f32.mrb[0].mxu0
    %v829 = vadd.f32 %v141, %v828
    %v830 = vpop.f32.mrb[0].mxu0
    %v831 = vpop.f32.mrb[0].mxu0
    %v832 = vadd.f32 %v141, %v831
    %v833 = vpop.f32.mrb[0].mxu0
    %834 = vmatprep.mubr.bf16.mxu0 %v565
    %835 = vmatmul.mubr.bf16.gmra.mrb[0].mxu0 %v389
    %v836 = vpop.f32.mrb[0].mxu0
    %v837 = vadd.f32 %v141, %v836
    %v838 = vpop.f32.mrb[0].mxu0
    %v839 = vpop.f32.mrb[0].mxu0
    %v840 = vadd.f32 %v141, %v839
    %v841 = vpop.f32.mrb[0].mxu0
    %842 = vmatprep.mubr.bf16.mxu0 %v568
    %843 = vmatmul.mubr.bf16.gmra.mrb[0].mxu0 %v391
    %v844 = vpop.f32.mrb[0].mxu0
    %v845 = vadd.f32 %v141, %v844
    %v846 = vpop.f32.mrb[0].mxu0
    %v847 = vpop.f32.mrb[0].mxu0
    %v848 = vadd.f32 %v141, %v847
    %v849 = vpop.f32.mrb[0].mxu0
    %850 = vmatprep.mubr.bf16.mxu0 %v571
    %851 = vmatmul.mubr.bf16.gmra.mrb[0].mxu0 %v393
    %v852 = vpop.f32.mrb[0].mxu0
    %v853 = vadd.f32 %v141, %v852
    %v854 = vpop.f32.mrb[0].mxu0
    %v855 = vpop.f32.mrb[0].mxu0
    %v856 = vadd.f32 %v141, %v855
    %v857 = vpop.f32.mrb[0].mxu0
    %858 = vmatprep.mubr.bf16.mxu0 %v574
    %859 = vmatmul.mubr.bf16.gmra.mrb[0].mxu0 %v395
    %v860 = vpop.f32.mrb[0].mxu0
    %v861 = vadd.f32 %v141, %v860
    %v862 = vpop.f32.mrb[0].mxu0
    %v863 = vpop.f32.mrb[0].mxu0
    %v864 = vadd.f32 %v141, %v863
    %v865 = vpop.f32.mrb[0].mxu0
    %866 = vmatprep.mubr.bf16.mxu0 %v577
    %867 = vmatmul.mubr.bf16.gmra.mrb[0].mxu0 %v397
    %v868 = vpop.f32.mrb[0].mxu0
    %v869 = vadd.f32 %v141, %v868
    %v870 = vpop.f32.mrb[0].mxu0
    %v871 = vpop.f32.mrb[0].mxu0
    %v872 = vadd.f32 %v141, %v871
    %v873 = vpop.f32.mrb[0].mxu0
    %874 = vdwg.mxu0
    %vm875 = vcmp.ge.f32.partialorder %v621, 0.0
    %vm876 = vcmp.ge.f32.partialorder %v624, 0.0
    %vm877 = vcmp.ge.f32.partialorder %v629, 0.0
    %vm878 = vcmp.ge.f32.partialorder %v632, 0.0
    %vm879 = vcmp.ge.f32.partialorder %v637, 0.0
    %vm880 = vcmp.ge.f32.partialorder %v640, 0.0
    %vm881 = vcmp.ge.f32.partialorder %v645, 0.0
    %vm882 = vcmp.ge.f32.partialorder %v648, 0.0
    %vm883 = vcmp.ge.f32.partialorder %v653, 0.0
    %vm884 = vcmp.ge.f32.partialorder %v656, 0.0
    %vm885 = vcmp.ge.f32.partialorder %v661, 0.0
    %vm886 = vcmp.ge.f32.partialorder %v664, 0.0
    %vm887 = vcmp.ge.f32.partialorder %v669, 0.0
    %vm888 = vcmp.ge.f32.partialorder %v672, 0.0
    %vm889 = vcmp.ge.f32.partialorder %v677, 0.0
    %vm890 = vcmp.ge.f32.partialorder %v680, 0.0
    %vm891 = vcmp.ge.f32.partialorder %v685, 0.0
    %vm892 = vcmp.ge.f32.partialorder %v688, 0.0
    %vm893 = vcmp.ge.f32.partialorder %v693, 0.0
    %vm894 = vcmp.ge.f32.partialorder %v696, 0.0
    %vm895 = vcmp.ge.f32.partialorder %v701, 0.0
    %vm896 = vcmp.ge.f32.partialorder %v704, 0.0
    %vm897 = vcmp.ge.f32.partialorder %v709, 0.0
    %vm898 = vcmp.ge.f32.partialorder %v712, 0.0
    %vm899 = vcmp.ge.f32.partialorder %v717, 0.0
    %vm900 = vcmp.ge.f32.partialorder %v720, 0.0
    %vm901 = vcmp.ge.f32.partialorder %v725, 0.0
    %vm902 = vcmp.ge.f32.partialorder %v728, 0.0
    %vm903 = vcmp.ge.f32.partialorder %v733, 0.0
    %vm904 = vcmp.ge.f32.partialorder %v736, 0.0
    %vm905 = vcmp.ge.f32.partialorder %v741, 0.0
    %vm906 = vcmp.ge.f32.partialorder %v744, 0.0
    %vm907 = vcmp.ge.f32.partialorder %v749, 0.0
    %vm908 = vcmp.ge.f32.partialorder %v752, 0.0
    %vm909 = vcmp.ge.f32.partialorder %v757, 0.0
    %vm910 = vcmp.ge.f32.partialorder %v760, 0.0
    %vm911 = vcmp.ge.f32.partialorder %v765, 0.0
    %vm912 = vcmp.ge.f32.partialorder %v768, 0.0
    %vm913 = vcmp.ge.f32.partialorder %v773, 0.0
    %vm914 = vcmp.ge.f32.partialorder %v776, 0.0
    %vm915 = vcmp.ge.f32.partialorder %v781, 0.0
    %vm916 = vcmp.ge.f32.partialorder %v784, 0.0
    %vm917 = vcmp.ge.f32.partialorder %v789, 0.0
    %vm918 = vcmp.ge.f32.partialorder %v792, 0.0
    %vm919 = vcmp.ge.f32.partialorder %v797, 0.0
    %vm920 = vcmp.ge.f32.partialorder %v800, 0.0
    %vm921 = vcmp.ge.f32.partialorder %v805, 0.0
    %vm922 = vcmp.ge.f32.partialorder %v808, 0.0
    %vm923 = vcmp.ge.f32.partialorder %v813, 0.0
    %vm924 = vcmp.ge.f32.partialorder %v816, 0.0
    %vm925 = vcmp.ge.f32.partialorder %v821, 0.0
    %vm926 = vcmp.ge.f32.partialorder %v824, 0.0
    %vm927 = vcmp.ge.f32.partialorder %v829, 0.0
    %vm928 = vcmp.ge.f32.partialorder %v832, 0.0
    %vm929 = vcmp.ge.f32.partialorder %v837, 0.0
    %vm930 = vcmp.ge.f32.partialorder %v840, 0.0
    %vm931 = vcmp.ge.f32.partialorder %v845, 0.0
    %vm932 = vcmp.ge.f32.partialorder %v848, 0.0
    %vm933 = vcmp.ge.f32.partialorder %v853, 0.0
    %vm934 = vcmp.ge.f32.partialorder %v856, 0.0
    %vm935 = vcmp.ge.f32.partialorder %v861, 0.0
    %vm936 = vcmp.ge.f32.partialorder %v864, 0.0
    %vm937 = vcmp.ge.f32.partialorder %v869, 0.0
    %vm938 = vcmp.ge.f32.partialorder %v872, 0.0
    %v939 = vmul.f32 %v621, 0.2
    %v940 = vmul.f32 %v624, 0.2
    %v941 = vmul.f32 %v629, 0.2
    %v942 = vmul.f32 %v632, 0.2
    %v943 = vmul.f32 %v637, 0.2
    %v944 = vmul.f32 %v640, 0.2
    %v945 = vmul.f32 %v645, 0.2
    %v946 = vmul.f32 %v648, 0.2
    %v947 = vmul.f32 %v653, 0.2
    %v948 = vmul.f32 %v656, 0.2
    %v949 = vmul.f32 %v661, 0.2
    %v950 = vmul.f32 %v664, 0.2
    %v951 = vmul.f32 %v669, 0.2
    %v952 = vmul.f32 %v672, 0.2
    %v953 = vmul.f32 %v677, 0.2
    %v954 = vmul.f32 %v680, 0.2
    %v955 = vmul.f32 %v685, 0.2
    %v956 = vmul.f32 %v688, 0.2
    %v957 = vmul.f32 %v693, 0.2
    %v958 = vmul.f32 %v696, 0.2
    %v959 = vmul.f32 %v701, 0.2
    %v960 = vmul.f32 %v704, 0.2
    %v961 = vmul.f32 %v709, 0.2
    %v962 = vmul.f32 %v712, 0.2
    %v963 = vmul.f32 %v717, 0.2
    %v964 = vmul.f32 %v720, 0.2
    %v965 = vmul.f32 %v725, 0.2
    %v966 = vmul.f32 %v728, 0.2
    %v967 = vmul.f32 %v733, 0.2
    %v968 = vmul.f32 %v736, 0.2
    %v969 = vmul.f32 %v741, 0.2
    %v970 = vmul.f32 %v744, 0.2
    %v971 = vmul.f32 %v749, 0.2
    %v972 = vmul.f32 %v752, 0.2
    %v973 = vmul.f32 %v757, 0.2
    %v974 = vmul.f32 %v760, 0.2
    %v975 = vmul.f32 %v765, 0.2
    %v976 = vmul.f32 %v768, 0.2
    %v977 = vmul.f32 %v773, 0.2
    %v978 = vmul.f32 %v776, 0.2
    %v979 = vmul.f32 %v781, 0.2
    %v980 = vmul.f32 %v784, 0.2
    %v981 = vmul.f32 %v789, 0.2
    %v982 = vmul.f32 %v792, 0.2
    %v983 = vmul.f32 %v797, 0.2
    %v984 = vmul.f32 %v800, 0.2
    %v985 = vmul.f32 %v805, 0.2
    %v986 = vmul.f32 %v808, 0.2
    %v987 = vmul.f32 %v813, 0.2
    %v988 = vmul.f32 %v816, 0.2
    %v989 = vmul.f32 %v821, 0.2
    %v990 = vmul.f32 %v824, 0.2
    %v991 = vmul.f32 %v829, 0.2
    %v992 = vmul.f32 %v832, 0.2
    %v993 = vmul.f32 %v837, 0.2
    %v994 = vmul.f32 %v840, 0.2
    %v995 = vmul.f32 %v845, 0.2
    %v996 = vmul.f32 %v848, 0.2
    %v997 = vmul.f32 %v853, 0.2
    %v998 = vmul.f32 %v856, 0.2
    %v999 = vmul.f32 %v861, 0.2
    %v1000 = vmul.f32 %v864, 0.2
    %v1001 = vmul.f32 %v869, 0.2
    %v1002 = vmul.f32 %v872, 0.2
    %v1003 = vsel %vm875, %v621, %v939
    %v1004 = vsel %vm876, %v624, %v940
    %v1005 = vsel %vm877, %v629, %v941
    %v1006 = vsel %vm878, %v632, %v942
    %v1007 = vsel %vm879, %v637, %v943
    %v1008 = vsel %vm880, %v640, %v944
    %v1009 = vsel %vm881, %v645, %v945
    %v1010 = vsel %vm882, %v648, %v946
    %v1011 = vsel %vm883, %v653, %v947
    %v1012 = vsel %vm884, %v656, %v948
    %v1013 = vsel %vm885, %v661, %v949
    %v1014 = vsel %vm886, %v664, %v950
    %v1015 = vsel %vm887, %v669, %v951
    %v1016 = vsel %vm888, %v672, %v952
    %v1017 = vsel %vm889, %v677, %v953
    %v1018 = vsel %vm890, %v680, %v954
    %v1019 = vsel %vm891, %v685, %v955
    %v1020 = vsel %vm892, %v688, %v956
    %v1021 = vsel %vm893, %v693, %v957
    %v1022 = vsel %vm894, %v696, %v958
    %v1023 = vsel %vm895, %v701, %v959
    %v1024 = vsel %vm896, %v704, %v960
    %v1025 = vsel %vm897, %v709, %v961
    %v1026 = vsel %vm898, %v712, %v962
    %v1027 = vsel %vm899, %v717, %v963
    %v1028 = vsel %vm900, %v720, %v964
    %v1029 = vsel %vm901, %v725, %v965
    %v1030 = vsel %vm902, %v728, %v966
    %v1031 = vsel %vm903, %v733, %v967
    %v1032 = vsel %vm904, %v736, %v968
    %v1033 = vsel %vm905, %v741, %v969
    %v1034 = vsel %vm906, %v744, %v970
    %v1035 = vsel %vm907, %v749, %v971
    %v1036 = vsel %vm908, %v752, %v972
    %v1037 = vsel %vm909, %v757, %v973
    %v1038 = vsel %vm910, %v760, %v974
    %v1039 = vsel %vm911, %v765, %v975
    %v1040 = vsel %vm912, %v768, %v976
    %v1041 = vsel %vm913, %v773, %v977
    %v1042 = vsel %vm914, %v776, %v978
    %v1043 = vsel %vm915, %v781, %v979
    %v1044 = vsel %vm916, %v784, %v980
    %v1045 = vsel %vm917, %v789, %v981
    %v1046 = vsel %vm918, %v792, %v982
    %v1047 = vsel %vm919, %v797, %v983
    %v1048 = vsel %vm920, %v800, %v984
    %v1049 = vsel %vm921, %v805, %v985
    %v1050 = vsel %vm922, %v808, %v986
    %v1051 = vsel %vm923, %v813, %v987
    %v1052 = vsel %vm924, %v816, %v988
    %v1053 = vsel %vm925, %v821, %v989
    %v1054 = vsel %vm926, %v824, %v990
    %v1055 = vsel %vm927, %v829, %v991
    %v1056 = vsel %vm928, %v832, %v992
    %v1057 = vsel %vm929, %v837, %v993
    %v1058 = vsel %vm930, %v840, %v994
    %v1059 = vsel %vm931, %v845, %v995
    %v1060 = vsel %vm932, %v848, %v996
    %v1061 = vsel %vm933, %v853, %v997
    %v1062 = vsel %vm934, %v856, %v998
    %v1063 = vsel %vm935, %v861, %v999
    %v1064 = vsel %vm936, %v864, %v1000
    %v1065 = vsel %vm937, %v869, %v1001
    %v1066 = vsel %vm938, %v872, %v1002
    %1067 = vst [vmem:[#allocation8] sm:$0xff] %v1003
    %1068 = vst [vmem:[#allocation8 + $0x8] sm:$0xff] %v1004
    %1069 = vst [vmem:[#allocation8 + $0x10] sm:$0xff] %v1005
    %1070 = vst [vmem:[#allocation8 + $0x18] sm:$0xff] %v1006
    %1071 = vst [vmem:[#allocation8 + $0x20] sm:$0xff] %v1007
    %1072 = vst [vmem:[#allocation8 + $0x28] sm:$0xff] %v1008
    %1073 = vst [vmem:[#allocation8 + $0x30] sm:$0xff] %v1009
    %1074 = vst [vmem:[#allocation8 + $0x38] sm:$0xff] %v1010
    %1075 = vst [vmem:[#allocation8 + $0x40] sm:$0xff] %v1011
    %1076 = vst [vmem:[#allocation8 + $0x48] sm:$0xff] %v1012
    %1077 = vst [vmem:[#allocation8 + $0x50] sm:$0xff] %v1013
    %1078 = vst [vmem:[#allocation8 + $0x58] sm:$0xff] %v1014
    %1079 = vst [vmem:[#allocation8 + $0x60] sm:$0xff] %v1015
    %1080 = vst [vmem:[#allocation8 + $0x68] sm:$0xff] %v1016
    %1081 = vst [vmem:[#allocation8 + $0x70] sm:$0xff] %v1017
    %1082 = vst [vmem:[#allocation8 + $0x78] sm:$0xff] %v1018
    %1083 = vst [vmem:[#allocation8 + $0x80] sm:$0xff] %v1019
    %1084 = vst [vmem:[#allocation8 + $0x88] sm:$0xff] %v1020
    %1085 = vst [vmem:[#allocation8 + $0x90] sm:$0xff] %v1021
    %1086 = vst [vmem:[#allocation8 + $0x98] sm:$0xff] %v1022
    %1087 = vst [vmem:[#allocation8 + $0xa0] sm:$0xff] %v1023
    %1088 = vst [vmem:[#allocation8 + $0xa8] sm:$0xff] %v1024
    %1089 = vst [vmem:[#allocation8 + $0xb0] sm:$0xff] %v1025
    %1090 = vst [vmem:[#allocation8 + $0xb8] sm:$0xff] %v1026
    %1091 = vst [vmem:[#allocation8 + $0xc0] sm:$0xff] %v1027
    %1092 = vst [vmem:[#allocation8 + $0xc8] sm:$0xff] %v1028
    %1093 = vst [vmem:[#allocation8 + $0xd0] sm:$0xff] %v1029
    %1094 = vst [vmem:[#allocation8 + $0xd8] sm:$0xff] %v1030
    %1095 = vst [vmem:[#allocation8 + $0xe0] sm:$0xff] %v1031
    %1096 = vst [vmem:[#allocation8 + $0xe8] sm:$0xff] %v1032
    %1097 = vst [vmem:[#allocation8 + $0xf0] sm:$0xff] %v1033
    %1098 = vst [vmem:[#allocation8 + $0xf8] sm:$0xff] %v1034
    %1099 = vst [vmem:[#allocation8 + $0x100] sm:$0xff] %v1035
    %1100 = vst [vmem:[#allocation8 + $0x108] sm:$0xff] %v1036
    %1101 = vst [vmem:[#allocation8 + $0x110] sm:$0xff] %v1037
    %1102 = vst [vmem:[#allocation8 + $0x118] sm:$0xff] %v1038
    %1103 = vst [vmem:[#allocation8 + $0x120] sm:$0xff] %v1039
    %1104 = vst [vmem:[#allocation8 + $0x128] sm:$0xff] %v1040
    %1105 = vst [vmem:[#allocation8 + $0x130] sm:$0xff] %v1041
    %1106 = vst [vmem:[#allocation8 + $0x138] sm:$0xff] %v1042
    %1107 = vst [vmem:[#allocation8 + $0x140] sm:$0xff] %v1043
    %1108 = vst [vmem:[#allocation8 + $0x148] sm:$0xff] %v1044
    %1109 = vst [vmem:[#allocation8 + $0x150] sm:$0xff] %v1045
    %1110 = vst [vmem:[#allocation8 + $0x158] sm:$0xff] %v1046
    %1111 = vst [vmem:[#allocation8 + $0x160] sm:$0xff] %v1047
    %1112 = vst [vmem:[#allocation8 + $0x168] sm:$0xff] %v1048
    %1113 = vst [vmem:[#allocation8 + $0x170] sm:$0xff] %v1049
    %1114 = vst [vmem:[#allocation8 + $0x178] sm:$0xff] %v1050
    %1115 = vst [vmem:[#allocation8 + $0x180] sm:$0xff] %v1051
    %1116 = vst [vmem:[#allocation8 + $0x188] sm:$0xff] %v1052
    %1117 = vst [vmem:[#allocation8 + $0x190] sm:$0xff] %v1053
    %1118 = vst [vmem:[#allocation8 + $0x198] sm:$0xff] %v1054
    %1119 = vst [vmem:[#allocation8 + $0x1a0] sm:$0xff] %v1055
    %1120 = vst [vmem:[#allocation8 + $0x1a8] sm:$0xff] %v1056
    %1121 = vst [vmem:[#allocation8 + $0x1b0] sm:$0xff] %v1057
    %1122 = vst [vmem:[#allocation8 + $0x1b8] sm:$0xff] %v1058
    %1123 = vst [vmem:[#allocation8 + $0x1c0] sm:$0xff] %v1059
    %1124 = vst [vmem:[#allocation8 + $0x1c8] sm:$0xff] %v1060
    %1125 = vst [vmem:[#allocation8 + $0x1d0] sm:$0xff] %v1061
    %1126 = vst [vmem:[#allocation8 + $0x1d8] sm:$0xff] %v1062
    %1127 = vst [vmem:[#allocation8 + $0x1e0] sm:$0xff] %v1063
    %1128 = vst [vmem:[#allocation8 + $0x1e8] sm:$0xff] %v1064
    %1129 = vst [vmem:[#allocation8 + $0x1f0] sm:$0xff] %v1065
    %1130 = vst [vmem:[#allocation8 + $0x1f8] sm:$0xff] %v1066
    // Predicated region
    $region26: #{stargan_generator_forward.31} parent=1 // pred_check
      _
    $region27: #{stargan_generator_forward.31} parent=1 // pred_check_branch
      %1132 = sbr.rel (0) target = $region29
    $region28: #{stargan_generator_forward.31} parent=1 // pred_region
      %s1134 = ssub.s32 8192, 8192
      %1135 = vsyncadd [#allocation4], %s1134
      %s1136 = sshll.u32 [#allocation8], 4
      %s1137 = int_to_ptr.vmem [resolvable:$true] %s1136
      %1142 = dma.vmem_to_hbm [thread:$0]  %s1137, 8192, %s3, [#allocation4], 128, 128, 8
    $region29: #{stargan_generator_forward.31} parent=1 // pred_fallthru
      _
    // Predicated region
    $region30: #{stargan_generator_forward.31} parent=1 // pred_check
      _
    $region31: #{stargan_generator_forward.31} parent=1 // pred_check_branch
      %1144 = sbr.rel (0) target = $region33
    $region32: #{stargan_generator_forward.31} parent=1 // pred_region
      %1145 = dma.done [#allocation4], 8192
    $region33: #{stargan_generator_forward.31} parent=1 // pred_fallthru
      _
    %1146 = vsyncpa [#allocation3], 1
    %1147 = vsyncpa [#allocation6], 1
    %1148 = vsyncpa [#allocation4], 1

</llo_original>
